<compile_context>
chip_gen: v7x
topology: tpu7x:2x2x1
jax: 0.10.0
libtpu: 0.0.40
codegen_flags: <defaults>
</compile_context>

<pallas_src>
import math

import jax
import jax.numpy as jnp
from jax.experimental import pallas as pl
from jax.experimental.pallas import tpu as pltpu


def _gfft_kernel(x_ref, b_ref, o_ref):
    # x_ref: (TM, input_dim)  b_ref: (input_dim, half)  o_ref: (TM, 2*half)
    # 2*pi is already folded into b_ref by the wrapper.
    xt = jnp.dot(x_ref[...], b_ref[...], preferred_element_type=jnp.float32)
    half = xt.shape[-1]
    o_ref[:, :half] = jnp.sin(xt).astype(o_ref.dtype)
    o_ref[:, half:] = jnp.cos(xt).astype(o_ref.dtype)


def _round_up(v, m):
    return ((v + m - 1) // m) * m


def gaussian_fourier_feature_transform(x, b_param, *, tm=1024, out_dtype=jnp.float32):
    """x: [N, input_dim] f32, b_param: [input_dim, mapping_dim//2] f32 (already
    scaled by `scale`). Returns [N, mapping_dim] in out_dtype."""
    n, input_dim = x.shape
    in_dim_b, half = b_param.shape
    assert in_dim_b == input_dim
    mapping_dim = 2 * half

    # Fold the 2*pi scale into the (tiny, grid-resident) projection matrix once,
    # outside the N loop -- removes a (tm x half) VALU multiply per grid step.
    b_scaled = ((2.0 * math.pi) * b_param).astype(jnp.float32)

    # Clamp the row tile to the problem size (rounded to the sublane multiple)
    # so small inputs don't get padded all the way to `tm`.
    tm_eff = min(tm, _round_up(n, 8))
    n_pad = _round_up(n, tm_eff)
    x_p = jnp.pad(x, ((0, n_pad - n), (0, 0))) if n_pad != n else x

    grid = (n_pad // tm_eff,)

    cost = pl.CostEstimate(
        flops=2 * n_pad * input_dim * half,
        transcendentals=n_pad * mapping_dim,  # one sin + one cos per output elem
        bytes_accessed=n_pad * (4 * input_dim + jnp.dtype(out_dtype).itemsize * mapping_dim)
        + 4 * input_dim * half,
    )

    out = pl.pallas_call(
        _gfft_kernel,
        out_shape=jax.ShapeDtypeStruct((n_pad, mapping_dim), out_dtype),
        grid_spec=pltpu.PrefetchScalarGridSpec(
            num_scalar_prefetch=0,
            grid=grid,
            in_specs=[
                # x tile: (tm_eff, input_dim) -- last dim equals full array dim
                pl.BlockSpec((tm_eff, input_dim), lambda i: (i, 0)),
                # projection matrix: full block, resident across every step
                pl.BlockSpec((input_dim, half), lambda i: (0, 0)),
            ],
            out_specs=pl.BlockSpec((tm_eff, mapping_dim), lambda i: (i, 0)),
        ),
        compiler_params=pltpu.CompilerParams(
            dimension_semantics=("parallel",),
        ),
        cost_estimate=cost,
    )(x_p, b_scaled)

    return out[:n] if n_pad != n else out


def reference_gfft(x, b_param):
    xt = 2.0 * math.pi * (x @ b_param)
    return jnp.concatenate([jnp.sin(xt), jnp.cos(xt)], axis=-1)


if __name__ == "__main__":
    # Module config (type='gauss'): input_dim=2 (pixel coords), mapping_dim=256,
    # scale=10. Deterministic parameter init standing in for torch.randn.
    input_dim = 2
    mapping_dim = 256
    scale = 10.0

    key = jax.random.PRNGKey(0)
    k_param, k_x1, k_x2 = jax.random.split(key, 3)

    # preprocessing_param = randn(input_dim, mapping_dim // 2) * scale
    b_param = (
        jax.random.normal(k_param, (input_dim, mapping_dim // 2), dtype=jnp.float32)
        * scale
    )

    # Test 1: flattened 16x16 grid of 2D coordinates in [0, 1) -> [256, 2]
    side = 16
    coords = jnp.stack(
        jnp.meshgrid(
            jnp.linspace(0.0, 1.0, side, endpoint=False),
            jnp.linspace(0.0, 1.0, side, endpoint=False),
            indexing="ij",
        ),
        axis=-1,
    ).reshape(-1, input_dim).astype(jnp.float32)
    x1 = coords + 0.01 * jax.random.normal(k_x1, coords.shape, dtype=jnp.float32)

    out1 = jax.block_until_ready(gaussian_fourier_feature_transform(x1, b_param))
    ref1 = jax.block_until_ready(reference_gfft(x1, b_param))
    assert out1.shape == (side * side, mapping_dim), out1.shape
    assert jnp.allclose(out1, ref1, atol=1e-4, rtol=1e-4), float(
        jnp.max(jnp.abs(out1 - ref1))
    )

    # Test 2: N not a multiple of 8 / the tile -> exercises the padding path.
    n_odd = 10 * 13  # 130 rows
    x2 = jax.random.uniform(k_x2, (n_odd, input_dim), dtype=jnp.float32)
    out2 = jax.block_until_ready(gaussian_fourier_feature_transform(x2, b_param))
    ref2 = jax.block_until_ready(reference_gfft(x2, b_param))
    assert out2.shape == (n_odd, mapping_dim), out2.shape
    assert jnp.allclose(out2, ref2, atol=1e-4, rtol=1e-4), float(
        jnp.max(jnp.abs(out2 - ref2))
    )

    print("KERNEL_OK")
</pallas_src>

<mosaic_0001>
module attributes {stable_mosaic.version = 11 : i64} {
  func.func @_gfft_kernel(%arg0: i32, %arg1: memref<256x2xf32, #tpu.memory_space<vmem>>, %arg2: memref<2x128xf32, #tpu.memory_space<vmem>>, %arg3: memref<256x256xf32, #tpu.memory_space<vmem>>) attributes {dimension_semantics = [#tpu.dimension_semantics<parallel>], iteration_bounds = array<i64: 1>, scalar_prefetch = 0 : i64, scratch_operands = 0 : i64, tpu.core_type = #tpu.core_type<tc>, window_params = [{transform_indices = @transform_0, window_bounds = array<i64: 256, 2>}, {pipeline_mode = #tpu.pipeline_mode<synchronous>, transform_indices = @transform_1, window_bounds = array<i64: 2, 128>}, {transform_indices = @transform_2, window_bounds = array<i64: 256, 256>}]} {
    %c0 = arith.constant 0 : index
    %c0_0 = arith.constant 0 : index
    %0 = vector.load %arg1[%c0, %c0_0] : memref<256x2xf32, #tpu.memory_space<vmem>>, vector<256x2xf32>
    %c0_1 = arith.constant 0 : index
    %c0_2 = arith.constant 0 : index
    %1 = vector.load %arg2[%c0_1, %c0_2] : memref<2x128xf32, #tpu.memory_space<vmem>>, vector<2x128xf32>
    %cst = arith.constant dense<0.000000e+00> : vector<256x128xf32>
    %2 = tpu.matmul %0, %1, %cst {dimension_numbers = #tpu.dot_dimension_numbers<[1], [0], [0], [1], [0, 0, 1, 1], [], []>} : vector<256x2xf32>, vector<2x128xf32>, vector<256x128xf32> -> vector<256x128xf32>
    %3 = math.sin %2 : vector<256x128xf32>
    %c0_3 = arith.constant 0 : index
    %c0_4 = arith.constant 0 : index
    %4 = vector.load %arg3[%c0_3, %c0_4] : memref<256x256xf32, #tpu.memory_space<vmem>>, vector<256x128xf32>
    tpu.vector_store %arg3[%c0_3, %c0_4], %3 {strides = array<i32>} : memref<256x256xf32, #tpu.memory_space<vmem>>, vector<256x128xf32>,
    %5 = math.cos %2 : vector<256x128xf32>
    %c0_5 = arith.constant 0 : index
    %c128 = arith.constant 128 : index
    %6 = vector.load %arg3[%c0_5, %c128] : memref<256x256xf32, #tpu.memory_space<vmem>>, vector<256x128xf32>
    tpu.vector_store %arg3[%c0_5, %c128], %5 {strides = array<i32>} : memref<256x256xf32, #tpu.memory_space<vmem>>, vector<256x128xf32>,
    return
  }
  func.func @transform_0(%arg0: i32) -> (i32, i32) {
    %c0_i32 = arith.constant 0 : i32
    %c0_i32_0 = arith.constant 0 : i32
    return %arg0, %c0_i32 : i32, i32
  }
  func.func @transform_1(%arg0: i32) -> (i32, i32) {
    %c0_i32 = arith.constant 0 : i32
    %c0_i32_0 = arith.constant 0 : i32
    %c0_i32_1 = arith.constant 0 : i32
    return %c0_i32, %c0_i32_0 : i32, i32
  }
  func.func @transform_2(%arg0: i32) -> (i32, i32) {
    %c0_i32 = arith.constant 0 : i32
    %c0_i32_0 = arith.constant 0 : i32
    return %arg0, %c0_i32 : i32, i32
  }
}

</mosaic_0001>

<llo_original>
// kernel: tpu_custom_call.1
$region0: #{tpu_custom_call.1}
  #allocation0 [shape = 'u32[]', space=smem, size = 0x4, offset = 0x4, fixed_abs, tag = 'smem constant byte address 0x4 - core index']
  #allocation1 [shape = 'u32[144,128]{1,0:T(1,128)}', space=vmem, size = 0x12000, scoped, tag = 'internal scratch']
  %s0 = inlined_call_operand.vmem [shape: f32[256,2], index: 0, kind: input, shape index: {}]
  %s1 = inlined_call_operand.vmem [shape: f32[2,128], index: 1, kind: input, shape index: {}]
  %s2 = inlined_call_operand.hbm [shape: f32[256,256], index: 2, kind: output, shape index: {}]
  %s3 = sld [smem:[#allocation0]]
  $region18: #{tpu_custom_call.1} parent=0
    _
  %s5 = ssub.s32 1, %s3
  %s6 = scalar_select 0, %s5, %s3
  $region1: #{tpu_custom_call.1} parent=0
    #allocation2 [shape = 'u8[262144]{0}', space=vmem, size = 0x40000, scoped, tag = 'output window, operand 0, single buffered']
    #allocation3 [shape = 's32[1]{0}', space=sflag, size = 0x4, scoped, tag = 'scoped memory for tpu_custom_call.1']
    %7 = vsyncpa [#allocation3], 0
    // Predicated region
    $region2: #{tpu_custom_call.1} parent=1 // pred_check
      _
    $region3: #{tpu_custom_call.1} parent=1 // pred_check_branch
      %9 = sbr.rel (0) target = $region5
    $region4: #{tpu_custom_call.1} parent=1 // pred_region
      _
    $region5: #{tpu_custom_call.1} parent=1 // pred_fallthru
      _
    // Predicated region
    $region6: #{tpu_custom_call.1} parent=1 // pred_check
      _
    $region7: #{tpu_custom_call.1} parent=1 // pred_check_branch
      %11 = sbr.rel (0) target = $region9
    $region8: #{tpu_custom_call.1} parent=1 // pred_region
      _
    $region9: #{tpu_custom_call.1} parent=1 // pred_fallthru
      _
    %v12 = vld [vmem:[%s0] sm:$0xff]
    %v13 = vld [vmem:[%s0 + $0x8] sm:$0xff]
    %v14 = vld [vmem:[%s0 + $0x10] sm:$0xff]
    %v15 = vld [vmem:[%s0 + $0x18] sm:$0xff]
    %v16 = vld [vmem:[%s0 + $0x20] sm:$0xff]
    %v17 = vld [vmem:[%s0 + $0x28] sm:$0xff]
    %v18 = vld [vmem:[%s0 + $0x30] sm:$0xff]
    %v19 = vld [vmem:[%s0 + $0x38] sm:$0xff]
    %v20 = vld [vmem:[%s0 + $0x40] sm:$0xff]
    %v21 = vld [vmem:[%s0 + $0x48] sm:$0xff]
    %v22 = vld [vmem:[%s0 + $0x50] sm:$0xff]
    %v23 = vld [vmem:[%s0 + $0x58] sm:$0xff]
    %v24 = vld [vmem:[%s0 + $0x60] sm:$0xff]
    %v25 = vld [vmem:[%s0 + $0x68] sm:$0xff]
    %v26 = vld [vmem:[%s0 + $0x70] sm:$0xff]
    %v27 = vld [vmem:[%s0 + $0x78] sm:$0xff]
    %v28 = vld [vmem:[%s0 + $0x80] sm:$0xff]
    %v29 = vld [vmem:[%s0 + $0x88] sm:$0xff]
    %v30 = vld [vmem:[%s0 + $0x90] sm:$0xff]
    %v31 = vld [vmem:[%s0 + $0x98] sm:$0xff]
    %v32 = vld [vmem:[%s0 + $0xa0] sm:$0xff]
    %v33 = vld [vmem:[%s0 + $0xa8] sm:$0xff]
    %v34 = vld [vmem:[%s0 + $0xb0] sm:$0xff]
    %v35 = vld [vmem:[%s0 + $0xb8] sm:$0xff]
    %v36 = vld [vmem:[%s0 + $0xc0] sm:$0xff]
    %v37 = vld [vmem:[%s0 + $0xc8] sm:$0xff]
    %v38 = vld [vmem:[%s0 + $0xd0] sm:$0xff]
    %v39 = vld [vmem:[%s0 + $0xd8] sm:$0xff]
    %v40 = vld [vmem:[%s0 + $0xe0] sm:$0xff]
    %v41 = vld [vmem:[%s0 + $0xe8] sm:$0xff]
    %v42 = vld [vmem:[%s0 + $0xf0] sm:$0xff]
    %v43 = vld [vmem:[%s0 + $0xf8] sm:$0xff]
    %v44 = vld [vmem:[%s1] sm:$0x3]
    %vm45 = vcmask 15360
    %v47 = vsel %vm45, %v12, 0
    %v50 = vsel %vm45, %v13, 0
    %v53 = vsel %vm45, %v14, 0
    %v56 = vsel %vm45, %v15, 0
    %v59 = vsel %vm45, %v16, 0
    %v62 = vsel %vm45, %v17, 0
    %v65 = vsel %vm45, %v18, 0
    %v68 = vsel %vm45, %v19, 0
    %v71 = vsel %vm45, %v20, 0
    %v74 = vsel %vm45, %v21, 0
    %v77 = vsel %vm45, %v22, 0
    %v80 = vsel %vm45, %v23, 0
    %v83 = vsel %vm45, %v24, 0
    %v86 = vsel %vm45, %v25, 0
    %v89 = vsel %vm45, %v26, 0
    %v92 = vsel %vm45, %v27, 0
    %v95 = vsel %vm45, %v28, 0
    %v98 = vsel %vm45, %v29, 0
    %v101 = vsel %vm45, %v30, 0
    %v104 = vsel %vm45, %v31, 0
    %v107 = vsel %vm45, %v32, 0
    %v110 = vsel %vm45, %v33, 0
    %v113 = vsel %vm45, %v34, 0
    %v116 = vsel %vm45, %v35, 0
    %v119 = vsel %vm45, %v36, 0
    %v122 = vsel %vm45, %v37, 0
    %v125 = vsel %vm45, %v38, 0
    %v128 = vsel %vm45, %v39, 0
    %v131 = vsel %vm45, %v40, 0
    %v134 = vsel %vm45, %v41, 0
    %v137 = vsel %vm45, %v42, 0
    %v140 = vsel %vm45, %v43, 0
    %vm142 = vcmask 1041408
    %v144 = vsel %vm142, %v44, 0
    %146 = vmatprep.subr.mxu0 0.0
    %147 = vmatpush1.msra.mxu0 %v144
    %148 = vmatprep.subr.mxu0 0.0
    %149 = vmatpush1.msra.mxu0 0.0
    %150 = vmatprep.subr.mxu0 0.0
    %151 = vmatpush1.msra.mxu0 0.0
    %152 = vmatprep.subr.mxu0 0.0
    %153 = vmatpush1.msra.mxu0 0.0
    %154 = vmatprep.subr.mxu0 0.0
    %155 = vmatpush1.msra.mxu0 0.0
    %156 = vmatprep.subr.mxu0 0.0
    %157 = vmatpush1.msra.mxu0 0.0
    %158 = vmatprep.subr.mxu0 0.0
    %159 = vmatpush1.msra.mxu0 0.0
    %160 = vmatprep.subr.mxu0 0.0
    %161 = vmatpush1.msra.mxu0 0.0
    %162 = vmatprep.subr.mxu0 0.0
    %163 = vmatpush1.msra.mxu0 0.0
    %164 = vmatprep.subr.mxu0 0.0
    %165 = vmatpush1.msra.mxu0 0.0
    %166 = vmatprep.subr.mxu0 0.0
    %167 = vmatpush1.msra.mxu0 0.0
    %168 = vmatprep.subr.mxu0 0.0
    %169 = vmatpush1.msra.mxu0 0.0
    %170 = vmatprep.subr.mxu0 0.0
    %171 = vmatpush1.msra.mxu0 0.0
    %172 = vmatprep.subr.mxu0 0.0
    %173 = vmatpush1.msra.mxu0 0.0
    %174 = vmatprep.subr.mxu0 0.0
    %175 = vmatpush1.msra.mxu0 0.0
    %176 = vmatprep.subr.mxu0 0.0
    %177 = vmatpush1.msra.mxu0 0.0
    %178 = vmatprep.subr.mxu0 0.0
    %179 = vmatpush1.msra.mxu0 0.0
    %180 = vmatprep.subr.mxu0 0.0
    %181 = vmatpush1.msra.mxu0 0.0
    %182 = vmatprep.subr.mxu0 0.0
    %183 = vmatpush1.msra.mxu0 0.0
    %184 = vmatprep.subr.mxu0 0.0
    %185 = vmatpush1.msra.mxu0 0.0
    %186 = vmatprep.subr.mxu0 0.0
    %187 = vmatpush1.msra.mxu0 0.0
    %188 = vmatprep.subr.mxu0 0.0
    %189 = vmatpush1.msra.mxu0 0.0
    %190 = vmatprep.subr.mxu0 0.0
    %191 = vmatpush1.msra.mxu0 0.0
    %192 = vmatprep.subr.mxu0 0.0
    %193 = vmatpush1.msra.mxu0 0.0
    %194 = vmatprep.subr.mxu0 0.0
    %195 = vmatpush1.msra.mxu0 0.0
    %196 = vmatprep.subr.mxu0 0.0
    %197 = vmatpush1.msra.mxu0 0.0
    %198 = vmatprep.subr.mxu0 0.0
    %199 = vmatpush1.msra.mxu0 0.0
    %200 = vmatprep.subr.mxu0 0.0
    %201 = vmatpush1.msra.mxu0 0.0
    %202 = vmatprep.subr.mxu0 0.0
    %203 = vmatpush1.msra.mxu0 0.0
    %204 = vmatprep.subr.mxu0 0.0
    %205 = vmatpush1.msra.mxu0 0.0
    %206 = vmatprep.subr.mxu0 0.0
    %207 = vmatpush1.msra.mxu0 0.0
    %208 = vmatprep.subr.mxu0 0.0
    %209 = vmatpush1.msra.mxu0 0.0
    %210 = vmatprep.mubr.f32.mxu0 0.0
    %211 = vmatmul.mubr.f32.gmra.mrb[0].mxu0 %v47
    %v212 = vpop.f32.mrb[0].mxu0
    %v213 = vadd.f32 0.0, %v212
    %v214 = vpop.f32.mrb[0].mxu0
    %215 = vmatprep.mubr.f32.mxu0 0.0
    %216 = vmatmul.mubr.f32.gmra.mrb[0].mxu0 %v50
    %v217 = vpop.f32.mrb[0].mxu0
    %v218 = vadd.f32 0.0, %v217
    %v219 = vpop.f32.mrb[0].mxu0
    %220 = vmatprep.mubr.f32.mxu0 0.0
    %221 = vmatmul.mubr.f32.gmra.mrb[0].mxu0 %v53
    %v222 = vpop.f32.mrb[0].mxu0
    %v223 = vadd.f32 0.0, %v222
    %v224 = vpop.f32.mrb[0].mxu0
    %225 = vmatprep.mubr.f32.mxu0 0.0
    %226 = vmatmul.mubr.f32.gmra.mrb[0].mxu0 %v56
    %v227 = vpop.f32.mrb[0].mxu0
    %v228 = vadd.f32 0.0, %v227
    %v229 = vpop.f32.mrb[0].mxu0
    %230 = vmatprep.mubr.f32.mxu0 0.0
    %231 = vmatmul.mubr.f32.gmra.mrb[0].mxu0 %v59
    %v232 = vpop.f32.mrb[0].mxu0
    %v233 = vadd.f32 0.0, %v232
    %v234 = vpop.f32.mrb[0].mxu0
    %235 = vmatprep.mubr.f32.mxu0 0.0
    %236 = vmatmul.mubr.f32.gmra.mrb[0].mxu0 %v62
    %v237 = vpop.f32.mrb[0].mxu0
    %v238 = vadd.f32 0.0, %v237
    %v239 = vpop.f32.mrb[0].mxu0
    %240 = vmatprep.mubr.f32.mxu0 0.0
    %241 = vmatmul.mubr.f32.gmra.mrb[0].mxu0 %v65
    %v242 = vpop.f32.mrb[0].mxu0
    %v243 = vadd.f32 0.0, %v242
    %v244 = vpop.f32.mrb[0].mxu0
    %245 = vmatprep.mubr.f32.mxu0 0.0
    %246 = vmatmul.mubr.f32.gmra.mrb[0].mxu0 %v68
    %v247 = vpop.f32.mrb[0].mxu0
    %v248 = vadd.f32 0.0, %v247
    %v249 = vpop.f32.mrb[0].mxu0
    %250 = vmatprep.mubr.f32.mxu0 0.0
    %251 = vmatmul.mubr.f32.gmra.mrb[0].mxu0 %v71
    %v252 = vpop.f32.mrb[0].mxu0
    %v253 = vadd.f32 0.0, %v252
    %v254 = vpop.f32.mrb[0].mxu0
    %255 = vmatprep.mubr.f32.mxu0 0.0
    %256 = vmatmul.mubr.f32.gmra.mrb[0].mxu0 %v74
    %v257 = vpop.f32.mrb[0].mxu0
    %v258 = vadd.f32 0.0, %v257
    %v259 = vpop.f32.mrb[0].mxu0
    %260 = vmatprep.mubr.f32.mxu0 0.0
    %261 = vmatmul.mubr.f32.gmra.mrb[0].mxu0 %v77
    %v262 = vpop.f32.mrb[0].mxu0
    %v263 = vadd.f32 0.0, %v262
    %v264 = vpop.f32.mrb[0].mxu0
    %265 = vmatprep.mubr.f32.mxu0 0.0
    %266 = vmatmul.mubr.f32.gmra.mrb[0].mxu0 %v80
    %v267 = vpop.f32.mrb[0].mxu0
    %v268 = vadd.f32 0.0, %v267
    %v269 = vpop.f32.mrb[0].mxu0
    %270 = vmatprep.mubr.f32.mxu0 0.0
    %271 = vmatmul.mubr.f32.gmra.mrb[0].mxu0 %v83
    %v272 = vpop.f32.mrb[0].mxu0
    %v273 = vadd.f32 0.0, %v272
    %v274 = vpop.f32.mrb[0].mxu0
    %275 = vmatprep.mubr.f32.mxu0 0.0
    %276 = vmatmul.mubr.f32.gmra.mrb[0].mxu0 %v86
    %v277 = vpop.f32.mrb[0].mxu0
    %v278 = vadd.f32 0.0, %v277
    %v279 = vpop.f32.mrb[0].mxu0
    %280 = vmatprep.mubr.f32.mxu0 0.0
    %281 = vmatmul.mubr.f32.gmra.mrb[0].mxu0 %v89
    %v282 = vpop.f32.mrb[0].mxu0
    %v283 = vadd.f32 0.0, %v282
    %v284 = vpop.f32.mrb[0].mxu0
    %285 = vmatprep.mubr.f32.mxu0 0.0
    %286 = vmatmul.mubr.f32.gmra.mrb[0].mxu0 %v92
    %v287 = vpop.f32.mrb[0].mxu0
    %v288 = vadd.f32 0.0, %v287
    %v289 = vpop.f32.mrb[0].mxu0
    %290 = vmatprep.mubr.f32.mxu0 0.0
    %291 = vmatmul.mubr.f32.gmra.mrb[0].mxu0 %v95
    %v292 = vpop.f32.mrb[0].mxu0
    %v293 = vadd.f32 0.0, %v292
    %v294 = vpop.f32.mrb[0].mxu0
    %295 = vmatprep.mubr.f32.mxu0 0.0
    %296 = vmatmul.mubr.f32.gmra.mrb[0].mxu0 %v98
    %v297 = vpop.f32.mrb[0].mxu0
    %v298 = vadd.f32 0.0, %v297
    %v299 = vpop.f32.mrb[0].mxu0
    %300 = vmatprep.mubr.f32.mxu0 0.0
    %301 = vmatmul.mubr.f32.gmra.mrb[0].mxu0 %v101
    %v302 = vpop.f32.mrb[0].mxu0
    %v303 = vadd.f32 0.0, %v302
    %v304 = vpop.f32.mrb[0].mxu0
    %305 = vmatprep.mubr.f32.mxu0 0.0
    %306 = vmatmul.mubr.f32.gmra.mrb[0].mxu0 %v104
    %v307 = vpop.f32.mrb[0].mxu0
    %v308 = vadd.f32 0.0, %v307
    %v309 = vpop.f32.mrb[0].mxu0
    %310 = vmatprep.mubr.f32.mxu0 0.0
    %311 = vmatmul.mubr.f32.gmra.mrb[0].mxu0 %v107
    %v312 = vpop.f32.mrb[0].mxu0
    %v313 = vadd.f32 0.0, %v312
    %v314 = vpop.f32.mrb[0].mxu0
    %315 = vmatprep.mubr.f32.mxu0 0.0
    %316 = vmatmul.mubr.f32.gmra.mrb[0].mxu0 %v110
    %v317 = vpop.f32.mrb[0].mxu0
    %v318 = vadd.f32 0.0, %v317
    %v319 = vpop.f32.mrb[0].mxu0
    %320 = vmatprep.mubr.f32.mxu0 0.0
    %321 = vmatmul.mubr.f32.gmra.mrb[0].mxu0 %v113
    %v322 = vpop.f32.mrb[0].mxu0
    %v323 = vadd.f32 0.0, %v322
    %v324 = vpop.f32.mrb[0].mxu0
    %325 = vmatprep.mubr.f32.mxu0 0.0
    %326 = vmatmul.mubr.f32.gmra.mrb[0].mxu0 %v116
    %v327 = vpop.f32.mrb[0].mxu0
    %v328 = vadd.f32 0.0, %v327
    %v329 = vpop.f32.mrb[0].mxu0
    %330 = vmatprep.mubr.f32.mxu0 0.0
    %331 = vmatmul.mubr.f32.gmra.mrb[0].mxu0 %v119
    %v332 = vpop.f32.mrb[0].mxu0
    %v333 = vadd.f32 0.0, %v332
    %v334 = vpop.f32.mrb[0].mxu0
    %335 = vmatprep.mubr.f32.mxu0 0.0
    %336 = vmatmul.mubr.f32.gmra.mrb[0].mxu0 %v122
    %v337 = vpop.f32.mrb[0].mxu0
    %v338 = vadd.f32 0.0, %v337
    %v339 = vpop.f32.mrb[0].mxu0
    %340 = vmatprep.mubr.f32.mxu0 0.0
    %341 = vmatmul.mubr.f32.gmra.mrb[0].mxu0 %v125
    %v342 = vpop.f32.mrb[0].mxu0
    %v343 = vadd.f32 0.0, %v342
    %v344 = vpop.f32.mrb[0].mxu0
    %345 = vmatprep.mubr.f32.mxu0 0.0
    %346 = vmatmul.mubr.f32.gmra.mrb[0].mxu0 %v128
    %v347 = vpop.f32.mrb[0].mxu0
    %v348 = vadd.f32 0.0, %v347
    %v349 = vpop.f32.mrb[0].mxu0
    %350 = vmatprep.mubr.f32.mxu0 0.0
    %351 = vmatmul.mubr.f32.gmra.mrb[0].mxu0 %v131
    %v352 = vpop.f32.mrb[0].mxu0
    %v353 = vadd.f32 0.0, %v352
    %v354 = vpop.f32.mrb[0].mxu0
    %355 = vmatprep.mubr.f32.mxu0 0.0
    %356 = vmatmul.mubr.f32.gmra.mrb[0].mxu0 %v134
    %v357 = vpop.f32.mrb[0].mxu0
    %v358 = vadd.f32 0.0, %v357
    %v359 = vpop.f32.mrb[0].mxu0
    %360 = vmatprep.mubr.f32.mxu0 0.0
    %361 = vmatmul.mubr.f32.gmra.mrb[0].mxu0 %v137
    %v362 = vpop.f32.mrb[0].mxu0
    %v363 = vadd.f32 0.0, %v362
    %v364 = vpop.f32.mrb[0].mxu0
    %365 = vmatprep.mubr.f32.mxu0 0.0
    %366 = vmatmul.mubr.f32.gmra.mrb[0].mxu0 %v140
    %v367 = vpop.f32.mrb[0].mxu0
    %v368 = vadd.f32 0.0, %v367
    %v369 = vpop.f32.mrb[0].mxu0
    %370 = vdwg.mxu0
    %v371 = vand.u32 2147483647, %v213
    %vm372 = vcmp.le.f32.partialorder %v371, 0.7853982
    %vm373 = vcmp.lt.s32.totalorder %v213, 0
    %v374 = vand.u32 %v213, 2139095040
    %v375 = vshrl.u32 %v374, 23
    %v376 = vsub.s32 %v375, 127
    %v377 = vand.u32 2147483647, %v213
    %v378 = vand.u32 %v377, 8388607
    %v379 = vor.u32 %v378, 8388608
    %v380 = vsub.s32 0, %v379
    %v381 = vadd.s32 %v376, 1
    %vm382 = vcmp.gt.s32.totalorder %v381, 0
    %v383 = vsel %vm382, %v381, 0
    %v384 = vshrl.u32 %v383, 5
    %v385 = vand.u32 %v383, 31
    %v386 = vsub.s32 32, %v385
    %v387 = vshrl.u32 683565275, %v386
    %v388 = vshll.u32 683565275, %v385
    %v389 = vshrl.u32 2475754826, %v386
    %v390 = vor.u32 %v388, %v389
    %v391 = vshll.u32 2475754826, %v385
    %v392 = vshrl.u32 2131351028, %v386
    %v393 = vor.u32 %v391, %v392
    %v394 = vshll.u32 2131351028, %v385
    %v395 = vshrl.u32 2102212464, %v386
    %v396 = vor.u32 %v394, %v395
    %v397 = vshll.u32 2102212464, %v385
    %v398 = vshrl.u32 920167782, %v386
    %v399 = vor.u32 %v397, %v398
    %v400 = vshll.u32 920167782, %v385
    %v401 = vshrl.u32 1326507024, %v386
    %v402 = vor.u32 %v400, %v401
    %vm403 = vcmp.lt.s32.totalorder %v384, 1
    %vm404 = vcmp.lt.s32.totalorder %v384, 2
    %vm405 = vcmp.lt.s32.totalorder %v384, 3
    %vm406 = vcmp.lt.s32.totalorder %v384, 4
    %v407 = vsel %vm403, %v387, %v390
    %v408 = vsel %vm406, %v396, 2102212464
    %v409 = vsel %vm405, %v393, %v408
    %v410 = vsel %vm404, %v407, %v409
    %v411 = vsel %vm403, %v390, %v393
    %v412 = vsel %vm406, %v399, 920167782
    %v413 = vsel %vm405, %v396, %v412
    %v414 = vsel %vm404, %v411, %v413
    %v415 = vsel %vm403, %v393, %v396
    %v416 = vsel %vm406, %v402, 1326507024
    %v417 = vsel %vm405, %v399, %v416
    %v418 = vsel %vm404, %v415, %v417
    %v419 = vshll.u32 %v379, 8
    %v420 = vmul.u32.u64.compose %v419, %v418
    %v421 = vextract.low.u32 %v420
    %v422 = vextract.high.u32 %v420
    %v423 = vmul.u32.u64.compose %v419, %v414
    %v424 = vextract.low.u32 %v423
    %v425 = vextract.high.u32 %v423
    %v426 = vmul.u32 %v419, %v410
    %v427 = vadd.s32 %v422, %v424
    %vm428 = vc.u32 %v422, %v424
    %v429 = vadd.s32 %v425, 1
    %v430 = vsel %vm428, %v429, %v425
    %v431 = vadd.s32 %v426, %v430
    %v432 = vadd.s32 %v431, 536870912
    %v433 = vshrl.u32 %v432, 30
    %v434 = vshll.u32 %v433, 30
    %v435 = vsub.s32 %v431, %v434
    %vm436 = vcmp.lt.s32.totalorder %v435, 0
    %v437 = vsub.s32 0, %v435
    %v438 = vsel %vm436, %v437, %v435
    %v439 = vclz %v438
    %v440 = vsub.s32 %v439, 2
    %vm441 = vcmp.gt.s32.totalorder 0, %v440
    %v442 = vsel %vm441, 0, %v440
    %v443 = vsub.s32 32, %v442
    %v444 = vshll.u32 %v435, %v442
    %v445 = vshrl.u32 %v427, %v443
    %v446 = vor.u32 %v444, %v445
    %v447 = vsub.s32 4294967266, %v442
    %v448 = vadd.s32 %v447, 127
    %v449 = vshll.u32 %v448, 23
    %v450 = vor.u32 4788187, %v449
    %v451 = vand.u32 2147483647, %v450
    %v453 = vcvt.s32.f32 %v446
    %v454 = vmul.f32 %v453, %v451
    %v455 = vxor.u32 %v454, 2147483648
    %v456 = vsel %vm373, %v455, %v454
    %v457 = vsub.s32 4, %v433
    %v458 = vsel %vm373, %v457, %v433
    %v459 = vsel %vm372, %v213, %v456
    %v460 = vsel %vm372, 0, %v458
    %v461 = vcosq.f32.pop %v459
    %v462 = vsinq.f32.pop %v459
    %vm463 = vweird.f32 %v213
    %v464 = vadd.s32 %v460, 3
    %v465 = vand.u32 %v464, 3
    %vm466 = vcmp.lt.s32.totalorder %v465, 2
    %vm467 = vcmp.eq.s32.totalorder %v465, 0
    %v468 = vxor.u32 %v462, 2147483648
    %v469 = vsel %vm467, %v461, %v468
    %vm470 = vcmp.eq.s32.totalorder %v465, 2
    %v471 = vxor.u32 %v461, 2147483648
    %v472 = vsel %vm470, %v471, %v462
    %v473 = vsel %vm466, %v469, %v472
    %v474 = vsel %vm463, nan, %v473
    %v475 = vand.u32 2147483647, %v218
    %vm476 = vcmp.le.f32.partialorder %v475, 0.7853982
    %vm477 = vcmp.lt.s32.totalorder %v218, 0
    %v478 = vand.u32 %v218, 2139095040
    %v479 = vshrl.u32 %v478, 23
    %v480 = vsub.s32 %v479, 127
    %v481 = vand.u32 2147483647, %v218
    %v482 = vand.u32 %v481, 8388607
    %v483 = vor.u32 %v482, 8388608
    %v484 = vsub.s32 0, %v483
    %v485 = vadd.s32 %v480, 1
    %vm486 = vcmp.gt.s32.totalorder %v485, 0
    %v487 = vsel %vm486, %v485, 0
    %v488 = vshrl.u32 %v487, 5
    %v489 = vand.u32 %v487, 31
    %v490 = vsub.s32 32, %v489
    %v491 = vshrl.u32 683565275, %v490
    %v492 = vshll.u32 683565275, %v489
    %v493 = vshrl.u32 2475754826, %v490
    %v494 = vor.u32 %v492, %v493
    %v495 = vshll.u32 2475754826, %v489
    %v496 = vshrl.u32 2131351028, %v490
    %v497 = vor.u32 %v495, %v496
    %v498 = vshll.u32 2131351028, %v489
    %v499 = vshrl.u32 2102212464, %v490
    %v500 = vor.u32 %v498, %v499
    %v501 = vshll.u32 2102212464, %v489
    %v502 = vshrl.u32 920167782, %v490
    %v503 = vor.u32 %v501, %v502
    %v504 = vshll.u32 920167782, %v489
    %v505 = vshrl.u32 1326507024, %v490
    %v506 = vor.u32 %v504, %v505
    %vm507 = vcmp.lt.s32.totalorder %v488, 1
    %vm508 = vcmp.lt.s32.totalorder %v488, 2
    %vm509 = vcmp.lt.s32.totalorder %v488, 3
    %vm510 = vcmp.lt.s32.totalorder %v488, 4
    %v511 = vsel %vm507, %v491, %v494
    %v512 = vsel %vm510, %v500, 2102212464
    %v513 = vsel %vm509, %v497, %v512
    %v514 = vsel %vm508, %v511, %v513
    %v515 = vsel %vm507, %v494, %v497
    %v516 = vsel %vm510, %v503, 920167782
    %v517 = vsel %vm509, %v500, %v516
    %v518 = vsel %vm508, %v515, %v517
    %v519 = vsel %vm507, %v497, %v500
    %v520 = vsel %vm510, %v506, 1326507024
    %v521 = vsel %vm509, %v503, %v520
    %v522 = vsel %vm508, %v519, %v521
    %v523 = vshll.u32 %v483, 8
    %v524 = vmul.u32.u64.compose %v523, %v522
    %v525 = vextract.low.u32 %v524
    %v526 = vextract.high.u32 %v524
    %v527 = vmul.u32.u64.compose %v523, %v518
    %v528 = vextract.low.u32 %v527
    %v529 = vextract.high.u32 %v527
    %v530 = vmul.u32 %v523, %v514
    %v531 = vadd.s32 %v526, %v528
    %vm532 = vc.u32 %v526, %v528
    %v533 = vadd.s32 %v529, 1
    %v534 = vsel %vm532, %v533, %v529
    %v535 = vadd.s32 %v530, %v534
    %v536 = vadd.s32 %v535, 536870912
    %v537 = vshrl.u32 %v536, 30
    %v538 = vshll.u32 %v537, 30
    %v539 = vsub.s32 %v535, %v538
    %vm540 = vcmp.lt.s32.totalorder %v539, 0
    %v541 = vsub.s32 0, %v539
    %v542 = vsel %vm540, %v541, %v539
    %v543 = vclz %v542
    %v544 = vsub.s32 %v543, 2
    %vm545 = vcmp.gt.s32.totalorder 0, %v544
    %v546 = vsel %vm545, 0, %v544
    %v547 = vsub.s32 32, %v546
    %v548 = vshll.u32 %v539, %v546
    %v549 = vshrl.u32 %v531, %v547
    %v550 = vor.u32 %v548, %v549
    %v551 = vsub.s32 4294967266, %v546
    %v552 = vadd.s32 %v551, 127
    %v553 = vshll.u32 %v552, 23
    %v554 = vor.u32 4788187, %v553
    %v555 = vand.u32 2147483647, %v554
    %v557 = vcvt.s32.f32 %v550
    %v558 = vmul.f32 %v557, %v555
    %v559 = vxor.u32 %v558, 2147483648
    %v560 = vsel %vm477, %v559, %v558
    %v561 = vsub.s32 4, %v537
    %v562 = vsel %vm477, %v561, %v537
    %v563 = vsel %vm476, %v218, %v560
    %v564 = vsel %vm476, 0, %v562
    %v565 = vcosq.f32.pop %v563
    %v566 = vsinq.f32.pop %v563
    %vm567 = vweird.f32 %v218
    %v568 = vadd.s32 %v564, 3
    %v569 = vand.u32 %v568, 3
    %vm570 = vcmp.lt.s32.totalorder %v569, 2
    %vm571 = vcmp.eq.s32.totalorder %v569, 0
    %v572 = vxor.u32 %v566, 2147483648
    %v573 = vsel %vm571, %v565, %v572
    %vm574 = vcmp.eq.s32.totalorder %v569, 2
    %v575 = vxor.u32 %v565, 2147483648
    %v576 = vsel %vm574, %v575, %v566
    %v577 = vsel %vm570, %v573, %v576
    %v578 = vsel %vm567, nan, %v577
    %v579 = vand.u32 2147483647, %v223
    %vm580 = vcmp.le.f32.partialorder %v579, 0.7853982
    %vm581 = vcmp.lt.s32.totalorder %v223, 0
    %v582 = vand.u32 %v223, 2139095040
    %v583 = vshrl.u32 %v582, 23
    %v584 = vsub.s32 %v583, 127
    %v585 = vand.u32 2147483647, %v223
    %v586 = vand.u32 %v585, 8388607
    %v587 = vor.u32 %v586, 8388608
    %v588 = vsub.s32 0, %v587
    %v589 = vadd.s32 %v584, 1
    %vm590 = vcmp.gt.s32.totalorder %v589, 0
    %v591 = vsel %vm590, %v589, 0
    %v592 = vshrl.u32 %v591, 5
    %v593 = vand.u32 %v591, 31
    %v594 = vsub.s32 32, %v593
    %v595 = vshrl.u32 683565275, %v594
    %v596 = vshll.u32 683565275, %v593
    %v597 = vshrl.u32 2475754826, %v594
    %v598 = vor.u32 %v596, %v597
    %v599 = vshll.u32 2475754826, %v593
    %v600 = vshrl.u32 2131351028, %v594
    %v601 = vor.u32 %v599, %v600
    %v602 = vshll.u32 2131351028, %v593
    %v603 = vshrl.u32 2102212464, %v594
    %v604 = vor.u32 %v602, %v603
    %v605 = vshll.u32 2102212464, %v593
    %v606 = vshrl.u32 920167782, %v594
    %v607 = vor.u32 %v605, %v606
    %v608 = vshll.u32 920167782, %v593
    %v609 = vshrl.u32 1326507024, %v594
    %v610 = vor.u32 %v608, %v609
    %vm611 = vcmp.lt.s32.totalorder %v592, 1
    %vm612 = vcmp.lt.s32.totalorder %v592, 2
    %vm613 = vcmp.lt.s32.totalorder %v592, 3
    %vm614 = vcmp.lt.s32.totalorder %v592, 4
    %v615 = vsel %vm611, %v595, %v598
    %v616 = vsel %vm614, %v604, 2102212464
    %v617 = vsel %vm613, %v601, %v616
    %v618 = vsel %vm612, %v615, %v617
    %v619 = vsel %vm611, %v598, %v601
    %v620 = vsel %vm614, %v607, 920167782
    %v621 = vsel %vm613, %v604, %v620
    %v622 = vsel %vm612, %v619, %v621
    %v623 = vsel %vm611, %v601, %v604
    %v624 = vsel %vm614, %v610, 1326507024
    %v625 = vsel %vm613, %v607, %v624
    %v626 = vsel %vm612, %v623, %v625
    %v627 = vshll.u32 %v587, 8
    %v628 = vmul.u32.u64.compose %v627, %v626
    %v629 = vextract.low.u32 %v628
    %v630 = vextract.high.u32 %v628
    %v631 = vmul.u32.u64.compose %v627, %v622
    %v632 = vextract.low.u32 %v631
    %v633 = vextract.high.u32 %v631
    %v634 = vmul.u32 %v627, %v618
    %v635 = vadd.s32 %v630, %v632
    %vm636 = vc.u32 %v630, %v632
    %v637 = vadd.s32 %v633, 1
    %v638 = vsel %vm636, %v637, %v633
    %v639 = vadd.s32 %v634, %v638
    %v640 = vadd.s32 %v639, 536870912
    %v641 = vshrl.u32 %v640, 30
    %v642 = vshll.u32 %v641, 30
    %v643 = vsub.s32 %v639, %v642
    %vm644 = vcmp.lt.s32.totalorder %v643, 0
    %v645 = vsub.s32 0, %v643
    %v646 = vsel %vm644, %v645, %v643
    %v647 = vclz %v646
    %v648 = vsub.s32 %v647, 2
    %vm649 = vcmp.gt.s32.totalorder 0, %v648
    %v650 = vsel %vm649, 0, %v648
    %v651 = vsub.s32 32, %v650
    %v652 = vshll.u32 %v643, %v650
    %v653 = vshrl.u32 %v635, %v651
    %v654 = vor.u32 %v652, %v653
    %v655 = vsub.s32 4294967266, %v650
    %v656 = vadd.s32 %v655, 127
    %v657 = vshll.u32 %v656, 23
    %v658 = vor.u32 4788187, %v657
    %v659 = vand.u32 2147483647, %v658
    %v661 = vcvt.s32.f32 %v654
    %v662 = vmul.f32 %v661, %v659
    %v663 = vxor.u32 %v662, 2147483648
    %v664 = vsel %vm581, %v663, %v662
    %v665 = vsub.s32 4, %v641
    %v666 = vsel %vm581, %v665, %v641
    %v667 = vsel %vm580, %v223, %v664
    %v668 = vsel %vm580, 0, %v666
    %v669 = vcosq.f32.pop %v667
    %v670 = vsinq.f32.pop %v667
    %vm671 = vweird.f32 %v223
    %v672 = vadd.s32 %v668, 3
    %v673 = vand.u32 %v672, 3
    %vm674 = vcmp.lt.s32.totalorder %v673, 2
    %vm675 = vcmp.eq.s32.totalorder %v673, 0
    %v676 = vxor.u32 %v670, 2147483648
    %v677 = vsel %vm675, %v669, %v676
    %vm678 = vcmp.eq.s32.totalorder %v673, 2
    %v679 = vxor.u32 %v669, 2147483648
    %v680 = vsel %vm678, %v679, %v670
    %v681 = vsel %vm674, %v677, %v680
    %v682 = vsel %vm671, nan, %v681
    %v683 = vand.u32 2147483647, %v228
    %vm684 = vcmp.le.f32.partialorder %v683, 0.7853982
    %vm685 = vcmp.lt.s32.totalorder %v228, 0
    %v686 = vand.u32 %v228, 2139095040
    %v687 = vshrl.u32 %v686, 23
    %v688 = vsub.s32 %v687, 127
    %v689 = vand.u32 2147483647, %v228
    %v690 = vand.u32 %v689, 8388607
    %v691 = vor.u32 %v690, 8388608
    %v692 = vsub.s32 0, %v691
    %v693 = vadd.s32 %v688, 1
    %vm694 = vcmp.gt.s32.totalorder %v693, 0
    %v695 = vsel %vm694, %v693, 0
    %v696 = vshrl.u32 %v695, 5
    %v697 = vand.u32 %v695, 31
    %v698 = vsub.s32 32, %v697
    %v699 = vshrl.u32 683565275, %v698
    %v700 = vshll.u32 683565275, %v697
    %v701 = vshrl.u32 2475754826, %v698
    %v702 = vor.u32 %v700, %v701
    %v703 = vshll.u32 2475754826, %v697
    %v704 = vshrl.u32 2131351028, %v698
    %v705 = vor.u32 %v703, %v704
    %v706 = vshll.u32 2131351028, %v697
    %v707 = vshrl.u32 2102212464, %v698
    %v708 = vor.u32 %v706, %v707
    %v709 = vshll.u32 2102212464, %v697
    %v710 = vshrl.u32 920167782, %v698
    %v711 = vor.u32 %v709, %v710
    %v712 = vshll.u32 920167782, %v697
    %v713 = vshrl.u32 1326507024, %v698
    %v714 = vor.u32 %v712, %v713
    %vm715 = vcmp.lt.s32.totalorder %v696, 1
    %vm716 = vcmp.lt.s32.totalorder %v696, 2
    %vm717 = vcmp.lt.s32.totalorder %v696, 3
    %vm718 = vcmp.lt.s32.totalorder %v696, 4
    %v719 = vsel %vm715, %v699, %v702
    %v720 = vsel %vm718, %v708, 2102212464
    %v721 = vsel %vm717, %v705, %v720
    %v722 = vsel %vm716, %v719, %v721
    %v723 = vsel %vm715, %v702, %v705
    %v724 = vsel %vm718, %v711, 920167782
    %v725 = vsel %vm717, %v708, %v724
    %v726 = vsel %vm716, %v723, %v725
    %v727 = vsel %vm715, %v705, %v708
    %v728 = vsel %vm718, %v714, 1326507024
    %v729 = vsel %vm717, %v711, %v728
    %v730 = vsel %vm716, %v727, %v729
    %v731 = vshll.u32 %v691, 8
    %v732 = vmul.u32.u64.compose %v731, %v730
    %v733 = vextract.low.u32 %v732
    %v734 = vextract.high.u32 %v732
    %v735 = vmul.u32.u64.compose %v731, %v726
    %v736 = vextract.low.u32 %v735
    %v737 = vextract.high.u32 %v735
    %v738 = vmul.u32 %v731, %v722
    %v739 = vadd.s32 %v734, %v736
    %vm740 = vc.u32 %v734, %v736
    %v741 = vadd.s32 %v737, 1
    %v742 = vsel %vm740, %v741, %v737
    %v743 = vadd.s32 %v738, %v742
    %v744 = vadd.s32 %v743, 536870912
    %v745 = vshrl.u32 %v744, 30
    %v746 = vshll.u32 %v745, 30
    %v747 = vsub.s32 %v743, %v746
    %vm748 = vcmp.lt.s32.totalorder %v747, 0
    %v749 = vsub.s32 0, %v747
    %v750 = vsel %vm748, %v749, %v747
    %v751 = vclz %v750
    %v752 = vsub.s32 %v751, 2
    %vm753 = vcmp.gt.s32.totalorder 0, %v752
    %v754 = vsel %vm753, 0, %v752
    %v755 = vsub.s32 32, %v754
    %v756 = vshll.u32 %v747, %v754
    %v757 = vshrl.u32 %v739, %v755
    %v758 = vor.u32 %v756, %v757
    %v759 = vsub.s32 4294967266, %v754
    %v760 = vadd.s32 %v759, 127
    %v761 = vshll.u32 %v760, 23
    %v762 = vor.u32 4788187, %v761
    %v763 = vand.u32 2147483647, %v762
    %v765 = vcvt.s32.f32 %v758
    %v766 = vmul.f32 %v765, %v763
    %v767 = vxor.u32 %v766, 2147483648
    %v768 = vsel %vm685, %v767, %v766
    %v769 = vsub.s32 4, %v745
    %v770 = vsel %vm685, %v769, %v745
    %v771 = vsel %vm684, %v228, %v768
    %v772 = vsel %vm684, 0, %v770
    %v773 = vcosq.f32.pop %v771
    %v774 = vsinq.f32.pop %v771
    %vm775 = vweird.f32 %v228
    %v776 = vadd.s32 %v772, 3
    %v777 = vand.u32 %v776, 3
    %vm778 = vcmp.lt.s32.totalorder %v777, 2
    %vm779 = vcmp.eq.s32.totalorder %v777, 0
    %v780 = vxor.u32 %v774, 2147483648
    %v781 = vsel %vm779, %v773, %v780
    %vm782 = vcmp.eq.s32.totalorder %v777, 2
    %v783 = vxor.u32 %v773, 2147483648
    %v784 = vsel %vm782, %v783, %v774
    %v785 = vsel %vm778, %v781, %v784
    %v786 = vsel %vm775, nan, %v785
    %v787 = vand.u32 2147483647, %v233
    %vm788 = vcmp.le.f32.partialorder %v787, 0.7853982
    %vm789 = vcmp.lt.s32.totalorder %v233, 0
    %v790 = vand.u32 %v233, 2139095040
    %v791 = vshrl.u32 %v790, 23
    %v792 = vsub.s32 %v791, 127
    %v793 = vand.u32 2147483647, %v233
    %v794 = vand.u32 %v793, 8388607
    %v795 = vor.u32 %v794, 8388608
    %v796 = vsub.s32 0, %v795
    %v797 = vadd.s32 %v792, 1
    %vm798 = vcmp.gt.s32.totalorder %v797, 0
    %v799 = vsel %vm798, %v797, 0
    %v800 = vshrl.u32 %v799, 5
    %v801 = vand.u32 %v799, 31
    %v802 = vsub.s32 32, %v801
    %v803 = vshrl.u32 683565275, %v802
    %v804 = vshll.u32 683565275, %v801
    %v805 = vshrl.u32 2475754826, %v802
    %v806 = vor.u32 %v804, %v805
    %v807 = vshll.u32 2475754826, %v801
    %v808 = vshrl.u32 2131351028, %v802
    %v809 = vor.u32 %v807, %v808
    %v810 = vshll.u32 2131351028, %v801
    %v811 = vshrl.u32 2102212464, %v802
    %v812 = vor.u32 %v810, %v811
    %v813 = vshll.u32 2102212464, %v801
    %v814 = vshrl.u32 920167782, %v802
    %v815 = vor.u32 %v813, %v814
    %v816 = vshll.u32 920167782, %v801
    %v817 = vshrl.u32 1326507024, %v802
    %v818 = vor.u32 %v816, %v817
    %vm819 = vcmp.lt.s32.totalorder %v800, 1
    %vm820 = vcmp.lt.s32.totalorder %v800, 2
    %vm821 = vcmp.lt.s32.totalorder %v800, 3
    %vm822 = vcmp.lt.s32.totalorder %v800, 4
    %v823 = vsel %vm819, %v803, %v806
    %v824 = vsel %vm822, %v812, 2102212464
    %v825 = vsel %vm821, %v809, %v824
    %v826 = vsel %vm820, %v823, %v825
    %v827 = vsel %vm819, %v806, %v809
    %v828 = vsel %vm822, %v815, 920167782
    %v829 = vsel %vm821, %v812, %v828
    %v830 = vsel %vm820, %v827, %v829
    %v831 = vsel %vm819, %v809, %v812
    %v832 = vsel %vm822, %v818, 1326507024
    %v833 = vsel %vm821, %v815, %v832
    %v834 = vsel %vm820, %v831, %v833
    %v835 = vshll.u32 %v795, 8
    %v836 = vmul.u32.u64.compose %v835, %v834
    %v837 = vextract.low.u32 %v836
    %v838 = vextract.high.u32 %v836
    %v839 = vmul.u32.u64.compose %v835, %v830
    %v840 = vextract.low.u32 %v839
    %v841 = vextract.high.u32 %v839
    %v842 = vmul.u32 %v835, %v826
    %v843 = vadd.s32 %v838, %v840
    %vm844 = vc.u32 %v838, %v840
    %v845 = vadd.s32 %v841, 1
    %v846 = vsel %vm844, %v845, %v841
    %v847 = vadd.s32 %v842, %v846
    %v848 = vadd.s32 %v847, 536870912
    %v849 = vshrl.u32 %v848, 30
    %v850 = vshll.u32 %v849, 30
    %v851 = vsub.s32 %v847, %v850
    %vm852 = vcmp.lt.s32.totalorder %v851, 0
    %v853 = vsub.s32 0, %v851
    %v854 = vsel %vm852, %v853, %v851
    %v855 = vclz %v854
    %v856 = vsub.s32 %v855, 2
    %vm857 = vcmp.gt.s32.totalorder 0, %v856
    %v858 = vsel %vm857, 0, %v856
    %v859 = vsub.s32 32, %v858
    %v860 = vshll.u32 %v851, %v858
    %v861 = vshrl.u32 %v843, %v859
    %v862 = vor.u32 %v860, %v861
    %v863 = vsub.s32 4294967266, %v858
    %v864 = vadd.s32 %v863, 127
    %v865 = vshll.u32 %v864, 23
    %v866 = vor.u32 4788187, %v865
    %v867 = vand.u32 2147483647, %v866
    %v869 = vcvt.s32.f32 %v862
    %v870 = vmul.f32 %v869, %v867
    %v871 = vxor.u32 %v870, 2147483648
    %v872 = vsel %vm789, %v871, %v870
    %v873 = vsub.s32 4, %v849
    %v874 = vsel %vm789, %v873, %v849
    %v875 = vsel %vm788, %v233, %v872
    %v876 = vsel %vm788, 0, %v874
    %v877 = vcosq.f32.pop %v875
    %v878 = vsinq.f32.pop %v875
    %vm879 = vweird.f32 %v233
    %v880 = vadd.s32 %v876, 3
    %v881 = vand.u32 %v880, 3
    %vm882 = vcmp.lt.s32.totalorder %v881, 2
    %vm883 = vcmp.eq.s32.totalorder %v881, 0
    %v884 = vxor.u32 %v878, 2147483648
    %v885 = vsel %vm883, %v877, %v884
    %vm886 = vcmp.eq.s32.totalorder %v881, 2
    %v887 = vxor.u32 %v877, 2147483648
    %v888 = vsel %vm886, %v887, %v878
    %v889 = vsel %vm882, %v885, %v888
    %v890 = vsel %vm879, nan, %v889
    %v891 = vand.u32 2147483647, %v238
    %vm892 = vcmp.le.f32.partialorder %v891, 0.7853982
    %vm893 = vcmp.lt.s32.totalorder %v238, 0
    %v894 = vand.u32 %v238, 2139095040
    %v895 = vshrl.u32 %v894, 23
    %v896 = vsub.s32 %v895, 127
    %v897 = vand.u32 2147483647, %v238
    %v898 = vand.u32 %v897, 8388607
    %v899 = vor.u32 %v898, 8388608
    %v900 = vsub.s32 0, %v899
    %v901 = vadd.s32 %v896, 1
    %vm902 = vcmp.gt.s32.totalorder %v901, 0
    %v903 = vsel %vm902, %v901, 0
    %v904 = vshrl.u32 %v903, 5
    %v905 = vand.u32 %v903, 31
    %v906 = vsub.s32 32, %v905
    %v907 = vshrl.u32 683565275, %v906
    %v908 = vshll.u32 683565275, %v905
    %v909 = vshrl.u32 2475754826, %v906
    %v910 = vor.u32 %v908, %v909
    %v911 = vshll.u32 2475754826, %v905
    %v912 = vshrl.u32 2131351028, %v906
    %v913 = vor.u32 %v911, %v912
    %v914 = vshll.u32 2131351028, %v905
    %v915 = vshrl.u32 2102212464, %v906
    %v916 = vor.u32 %v914, %v915
    %v917 = vshll.u32 2102212464, %v905
    %v918 = vshrl.u32 920167782, %v906
    %v919 = vor.u32 %v917, %v918
    %v920 = vshll.u32 920167782, %v905
    %v921 = vshrl.u32 1326507024, %v906
    %v922 = vor.u32 %v920, %v921
    %vm923 = vcmp.lt.s32.totalorder %v904, 1
    %vm924 = vcmp.lt.s32.totalorder %v904, 2
    %vm925 = vcmp.lt.s32.totalorder %v904, 3
    %vm926 = vcmp.lt.s32.totalorder %v904, 4
    %v927 = vsel %vm923, %v907, %v910
    %v928 = vsel %vm926, %v916, 2102212464
    %v929 = vsel %vm925, %v913, %v928
    %v930 = vsel %vm924, %v927, %v929
    %v931 = vsel %vm923, %v910, %v913
    %v932 = vsel %vm926, %v919, 920167782
    %v933 = vsel %vm925, %v916, %v932
    %v934 = vsel %vm924, %v931, %v933
    %v935 = vsel %vm923, %v913, %v916
    %v936 = vsel %vm926, %v922, 1326507024
    %v937 = vsel %vm925, %v919, %v936
    %v938 = vsel %vm924, %v935, %v937
    %v939 = vshll.u32 %v899, 8
    %v940 = vmul.u32.u64.compose %v939, %v938
    %v941 = vextract.low.u32 %v940
    %v942 = vextract.high.u32 %v940
    %v943 = vmul.u32.u64.compose %v939, %v934
    %v944 = vextract.low.u32 %v943
    %v945 = vextract.high.u32 %v943
    %v946 = vmul.u32 %v939, %v930
    %v947 = vadd.s32 %v942, %v944
    %vm948 = vc.u32 %v942, %v944
    %v949 = vadd.s32 %v945, 1
    %v950 = vsel %vm948, %v949, %v945
    %v951 = vadd.s32 %v946, %v950
    %v952 = vadd.s32 %v951, 536870912
    %v953 = vshrl.u32 %v952, 30
    %v954 = vshll.u32 %v953, 30
    %v955 = vsub.s32 %v951, %v954
    %vm956 = vcmp.lt.s32.totalorder %v955, 0
    %v957 = vsub.s32 0, %v955
    %v958 = vsel %vm956, %v957, %v955
    %v959 = vclz %v958
    %v960 = vsub.s32 %v959, 2
    %vm961 = vcmp.gt.s32.totalorder 0, %v960
    %v962 = vsel %vm961, 0, %v960
    %v963 = vsub.s32 32, %v962
    %v964 = vshll.u32 %v955, %v962
    %v965 = vshrl.u32 %v947, %v963
    %v966 = vor.u32 %v964, %v965
    %v967 = vsub.s32 4294967266, %v962
    %v968 = vadd.s32 %v967, 127
    %v969 = vshll.u32 %v968, 23
    %v970 = vor.u32 4788187, %v969
    %v971 = vand.u32 2147483647, %v970
    %v973 = vcvt.s32.f32 %v966
    %v974 = vmul.f32 %v973, %v971
    %v975 = vxor.u32 %v974, 2147483648
    %v976 = vsel %vm893, %v975, %v974
    %v977 = vsub.s32 4, %v953
    %v978 = vsel %vm893, %v977, %v953
    %v979 = vsel %vm892, %v238, %v976
    %v980 = vsel %vm892, 0, %v978
    %v981 = vcosq.f32.pop %v979
    %v982 = vsinq.f32.pop %v979
    %vm983 = vweird.f32 %v238
    %v984 = vadd.s32 %v980, 3
    %v985 = vand.u32 %v984, 3
    %vm986 = vcmp.lt.s32.totalorder %v985, 2
    %vm987 = vcmp.eq.s32.totalorder %v985, 0
    %v988 = vxor.u32 %v982, 2147483648
    %v989 = vsel %vm987, %v981, %v988
    %vm990 = vcmp.eq.s32.totalorder %v985, 2
    %v991 = vxor.u32 %v981, 2147483648
    %v992 = vsel %vm990, %v991, %v982
    %v993 = vsel %vm986, %v989, %v992
    %v994 = vsel %vm983, nan, %v993
    %v995 = vand.u32 2147483647, %v243
    %vm996 = vcmp.le.f32.partialorder %v995, 0.7853982
    %vm997 = vcmp.lt.s32.totalorder %v243, 0
    %v998 = vand.u32 %v243, 2139095040
    %v999 = vshrl.u32 %v998, 23
    %v1000 = vsub.s32 %v999, 127
    %v1001 = vand.u32 2147483647, %v243
    %v1002 = vand.u32 %v1001, 8388607
    %v1003 = vor.u32 %v1002, 8388608
    %v1004 = vsub.s32 0, %v1003
    %v1005 = vadd.s32 %v1000, 1
    %vm1006 = vcmp.gt.s32.totalorder %v1005, 0
    %v1007 = vsel %vm1006, %v1005, 0
    %v1008 = vshrl.u32 %v1007, 5
    %v1009 = vand.u32 %v1007, 31
    %v1010 = vsub.s32 32, %v1009
    %v1011 = vshrl.u32 683565275, %v1010
    %v1012 = vshll.u32 683565275, %v1009
    %v1013 = vshrl.u32 2475754826, %v1010
    %v1014 = vor.u32 %v1012, %v1013
    %v1015 = vshll.u32 2475754826, %v1009
    %v1016 = vshrl.u32 2131351028, %v1010
    %v1017 = vor.u32 %v1015, %v1016
    %v1018 = vshll.u32 2131351028, %v1009
    %v1019 = vshrl.u32 2102212464, %v1010
    %v1020 = vor.u32 %v1018, %v1019
    %v1021 = vshll.u32 2102212464, %v1009
    %v1022 = vshrl.u32 920167782, %v1010
    %v1023 = vor.u32 %v1021, %v1022
    %v1024 = vshll.u32 920167782, %v1009
    %v1025 = vshrl.u32 1326507024, %v1010
    %v1026 = vor.u32 %v1024, %v1025
    %vm1027 = vcmp.lt.s32.totalorder %v1008, 1
    %vm1028 = vcmp.lt.s32.totalorder %v1008, 2
    %vm1029 = vcmp.lt.s32.totalorder %v1008, 3
    %vm1030 = vcmp.lt.s32.totalorder %v1008, 4
    %v1031 = vsel %vm1027, %v1011, %v1014
    %v1032 = vsel %vm1030, %v1020, 2102212464
    %v1033 = vsel %vm1029, %v1017, %v1032
    %v1034 = vsel %vm1028, %v1031, %v1033
    %v1035 = vsel %vm1027, %v1014, %v1017
    %v1036 = vsel %vm1030, %v1023, 920167782
    %v1037 = vsel %vm1029, %v1020, %v1036
    %v1038 = vsel %vm1028, %v1035, %v1037
    %v1039 = vsel %vm1027, %v1017, %v1020
    %v1040 = vsel %vm1030, %v1026, 1326507024
    %v1041 = vsel %vm1029, %v1023, %v1040
    %v1042 = vsel %vm1028, %v1039, %v1041
    %v1043 = vshll.u32 %v1003, 8
    %v1044 = vmul.u32.u64.compose %v1043, %v1042
    %v1045 = vextract.low.u32 %v1044
    %v1046 = vextract.high.u32 %v1044
    %v1047 = vmul.u32.u64.compose %v1043, %v1038
    %v1048 = vextract.low.u32 %v1047
    %v1049 = vextract.high.u32 %v1047
    %v1050 = vmul.u32 %v1043, %v1034
    %v1051 = vadd.s32 %v1046, %v1048
    %vm1052 = vc.u32 %v1046, %v1048
    %v1053 = vadd.s32 %v1049, 1
    %v1054 = vsel %vm1052, %v1053, %v1049
    %v1055 = vadd.s32 %v1050, %v1054
    %v1056 = vadd.s32 %v1055, 536870912
    %v1057 = vshrl.u32 %v1056, 30
    %v1058 = vshll.u32 %v1057, 30
    %v1059 = vsub.s32 %v1055, %v1058
    %vm1060 = vcmp.lt.s32.totalorder %v1059, 0
    %v1061 = vsub.s32 0, %v1059
    %v1062 = vsel %vm1060, %v1061, %v1059
    %v1063 = vclz %v1062
    %v1064 = vsub.s32 %v1063, 2
    %vm1065 = vcmp.gt.s32.totalorder 0, %v1064
    %v1066 = vsel %vm1065, 0, %v1064
    %v1067 = vsub.s32 32, %v1066
    %v1068 = vshll.u32 %v1059, %v1066
    %v1069 = vshrl.u32 %v1051, %v1067
    %v1070 = vor.u32 %v1068, %v1069
    %v1071 = vsub.s32 4294967266, %v1066
    %v1072 = vadd.s32 %v1071, 127
    %v1073 = vshll.u32 %v1072, 23
    %v1074 = vor.u32 4788187, %v1073
    %v1075 = vand.u32 2147483647, %v1074
    %v1077 = vcvt.s32.f32 %v1070
    %v1078 = vmul.f32 %v1077, %v1075
    %v1079 = vxor.u32 %v1078, 2147483648
    %v1080 = vsel %vm997, %v1079, %v1078
    %v1081 = vsub.s32 4, %v1057
    %v1082 = vsel %vm997, %v1081, %v1057
    %v1083 = vsel %vm996, %v243, %v1080
    %v1084 = vsel %vm996, 0, %v1082
    %v1085 = vcosq.f32.pop %v1083
    %v1086 = vsinq.f32.pop %v1083
    %vm1087 = vweird.f32 %v243
    %v1088 = vadd.s32 %v1084, 3
    %v1089 = vand.u32 %v1088, 3
    %vm1090 = vcmp.lt.s32.totalorder %v1089, 2
    %vm1091 = vcmp.eq.s32.totalorder %v1089, 0
    %v1092 = vxor.u32 %v1086, 2147483648
    %v1093 = vsel %vm1091, %v1085, %v1092
    %vm1094 = vcmp.eq.s32.totalorder %v1089, 2
    %v1095 = vxor.u32 %v1085, 2147483648
    %v1096 = vsel %vm1094, %v1095, %v1086
    %v1097 = vsel %vm1090, %v1093, %v1096
    %v1098 = vsel %vm1087, nan, %v1097
    %v1099 = vand.u32 2147483647, %v248
    %vm1100 = vcmp.le.f32.partialorder %v1099, 0.7853982
    %vm1101 = vcmp.lt.s32.totalorder %v248, 0
    %v1102 = vand.u32 %v248, 2139095040
    %v1103 = vshrl.u32 %v1102, 23
    %v1104 = vsub.s32 %v1103, 127
    %v1105 = vand.u32 2147483647, %v248
    %v1106 = vand.u32 %v1105, 8388607
    %v1107 = vor.u32 %v1106, 8388608
    %v1108 = vsub.s32 0, %v1107
    %v1109 = vadd.s32 %v1104, 1
    %vm1110 = vcmp.gt.s32.totalorder %v1109, 0
    %v1111 = vsel %vm1110, %v1109, 0
    %v1112 = vshrl.u32 %v1111, 5
    %v1113 = vand.u32 %v1111, 31
    %v1114 = vsub.s32 32, %v1113
    %v1115 = vshrl.u32 683565275, %v1114
    %v1116 = vshll.u32 683565275, %v1113
    %v1117 = vshrl.u32 2475754826, %v1114
    %v1118 = vor.u32 %v1116, %v1117
    %v1119 = vshll.u32 2475754826, %v1113
    %v1120 = vshrl.u32 2131351028, %v1114
    %v1121 = vor.u32 %v1119, %v1120
    %v1122 = vshll.u32 2131351028, %v1113
    %v1123 = vshrl.u32 2102212464, %v1114
    %v1124 = vor.u32 %v1122, %v1123
    %v1125 = vshll.u32 2102212464, %v1113
    %v1126 = vshrl.u32 920167782, %v1114
    %v1127 = vor.u32 %v1125, %v1126
    %v1128 = vshll.u32 920167782, %v1113
    %v1129 = vshrl.u32 1326507024, %v1114
    %v1130 = vor.u32 %v1128, %v1129
    %vm1131 = vcmp.lt.s32.totalorder %v1112, 1
    %vm1132 = vcmp.lt.s32.totalorder %v1112, 2
    %vm1133 = vcmp.lt.s32.totalorder %v1112, 3
    %vm1134 = vcmp.lt.s32.totalorder %v1112, 4
    %v1135 = vsel %vm1131, %v1115, %v1118
    %v1136 = vsel %vm1134, %v1124, 2102212464
    %v1137 = vsel %vm1133, %v1121, %v1136
    %v1138 = vsel %vm1132, %v1135, %v1137
    %v1139 = vsel %vm1131, %v1118, %v1121
    %v1140 = vsel %vm1134, %v1127, 920167782
    %v1141 = vsel %vm1133, %v1124, %v1140
    %v1142 = vsel %vm1132, %v1139, %v1141
    %v1143 = vsel %vm1131, %v1121, %v1124
    %v1144 = vsel %vm1134, %v1130, 1326507024
    %v1145 = vsel %vm1133, %v1127, %v1144
    %v1146 = vsel %vm1132, %v1143, %v1145
    %v1147 = vshll.u32 %v1107, 8
    %v1148 = vmul.u32.u64.compose %v1147, %v1146
    %v1149 = vextract.low.u32 %v1148
    %v1150 = vextract.high.u32 %v1148
    %v1151 = vmul.u32.u64.compose %v1147, %v1142
    %v1152 = vextract.low.u32 %v1151
    %v1153 = vextract.high.u32 %v1151
    %v1154 = vmul.u32 %v1147, %v1138
    %v1155 = vadd.s32 %v1150, %v1152
    %vm1156 = vc.u32 %v1150, %v1152
    %v1157 = vadd.s32 %v1153, 1
    %v1158 = vsel %vm1156, %v1157, %v1153
    %v1159 = vadd.s32 %v1154, %v1158
    %v1160 = vadd.s32 %v1159, 536870912
    %v1161 = vshrl.u32 %v1160, 30
    %v1162 = vshll.u32 %v1161, 30
    %v1163 = vsub.s32 %v1159, %v1162
    %vm1164 = vcmp.lt.s32.totalorder %v1163, 0
    %v1165 = vsub.s32 0, %v1163
    %v1166 = vsel %vm1164, %v1165, %v1163
    %v1167 = vclz %v1166
    %v1168 = vsub.s32 %v1167, 2
    %vm1169 = vcmp.gt.s32.totalorder 0, %v1168
    %v1170 = vsel %vm1169, 0, %v1168
    %v1171 = vsub.s32 32, %v1170
    %v1172 = vshll.u32 %v1163, %v1170
    %v1173 = vshrl.u32 %v1155, %v1171
    %v1174 = vor.u32 %v1172, %v1173
    %v1175 = vsub.s32 4294967266, %v1170
    %v1176 = vadd.s32 %v1175, 127
    %v1177 = vshll.u32 %v1176, 23
    %v1178 = vor.u32 4788187, %v1177
    %v1179 = vand.u32 2147483647, %v1178
    %v1181 = vcvt.s32.f32 %v1174
    %v1182 = vmul.f32 %v1181, %v1179
    %v1183 = vxor.u32 %v1182, 2147483648
    %v1184 = vsel %vm1101, %v1183, %v1182
    %v1185 = vsub.s32 4, %v1161
    %v1186 = vsel %vm1101, %v1185, %v1161
    %v1187 = vsel %vm1100, %v248, %v1184
    %v1188 = vsel %vm1100, 0, %v1186
    %v1189 = vcosq.f32.pop %v1187
    %v1190 = vsinq.f32.pop %v1187
    %vm1191 = vweird.f32 %v248
    %v1192 = vadd.s32 %v1188, 3
    %v1193 = vand.u32 %v1192, 3
    %vm1194 = vcmp.lt.s32.totalorder %v1193, 2
    %vm1195 = vcmp.eq.s32.totalorder %v1193, 0
    %v1196 = vxor.u32 %v1190, 2147483648
    %v1197 = vsel %vm1195, %v1189, %v1196
    %vm1198 = vcmp.eq.s32.totalorder %v1193, 2
    %v1199 = vxor.u32 %v1189, 2147483648
    %v1200 = vsel %vm1198, %v1199, %v1190
    %v1201 = vsel %vm1194, %v1197, %v1200
    %v1202 = vsel %vm1191, nan, %v1201
    %v1203 = vand.u32 2147483647, %v253
    %vm1204 = vcmp.le.f32.partialorder %v1203, 0.7853982
    %vm1205 = vcmp.lt.s32.totalorder %v253, 0
    %v1206 = vand.u32 %v253, 2139095040
    %v1207 = vshrl.u32 %v1206, 23
    %v1208 = vsub.s32 %v1207, 127
    %v1209 = vand.u32 2147483647, %v253
    %v1210 = vand.u32 %v1209, 8388607
    %v1211 = vor.u32 %v1210, 8388608
    %v1212 = vsub.s32 0, %v1211
    %v1213 = vadd.s32 %v1208, 1
    %vm1214 = vcmp.gt.s32.totalorder %v1213, 0
    %v1215 = vsel %vm1214, %v1213, 0
    %v1216 = vshrl.u32 %v1215, 5
    %v1217 = vand.u32 %v1215, 31
    %v1218 = vsub.s32 32, %v1217
    %v1219 = vshrl.u32 683565275, %v1218
    %v1220 = vshll.u32 683565275, %v1217
    %v1221 = vshrl.u32 2475754826, %v1218
    %v1222 = vor.u32 %v1220, %v1221
    %v1223 = vshll.u32 2475754826, %v1217
    %v1224 = vshrl.u32 2131351028, %v1218
    %v1225 = vor.u32 %v1223, %v1224
    %v1226 = vshll.u32 2131351028, %v1217
    %v1227 = vshrl.u32 2102212464, %v1218
    %v1228 = vor.u32 %v1226, %v1227
    %v1229 = vshll.u32 2102212464, %v1217
    %v1230 = vshrl.u32 920167782, %v1218
    %v1231 = vor.u32 %v1229, %v1230
    %v1232 = vshll.u32 920167782, %v1217
    %v1233 = vshrl.u32 1326507024, %v1218
    %v1234 = vor.u32 %v1232, %v1233
    %vm1235 = vcmp.lt.s32.totalorder %v1216, 1
    %vm1236 = vcmp.lt.s32.totalorder %v1216, 2
    %vm1237 = vcmp.lt.s32.totalorder %v1216, 3
    %vm1238 = vcmp.lt.s32.totalorder %v1216, 4
    %v1239 = vsel %vm1235, %v1219, %v1222
    %v1240 = vsel %vm1238, %v1228, 2102212464
    %v1241 = vsel %vm1237, %v1225, %v1240
    %v1242 = vsel %vm1236, %v1239, %v1241
    %v1243 = vsel %vm1235, %v1222, %v1225
    %v1244 = vsel %vm1238, %v1231, 920167782
    %v1245 = vsel %vm1237, %v1228, %v1244
    %v1246 = vsel %vm1236, %v1243, %v1245
    %v1247 = vsel %vm1235, %v1225, %v1228
    %v1248 = vsel %vm1238, %v1234, 1326507024
    %v1249 = vsel %vm1237, %v1231, %v1248
    %v1250 = vsel %vm1236, %v1247, %v1249
    %v1251 = vshll.u32 %v1211, 8
    %v1252 = vmul.u32.u64.compose %v1251, %v1250
    %v1253 = vextract.low.u32 %v1252
    %v1254 = vextract.high.u32 %v1252
    %v1255 = vmul.u32.u64.compose %v1251, %v1246
    %v1256 = vextract.low.u32 %v1255
    %v1257 = vextract.high.u32 %v1255
    %v1258 = vmul.u32 %v1251, %v1242
    %v1259 = vadd.s32 %v1254, %v1256
    %vm1260 = vc.u32 %v1254, %v1256
    %v1261 = vadd.s32 %v1257, 1
    %v1262 = vsel %vm1260, %v1261, %v1257
    %v1263 = vadd.s32 %v1258, %v1262
    %v1264 = vadd.s32 %v1263, 536870912
    %v1265 = vshrl.u32 %v1264, 30
    %v1266 = vshll.u32 %v1265, 30
    %v1267 = vsub.s32 %v1263, %v1266
    %vm1268 = vcmp.lt.s32.totalorder %v1267, 0
    %v1269 = vsub.s32 0, %v1267
    %v1270 = vsel %vm1268, %v1269, %v1267
    %v1271 = vclz %v1270
    %v1272 = vsub.s32 %v1271, 2
    %vm1273 = vcmp.gt.s32.totalorder 0, %v1272
    %v1274 = vsel %vm1273, 0, %v1272
    %v1275 = vsub.s32 32, %v1274
    %v1276 = vshll.u32 %v1267, %v1274
    %v1277 = vshrl.u32 %v1259, %v1275
    %v1278 = vor.u32 %v1276, %v1277
    %v1279 = vsub.s32 4294967266, %v1274
    %v1280 = vadd.s32 %v1279, 127
    %v1281 = vshll.u32 %v1280, 23
    %v1282 = vor.u32 4788187, %v1281
    %v1283 = vand.u32 2147483647, %v1282
    %v1285 = vcvt.s32.f32 %v1278
    %v1286 = vmul.f32 %v1285, %v1283
    %v1287 = vxor.u32 %v1286, 2147483648
    %v1288 = vsel %vm1205, %v1287, %v1286
    %v1289 = vsub.s32 4, %v1265
    %v1290 = vsel %vm1205, %v1289, %v1265
    %v1291 = vsel %vm1204, %v253, %v1288
    %v1292 = vsel %vm1204, 0, %v1290
    %v1293 = vcosq.f32.pop %v1291
    %v1294 = vsinq.f32.pop %v1291
    %vm1295 = vweird.f32 %v253
    %v1296 = vadd.s32 %v1292, 3
    %v1297 = vand.u32 %v1296, 3
    %vm1298 = vcmp.lt.s32.totalorder %v1297, 2
    %vm1299 = vcmp.eq.s32.totalorder %v1297, 0
    %v1300 = vxor.u32 %v1294, 2147483648
    %v1301 = vsel %vm1299, %v1293, %v1300
    %vm1302 = vcmp.eq.s32.totalorder %v1297, 2
    %v1303 = vxor.u32 %v1293, 2147483648
    %v1304 = vsel %vm1302, %v1303, %v1294
    %v1305 = vsel %vm1298, %v1301, %v1304
    %v1306 = vsel %vm1295, nan, %v1305
    %v1307 = vand.u32 2147483647, %v258
    %vm1308 = vcmp.le.f32.partialorder %v1307, 0.7853982
    %vm1309 = vcmp.lt.s32.totalorder %v258, 0
    %v1310 = vand.u32 %v258, 2139095040
    %v1311 = vshrl.u32 %v1310, 23
    %v1312 = vsub.s32 %v1311, 127
    %v1313 = vand.u32 2147483647, %v258
    %v1314 = vand.u32 %v1313, 8388607
    %v1315 = vor.u32 %v1314, 8388608
    %v1316 = vsub.s32 0, %v1315
    %v1317 = vadd.s32 %v1312, 1
    %vm1318 = vcmp.gt.s32.totalorder %v1317, 0
    %v1319 = vsel %vm1318, %v1317, 0
    %v1320 = vshrl.u32 %v1319, 5
    %v1321 = vand.u32 %v1319, 31
    %v1322 = vsub.s32 32, %v1321
    %v1323 = vshrl.u32 683565275, %v1322
    %v1324 = vshll.u32 683565275, %v1321
    %v1325 = vshrl.u32 2475754826, %v1322
    %v1326 = vor.u32 %v1324, %v1325
    %v1327 = vshll.u32 2475754826, %v1321
    %v1328 = vshrl.u32 2131351028, %v1322
    %v1329 = vor.u32 %v1327, %v1328
    %v1330 = vshll.u32 2131351028, %v1321
    %v1331 = vshrl.u32 2102212464, %v1322
    %v1332 = vor.u32 %v1330, %v1331
    %v1333 = vshll.u32 2102212464, %v1321
    %v1334 = vshrl.u32 920167782, %v1322
    %v1335 = vor.u32 %v1333, %v1334
    %v1336 = vshll.u32 920167782, %v1321
    %v1337 = vshrl.u32 1326507024, %v1322
    %v1338 = vor.u32 %v1336, %v1337
    %vm1339 = vcmp.lt.s32.totalorder %v1320, 1
    %vm1340 = vcmp.lt.s32.totalorder %v1320, 2
    %vm1341 = vcmp.lt.s32.totalorder %v1320, 3
    %vm1342 = vcmp.lt.s32.totalorder %v1320, 4
    %v1343 = vsel %vm1339, %v1323, %v1326
    %v1344 = vsel %vm1342, %v1332, 2102212464
    %v1345 = vsel %vm1341, %v1329, %v1344
    %v1346 = vsel %vm1340, %v1343, %v1345
    %v1347 = vsel %vm1339, %v1326, %v1329
    %v1348 = vsel %vm1342, %v1335, 920167782
    %v1349 = vsel %vm1341, %v1332, %v1348
    %v1350 = vsel %vm1340, %v1347, %v1349
    %v1351 = vsel %vm1339, %v1329, %v1332
    %v1352 = vsel %vm1342, %v1338, 1326507024
    %v1353 = vsel %vm1341, %v1335, %v1352
    %v1354 = vsel %vm1340, %v1351, %v1353
    %v1355 = vshll.u32 %v1315, 8
    %v1356 = vmul.u32.u64.compose %v1355, %v1354
    %v1357 = vextract.low.u32 %v1356
    %v1358 = vextract.high.u32 %v1356
    %v1359 = vmul.u32.u64.compose %v1355, %v1350
    %v1360 = vextract.low.u32 %v1359
    %v1361 = vextract.high.u32 %v1359
    %v1362 = vmul.u32 %v1355, %v1346
    %v1363 = vadd.s32 %v1358, %v1360
    %vm1364 = vc.u32 %v1358, %v1360
    %v1365 = vadd.s32 %v1361, 1
    %v1366 = vsel %vm1364, %v1365, %v1361
    %v1367 = vadd.s32 %v1362, %v1366
    %v1368 = vadd.s32 %v1367, 536870912
    %v1369 = vshrl.u32 %v1368, 30
    %v1370 = vshll.u32 %v1369, 30
    %v1371 = vsub.s32 %v1367, %v1370
    %vm1372 = vcmp.lt.s32.totalorder %v1371, 0
    %v1373 = vsub.s32 0, %v1371
    %v1374 = vsel %vm1372, %v1373, %v1371
    %v1375 = vclz %v1374
    %v1376 = vsub.s32 %v1375, 2
    %vm1377 = vcmp.gt.s32.totalorder 0, %v1376
    %v1378 = vsel %vm1377, 0, %v1376
    %v1379 = vsub.s32 32, %v1378
    %v1380 = vshll.u32 %v1371, %v1378
    %v1381 = vshrl.u32 %v1363, %v1379
    %v1382 = vor.u32 %v1380, %v1381
    %v1383 = vsub.s32 4294967266, %v1378
    %v1384 = vadd.s32 %v1383, 127
    %v1385 = vshll.u32 %v1384, 23
    %v1386 = vor.u32 4788187, %v1385
    %v1387 = vand.u32 2147483647, %v1386
    %v1389 = vcvt.s32.f32 %v1382
    %v1390 = vmul.f32 %v1389, %v1387
    %v1391 = vxor.u32 %v1390, 2147483648
    %v1392 = vsel %vm1309, %v1391, %v1390
    %v1393 = vsub.s32 4, %v1369
    %v1394 = vsel %vm1309, %v1393, %v1369
    %v1395 = vsel %vm1308, %v258, %v1392
    %v1396 = vsel %vm1308, 0, %v1394
    %v1397 = vcosq.f32.pop %v1395
    %v1398 = vsinq.f32.pop %v1395
    %vm1399 = vweird.f32 %v258
    %v1400 = vadd.s32 %v1396, 3
    %v1401 = vand.u32 %v1400, 3
    %vm1402 = vcmp.lt.s32.totalorder %v1401, 2
    %vm1403 = vcmp.eq.s32.totalorder %v1401, 0
    %v1404 = vxor.u32 %v1398, 2147483648
    %v1405 = vsel %vm1403, %v1397, %v1404
    %vm1406 = vcmp.eq.s32.totalorder %v1401, 2
    %v1407 = vxor.u32 %v1397, 2147483648
    %v1408 = vsel %vm1406, %v1407, %v1398
    %v1409 = vsel %vm1402, %v1405, %v1408
    %v1410 = vsel %vm1399, nan, %v1409
    %v1411 = vand.u32 2147483647, %v263
    %vm1412 = vcmp.le.f32.partialorder %v1411, 0.7853982
    %vm1413 = vcmp.lt.s32.totalorder %v263, 0
    %v1414 = vand.u32 %v263, 2139095040
    %v1415 = vshrl.u32 %v1414, 23
    %v1416 = vsub.s32 %v1415, 127
    %v1417 = vand.u32 2147483647, %v263
    %v1418 = vand.u32 %v1417, 8388607
    %v1419 = vor.u32 %v1418, 8388608
    %v1420 = vsub.s32 0, %v1419
    %v1421 = vadd.s32 %v1416, 1
    %vm1422 = vcmp.gt.s32.totalorder %v1421, 0
    %v1423 = vsel %vm1422, %v1421, 0
    %v1424 = vshrl.u32 %v1423, 5
    %v1425 = vand.u32 %v1423, 31
    %v1426 = vsub.s32 32, %v1425
    %v1427 = vshrl.u32 683565275, %v1426
    %v1428 = vshll.u32 683565275, %v1425
    %v1429 = vshrl.u32 2475754826, %v1426
    %v1430 = vor.u32 %v1428, %v1429
    %v1431 = vshll.u32 2475754826, %v1425
    %v1432 = vshrl.u32 2131351028, %v1426
    %v1433 = vor.u32 %v1431, %v1432
    %v1434 = vshll.u32 2131351028, %v1425
    %v1435 = vshrl.u32 2102212464, %v1426
    %v1436 = vor.u32 %v1434, %v1435
    %v1437 = vshll.u32 2102212464, %v1425
    %v1438 = vshrl.u32 920167782, %v1426
    %v1439 = vor.u32 %v1437, %v1438
    %v1440 = vshll.u32 920167782, %v1425
    %v1441 = vshrl.u32 1326507024, %v1426
    %v1442 = vor.u32 %v1440, %v1441
    %vm1443 = vcmp.lt.s32.totalorder %v1424, 1
    %vm1444 = vcmp.lt.s32.totalorder %v1424, 2
    %vm1445 = vcmp.lt.s32.totalorder %v1424, 3
    %vm1446 = vcmp.lt.s32.totalorder %v1424, 4
    %v1447 = vsel %vm1443, %v1427, %v1430
    %v1448 = vsel %vm1446, %v1436, 2102212464
    %v1449 = vsel %vm1445, %v1433, %v1448
    %v1450 = vsel %vm1444, %v1447, %v1449
    %v1451 = vsel %vm1443, %v1430, %v1433
    %v1452 = vsel %vm1446, %v1439, 920167782
    %v1453 = vsel %vm1445, %v1436, %v1452
    %v1454 = vsel %vm1444, %v1451, %v1453
    %v1455 = vsel %vm1443, %v1433, %v1436
    %v1456 = vsel %vm1446, %v1442, 1326507024
    %v1457 = vsel %vm1445, %v1439, %v1456
    %v1458 = vsel %vm1444, %v1455, %v1457
    %v1459 = vshll.u32 %v1419, 8
    %v1460 = vmul.u32.u64.compose %v1459, %v1458
    %v1461 = vextract.low.u32 %v1460
    %v1462 = vextract.high.u32 %v1460
    %v1463 = vmul.u32.u64.compose %v1459, %v1454
    %v1464 = vextract.low.u32 %v1463
    %v1465 = vextract.high.u32 %v1463
    %v1466 = vmul.u32 %v1459, %v1450
    %v1467 = vadd.s32 %v1462, %v1464
    %vm1468 = vc.u32 %v1462, %v1464
    %v1469 = vadd.s32 %v1465, 1
    %v1470 = vsel %vm1468, %v1469, %v1465
    %v1471 = vadd.s32 %v1466, %v1470
    %v1472 = vadd.s32 %v1471, 536870912
    %v1473 = vshrl.u32 %v1472, 30
    %v1474 = vshll.u32 %v1473, 30
    %v1475 = vsub.s32 %v1471, %v1474
    %vm1476 = vcmp.lt.s32.totalorder %v1475, 0
    %v1477 = vsub.s32 0, %v1475
    %v1478 = vsel %vm1476, %v1477, %v1475
    %v1479 = vclz %v1478
    %v1480 = vsub.s32 %v1479, 2
    %vm1481 = vcmp.gt.s32.totalorder 0, %v1480
    %v1482 = vsel %vm1481, 0, %v1480
    %v1483 = vsub.s32 32, %v1482
    %v1484 = vshll.u32 %v1475, %v1482
    %v1485 = vshrl.u32 %v1467, %v1483
    %v1486 = vor.u32 %v1484, %v1485
    %v1487 = vsub.s32 4294967266, %v1482
    %v1488 = vadd.s32 %v1487, 127
    %v1489 = vshll.u32 %v1488, 23
    %v1490 = vor.u32 4788187, %v1489
    %v1491 = vand.u32 2147483647, %v1490
    %v1493 = vcvt.s32.f32 %v1486
    %v1494 = vmul.f32 %v1493, %v1491
    %v1495 = vxor.u32 %v1494, 2147483648
    %v1496 = vsel %vm1413, %v1495, %v1494
    %v1497 = vsub.s32 4, %v1473
    %v1498 = vsel %vm1413, %v1497, %v1473
    %v1499 = vsel %vm1412, %v263, %v1496
    %v1500 = vsel %vm1412, 0, %v1498
    %v1501 = vcosq.f32.pop %v1499
    %v1502 = vsinq.f32.pop %v1499
    %vm1503 = vweird.f32 %v263
    %v1504 = vadd.s32 %v1500, 3
    %v1505 = vand.u32 %v1504, 3
    %vm1506 = vcmp.lt.s32.totalorder %v1505, 2
    %vm1507 = vcmp.eq.s32.totalorder %v1505, 0
    %v1508 = vxor.u32 %v1502, 2147483648
    %v1509 = vsel %vm1507, %v1501, %v1508
    %vm1510 = vcmp.eq.s32.totalorder %v1505, 2
    %v1511 = vxor.u32 %v1501, 2147483648
    %v1512 = vsel %vm1510, %v1511, %v1502
    %v1513 = vsel %vm1506, %v1509, %v1512
    %v1514 = vsel %vm1503, nan, %v1513
    %v1515 = vand.u32 2147483647, %v268
    %vm1516 = vcmp.le.f32.partialorder %v1515, 0.7853982
    %vm1517 = vcmp.lt.s32.totalorder %v268, 0
    %v1518 = vand.u32 %v268, 2139095040
    %v1519 = vshrl.u32 %v1518, 23
    %v1520 = vsub.s32 %v1519, 127
    %v1521 = vand.u32 2147483647, %v268
    %v1522 = vand.u32 %v1521, 8388607
    %v1523 = vor.u32 %v1522, 8388608
    %v1524 = vsub.s32 0, %v1523
    %v1525 = vadd.s32 %v1520, 1
    %vm1526 = vcmp.gt.s32.totalorder %v1525, 0
    %v1527 = vsel %vm1526, %v1525, 0
    %v1528 = vshrl.u32 %v1527, 5
    %v1529 = vand.u32 %v1527, 31
    %v1530 = vsub.s32 32, %v1529
    %v1531 = vshrl.u32 683565275, %v1530
    %v1532 = vshll.u32 683565275, %v1529
    %v1533 = vshrl.u32 2475754826, %v1530
    %v1534 = vor.u32 %v1532, %v1533
    %v1535 = vshll.u32 2475754826, %v1529
    %v1536 = vshrl.u32 2131351028, %v1530
    %v1537 = vor.u32 %v1535, %v1536
    %v1538 = vshll.u32 2131351028, %v1529
    %v1539 = vshrl.u32 2102212464, %v1530
    %v1540 = vor.u32 %v1538, %v1539
    %v1541 = vshll.u32 2102212464, %v1529
    %v1542 = vshrl.u32 920167782, %v1530
    %v1543 = vor.u32 %v1541, %v1542
    %v1544 = vshll.u32 920167782, %v1529
    %v1545 = vshrl.u32 1326507024, %v1530
    %v1546 = vor.u32 %v1544, %v1545
    %vm1547 = vcmp.lt.s32.totalorder %v1528, 1
    %vm1548 = vcmp.lt.s32.totalorder %v1528, 2
    %vm1549 = vcmp.lt.s32.totalorder %v1528, 3
    %vm1550 = vcmp.lt.s32.totalorder %v1528, 4
    %v1551 = vsel %vm1547, %v1531, %v1534
    %v1552 = vsel %vm1550, %v1540, 2102212464
    %v1553 = vsel %vm1549, %v1537, %v1552
    %v1554 = vsel %vm1548, %v1551, %v1553
    %v1555 = vsel %vm1547, %v1534, %v1537
    %v1556 = vsel %vm1550, %v1543, 920167782
    %v1557 = vsel %vm1549, %v1540, %v1556
    %v1558 = vsel %vm1548, %v1555, %v1557
    %v1559 = vsel %vm1547, %v1537, %v1540
    %v1560 = vsel %vm1550, %v1546, 1326507024
    %v1561 = vsel %vm1549, %v1543, %v1560
    %v1562 = vsel %vm1548, %v1559, %v1561
    %v1563 = vshll.u32 %v1523, 8
    %v1564 = vmul.u32.u64.compose %v1563, %v1562
    %v1565 = vextract.low.u32 %v1564
    %v1566 = vextract.high.u32 %v1564
    %v1567 = vmul.u32.u64.compose %v1563, %v1558
    %v1568 = vextract.low.u32 %v1567
    %v1569 = vextract.high.u32 %v1567
    %v1570 = vmul.u32 %v1563, %v1554
    %v1571 = vadd.s32 %v1566, %v1568
    %vm1572 = vc.u32 %v1566, %v1568
    %v1573 = vadd.s32 %v1569, 1
    %v1574 = vsel %vm1572, %v1573, %v1569
    %v1575 = vadd.s32 %v1570, %v1574
    %v1576 = vadd.s32 %v1575, 536870912
    %v1577 = vshrl.u32 %v1576, 30
    %v1578 = vshll.u32 %v1577, 30
    %v1579 = vsub.s32 %v1575, %v1578
    %vm1580 = vcmp.lt.s32.totalorder %v1579, 0
    %v1581 = vsub.s32 0, %v1579
    %v1582 = vsel %vm1580, %v1581, %v1579
    %v1583 = vclz %v1582
    %v1584 = vsub.s32 %v1583, 2
    %vm1585 = vcmp.gt.s32.totalorder 0, %v1584
    %v1586 = vsel %vm1585, 0, %v1584
    %v1587 = vsub.s32 32, %v1586
    %v1588 = vshll.u32 %v1579, %v1586
    %v1589 = vshrl.u32 %v1571, %v1587
    %v1590 = vor.u32 %v1588, %v1589
    %v1591 = vsub.s32 4294967266, %v1586
    %v1592 = vadd.s32 %v1591, 127
    %v1593 = vshll.u32 %v1592, 23
    %v1594 = vor.u32 4788187, %v1593
    %v1595 = vand.u32 2147483647, %v1594
    %v1597 = vcvt.s32.f32 %v1590
    %v1598 = vmul.f32 %v1597, %v1595
    %v1599 = vxor.u32 %v1598, 2147483648
    %v1600 = vsel %vm1517, %v1599, %v1598
    %v1601 = vsub.s32 4, %v1577
    %v1602 = vsel %vm1517, %v1601, %v1577
    %v1603 = vsel %vm1516, %v268, %v1600
    %v1604 = vsel %vm1516, 0, %v1602
    %v1605 = vcosq.f32.pop %v1603
    %v1606 = vsinq.f32.pop %v1603
    %vm1607 = vweird.f32 %v268
    %v1608 = vadd.s32 %v1604, 3
    %v1609 = vand.u32 %v1608, 3
    %vm1610 = vcmp.lt.s32.totalorder %v1609, 2
    %vm1611 = vcmp.eq.s32.totalorder %v1609, 0
    %v1612 = vxor.u32 %v1606, 2147483648
    %v1613 = vsel %vm1611, %v1605, %v1612
    %vm1614 = vcmp.eq.s32.totalorder %v1609, 2
    %v1615 = vxor.u32 %v1605, 2147483648
    %v1616 = vsel %vm1614, %v1615, %v1606
    %v1617 = vsel %vm1610, %v1613, %v1616
    %v1618 = vsel %vm1607, nan, %v1617
    %v1619 = vand.u32 2147483647, %v273
    %vm1620 = vcmp.le.f32.partialorder %v1619, 0.7853982
    %vm1621 = vcmp.lt.s32.totalorder %v273, 0
    %v1622 = vand.u32 %v273, 2139095040
    %v1623 = vshrl.u32 %v1622, 23
    %v1624 = vsub.s32 %v1623, 127
    %v1625 = vand.u32 2147483647, %v273
    %v1626 = vand.u32 %v1625, 8388607
    %v1627 = vor.u32 %v1626, 8388608
    %v1628 = vsub.s32 0, %v1627
    %v1629 = vadd.s32 %v1624, 1
    %vm1630 = vcmp.gt.s32.totalorder %v1629, 0
    %v1631 = vsel %vm1630, %v1629, 0
    %v1632 = vshrl.u32 %v1631, 5
    %v1633 = vand.u32 %v1631, 31
    %v1634 = vsub.s32 32, %v1633
    %v1635 = vshrl.u32 683565275, %v1634
    %v1636 = vshll.u32 683565275, %v1633
    %v1637 = vshrl.u32 2475754826, %v1634
    %v1638 = vor.u32 %v1636, %v1637
    %v1639 = vshll.u32 2475754826, %v1633
    %v1640 = vshrl.u32 2131351028, %v1634
    %v1641 = vor.u32 %v1639, %v1640
    %v1642 = vshll.u32 2131351028, %v1633
    %v1643 = vshrl.u32 2102212464, %v1634
    %v1644 = vor.u32 %v1642, %v1643
    %v1645 = vshll.u32 2102212464, %v1633
    %v1646 = vshrl.u32 920167782, %v1634
    %v1647 = vor.u32 %v1645, %v1646
    %v1648 = vshll.u32 920167782, %v1633
    %v1649 = vshrl.u32 1326507024, %v1634
    %v1650 = vor.u32 %v1648, %v1649
    %vm1651 = vcmp.lt.s32.totalorder %v1632, 1
    %vm1652 = vcmp.lt.s32.totalorder %v1632, 2
    %vm1653 = vcmp.lt.s32.totalorder %v1632, 3
    %vm1654 = vcmp.lt.s32.totalorder %v1632, 4
    %v1655 = vsel %vm1651, %v1635, %v1638
    %v1656 = vsel %vm1654, %v1644, 2102212464
    %v1657 = vsel %vm1653, %v1641, %v1656
    %v1658 = vsel %vm1652, %v1655, %v1657
    %v1659 = vsel %vm1651, %v1638, %v1641
    %v1660 = vsel %vm1654, %v1647, 920167782
    %v1661 = vsel %vm1653, %v1644, %v1660
    %v1662 = vsel %vm1652, %v1659, %v1661
    %v1663 = vsel %vm1651, %v1641, %v1644
    %v1664 = vsel %vm1654, %v1650, 1326507024
    %v1665 = vsel %vm1653, %v1647, %v1664
    %v1666 = vsel %vm1652, %v1663, %v1665
    %v1667 = vshll.u32 %v1627, 8
    %v1668 = vmul.u32.u64.compose %v1667, %v1666
    %v1669 = vextract.low.u32 %v1668
    %v1670 = vextract.high.u32 %v1668
    %v1671 = vmul.u32.u64.compose %v1667, %v1662
    %v1672 = vextract.low.u32 %v1671
    %v1673 = vextract.high.u32 %v1671
    %v1674 = vmul.u32 %v1667, %v1658
    %v1675 = vadd.s32 %v1670, %v1672
    %vm1676 = vc.u32 %v1670, %v1672
    %v1677 = vadd.s32 %v1673, 1
    %v1678 = vsel %vm1676, %v1677, %v1673
    %v1679 = vadd.s32 %v1674, %v1678
    %v1680 = vadd.s32 %v1679, 536870912
    %v1681 = vshrl.u32 %v1680, 30
    %v1682 = vshll.u32 %v1681, 30
    %v1683 = vsub.s32 %v1679, %v1682
    %vm1684 = vcmp.lt.s32.totalorder %v1683, 0
    %v1685 = vsub.s32 0, %v1683
    %v1686 = vsel %vm1684, %v1685, %v1683
    %v1687 = vclz %v1686
    %v1688 = vsub.s32 %v1687, 2
    %vm1689 = vcmp.gt.s32.totalorder 0, %v1688
    %v1690 = vsel %vm1689, 0, %v1688
    %v1691 = vsub.s32 32, %v1690
    %v1692 = vshll.u32 %v1683, %v1690
    %v1693 = vshrl.u32 %v1675, %v1691
    %v1694 = vor.u32 %v1692, %v1693
    %v1695 = vsub.s32 4294967266, %v1690
    %v1696 = vadd.s32 %v1695, 127
    %v1697 = vshll.u32 %v1696, 23
    %v1698 = vor.u32 4788187, %v1697
    %v1699 = vand.u32 2147483647, %v1698
    %v1701 = vcvt.s32.f32 %v1694
    %v1702 = vmul.f32 %v1701, %v1699
    %v1703 = vxor.u32 %v1702, 2147483648
    %v1704 = vsel %vm1621, %v1703, %v1702
    %v1705 = vsub.s32 4, %v1681
    %v1706 = vsel %vm1621, %v1705, %v1681
    %v1707 = vsel %vm1620, %v273, %v1704
    %v1708 = vsel %vm1620, 0, %v1706
    %v1709 = vcosq.f32.pop %v1707
    %v1710 = vsinq.f32.pop %v1707
    %vm1711 = vweird.f32 %v273
    %v1712 = vadd.s32 %v1708, 3
    %v1713 = vand.u32 %v1712, 3
    %vm1714 = vcmp.lt.s32.totalorder %v1713, 2
    %vm1715 = vcmp.eq.s32.totalorder %v1713, 0
    %v1716 = vxor.u32 %v1710, 2147483648
    %v1717 = vsel %vm1715, %v1709, %v1716
    %vm1718 = vcmp.eq.s32.totalorder %v1713, 2
    %v1719 = vxor.u32 %v1709, 2147483648
    %v1720 = vsel %vm1718, %v1719, %v1710
    %v1721 = vsel %vm1714, %v1717, %v1720
    %v1722 = vsel %vm1711, nan, %v1721
    %v1723 = vand.u32 2147483647, %v278
    %vm1724 = vcmp.le.f32.partialorder %v1723, 0.7853982
    %vm1725 = vcmp.lt.s32.totalorder %v278, 0
    %v1726 = vand.u32 %v278, 2139095040
    %v1727 = vshrl.u32 %v1726, 23
    %v1728 = vsub.s32 %v1727, 127
    %v1729 = vand.u32 2147483647, %v278
    %v1730 = vand.u32 %v1729, 8388607
    %v1731 = vor.u32 %v1730, 8388608
    %v1732 = vsub.s32 0, %v1731
    %v1733 = vadd.s32 %v1728, 1
    %vm1734 = vcmp.gt.s32.totalorder %v1733, 0
    %v1735 = vsel %vm1734, %v1733, 0
    %v1736 = vshrl.u32 %v1735, 5
    %v1737 = vand.u32 %v1735, 31
    %v1738 = vsub.s32 32, %v1737
    %v1739 = vshrl.u32 683565275, %v1738
    %v1740 = vshll.u32 683565275, %v1737
    %v1741 = vshrl.u32 2475754826, %v1738
    %v1742 = vor.u32 %v1740, %v1741
    %v1743 = vshll.u32 2475754826, %v1737
    %v1744 = vshrl.u32 2131351028, %v1738
    %v1745 = vor.u32 %v1743, %v1744
    %v1746 = vshll.u32 2131351028, %v1737
    %v1747 = vshrl.u32 2102212464, %v1738
    %v1748 = vor.u32 %v1746, %v1747
    %v1749 = vshll.u32 2102212464, %v1737
    %v1750 = vshrl.u32 920167782, %v1738
    %v1751 = vor.u32 %v1749, %v1750
    %v1752 = vshll.u32 920167782, %v1737
    %v1753 = vshrl.u32 1326507024, %v1738
    %v1754 = vor.u32 %v1752, %v1753
    %vm1755 = vcmp.lt.s32.totalorder %v1736, 1
    %vm1756 = vcmp.lt.s32.totalorder %v1736, 2
    %vm1757 = vcmp.lt.s32.totalorder %v1736, 3
    %vm1758 = vcmp.lt.s32.totalorder %v1736, 4
    %v1759 = vsel %vm1755, %v1739, %v1742
    %v1760 = vsel %vm1758, %v1748, 2102212464
    %v1761 = vsel %vm1757, %v1745, %v1760
    %v1762 = vsel %vm1756, %v1759, %v1761
    %v1763 = vsel %vm1755, %v1742, %v1745
    %v1764 = vsel %vm1758, %v1751, 920167782
    %v1765 = vsel %vm1757, %v1748, %v1764
    %v1766 = vsel %vm1756, %v1763, %v1765
    %v1767 = vsel %vm1755, %v1745, %v1748
    %v1768 = vsel %vm1758, %v1754, 1326507024
    %v1769 = vsel %vm1757, %v1751, %v1768
    %v1770 = vsel %vm1756, %v1767, %v1769
    %v1771 = vshll.u32 %v1731, 8
    %v1772 = vmul.u32.u64.compose %v1771, %v1770
    %v1773 = vextract.low.u32 %v1772
    %v1774 = vextract.high.u32 %v1772
    %v1775 = vmul.u32.u64.compose %v1771, %v1766
    %v1776 = vextract.low.u32 %v1775
    %v1777 = vextract.high.u32 %v1775
    %v1778 = vmul.u32 %v1771, %v1762
    %v1779 = vadd.s32 %v1774, %v1776
    %vm1780 = vc.u32 %v1774, %v1776
    %v1781 = vadd.s32 %v1777, 1
    %v1782 = vsel %vm1780, %v1781, %v1777
    %v1783 = vadd.s32 %v1778, %v1782
    %v1784 = vadd.s32 %v1783, 536870912
    %v1785 = vshrl.u32 %v1784, 30
    %v1786 = vshll.u32 %v1785, 30
    %v1787 = vsub.s32 %v1783, %v1786
    %vm1788 = vcmp.lt.s32.totalorder %v1787, 0
    %v1789 = vsub.s32 0, %v1787
    %v1790 = vsel %vm1788, %v1789, %v1787
    %v1791 = vclz %v1790
    %v1792 = vsub.s32 %v1791, 2
    %vm1793 = vcmp.gt.s32.totalorder 0, %v1792
    %v1794 = vsel %vm1793, 0, %v1792
    %v1795 = vsub.s32 32, %v1794
    %v1796 = vshll.u32 %v1787, %v1794
    %v1797 = vshrl.u32 %v1779, %v1795
    %v1798 = vor.u32 %v1796, %v1797
    %v1799 = vsub.s32 4294967266, %v1794
    %v1800 = vadd.s32 %v1799, 127
    %v1801 = vshll.u32 %v1800, 23
    %v1802 = vor.u32 4788187, %v1801
    %v1803 = vand.u32 2147483647, %v1802
    %v1805 = vcvt.s32.f32 %v1798
    %v1806 = vmul.f32 %v1805, %v1803
    %v1807 = vxor.u32 %v1806, 2147483648
    %v1808 = vsel %vm1725, %v1807, %v1806
    %v1809 = vsub.s32 4, %v1785
    %v1810 = vsel %vm1725, %v1809, %v1785
    %v1811 = vsel %vm1724, %v278, %v1808
    %v1812 = vsel %vm1724, 0, %v1810
    %v1813 = vcosq.f32.pop %v1811
    %v1814 = vsinq.f32.pop %v1811
    %vm1815 = vweird.f32 %v278
    %v1816 = vadd.s32 %v1812, 3
    %v1817 = vand.u32 %v1816, 3
    %vm1818 = vcmp.lt.s32.totalorder %v1817, 2
    %vm1819 = vcmp.eq.s32.totalorder %v1817, 0
    %v1820 = vxor.u32 %v1814, 2147483648
    %v1821 = vsel %vm1819, %v1813, %v1820
    %vm1822 = vcmp.eq.s32.totalorder %v1817, 2
    %v1823 = vxor.u32 %v1813, 2147483648
    %v1824 = vsel %vm1822, %v1823, %v1814
    %v1825 = vsel %vm1818, %v1821, %v1824
    %v1826 = vsel %vm1815, nan, %v1825
    %v1827 = vand.u32 2147483647, %v283
    %vm1828 = vcmp.le.f32.partialorder %v1827, 0.7853982
    %vm1829 = vcmp.lt.s32.totalorder %v283, 0
    %v1830 = vand.u32 %v283, 2139095040
    %v1831 = vshrl.u32 %v1830, 23
    %v1832 = vsub.s32 %v1831, 127
    %v1833 = vand.u32 2147483647, %v283
    %v1834 = vand.u32 %v1833, 8388607
    %v1835 = vor.u32 %v1834, 8388608
    %v1836 = vsub.s32 0, %v1835
    %v1837 = vadd.s32 %v1832, 1
    %vm1838 = vcmp.gt.s32.totalorder %v1837, 0
    %v1839 = vsel %vm1838, %v1837, 0
    %v1840 = vshrl.u32 %v1839, 5
    %v1841 = vand.u32 %v1839, 31
    %v1842 = vsub.s32 32, %v1841
    %v1843 = vshrl.u32 683565275, %v1842
    %v1844 = vshll.u32 683565275, %v1841
    %v1845 = vshrl.u32 2475754826, %v1842
    %v1846 = vor.u32 %v1844, %v1845
    %v1847 = vshll.u32 2475754826, %v1841
    %v1848 = vshrl.u32 2131351028, %v1842
    %v1849 = vor.u32 %v1847, %v1848
    %v1850 = vshll.u32 2131351028, %v1841
    %v1851 = vshrl.u32 2102212464, %v1842
    %v1852 = vor.u32 %v1850, %v1851
    %v1853 = vshll.u32 2102212464, %v1841
    %v1854 = vshrl.u32 920167782, %v1842
    %v1855 = vor.u32 %v1853, %v1854
    %v1856 = vshll.u32 920167782, %v1841
    %v1857 = vshrl.u32 1326507024, %v1842
    %v1858 = vor.u32 %v1856, %v1857
    %vm1859 = vcmp.lt.s32.totalorder %v1840, 1
    %vm1860 = vcmp.lt.s32.totalorder %v1840, 2
    %vm1861 = vcmp.lt.s32.totalorder %v1840, 3
    %vm1862 = vcmp.lt.s32.totalorder %v1840, 4
    %v1863 = vsel %vm1859, %v1843, %v1846
    %v1864 = vsel %vm1862, %v1852, 2102212464
    %v1865 = vsel %vm1861, %v1849, %v1864
    %v1866 = vsel %vm1860, %v1863, %v1865
    %v1867 = vsel %vm1859, %v1846, %v1849
    %v1868 = vsel %vm1862, %v1855, 920167782
    %v1869 = vsel %vm1861, %v1852, %v1868
    %v1870 = vsel %vm1860, %v1867, %v1869
    %v1871 = vsel %vm1859, %v1849, %v1852
    %v1872 = vsel %vm1862, %v1858, 1326507024
    %v1873 = vsel %vm1861, %v1855, %v1872
    %v1874 = vsel %vm1860, %v1871, %v1873
    %v1875 = vshll.u32 %v1835, 8
    %v1876 = vmul.u32.u64.compose %v1875, %v1874
    %v1877 = vextract.low.u32 %v1876
    %v1878 = vextract.high.u32 %v1876
    %v1879 = vmul.u32.u64.compose %v1875, %v1870
    %v1880 = vextract.low.u32 %v1879
    %v1881 = vextract.high.u32 %v1879
    %v1882 = vmul.u32 %v1875, %v1866
    %v1883 = vadd.s32 %v1878, %v1880
    %vm1884 = vc.u32 %v1878, %v1880
    %v1885 = vadd.s32 %v1881, 1
    %v1886 = vsel %vm1884, %v1885, %v1881
    %v1887 = vadd.s32 %v1882, %v1886
    %v1888 = vadd.s32 %v1887, 536870912
    %v1889 = vshrl.u32 %v1888, 30
    %v1890 = vshll.u32 %v1889, 30
    %v1891 = vsub.s32 %v1887, %v1890
    %vm1892 = vcmp.lt.s32.totalorder %v1891, 0
    %v1893 = vsub.s32 0, %v1891
    %v1894 = vsel %vm1892, %v1893, %v1891
    %v1895 = vclz %v1894
    %v1896 = vsub.s32 %v1895, 2
    %vm1897 = vcmp.gt.s32.totalorder 0, %v1896
    %v1898 = vsel %vm1897, 0, %v1896
    %v1899 = vsub.s32 32, %v1898
    %v1900 = vshll.u32 %v1891, %v1898
    %v1901 = vshrl.u32 %v1883, %v1899
    %v1902 = vor.u32 %v1900, %v1901
    %v1903 = vsub.s32 4294967266, %v1898
    %v1904 = vadd.s32 %v1903, 127
    %v1905 = vshll.u32 %v1904, 23
    %v1906 = vor.u32 4788187, %v1905
    %v1907 = vand.u32 2147483647, %v1906
    %v1909 = vcvt.s32.f32 %v1902
    %v1910 = vmul.f32 %v1909, %v1907
    %v1911 = vxor.u32 %v1910, 2147483648
    %v1912 = vsel %vm1829, %v1911, %v1910
    %v1913 = vsub.s32 4, %v1889
    %v1914 = vsel %vm1829, %v1913, %v1889
    %v1915 = vsel %vm1828, %v283, %v1912
    %v1916 = vsel %vm1828, 0, %v1914
    %v1917 = vcosq.f32.pop %v1915
    %v1918 = vsinq.f32.pop %v1915
    %vm1919 = vweird.f32 %v283
    %v1920 = vadd.s32 %v1916, 3
    %v1921 = vand.u32 %v1920, 3
    %vm1922 = vcmp.lt.s32.totalorder %v1921, 2
    %vm1923 = vcmp.eq.s32.totalorder %v1921, 0
    %v1924 = vxor.u32 %v1918, 2147483648
    %v1925 = vsel %vm1923, %v1917, %v1924
    %vm1926 = vcmp.eq.s32.totalorder %v1921, 2
    %v1927 = vxor.u32 %v1917, 2147483648
    %v1928 = vsel %vm1926, %v1927, %v1918
    %v1929 = vsel %vm1922, %v1925, %v1928
    %v1930 = vsel %vm1919, nan, %v1929
    %v1931 = vand.u32 2147483647, %v288
    %vm1932 = vcmp.le.f32.partialorder %v1931, 0.7853982
    %vm1933 = vcmp.lt.s32.totalorder %v288, 0
    %v1934 = vand.u32 %v288, 2139095040
    %v1935 = vshrl.u32 %v1934, 23
    %v1936 = vsub.s32 %v1935, 127
    %v1937 = vand.u32 2147483647, %v288
    %v1938 = vand.u32 %v1937, 8388607
    %v1939 = vor.u32 %v1938, 8388608
    %v1940 = vsub.s32 0, %v1939
    %v1941 = vadd.s32 %v1936, 1
    %vm1942 = vcmp.gt.s32.totalorder %v1941, 0
    %v1943 = vsel %vm1942, %v1941, 0
    %v1944 = vshrl.u32 %v1943, 5
    %v1945 = vand.u32 %v1943, 31
    %v1946 = vsub.s32 32, %v1945
    %v1947 = vshrl.u32 683565275, %v1946
    %v1948 = vshll.u32 683565275, %v1945
    %v1949 = vshrl.u32 2475754826, %v1946
    %v1950 = vor.u32 %v1948, %v1949
    %v1951 = vshll.u32 2475754826, %v1945
    %v1952 = vshrl.u32 2131351028, %v1946
    %v1953 = vor.u32 %v1951, %v1952
    %v1954 = vshll.u32 2131351028, %v1945
    %v1955 = vshrl.u32 2102212464, %v1946
    %v1956 = vor.u32 %v1954, %v1955
    %v1957 = vshll.u32 2102212464, %v1945
    %v1958 = vshrl.u32 920167782, %v1946
    %v1959 = vor.u32 %v1957, %v1958
    %v1960 = vshll.u32 920167782, %v1945
    %v1961 = vshrl.u32 1326507024, %v1946
    %v1962 = vor.u32 %v1960, %v1961
    %vm1963 = vcmp.lt.s32.totalorder %v1944, 1
    %vm1964 = vcmp.lt.s32.totalorder %v1944, 2
    %vm1965 = vcmp.lt.s32.totalorder %v1944, 3
    %vm1966 = vcmp.lt.s32.totalorder %v1944, 4
    %v1967 = vsel %vm1963, %v1947, %v1950
    %v1968 = vsel %vm1966, %v1956, 2102212464
    %v1969 = vsel %vm1965, %v1953, %v1968
    %v1970 = vsel %vm1964, %v1967, %v1969
    %v1971 = vsel %vm1963, %v1950, %v1953
    %v1972 = vsel %vm1966, %v1959, 920167782
    %v1973 = vsel %vm1965, %v1956, %v1972
    %v1974 = vsel %vm1964, %v1971, %v1973
    %v1975 = vsel %vm1963, %v1953, %v1956
    %v1976 = vsel %vm1966, %v1962, 1326507024
    %v1977 = vsel %vm1965, %v1959, %v1976
    %v1978 = vsel %vm1964, %v1975, %v1977
    %v1979 = vshll.u32 %v1939, 8
    %v1980 = vmul.u32.u64.compose %v1979, %v1978
    %v1981 = vextract.low.u32 %v1980
    %v1982 = vextract.high.u32 %v1980
    %v1983 = vmul.u32.u64.compose %v1979, %v1974
    %v1984 = vextract.low.u32 %v1983
    %v1985 = vextract.high.u32 %v1983
    %v1986 = vmul.u32 %v1979, %v1970
    %v1987 = vadd.s32 %v1982, %v1984
    %vm1988 = vc.u32 %v1982, %v1984
    %v1989 = vadd.s32 %v1985, 1
    %v1990 = vsel %vm1988, %v1989, %v1985
    %v1991 = vadd.s32 %v1986, %v1990
    %v1992 = vadd.s32 %v1991, 536870912
    %v1993 = vshrl.u32 %v1992, 30
    %v1994 = vshll.u32 %v1993, 30
    %v1995 = vsub.s32 %v1991, %v1994
    %vm1996 = vcmp.lt.s32.totalorder %v1995, 0
    %v1997 = vsub.s32 0, %v1995
    %v1998 = vsel %vm1996, %v1997, %v1995
    %v1999 = vclz %v1998
    %v2000 = vsub.s32 %v1999, 2
    %vm2001 = vcmp.gt.s32.totalorder 0, %v2000
    %v2002 = vsel %vm2001, 0, %v2000
    %v2003 = vsub.s32 32, %v2002
    %v2004 = vshll.u32 %v1995, %v2002
    %v2005 = vshrl.u32 %v1987, %v2003
    %v2006 = vor.u32 %v2004, %v2005
    %v2007 = vsub.s32 4294967266, %v2002
    %v2008 = vadd.s32 %v2007, 127
    %v2009 = vshll.u32 %v2008, 23
    %v2010 = vor.u32 4788187, %v2009
    %v2011 = vand.u32 2147483647, %v2010
    %v2013 = vcvt.s32.f32 %v2006
    %v2014 = vmul.f32 %v2013, %v2011
    %v2015 = vxor.u32 %v2014, 2147483648
    %v2016 = vsel %vm1933, %v2015, %v2014
    %v2017 = vsub.s32 4, %v1993
    %v2018 = vsel %vm1933, %v2017, %v1993
    %v2019 = vsel %vm1932, %v288, %v2016
    %v2020 = vsel %vm1932, 0, %v2018
    %v2021 = vcosq.f32.pop %v2019
    %v2022 = vsinq.f32.pop %v2019
    %vm2023 = vweird.f32 %v288
    %v2024 = vadd.s32 %v2020, 3
    %v2025 = vand.u32 %v2024, 3
    %vm2026 = vcmp.lt.s32.totalorder %v2025, 2
    %vm2027 = vcmp.eq.s32.totalorder %v2025, 0
    %v2028 = vxor.u32 %v2022, 2147483648
    %v2029 = vsel %vm2027, %v2021, %v2028
    %vm2030 = vcmp.eq.s32.totalorder %v2025, 2
    %v2031 = vxor.u32 %v2021, 2147483648
    %v2032 = vsel %vm2030, %v2031, %v2022
    %v2033 = vsel %vm2026, %v2029, %v2032
    %v2034 = vsel %vm2023, nan, %v2033
    %v2035 = vand.u32 2147483647, %v293
    %vm2036 = vcmp.le.f32.partialorder %v2035, 0.7853982
    %vm2037 = vcmp.lt.s32.totalorder %v293, 0
    %v2038 = vand.u32 %v293, 2139095040
    %v2039 = vshrl.u32 %v2038, 23
    %v2040 = vsub.s32 %v2039, 127
    %v2041 = vand.u32 2147483647, %v293
    %v2042 = vand.u32 %v2041, 8388607
    %v2043 = vor.u32 %v2042, 8388608
    %v2044 = vsub.s32 0, %v2043
    %v2045 = vadd.s32 %v2040, 1
    %vm2046 = vcmp.gt.s32.totalorder %v2045, 0
    %v2047 = vsel %vm2046, %v2045, 0
    %v2048 = vshrl.u32 %v2047, 5
    %v2049 = vand.u32 %v2047, 31
    %v2050 = vsub.s32 32, %v2049
    %v2051 = vshrl.u32 683565275, %v2050
    %v2052 = vshll.u32 683565275, %v2049
    %v2053 = vshrl.u32 2475754826, %v2050
    %v2054 = vor.u32 %v2052, %v2053
    %v2055 = vshll.u32 2475754826, %v2049
    %v2056 = vshrl.u32 2131351028, %v2050
    %v2057 = vor.u32 %v2055, %v2056
    %v2058 = vshll.u32 2131351028, %v2049
    %v2059 = vshrl.u32 2102212464, %v2050
    %v2060 = vor.u32 %v2058, %v2059
    %v2061 = vshll.u32 2102212464, %v2049
    %v2062 = vshrl.u32 920167782, %v2050
    %v2063 = vor.u32 %v2061, %v2062
    %v2064 = vshll.u32 920167782, %v2049
    %v2065 = vshrl.u32 1326507024, %v2050
    %v2066 = vor.u32 %v2064, %v2065
    %vm2067 = vcmp.lt.s32.totalorder %v2048, 1
    %vm2068 = vcmp.lt.s32.totalorder %v2048, 2
    %vm2069 = vcmp.lt.s32.totalorder %v2048, 3
    %vm2070 = vcmp.lt.s32.totalorder %v2048, 4
    %v2071 = vsel %vm2067, %v2051, %v2054
    %v2072 = vsel %vm2070, %v2060, 2102212464
    %v2073 = vsel %vm2069, %v2057, %v2072
    %v2074 = vsel %vm2068, %v2071, %v2073
    %v2075 = vsel %vm2067, %v2054, %v2057
    %v2076 = vsel %vm2070, %v2063, 920167782
    %v2077 = vsel %vm2069, %v2060, %v2076
    %v2078 = vsel %vm2068, %v2075, %v2077
    %v2079 = vsel %vm2067, %v2057, %v2060
    %v2080 = vsel %vm2070, %v2066, 1326507024
    %v2081 = vsel %vm2069, %v2063, %v2080
    %v2082 = vsel %vm2068, %v2079, %v2081
    %v2083 = vshll.u32 %v2043, 8
    %v2084 = vmul.u32.u64.compose %v2083, %v2082
    %v2085 = vextract.low.u32 %v2084
    %v2086 = vextract.high.u32 %v2084
    %v2087 = vmul.u32.u64.compose %v2083, %v2078
    %v2088 = vextract.low.u32 %v2087
    %v2089 = vextract.high.u32 %v2087
    %v2090 = vmul.u32 %v2083, %v2074
    %v2091 = vadd.s32 %v2086, %v2088
    %vm2092 = vc.u32 %v2086, %v2088
    %v2093 = vadd.s32 %v2089, 1
    %v2094 = vsel %vm2092, %v2093, %v2089
    %v2095 = vadd.s32 %v2090, %v2094
    %v2096 = vadd.s32 %v2095, 536870912
    %v2097 = vshrl.u32 %v2096, 30
    %v2098 = vshll.u32 %v2097, 30
    %v2099 = vsub.s32 %v2095, %v2098
    %vm2100 = vcmp.lt.s32.totalorder %v2099, 0
    %v2101 = vsub.s32 0, %v2099
    %v2102 = vsel %vm2100, %v2101, %v2099
    %v2103 = vclz %v2102
    %v2104 = vsub.s32 %v2103, 2
    %vm2105 = vcmp.gt.s32.totalorder 0, %v2104
    %v2106 = vsel %vm2105, 0, %v2104
    %v2107 = vsub.s32 32, %v2106
    %v2108 = vshll.u32 %v2099, %v2106
    %v2109 = vshrl.u32 %v2091, %v2107
    %v2110 = vor.u32 %v2108, %v2109
    %v2111 = vsub.s32 4294967266, %v2106
    %v2112 = vadd.s32 %v2111, 127
    %v2113 = vshll.u32 %v2112, 23
    %v2114 = vor.u32 4788187, %v2113
    %v2115 = vand.u32 2147483647, %v2114
    %v2117 = vcvt.s32.f32 %v2110
    %v2118 = vmul.f32 %v2117, %v2115
    %v2119 = vxor.u32 %v2118, 2147483648
    %v2120 = vsel %vm2037, %v2119, %v2118
    %v2121 = vsub.s32 4, %v2097
    %v2122 = vsel %vm2037, %v2121, %v2097
    %v2123 = vsel %vm2036, %v293, %v2120
    %v2124 = vsel %vm2036, 0, %v2122
    %v2125 = vcosq.f32.pop %v2123
    %v2126 = vsinq.f32.pop %v2123
    %vm2127 = vweird.f32 %v293
    %v2128 = vadd.s32 %v2124, 3
    %v2129 = vand.u32 %v2128, 3
    %vm2130 = vcmp.lt.s32.totalorder %v2129, 2
    %vm2131 = vcmp.eq.s32.totalorder %v2129, 0
    %v2132 = vxor.u32 %v2126, 2147483648
    %v2133 = vsel %vm2131, %v2125, %v2132
    %vm2134 = vcmp.eq.s32.totalorder %v2129, 2
    %v2135 = vxor.u32 %v2125, 2147483648
    %v2136 = vsel %vm2134, %v2135, %v2126
    %v2137 = vsel %vm2130, %v2133, %v2136
    %v2138 = vsel %vm2127, nan, %v2137
    %v2139 = vand.u32 2147483647, %v298
    %vm2140 = vcmp.le.f32.partialorder %v2139, 0.7853982
    %vm2141 = vcmp.lt.s32.totalorder %v298, 0
    %v2142 = vand.u32 %v298, 2139095040
    %v2143 = vshrl.u32 %v2142, 23
    %v2144 = vsub.s32 %v2143, 127
    %v2145 = vand.u32 2147483647, %v298
    %v2146 = vand.u32 %v2145, 8388607
    %v2147 = vor.u32 %v2146, 8388608
    %v2148 = vsub.s32 0, %v2147
    %v2149 = vadd.s32 %v2144, 1
    %vm2150 = vcmp.gt.s32.totalorder %v2149, 0
    %v2151 = vsel %vm2150, %v2149, 0
    %v2152 = vshrl.u32 %v2151, 5
    %v2153 = vand.u32 %v2151, 31
    %v2154 = vsub.s32 32, %v2153
    %v2155 = vshrl.u32 683565275, %v2154
    %v2156 = vshll.u32 683565275, %v2153
    %v2157 = vshrl.u32 2475754826, %v2154
    %v2158 = vor.u32 %v2156, %v2157
    %v2159 = vshll.u32 2475754826, %v2153
    %v2160 = vshrl.u32 2131351028, %v2154
    %v2161 = vor.u32 %v2159, %v2160
    %v2162 = vshll.u32 2131351028, %v2153
    %v2163 = vshrl.u32 2102212464, %v2154
    %v2164 = vor.u32 %v2162, %v2163
    %v2165 = vshll.u32 2102212464, %v2153
    %v2166 = vshrl.u32 920167782, %v2154
    %v2167 = vor.u32 %v2165, %v2166
    %v2168 = vshll.u32 920167782, %v2153
    %v2169 = vshrl.u32 1326507024, %v2154
    %v2170 = vor.u32 %v2168, %v2169
    %vm2171 = vcmp.lt.s32.totalorder %v2152, 1
    %vm2172 = vcmp.lt.s32.totalorder %v2152, 2
    %vm2173 = vcmp.lt.s32.totalorder %v2152, 3
    %vm2174 = vcmp.lt.s32.totalorder %v2152, 4
    %v2175 = vsel %vm2171, %v2155, %v2158
    %v2176 = vsel %vm2174, %v2164, 2102212464
    %v2177 = vsel %vm2173, %v2161, %v2176
    %v2178 = vsel %vm2172, %v2175, %v2177
    %v2179 = vsel %vm2171, %v2158, %v2161
    %v2180 = vsel %vm2174, %v2167, 920167782
    %v2181 = vsel %vm2173, %v2164, %v2180
    %v2182 = vsel %vm2172, %v2179, %v2181
    %v2183 = vsel %vm2171, %v2161, %v2164
    %v2184 = vsel %vm2174, %v2170, 1326507024
    %v2185 = vsel %vm2173, %v2167, %v2184
    %v2186 = vsel %vm2172, %v2183, %v2185
    %v2187 = vshll.u32 %v2147, 8
    %v2188 = vmul.u32.u64.compose %v2187, %v2186
    %v2189 = vextract.low.u32 %v2188
    %v2190 = vextract.high.u32 %v2188
    %v2191 = vmul.u32.u64.compose %v2187, %v2182
    %v2192 = vextract.low.u32 %v2191
    %v2193 = vextract.high.u32 %v2191
    %v2194 = vmul.u32 %v2187, %v2178
    %v2195 = vadd.s32 %v2190, %v2192
    %vm2196 = vc.u32 %v2190, %v2192
    %v2197 = vadd.s32 %v2193, 1
    %v2198 = vsel %vm2196, %v2197, %v2193
    %v2199 = vadd.s32 %v2194, %v2198
    %v2200 = vadd.s32 %v2199, 536870912
    %v2201 = vshrl.u32 %v2200, 30
    %v2202 = vshll.u32 %v2201, 30
    %v2203 = vsub.s32 %v2199, %v2202
    %vm2204 = vcmp.lt.s32.totalorder %v2203, 0
    %v2205 = vsub.s32 0, %v2203
    %v2206 = vsel %vm2204, %v2205, %v2203
    %v2207 = vclz %v2206
    %v2208 = vsub.s32 %v2207, 2
    %vm2209 = vcmp.gt.s32.totalorder 0, %v2208
    %v2210 = vsel %vm2209, 0, %v2208
    %v2211 = vsub.s32 32, %v2210
    %v2212 = vshll.u32 %v2203, %v2210
    %v2213 = vshrl.u32 %v2195, %v2211
    %v2214 = vor.u32 %v2212, %v2213
    %v2215 = vsub.s32 4294967266, %v2210
    %v2216 = vadd.s32 %v2215, 127
    %v2217 = vshll.u32 %v2216, 23
    %v2218 = vor.u32 4788187, %v2217
    %v2219 = vand.u32 2147483647, %v2218
    %v2221 = vcvt.s32.f32 %v2214
    %v2222 = vmul.f32 %v2221, %v2219
    %v2223 = vxor.u32 %v2222, 2147483648
    %v2224 = vsel %vm2141, %v2223, %v2222
    %v2225 = vsub.s32 4, %v2201
    %v2226 = vsel %vm2141, %v2225, %v2201
    %v2227 = vsel %vm2140, %v298, %v2224
    %v2228 = vsel %vm2140, 0, %v2226
    %v2229 = vcosq.f32.pop %v2227
    %v2230 = vsinq.f32.pop %v2227
    %vm2231 = vweird.f32 %v298
    %v2232 = vadd.s32 %v2228, 3
    %v2233 = vand.u32 %v2232, 3
    %vm2234 = vcmp.lt.s32.totalorder %v2233, 2
    %vm2235 = vcmp.eq.s32.totalorder %v2233, 0
    %v2236 = vxor.u32 %v2230, 2147483648
    %v2237 = vsel %vm2235, %v2229, %v2236
    %vm2238 = vcmp.eq.s32.totalorder %v2233, 2
    %v2239 = vxor.u32 %v2229, 2147483648
    %v2240 = vsel %vm2238, %v2239, %v2230
    %v2241 = vsel %vm2234, %v2237, %v2240
    %v2242 = vsel %vm2231, nan, %v2241
    %v2243 = vand.u32 2147483647, %v303
    %vm2244 = vcmp.le.f32.partialorder %v2243, 0.7853982
    %vm2245 = vcmp.lt.s32.totalorder %v303, 0
    %v2246 = vand.u32 %v303, 2139095040
    %v2247 = vshrl.u32 %v2246, 23
    %v2248 = vsub.s32 %v2247, 127
    %v2249 = vand.u32 2147483647, %v303
    %v2250 = vand.u32 %v2249, 8388607
    %v2251 = vor.u32 %v2250, 8388608
    %v2252 = vsub.s32 0, %v2251
    %v2253 = vadd.s32 %v2248, 1
    %vm2254 = vcmp.gt.s32.totalorder %v2253, 0
    %v2255 = vsel %vm2254, %v2253, 0
    %v2256 = vshrl.u32 %v2255, 5
    %v2257 = vand.u32 %v2255, 31
    %v2258 = vsub.s32 32, %v2257
    %v2259 = vshrl.u32 683565275, %v2258
    %v2260 = vshll.u32 683565275, %v2257
    %v2261 = vshrl.u32 2475754826, %v2258
    %v2262 = vor.u32 %v2260, %v2261
    %v2263 = vshll.u32 2475754826, %v2257
    %v2264 = vshrl.u32 2131351028, %v2258
    %v2265 = vor.u32 %v2263, %v2264
    %v2266 = vshll.u32 2131351028, %v2257
    %v2267 = vshrl.u32 2102212464, %v2258
    %v2268 = vor.u32 %v2266, %v2267
    %v2269 = vshll.u32 2102212464, %v2257
    %v2270 = vshrl.u32 920167782, %v2258
    %v2271 = vor.u32 %v2269, %v2270
    %v2272 = vshll.u32 920167782, %v2257
    %v2273 = vshrl.u32 1326507024, %v2258
    %v2274 = vor.u32 %v2272, %v2273
    %vm2275 = vcmp.lt.s32.totalorder %v2256, 1
    %vm2276 = vcmp.lt.s32.totalorder %v2256, 2
    %vm2277 = vcmp.lt.s32.totalorder %v2256, 3
    %vm2278 = vcmp.lt.s32.totalorder %v2256, 4
    %v2279 = vsel %vm2275, %v2259, %v2262
    %v2280 = vsel %vm2278, %v2268, 2102212464
    %v2281 = vsel %vm2277, %v2265, %v2280
    %v2282 = vsel %vm2276, %v2279, %v2281
    %v2283 = vsel %vm2275, %v2262, %v2265
    %v2284 = vsel %vm2278, %v2271, 920167782
    %v2285 = vsel %vm2277, %v2268, %v2284
    %v2286 = vsel %vm2276, %v2283, %v2285
    %v2287 = vsel %vm2275, %v2265, %v2268
    %v2288 = vsel %vm2278, %v2274, 1326507024
    %v2289 = vsel %vm2277, %v2271, %v2288
    %v2290 = vsel %vm2276, %v2287, %v2289
    %v2291 = vshll.u32 %v2251, 8
    %v2292 = vmul.u32.u64.compose %v2291, %v2290
    %v2293 = vextract.low.u32 %v2292
    %v2294 = vextract.high.u32 %v2292
    %v2295 = vmul.u32.u64.compose %v2291, %v2286
    %v2296 = vextract.low.u32 %v2295
    %v2297 = vextract.high.u32 %v2295
    %v2298 = vmul.u32 %v2291, %v2282
    %v2299 = vadd.s32 %v2294, %v2296
    %vm2300 = vc.u32 %v2294, %v2296
    %v2301 = vadd.s32 %v2297, 1
    %v2302 = vsel %vm2300, %v2301, %v2297
    %v2303 = vadd.s32 %v2298, %v2302
    %v2304 = vadd.s32 %v2303, 536870912
    %v2305 = vshrl.u32 %v2304, 30
    %v2306 = vshll.u32 %v2305, 30
    %v2307 = vsub.s32 %v2303, %v2306
    %vm2308 = vcmp.lt.s32.totalorder %v2307, 0
    %v2309 = vsub.s32 0, %v2307
    %v2310 = vsel %vm2308, %v2309, %v2307
    %v2311 = vclz %v2310
    %v2312 = vsub.s32 %v2311, 2
    %vm2313 = vcmp.gt.s32.totalorder 0, %v2312
    %v2314 = vsel %vm2313, 0, %v2312
    %v2315 = vsub.s32 32, %v2314
    %v2316 = vshll.u32 %v2307, %v2314
    %v2317 = vshrl.u32 %v2299, %v2315
    %v2318 = vor.u32 %v2316, %v2317
    %v2319 = vsub.s32 4294967266, %v2314
    %v2320 = vadd.s32 %v2319, 127
    %v2321 = vshll.u32 %v2320, 23
    %v2322 = vor.u32 4788187, %v2321
    %v2323 = vand.u32 2147483647, %v2322
    %v2325 = vcvt.s32.f32 %v2318
    %v2326 = vmul.f32 %v2325, %v2323
    %v2327 = vxor.u32 %v2326, 2147483648
    %v2328 = vsel %vm2245, %v2327, %v2326
    %v2329 = vsub.s32 4, %v2305
    %v2330 = vsel %vm2245, %v2329, %v2305
    %v2331 = vsel %vm2244, %v303, %v2328
    %v2332 = vsel %vm2244, 0, %v2330
    %v2333 = vcosq.f32.pop %v2331
    %v2334 = vsinq.f32.pop %v2331
    %vm2335 = vweird.f32 %v303
    %v2336 = vadd.s32 %v2332, 3
    %v2337 = vand.u32 %v2336, 3
    %vm2338 = vcmp.lt.s32.totalorder %v2337, 2
    %vm2339 = vcmp.eq.s32.totalorder %v2337, 0
    %v2340 = vxor.u32 %v2334, 2147483648
    %v2341 = vsel %vm2339, %v2333, %v2340
    %vm2342 = vcmp.eq.s32.totalorder %v2337, 2
    %v2343 = vxor.u32 %v2333, 2147483648
    %v2344 = vsel %vm2342, %v2343, %v2334
    %v2345 = vsel %vm2338, %v2341, %v2344
    %v2346 = vsel %vm2335, nan, %v2345
    %v2347 = vand.u32 2147483647, %v308
    %vm2348 = vcmp.le.f32.partialorder %v2347, 0.7853982
    %vm2349 = vcmp.lt.s32.totalorder %v308, 0
    %v2350 = vand.u32 %v308, 2139095040
    %v2351 = vshrl.u32 %v2350, 23
    %v2352 = vsub.s32 %v2351, 127
    %v2353 = vand.u32 2147483647, %v308
    %v2354 = vand.u32 %v2353, 8388607
    %v2355 = vor.u32 %v2354, 8388608
    %v2356 = vsub.s32 0, %v2355
    %v2357 = vadd.s32 %v2352, 1
    %vm2358 = vcmp.gt.s32.totalorder %v2357, 0
    %v2359 = vsel %vm2358, %v2357, 0
    %v2360 = vshrl.u32 %v2359, 5
    %v2361 = vand.u32 %v2359, 31
    %v2362 = vsub.s32 32, %v2361
    %v2363 = vshrl.u32 683565275, %v2362
    %v2364 = vshll.u32 683565275, %v2361
    %v2365 = vshrl.u32 2475754826, %v2362
    %v2366 = vor.u32 %v2364, %v2365
    %v2367 = vshll.u32 2475754826, %v2361
    %v2368 = vshrl.u32 2131351028, %v2362
    %v2369 = vor.u32 %v2367, %v2368
    %v2370 = vshll.u32 2131351028, %v2361
    %v2371 = vshrl.u32 2102212464, %v2362
    %v2372 = vor.u32 %v2370, %v2371
    %v2373 = vshll.u32 2102212464, %v2361
    %v2374 = vshrl.u32 920167782, %v2362
    %v2375 = vor.u32 %v2373, %v2374
    %v2376 = vshll.u32 920167782, %v2361
    %v2377 = vshrl.u32 1326507024, %v2362
    %v2378 = vor.u32 %v2376, %v2377
    %vm2379 = vcmp.lt.s32.totalorder %v2360, 1
    %vm2380 = vcmp.lt.s32.totalorder %v2360, 2
    %vm2381 = vcmp.lt.s32.totalorder %v2360, 3
    %vm2382 = vcmp.lt.s32.totalorder %v2360, 4
    %v2383 = vsel %vm2379, %v2363, %v2366
    %v2384 = vsel %vm2382, %v2372, 2102212464
    %v2385 = vsel %vm2381, %v2369, %v2384
    %v2386 = vsel %vm2380, %v2383, %v2385
    %v2387 = vsel %vm2379, %v2366, %v2369
    %v2388 = vsel %vm2382, %v2375, 920167782
    %v2389 = vsel %vm2381, %v2372, %v2388
    %v2390 = vsel %vm2380, %v2387, %v2389
    %v2391 = vsel %vm2379, %v2369, %v2372
    %v2392 = vsel %vm2382, %v2378, 1326507024
    %v2393 = vsel %vm2381, %v2375, %v2392
    %v2394 = vsel %vm2380, %v2391, %v2393
    %v2395 = vshll.u32 %v2355, 8
    %v2396 = vmul.u32.u64.compose %v2395, %v2394
    %v2397 = vextract.low.u32 %v2396
    %v2398 = vextract.high.u32 %v2396
    %v2399 = vmul.u32.u64.compose %v2395, %v2390
    %v2400 = vextract.low.u32 %v2399
    %v2401 = vextract.high.u32 %v2399
    %v2402 = vmul.u32 %v2395, %v2386
    %v2403 = vadd.s32 %v2398, %v2400
    %vm2404 = vc.u32 %v2398, %v2400
    %v2405 = vadd.s32 %v2401, 1
    %v2406 = vsel %vm2404, %v2405, %v2401
    %v2407 = vadd.s32 %v2402, %v2406
    %v2408 = vadd.s32 %v2407, 536870912
    %v2409 = vshrl.u32 %v2408, 30
    %v2410 = vshll.u32 %v2409, 30
    %v2411 = vsub.s32 %v2407, %v2410
    %vm2412 = vcmp.lt.s32.totalorder %v2411, 0
    %v2413 = vsub.s32 0, %v2411
    %v2414 = vsel %vm2412, %v2413, %v2411
    %v2415 = vclz %v2414
    %v2416 = vsub.s32 %v2415, 2
    %vm2417 = vcmp.gt.s32.totalorder 0, %v2416
    %v2418 = vsel %vm2417, 0, %v2416
    %v2419 = vsub.s32 32, %v2418
    %v2420 = vshll.u32 %v2411, %v2418
    %v2421 = vshrl.u32 %v2403, %v2419
    %v2422 = vor.u32 %v2420, %v2421
    %v2423 = vsub.s32 4294967266, %v2418
    %v2424 = vadd.s32 %v2423, 127
    %v2425 = vshll.u32 %v2424, 23
    %v2426 = vor.u32 4788187, %v2425
    %v2427 = vand.u32 2147483647, %v2426
    %v2429 = vcvt.s32.f32 %v2422
    %v2430 = vmul.f32 %v2429, %v2427
    %v2431 = vxor.u32 %v2430, 2147483648
    %v2432 = vsel %vm2349, %v2431, %v2430
    %v2433 = vsub.s32 4, %v2409
    %v2434 = vsel %vm2349, %v2433, %v2409
    %v2435 = vsel %vm2348, %v308, %v2432
    %v2436 = vsel %vm2348, 0, %v2434
    %v2437 = vcosq.f32.pop %v2435
    %v2438 = vsinq.f32.pop %v2435
    %vm2439 = vweird.f32 %v308
    %v2440 = vadd.s32 %v2436, 3
    %v2441 = vand.u32 %v2440, 3
    %vm2442 = vcmp.lt.s32.totalorder %v2441, 2
    %vm2443 = vcmp.eq.s32.totalorder %v2441, 0
    %v2444 = vxor.u32 %v2438, 2147483648
    %v2445 = vsel %vm2443, %v2437, %v2444
    %vm2446 = vcmp.eq.s32.totalorder %v2441, 2
    %v2447 = vxor.u32 %v2437, 2147483648
    %v2448 = vsel %vm2446, %v2447, %v2438
    %v2449 = vsel %vm2442, %v2445, %v2448
    %v2450 = vsel %vm2439, nan, %v2449
    %v2451 = vand.u32 2147483647, %v313
    %vm2452 = vcmp.le.f32.partialorder %v2451, 0.7853982
    %vm2453 = vcmp.lt.s32.totalorder %v313, 0
    %v2454 = vand.u32 %v313, 2139095040
    %v2455 = vshrl.u32 %v2454, 23
    %v2456 = vsub.s32 %v2455, 127
    %v2457 = vand.u32 2147483647, %v313
    %v2458 = vand.u32 %v2457, 8388607
    %v2459 = vor.u32 %v2458, 8388608
    %v2460 = vsub.s32 0, %v2459
    %v2461 = vadd.s32 %v2456, 1
    %vm2462 = vcmp.gt.s32.totalorder %v2461, 0
    %v2463 = vsel %vm2462, %v2461, 0
    %v2464 = vshrl.u32 %v2463, 5
    %v2465 = vand.u32 %v2463, 31
    %v2466 = vsub.s32 32, %v2465
    %v2467 = vshrl.u32 683565275, %v2466
    %v2468 = vshll.u32 683565275, %v2465
    %v2469 = vshrl.u32 2475754826, %v2466
    %v2470 = vor.u32 %v2468, %v2469
    %v2471 = vshll.u32 2475754826, %v2465
    %v2472 = vshrl.u32 2131351028, %v2466
    %v2473 = vor.u32 %v2471, %v2472
    %v2474 = vshll.u32 2131351028, %v2465
    %v2475 = vshrl.u32 2102212464, %v2466
    %v2476 = vor.u32 %v2474, %v2475
    %v2477 = vshll.u32 2102212464, %v2465
    %v2478 = vshrl.u32 920167782, %v2466
    %v2479 = vor.u32 %v2477, %v2478
    %v2480 = vshll.u32 920167782, %v2465
    %v2481 = vshrl.u32 1326507024, %v2466
    %v2482 = vor.u32 %v2480, %v2481
    %vm2483 = vcmp.lt.s32.totalorder %v2464, 1
    %vm2484 = vcmp.lt.s32.totalorder %v2464, 2
    %vm2485 = vcmp.lt.s32.totalorder %v2464, 3
    %vm2486 = vcmp.lt.s32.totalorder %v2464, 4
    %v2487 = vsel %vm2483, %v2467, %v2470
    %v2488 = vsel %vm2486, %v2476, 2102212464
    %v2489 = vsel %vm2485, %v2473, %v2488
    %v2490 = vsel %vm2484, %v2487, %v2489
    %v2491 = vsel %vm2483, %v2470, %v2473
    %v2492 = vsel %vm2486, %v2479, 920167782
    %v2493 = vsel %vm2485, %v2476, %v2492
    %v2494 = vsel %vm2484, %v2491, %v2493
    %v2495 = vsel %vm2483, %v2473, %v2476
    %v2496 = vsel %vm2486, %v2482, 1326507024
    %v2497 = vsel %vm2485, %v2479, %v2496
    %v2498 = vsel %vm2484, %v2495, %v2497
    %v2499 = vshll.u32 %v2459, 8
    %v2500 = vmul.u32.u64.compose %v2499, %v2498
    %v2501 = vextract.low.u32 %v2500
    %v2502 = vextract.high.u32 %v2500
    %v2503 = vmul.u32.u64.compose %v2499, %v2494
    %v2504 = vextract.low.u32 %v2503
    %v2505 = vextract.high.u32 %v2503
    %v2506 = vmul.u32 %v2499, %v2490
    %v2507 = vadd.s32 %v2502, %v2504
    %vm2508 = vc.u32 %v2502, %v2504
    %v2509 = vadd.s32 %v2505, 1
    %v2510 = vsel %vm2508, %v2509, %v2505
    %v2511 = vadd.s32 %v2506, %v2510
    %v2512 = vadd.s32 %v2511, 536870912
    %v2513 = vshrl.u32 %v2512, 30
    %v2514 = vshll.u32 %v2513, 30
    %v2515 = vsub.s32 %v2511, %v2514
    %vm2516 = vcmp.lt.s32.totalorder %v2515, 0
    %v2517 = vsub.s32 0, %v2515
    %v2518 = vsel %vm2516, %v2517, %v2515
    %v2519 = vclz %v2518
    %v2520 = vsub.s32 %v2519, 2
    %vm2521 = vcmp.gt.s32.totalorder 0, %v2520
    %v2522 = vsel %vm2521, 0, %v2520
    %v2523 = vsub.s32 32, %v2522
    %v2524 = vshll.u32 %v2515, %v2522
    %v2525 = vshrl.u32 %v2507, %v2523
    %v2526 = vor.u32 %v2524, %v2525
    %v2527 = vsub.s32 4294967266, %v2522
    %v2528 = vadd.s32 %v2527, 127
    %v2529 = vshll.u32 %v2528, 23
    %v2530 = vor.u32 4788187, %v2529
    %v2531 = vand.u32 2147483647, %v2530
    %v2533 = vcvt.s32.f32 %v2526
    %v2534 = vmul.f32 %v2533, %v2531
    %v2535 = vxor.u32 %v2534, 2147483648
    %v2536 = vsel %vm2453, %v2535, %v2534
    %v2537 = vsub.s32 4, %v2513
    %v2538 = vsel %vm2453, %v2537, %v2513
    %v2539 = vsel %vm2452, %v313, %v2536
    %v2540 = vsel %vm2452, 0, %v2538
    %v2541 = vcosq.f32.pop %v2539
    %v2542 = vsinq.f32.pop %v2539
    %vm2543 = vweird.f32 %v313
    %v2544 = vadd.s32 %v2540, 3
    %v2545 = vand.u32 %v2544, 3
    %vm2546 = vcmp.lt.s32.totalorder %v2545, 2
    %vm2547 = vcmp.eq.s32.totalorder %v2545, 0
    %v2548 = vxor.u32 %v2542, 2147483648
    %v2549 = vsel %vm2547, %v2541, %v2548
    %vm2550 = vcmp.eq.s32.totalorder %v2545, 2
    %v2551 = vxor.u32 %v2541, 2147483648
    %v2552 = vsel %vm2550, %v2551, %v2542
    %v2553 = vsel %vm2546, %v2549, %v2552
    %v2554 = vsel %vm2543, nan, %v2553
    %v2555 = vand.u32 2147483647, %v318
    %vm2556 = vcmp.le.f32.partialorder %v2555, 0.7853982
    %vm2557 = vcmp.lt.s32.totalorder %v318, 0
    %v2558 = vand.u32 %v318, 2139095040
    %v2559 = vshrl.u32 %v2558, 23
    %v2560 = vsub.s32 %v2559, 127
    %v2561 = vand.u32 2147483647, %v318
    %v2562 = vand.u32 %v2561, 8388607
    %v2563 = vor.u32 %v2562, 8388608
    %v2564 = vsub.s32 0, %v2563
    %v2565 = vadd.s32 %v2560, 1
    %vm2566 = vcmp.gt.s32.totalorder %v2565, 0
    %v2567 = vsel %vm2566, %v2565, 0
    %v2568 = vshrl.u32 %v2567, 5
    %v2569 = vand.u32 %v2567, 31
    %v2570 = vsub.s32 32, %v2569
    %v2571 = vshrl.u32 683565275, %v2570
    %v2572 = vshll.u32 683565275, %v2569
    %v2573 = vshrl.u32 2475754826, %v2570
    %v2574 = vor.u32 %v2572, %v2573
    %v2575 = vshll.u32 2475754826, %v2569
    %v2576 = vshrl.u32 2131351028, %v2570
    %v2577 = vor.u32 %v2575, %v2576
    %v2578 = vshll.u32 2131351028, %v2569
    %v2579 = vshrl.u32 2102212464, %v2570
    %v2580 = vor.u32 %v2578, %v2579
    %v2581 = vshll.u32 2102212464, %v2569
    %v2582 = vshrl.u32 920167782, %v2570
    %v2583 = vor.u32 %v2581, %v2582
    %v2584 = vshll.u32 920167782, %v2569
    %v2585 = vshrl.u32 1326507024, %v2570
    %v2586 = vor.u32 %v2584, %v2585
    %vm2587 = vcmp.lt.s32.totalorder %v2568, 1
    %vm2588 = vcmp.lt.s32.totalorder %v2568, 2
    %vm2589 = vcmp.lt.s32.totalorder %v2568, 3
    %vm2590 = vcmp.lt.s32.totalorder %v2568, 4
    %v2591 = vsel %vm2587, %v2571, %v2574
    %v2592 = vsel %vm2590, %v2580, 2102212464
    %v2593 = vsel %vm2589, %v2577, %v2592
    %v2594 = vsel %vm2588, %v2591, %v2593
    %v2595 = vsel %vm2587, %v2574, %v2577
    %v2596 = vsel %vm2590, %v2583, 920167782
    %v2597 = vsel %vm2589, %v2580, %v2596
    %v2598 = vsel %vm2588, %v2595, %v2597
    %v2599 = vsel %vm2587, %v2577, %v2580
    %v2600 = vsel %vm2590, %v2586, 1326507024
    %v2601 = vsel %vm2589, %v2583, %v2600
    %v2602 = vsel %vm2588, %v2599, %v2601
    %v2603 = vshll.u32 %v2563, 8
    %v2604 = vmul.u32.u64.compose %v2603, %v2602
    %v2605 = vextract.low.u32 %v2604
    %v2606 = vextract.high.u32 %v2604
    %v2607 = vmul.u32.u64.compose %v2603, %v2598
    %v2608 = vextract.low.u32 %v2607
    %v2609 = vextract.high.u32 %v2607
    %v2610 = vmul.u32 %v2603, %v2594
    %v2611 = vadd.s32 %v2606, %v2608
    %vm2612 = vc.u32 %v2606, %v2608
    %v2613 = vadd.s32 %v2609, 1
    %v2614 = vsel %vm2612, %v2613, %v2609
    %v2615 = vadd.s32 %v2610, %v2614
    %v2616 = vadd.s32 %v2615, 536870912
    %v2617 = vshrl.u32 %v2616, 30
    %v2618 = vshll.u32 %v2617, 30
    %v2619 = vsub.s32 %v2615, %v2618
    %vm2620 = vcmp.lt.s32.totalorder %v2619, 0
    %v2621 = vsub.s32 0, %v2619
    %v2622 = vsel %vm2620, %v2621, %v2619
    %v2623 = vclz %v2622
    %v2624 = vsub.s32 %v2623, 2
    %vm2625 = vcmp.gt.s32.totalorder 0, %v2624
    %v2626 = vsel %vm2625, 0, %v2624
    %v2627 = vsub.s32 32, %v2626
    %v2628 = vshll.u32 %v2619, %v2626
    %v2629 = vshrl.u32 %v2611, %v2627
    %v2630 = vor.u32 %v2628, %v2629
    %v2631 = vsub.s32 4294967266, %v2626
    %v2632 = vadd.s32 %v2631, 127
    %v2633 = vshll.u32 %v2632, 23
    %v2634 = vor.u32 4788187, %v2633
    %v2635 = vand.u32 2147483647, %v2634
    %v2637 = vcvt.s32.f32 %v2630
    %v2638 = vmul.f32 %v2637, %v2635
    %v2639 = vxor.u32 %v2638, 2147483648
    %v2640 = vsel %vm2557, %v2639, %v2638
    %v2641 = vsub.s32 4, %v2617
    %v2642 = vsel %vm2557, %v2641, %v2617
    %v2643 = vsel %vm2556, %v318, %v2640
    %v2644 = vsel %vm2556, 0, %v2642
    %v2645 = vcosq.f32.pop %v2643
    %v2646 = vsinq.f32.pop %v2643
    %vm2647 = vweird.f32 %v318
    %v2648 = vadd.s32 %v2644, 3
    %v2649 = vand.u32 %v2648, 3
    %vm2650 = vcmp.lt.s32.totalorder %v2649, 2
    %vm2651 = vcmp.eq.s32.totalorder %v2649, 0
    %v2652 = vxor.u32 %v2646, 2147483648
    %v2653 = vsel %vm2651, %v2645, %v2652
    %vm2654 = vcmp.eq.s32.totalorder %v2649, 2
    %v2655 = vxor.u32 %v2645, 2147483648
    %v2656 = vsel %vm2654, %v2655, %v2646
    %v2657 = vsel %vm2650, %v2653, %v2656
    %v2658 = vsel %vm2647, nan, %v2657
    %v2659 = vand.u32 2147483647, %v323
    %vm2660 = vcmp.le.f32.partialorder %v2659, 0.7853982
    %vm2661 = vcmp.lt.s32.totalorder %v323, 0
    %v2662 = vand.u32 %v323, 2139095040
    %v2663 = vshrl.u32 %v2662, 23
    %v2664 = vsub.s32 %v2663, 127
    %v2665 = vand.u32 2147483647, %v323
    %v2666 = vand.u32 %v2665, 8388607
    %v2667 = vor.u32 %v2666, 8388608
    %v2668 = vsub.s32 0, %v2667
    %v2669 = vadd.s32 %v2664, 1
    %vm2670 = vcmp.gt.s32.totalorder %v2669, 0
    %v2671 = vsel %vm2670, %v2669, 0
    %v2672 = vshrl.u32 %v2671, 5
    %v2673 = vand.u32 %v2671, 31
    %v2674 = vsub.s32 32, %v2673
    %v2675 = vshrl.u32 683565275, %v2674
    %v2676 = vshll.u32 683565275, %v2673
    %v2677 = vshrl.u32 2475754826, %v2674
    %v2678 = vor.u32 %v2676, %v2677
    %v2679 = vshll.u32 2475754826, %v2673
    %v2680 = vshrl.u32 2131351028, %v2674
    %v2681 = vor.u32 %v2679, %v2680
    %v2682 = vshll.u32 2131351028, %v2673
    %v2683 = vshrl.u32 2102212464, %v2674
    %v2684 = vor.u32 %v2682, %v2683
    %v2685 = vshll.u32 2102212464, %v2673
    %v2686 = vshrl.u32 920167782, %v2674
    %v2687 = vor.u32 %v2685, %v2686
    %v2688 = vshll.u32 920167782, %v2673
    %v2689 = vshrl.u32 1326507024, %v2674
    %v2690 = vor.u32 %v2688, %v2689
    %vm2691 = vcmp.lt.s32.totalorder %v2672, 1
    %vm2692 = vcmp.lt.s32.totalorder %v2672, 2
    %vm2693 = vcmp.lt.s32.totalorder %v2672, 3
    %vm2694 = vcmp.lt.s32.totalorder %v2672, 4
    %v2695 = vsel %vm2691, %v2675, %v2678
    %v2696 = vsel %vm2694, %v2684, 2102212464
    %v2697 = vsel %vm2693, %v2681, %v2696
    %v2698 = vsel %vm2692, %v2695, %v2697
    %v2699 = vsel %vm2691, %v2678, %v2681
    %v2700 = vsel %vm2694, %v2687, 920167782
    %v2701 = vsel %vm2693, %v2684, %v2700
    %v2702 = vsel %vm2692, %v2699, %v2701
    %v2703 = vsel %vm2691, %v2681, %v2684
    %v2704 = vsel %vm2694, %v2690, 1326507024
    %v2705 = vsel %vm2693, %v2687, %v2704
    %v2706 = vsel %vm2692, %v2703, %v2705
    %v2707 = vshll.u32 %v2667, 8
    %v2708 = vmul.u32.u64.compose %v2707, %v2706
    %v2709 = vextract.low.u32 %v2708
    %v2710 = vextract.high.u32 %v2708
    %v2711 = vmul.u32.u64.compose %v2707, %v2702
    %v2712 = vextract.low.u32 %v2711
    %v2713 = vextract.high.u32 %v2711
    %v2714 = vmul.u32 %v2707, %v2698
    %v2715 = vadd.s32 %v2710, %v2712
    %vm2716 = vc.u32 %v2710, %v2712
    %v2717 = vadd.s32 %v2713, 1
    %v2718 = vsel %vm2716, %v2717, %v2713
    %v2719 = vadd.s32 %v2714, %v2718
    %v2720 = vadd.s32 %v2719, 536870912
    %v2721 = vshrl.u32 %v2720, 30
    %v2722 = vshll.u32 %v2721, 30
    %v2723 = vsub.s32 %v2719, %v2722
    %vm2724 = vcmp.lt.s32.totalorder %v2723, 0
    %v2725 = vsub.s32 0, %v2723
    %v2726 = vsel %vm2724, %v2725, %v2723
    %v2727 = vclz %v2726
    %v2728 = vsub.s32 %v2727, 2
    %vm2729 = vcmp.gt.s32.totalorder 0, %v2728
    %v2730 = vsel %vm2729, 0, %v2728
    %v2731 = vsub.s32 32, %v2730
    %v2732 = vshll.u32 %v2723, %v2730
    %v2733 = vshrl.u32 %v2715, %v2731
    %v2734 = vor.u32 %v2732, %v2733
    %v2735 = vsub.s32 4294967266, %v2730
    %v2736 = vadd.s32 %v2735, 127
    %v2737 = vshll.u32 %v2736, 23
    %v2738 = vor.u32 4788187, %v2737
    %v2739 = vand.u32 2147483647, %v2738
    %v2741 = vcvt.s32.f32 %v2734
    %v2742 = vmul.f32 %v2741, %v2739
    %v2743 = vxor.u32 %v2742, 2147483648
    %v2744 = vsel %vm2661, %v2743, %v2742
    %v2745 = vsub.s32 4, %v2721
    %v2746 = vsel %vm2661, %v2745, %v2721
    %v2747 = vsel %vm2660, %v323, %v2744
    %v2748 = vsel %vm2660, 0, %v2746
    %v2749 = vcosq.f32.pop %v2747
    %v2750 = vsinq.f32.pop %v2747
    %vm2751 = vweird.f32 %v323
    %v2752 = vadd.s32 %v2748, 3
    %v2753 = vand.u32 %v2752, 3
    %vm2754 = vcmp.lt.s32.totalorder %v2753, 2
    %vm2755 = vcmp.eq.s32.totalorder %v2753, 0
    %v2756 = vxor.u32 %v2750, 2147483648
    %v2757 = vsel %vm2755, %v2749, %v2756
    %vm2758 = vcmp.eq.s32.totalorder %v2753, 2
    %v2759 = vxor.u32 %v2749, 2147483648
    %v2760 = vsel %vm2758, %v2759, %v2750
    %v2761 = vsel %vm2754, %v2757, %v2760
    %v2762 = vsel %vm2751, nan, %v2761
    %v2763 = vand.u32 2147483647, %v328
    %vm2764 = vcmp.le.f32.partialorder %v2763, 0.7853982
    %vm2765 = vcmp.lt.s32.totalorder %v328, 0
    %v2766 = vand.u32 %v328, 2139095040
    %v2767 = vshrl.u32 %v2766, 23
    %v2768 = vsub.s32 %v2767, 127
    %v2769 = vand.u32 2147483647, %v328
    %v2770 = vand.u32 %v2769, 8388607
    %v2771 = vor.u32 %v2770, 8388608
    %v2772 = vsub.s32 0, %v2771
    %v2773 = vadd.s32 %v2768, 1
    %vm2774 = vcmp.gt.s32.totalorder %v2773, 0
    %v2775 = vsel %vm2774, %v2773, 0
    %v2776 = vshrl.u32 %v2775, 5
    %v2777 = vand.u32 %v2775, 31
    %v2778 = vsub.s32 32, %v2777
    %v2779 = vshrl.u32 683565275, %v2778
    %v2780 = vshll.u32 683565275, %v2777
    %v2781 = vshrl.u32 2475754826, %v2778
    %v2782 = vor.u32 %v2780, %v2781
    %v2783 = vshll.u32 2475754826, %v2777
    %v2784 = vshrl.u32 2131351028, %v2778
    %v2785 = vor.u32 %v2783, %v2784
    %v2786 = vshll.u32 2131351028, %v2777
    %v2787 = vshrl.u32 2102212464, %v2778
    %v2788 = vor.u32 %v2786, %v2787
    %v2789 = vshll.u32 2102212464, %v2777
    %v2790 = vshrl.u32 920167782, %v2778
    %v2791 = vor.u32 %v2789, %v2790
    %v2792 = vshll.u32 920167782, %v2777
    %v2793 = vshrl.u32 1326507024, %v2778
    %v2794 = vor.u32 %v2792, %v2793
    %vm2795 = vcmp.lt.s32.totalorder %v2776, 1
    %vm2796 = vcmp.lt.s32.totalorder %v2776, 2
    %vm2797 = vcmp.lt.s32.totalorder %v2776, 3
    %vm2798 = vcmp.lt.s32.totalorder %v2776, 4
    %v2799 = vsel %vm2795, %v2779, %v2782
    %v2800 = vsel %vm2798, %v2788, 2102212464
    %v2801 = vsel %vm2797, %v2785, %v2800
    %v2802 = vsel %vm2796, %v2799, %v2801
    %v2803 = vsel %vm2795, %v2782, %v2785
    %v2804 = vsel %vm2798, %v2791, 920167782
    %v2805 = vsel %vm2797, %v2788, %v2804
    %v2806 = vsel %vm2796, %v2803, %v2805
    %v2807 = vsel %vm2795, %v2785, %v2788
    %v2808 = vsel %vm2798, %v2794, 1326507024
    %v2809 = vsel %vm2797, %v2791, %v2808
    %v2810 = vsel %vm2796, %v2807, %v2809
    %v2811 = vshll.u32 %v2771, 8
    %v2812 = vmul.u32.u64.compose %v2811, %v2810
    %v2813 = vextract.low.u32 %v2812
    %v2814 = vextract.high.u32 %v2812
    %v2815 = vmul.u32.u64.compose %v2811, %v2806
    %v2816 = vextract.low.u32 %v2815
    %v2817 = vextract.high.u32 %v2815
    %v2818 = vmul.u32 %v2811, %v2802
    %v2819 = vadd.s32 %v2814, %v2816
    %vm2820 = vc.u32 %v2814, %v2816
    %v2821 = vadd.s32 %v2817, 1
    %v2822 = vsel %vm2820, %v2821, %v2817
    %v2823 = vadd.s32 %v2818, %v2822
    %v2824 = vadd.s32 %v2823, 536870912
    %v2825 = vshrl.u32 %v2824, 30
    %v2826 = vshll.u32 %v2825, 30
    %v2827 = vsub.s32 %v2823, %v2826
    %vm2828 = vcmp.lt.s32.totalorder %v2827, 0
    %v2829 = vsub.s32 0, %v2827
    %v2830 = vsel %vm2828, %v2829, %v2827
    %v2831 = vclz %v2830
    %v2832 = vsub.s32 %v2831, 2
    %vm2833 = vcmp.gt.s32.totalorder 0, %v2832
    %v2834 = vsel %vm2833, 0, %v2832
    %v2835 = vsub.s32 32, %v2834
    %v2836 = vshll.u32 %v2827, %v2834
    %v2837 = vshrl.u32 %v2819, %v2835
    %v2838 = vor.u32 %v2836, %v2837
    %v2839 = vsub.s32 4294967266, %v2834
    %v2840 = vadd.s32 %v2839, 127
    %v2841 = vshll.u32 %v2840, 23
    %v2842 = vor.u32 4788187, %v2841
    %v2843 = vand.u32 2147483647, %v2842
    %v2845 = vcvt.s32.f32 %v2838
    %v2846 = vmul.f32 %v2845, %v2843
    %v2847 = vxor.u32 %v2846, 2147483648
    %v2848 = vsel %vm2765, %v2847, %v2846
    %v2849 = vsub.s32 4, %v2825
    %v2850 = vsel %vm2765, %v2849, %v2825
    %v2851 = vsel %vm2764, %v328, %v2848
    %v2852 = vsel %vm2764, 0, %v2850
    %v2853 = vcosq.f32.pop %v2851
    %v2854 = vsinq.f32.pop %v2851
    %vm2855 = vweird.f32 %v328
    %v2856 = vadd.s32 %v2852, 3
    %v2857 = vand.u32 %v2856, 3
    %vm2858 = vcmp.lt.s32.totalorder %v2857, 2
    %vm2859 = vcmp.eq.s32.totalorder %v2857, 0
    %v2860 = vxor.u32 %v2854, 2147483648
    %v2861 = vsel %vm2859, %v2853, %v2860
    %vm2862 = vcmp.eq.s32.totalorder %v2857, 2
    %v2863 = vxor.u32 %v2853, 2147483648
    %v2864 = vsel %vm2862, %v2863, %v2854
    %v2865 = vsel %vm2858, %v2861, %v2864
    %v2866 = vsel %vm2855, nan, %v2865
    %v2867 = vand.u32 2147483647, %v333
    %vm2868 = vcmp.le.f32.partialorder %v2867, 0.7853982
    %vm2869 = vcmp.lt.s32.totalorder %v333, 0
    %v2870 = vand.u32 %v333, 2139095040
    %v2871 = vshrl.u32 %v2870, 23
    %v2872 = vsub.s32 %v2871, 127
    %v2873 = vand.u32 2147483647, %v333
    %v2874 = vand.u32 %v2873, 8388607
    %v2875 = vor.u32 %v2874, 8388608
    %v2876 = vsub.s32 0, %v2875
    %v2877 = vadd.s32 %v2872, 1
    %vm2878 = vcmp.gt.s32.totalorder %v2877, 0
    %v2879 = vsel %vm2878, %v2877, 0
    %v2880 = vshrl.u32 %v2879, 5
    %v2881 = vand.u32 %v2879, 31
    %v2882 = vsub.s32 32, %v2881
    %v2883 = vshrl.u32 683565275, %v2882
    %v2884 = vshll.u32 683565275, %v2881
    %v2885 = vshrl.u32 2475754826, %v2882
    %v2886 = vor.u32 %v2884, %v2885
    %v2887 = vshll.u32 2475754826, %v2881
    %v2888 = vshrl.u32 2131351028, %v2882
    %v2889 = vor.u32 %v2887, %v2888
    %v2890 = vshll.u32 2131351028, %v2881
    %v2891 = vshrl.u32 2102212464, %v2882
    %v2892 = vor.u32 %v2890, %v2891
    %v2893 = vshll.u32 2102212464, %v2881
    %v2894 = vshrl.u32 920167782, %v2882
    %v2895 = vor.u32 %v2893, %v2894
    %v2896 = vshll.u32 920167782, %v2881
    %v2897 = vshrl.u32 1326507024, %v2882
    %v2898 = vor.u32 %v2896, %v2897
    %vm2899 = vcmp.lt.s32.totalorder %v2880, 1
    %vm2900 = vcmp.lt.s32.totalorder %v2880, 2
    %vm2901 = vcmp.lt.s32.totalorder %v2880, 3
    %vm2902 = vcmp.lt.s32.totalorder %v2880, 4
    %v2903 = vsel %vm2899, %v2883, %v2886
    %v2904 = vsel %vm2902, %v2892, 2102212464
    %v2905 = vsel %vm2901, %v2889, %v2904
    %v2906 = vsel %vm2900, %v2903, %v2905
    %v2907 = vsel %vm2899, %v2886, %v2889
    %v2908 = vsel %vm2902, %v2895, 920167782
    %v2909 = vsel %vm2901, %v2892, %v2908
    %v2910 = vsel %vm2900, %v2907, %v2909
    %v2911 = vsel %vm2899, %v2889, %v2892
    %v2912 = vsel %vm2902, %v2898, 1326507024
    %v2913 = vsel %vm2901, %v2895, %v2912
    %v2914 = vsel %vm2900, %v2911, %v2913
    %v2915 = vshll.u32 %v2875, 8
    %v2916 = vmul.u32.u64.compose %v2915, %v2914
    %v2917 = vextract.low.u32 %v2916
    %v2918 = vextract.high.u32 %v2916
    %v2919 = vmul.u32.u64.compose %v2915, %v2910
    %v2920 = vextract.low.u32 %v2919
    %v2921 = vextract.high.u32 %v2919
    %v2922 = vmul.u32 %v2915, %v2906
    %v2923 = vadd.s32 %v2918, %v2920
    %vm2924 = vc.u32 %v2918, %v2920
    %v2925 = vadd.s32 %v2921, 1
    %v2926 = vsel %vm2924, %v2925, %v2921
    %v2927 = vadd.s32 %v2922, %v2926
    %v2928 = vadd.s32 %v2927, 536870912
    %v2929 = vshrl.u32 %v2928, 30
    %v2930 = vshll.u32 %v2929, 30
    %v2931 = vsub.s32 %v2927, %v2930
    %vm2932 = vcmp.lt.s32.totalorder %v2931, 0
    %v2933 = vsub.s32 0, %v2931
    %v2934 = vsel %vm2932, %v2933, %v2931
    %v2935 = vclz %v2934
    %v2936 = vsub.s32 %v2935, 2
    %vm2937 = vcmp.gt.s32.totalorder 0, %v2936
    %v2938 = vsel %vm2937, 0, %v2936
    %v2939 = vsub.s32 32, %v2938
    %v2940 = vshll.u32 %v2931, %v2938
    %v2941 = vshrl.u32 %v2923, %v2939
    %v2942 = vor.u32 %v2940, %v2941
    %v2943 = vsub.s32 4294967266, %v2938
    %v2944 = vadd.s32 %v2943, 127
    %v2945 = vshll.u32 %v2944, 23
    %v2946 = vor.u32 4788187, %v2945
    %v2947 = vand.u32 2147483647, %v2946
    %v2949 = vcvt.s32.f32 %v2942
    %v2950 = vmul.f32 %v2949, %v2947
    %v2951 = vxor.u32 %v2950, 2147483648
    %v2952 = vsel %vm2869, %v2951, %v2950
    %v2953 = vsub.s32 4, %v2929
    %v2954 = vsel %vm2869, %v2953, %v2929
    %v2955 = vsel %vm2868, %v333, %v2952
    %v2956 = vsel %vm2868, 0, %v2954
    %v2957 = vcosq.f32.pop %v2955
    %v2958 = vsinq.f32.pop %v2955
    %vm2959 = vweird.f32 %v333
    %v2960 = vadd.s32 %v2956, 3
    %v2961 = vand.u32 %v2960, 3
    %vm2962 = vcmp.lt.s32.totalorder %v2961, 2
    %vm2963 = vcmp.eq.s32.totalorder %v2961, 0
    %v2964 = vxor.u32 %v2958, 2147483648
    %v2965 = vsel %vm2963, %v2957, %v2964
    %vm2966 = vcmp.eq.s32.totalorder %v2961, 2
    %v2967 = vxor.u32 %v2957, 2147483648
    %v2968 = vsel %vm2966, %v2967, %v2958
    %v2969 = vsel %vm2962, %v2965, %v2968
    %v2970 = vsel %vm2959, nan, %v2969
    %v2971 = vand.u32 2147483647, %v338
    %vm2972 = vcmp.le.f32.partialorder %v2971, 0.7853982
    %vm2973 = vcmp.lt.s32.totalorder %v338, 0
    %v2974 = vand.u32 %v338, 2139095040
    %v2975 = vshrl.u32 %v2974, 23
    %v2976 = vsub.s32 %v2975, 127
    %v2977 = vand.u32 2147483647, %v338
    %v2978 = vand.u32 %v2977, 8388607
    %v2979 = vor.u32 %v2978, 8388608
    %v2980 = vsub.s32 0, %v2979
    %v2981 = vadd.s32 %v2976, 1
    %vm2982 = vcmp.gt.s32.totalorder %v2981, 0
    %v2983 = vsel %vm2982, %v2981, 0
    %v2984 = vshrl.u32 %v2983, 5
    %v2985 = vand.u32 %v2983, 31
    %v2986 = vsub.s32 32, %v2985
    %v2987 = vshrl.u32 683565275, %v2986
    %v2988 = vshll.u32 683565275, %v2985
    %v2989 = vshrl.u32 2475754826, %v2986
    %v2990 = vor.u32 %v2988, %v2989
    %v2991 = vshll.u32 2475754826, %v2985
    %v2992 = vshrl.u32 2131351028, %v2986
    %v2993 = vor.u32 %v2991, %v2992
    %v2994 = vshll.u32 2131351028, %v2985
    %v2995 = vshrl.u32 2102212464, %v2986
    %v2996 = vor.u32 %v2994, %v2995
    %v2997 = vshll.u32 2102212464, %v2985
    %v2998 = vshrl.u32 920167782, %v2986
    %v2999 = vor.u32 %v2997, %v2998
    %v3000 = vshll.u32 920167782, %v2985
    %v3001 = vshrl.u32 1326507024, %v2986
    %v3002 = vor.u32 %v3000, %v3001
    %vm3003 = vcmp.lt.s32.totalorder %v2984, 1
    %vm3004 = vcmp.lt.s32.totalorder %v2984, 2
    %vm3005 = vcmp.lt.s32.totalorder %v2984, 3
    %vm3006 = vcmp.lt.s32.totalorder %v2984, 4
    %v3007 = vsel %vm3003, %v2987, %v2990
    %v3008 = vsel %vm3006, %v2996, 2102212464
    %v3009 = vsel %vm3005, %v2993, %v3008
    %v3010 = vsel %vm3004, %v3007, %v3009
    %v3011 = vsel %vm3003, %v2990, %v2993
    %v3012 = vsel %vm3006, %v2999, 920167782
    %v3013 = vsel %vm3005, %v2996, %v3012
    %v3014 = vsel %vm3004, %v3011, %v3013
    %v3015 = vsel %vm3003, %v2993, %v2996
    %v3016 = vsel %vm3006, %v3002, 1326507024
    %v3017 = vsel %vm3005, %v2999, %v3016
    %v3018 = vsel %vm3004, %v3015, %v3017
    %v3019 = vshll.u32 %v2979, 8
    %v3020 = vmul.u32.u64.compose %v3019, %v3018
    %v3021 = vextract.low.u32 %v3020
    %v3022 = vextract.high.u32 %v3020
    %v3023 = vmul.u32.u64.compose %v3019, %v3014
    %v3024 = vextract.low.u32 %v3023
    %v3025 = vextract.high.u32 %v3023
    %v3026 = vmul.u32 %v3019, %v3010
    %v3027 = vadd.s32 %v3022, %v3024
    %vm3028 = vc.u32 %v3022, %v3024
    %v3029 = vadd.s32 %v3025, 1
    %v3030 = vsel %vm3028, %v3029, %v3025
    %v3031 = vadd.s32 %v3026, %v3030
    %v3032 = vadd.s32 %v3031, 536870912
    %v3033 = vshrl.u32 %v3032, 30
    %v3034 = vshll.u32 %v3033, 30
    %v3035 = vsub.s32 %v3031, %v3034
    %vm3036 = vcmp.lt.s32.totalorder %v3035, 0
    %v3037 = vsub.s32 0, %v3035
    %v3038 = vsel %vm3036, %v3037, %v3035
    %v3039 = vclz %v3038
    %v3040 = vsub.s32 %v3039, 2
    %vm3041 = vcmp.gt.s32.totalorder 0, %v3040
    %v3042 = vsel %vm3041, 0, %v3040
    %v3043 = vsub.s32 32, %v3042
    %v3044 = vshll.u32 %v3035, %v3042
    %v3045 = vshrl.u32 %v3027, %v3043
    %v3046 = vor.u32 %v3044, %v3045
    %v3047 = vsub.s32 4294967266, %v3042
    %v3048 = vadd.s32 %v3047, 127
    %v3049 = vshll.u32 %v3048, 23
    %v3050 = vor.u32 4788187, %v3049
    %v3051 = vand.u32 2147483647, %v3050
    %v3053 = vcvt.s32.f32 %v3046
    %v3054 = vmul.f32 %v3053, %v3051
    %v3055 = vxor.u32 %v3054, 2147483648
    %v3056 = vsel %vm2973, %v3055, %v3054
    %v3057 = vsub.s32 4, %v3033
    %v3058 = vsel %vm2973, %v3057, %v3033
    %v3059 = vsel %vm2972, %v338, %v3056
    %v3060 = vsel %vm2972, 0, %v3058
    %v3061 = vcosq.f32.pop %v3059
    %v3062 = vsinq.f32.pop %v3059
    %vm3063 = vweird.f32 %v338
    %v3064 = vadd.s32 %v3060, 3
    %v3065 = vand.u32 %v3064, 3
    %vm3066 = vcmp.lt.s32.totalorder %v3065, 2
    %vm3067 = vcmp.eq.s32.totalorder %v3065, 0
    %v3068 = vxor.u32 %v3062, 2147483648
    %v3069 = vsel %vm3067, %v3061, %v3068
    %vm3070 = vcmp.eq.s32.totalorder %v3065, 2
    %v3071 = vxor.u32 %v3061, 2147483648
    %v3072 = vsel %vm3070, %v3071, %v3062
    %v3073 = vsel %vm3066, %v3069, %v3072
    %v3074 = vsel %vm3063, nan, %v3073
    %v3075 = vand.u32 2147483647, %v343
    %vm3076 = vcmp.le.f32.partialorder %v3075, 0.7853982
    %vm3077 = vcmp.lt.s32.totalorder %v343, 0
    %v3078 = vand.u32 %v343, 2139095040
    %v3079 = vshrl.u32 %v3078, 23
    %v3080 = vsub.s32 %v3079, 127
    %v3081 = vand.u32 2147483647, %v343
    %v3082 = vand.u32 %v3081, 8388607
    %v3083 = vor.u32 %v3082, 8388608
    %v3084 = vsub.s32 0, %v3083
    %v3085 = vadd.s32 %v3080, 1
    %vm3086 = vcmp.gt.s32.totalorder %v3085, 0
    %v3087 = vsel %vm3086, %v3085, 0
    %v3088 = vshrl.u32 %v3087, 5
    %v3089 = vand.u32 %v3087, 31
    %v3090 = vsub.s32 32, %v3089
    %v3091 = vshrl.u32 683565275, %v3090
    %v3092 = vshll.u32 683565275, %v3089
    %v3093 = vshrl.u32 2475754826, %v3090
    %v3094 = vor.u32 %v3092, %v3093
    %v3095 = vshll.u32 2475754826, %v3089
    %v3096 = vshrl.u32 2131351028, %v3090
    %v3097 = vor.u32 %v3095, %v3096
    %v3098 = vshll.u32 2131351028, %v3089
    %v3099 = vshrl.u32 2102212464, %v3090
    %v3100 = vor.u32 %v3098, %v3099
    %v3101 = vshll.u32 2102212464, %v3089
    %v3102 = vshrl.u32 920167782, %v3090
    %v3103 = vor.u32 %v3101, %v3102
    %v3104 = vshll.u32 920167782, %v3089
    %v3105 = vshrl.u32 1326507024, %v3090
    %v3106 = vor.u32 %v3104, %v3105
    %vm3107 = vcmp.lt.s32.totalorder %v3088, 1
    %vm3108 = vcmp.lt.s32.totalorder %v3088, 2
    %vm3109 = vcmp.lt.s32.totalorder %v3088, 3
    %vm3110 = vcmp.lt.s32.totalorder %v3088, 4
    %v3111 = vsel %vm3107, %v3091, %v3094
    %v3112 = vsel %vm3110, %v3100, 2102212464
    %v3113 = vsel %vm3109, %v3097, %v3112
    %v3114 = vsel %vm3108, %v3111, %v3113
    %v3115 = vsel %vm3107, %v3094, %v3097
    %v3116 = vsel %vm3110, %v3103, 920167782
    %v3117 = vsel %vm3109, %v3100, %v3116
    %v3118 = vsel %vm3108, %v3115, %v3117
    %v3119 = vsel %vm3107, %v3097, %v3100
    %v3120 = vsel %vm3110, %v3106, 1326507024
    %v3121 = vsel %vm3109, %v3103, %v3120
    %v3122 = vsel %vm3108, %v3119, %v3121
    %v3123 = vshll.u32 %v3083, 8
    %v3124 = vmul.u32.u64.compose %v3123, %v3122
    %v3125 = vextract.low.u32 %v3124
    %v3126 = vextract.high.u32 %v3124
    %v3127 = vmul.u32.u64.compose %v3123, %v3118
    %v3128 = vextract.low.u32 %v3127
    %v3129 = vextract.high.u32 %v3127
    %v3130 = vmul.u32 %v3123, %v3114
    %v3131 = vadd.s32 %v3126, %v3128
    %vm3132 = vc.u32 %v3126, %v3128
    %v3133 = vadd.s32 %v3129, 1
    %v3134 = vsel %vm3132, %v3133, %v3129
    %v3135 = vadd.s32 %v3130, %v3134
    %v3136 = vadd.s32 %v3135, 536870912
    %v3137 = vshrl.u32 %v3136, 30
    %v3138 = vshll.u32 %v3137, 30
    %v3139 = vsub.s32 %v3135, %v3138
    %vm3140 = vcmp.lt.s32.totalorder %v3139, 0
    %v3141 = vsub.s32 0, %v3139
    %v3142 = vsel %vm3140, %v3141, %v3139
    %v3143 = vclz %v3142
    %v3144 = vsub.s32 %v3143, 2
    %vm3145 = vcmp.gt.s32.totalorder 0, %v3144
    %v3146 = vsel %vm3145, 0, %v3144
    %v3147 = vsub.s32 32, %v3146
    %v3148 = vshll.u32 %v3139, %v3146
    %v3149 = vshrl.u32 %v3131, %v3147
    %v3150 = vor.u32 %v3148, %v3149
    %v3151 = vsub.s32 4294967266, %v3146
    %v3152 = vadd.s32 %v3151, 127
    %v3153 = vshll.u32 %v3152, 23
    %v3154 = vor.u32 4788187, %v3153
    %v3155 = vand.u32 2147483647, %v3154
    %v3157 = vcvt.s32.f32 %v3150
    %v3158 = vmul.f32 %v3157, %v3155
    %v3159 = vxor.u32 %v3158, 2147483648
    %v3160 = vsel %vm3077, %v3159, %v3158
    %v3161 = vsub.s32 4, %v3137
    %v3162 = vsel %vm3077, %v3161, %v3137
    %v3163 = vsel %vm3076, %v343, %v3160
    %v3164 = vsel %vm3076, 0, %v3162
    %v3165 = vcosq.f32.pop %v3163
    %v3166 = vsinq.f32.pop %v3163
    %vm3167 = vweird.f32 %v343
    %v3168 = vadd.s32 %v3164, 3
    %v3169 = vand.u32 %v3168, 3
    %vm3170 = vcmp.lt.s32.totalorder %v3169, 2
    %vm3171 = vcmp.eq.s32.totalorder %v3169, 0
    %v3172 = vxor.u32 %v3166, 2147483648
    %v3173 = vsel %vm3171, %v3165, %v3172
    %vm3174 = vcmp.eq.s32.totalorder %v3169, 2
    %v3175 = vxor.u32 %v3165, 2147483648
    %v3176 = vsel %vm3174, %v3175, %v3166
    %v3177 = vsel %vm3170, %v3173, %v3176
    %v3178 = vsel %vm3167, nan, %v3177
    %v3179 = vand.u32 2147483647, %v348
    %vm3180 = vcmp.le.f32.partialorder %v3179, 0.7853982
    %vm3181 = vcmp.lt.s32.totalorder %v348, 0
    %v3182 = vand.u32 %v348, 2139095040
    %v3183 = vshrl.u32 %v3182, 23
    %v3184 = vsub.s32 %v3183, 127
    %v3185 = vand.u32 2147483647, %v348
    %v3186 = vand.u32 %v3185, 8388607
    %v3187 = vor.u32 %v3186, 8388608
    %v3188 = vsub.s32 0, %v3187
    %v3189 = vadd.s32 %v3184, 1
    %vm3190 = vcmp.gt.s32.totalorder %v3189, 0
    %v3191 = vsel %vm3190, %v3189, 0
    %v3192 = vshrl.u32 %v3191, 5
    %v3193 = vand.u32 %v3191, 31
    %v3194 = vsub.s32 32, %v3193
    %v3195 = vshrl.u32 683565275, %v3194
    %v3196 = vshll.u32 683565275, %v3193
    %v3197 = vshrl.u32 2475754826, %v3194
    %v3198 = vor.u32 %v3196, %v3197
    %v3199 = vshll.u32 2475754826, %v3193
    %v3200 = vshrl.u32 2131351028, %v3194
    %v3201 = vor.u32 %v3199, %v3200
    %v3202 = vshll.u32 2131351028, %v3193
    %v3203 = vshrl.u32 2102212464, %v3194
    %v3204 = vor.u32 %v3202, %v3203
    %v3205 = vshll.u32 2102212464, %v3193
    %v3206 = vshrl.u32 920167782, %v3194
    %v3207 = vor.u32 %v3205, %v3206
    %v3208 = vshll.u32 920167782, %v3193
    %v3209 = vshrl.u32 1326507024, %v3194
    %v3210 = vor.u32 %v3208, %v3209
    %vm3211 = vcmp.lt.s32.totalorder %v3192, 1
    %vm3212 = vcmp.lt.s32.totalorder %v3192, 2
    %vm3213 = vcmp.lt.s32.totalorder %v3192, 3
    %vm3214 = vcmp.lt.s32.totalorder %v3192, 4
    %v3215 = vsel %vm3211, %v3195, %v3198
    %v3216 = vsel %vm3214, %v3204, 2102212464
    %v3217 = vsel %vm3213, %v3201, %v3216
    %v3218 = vsel %vm3212, %v3215, %v3217
    %v3219 = vsel %vm3211, %v3198, %v3201
    %v3220 = vsel %vm3214, %v3207, 920167782
    %v3221 = vsel %vm3213, %v3204, %v3220
    %v3222 = vsel %vm3212, %v3219, %v3221
    %v3223 = vsel %vm3211, %v3201, %v3204
    %v3224 = vsel %vm3214, %v3210, 1326507024
    %v3225 = vsel %vm3213, %v3207, %v3224
    %v3226 = vsel %vm3212, %v3223, %v3225
    %v3227 = vshll.u32 %v3187, 8
    %v3228 = vmul.u32.u64.compose %v3227, %v3226
    %v3229 = vextract.low.u32 %v3228
    %v3230 = vextract.high.u32 %v3228
    %v3231 = vmul.u32.u64.compose %v3227, %v3222
    %v3232 = vextract.low.u32 %v3231
    %v3233 = vextract.high.u32 %v3231
    %v3234 = vmul.u32 %v3227, %v3218
    %v3235 = vadd.s32 %v3230, %v3232
    %vm3236 = vc.u32 %v3230, %v3232
    %v3237 = vadd.s32 %v3233, 1
    %v3238 = vsel %vm3236, %v3237, %v3233
    %v3239 = vadd.s32 %v3234, %v3238
    %v3240 = vadd.s32 %v3239, 536870912
    %v3241 = vshrl.u32 %v3240, 30
    %v3242 = vshll.u32 %v3241, 30
    %v3243 = vsub.s32 %v3239, %v3242
    %vm3244 = vcmp.lt.s32.totalorder %v3243, 0
    %v3245 = vsub.s32 0, %v3243
    %v3246 = vsel %vm3244, %v3245, %v3243
    %v3247 = vclz %v3246
    %v3248 = vsub.s32 %v3247, 2
    %vm3249 = vcmp.gt.s32.totalorder 0, %v3248
    %v3250 = vsel %vm3249, 0, %v3248
    %v3251 = vsub.s32 32, %v3250
    %v3252 = vshll.u32 %v3243, %v3250
    %v3253 = vshrl.u32 %v3235, %v3251
    %v3254 = vor.u32 %v3252, %v3253
    %v3255 = vsub.s32 4294967266, %v3250
    %v3256 = vadd.s32 %v3255, 127
    %v3257 = vshll.u32 %v3256, 23
    %v3258 = vor.u32 4788187, %v3257
    %v3259 = vand.u32 2147483647, %v3258
    %v3261 = vcvt.s32.f32 %v3254
    %v3262 = vmul.f32 %v3261, %v3259
    %v3263 = vxor.u32 %v3262, 2147483648
    %v3264 = vsel %vm3181, %v3263, %v3262
    %v3265 = vsub.s32 4, %v3241
    %v3266 = vsel %vm3181, %v3265, %v3241
    %v3267 = vsel %vm3180, %v348, %v3264
    %v3268 = vsel %vm3180, 0, %v3266
    %v3269 = vcosq.f32.pop %v3267
    %v3270 = vsinq.f32.pop %v3267
    %vm3271 = vweird.f32 %v348
    %v3272 = vadd.s32 %v3268, 3
    %v3273 = vand.u32 %v3272, 3
    %vm3274 = vcmp.lt.s32.totalorder %v3273, 2
    %vm3275 = vcmp.eq.s32.totalorder %v3273, 0
    %v3276 = vxor.u32 %v3270, 2147483648
    %v3277 = vsel %vm3275, %v3269, %v3276
    %vm3278 = vcmp.eq.s32.totalorder %v3273, 2
    %v3279 = vxor.u32 %v3269, 2147483648
    %v3280 = vsel %vm3278, %v3279, %v3270
    %v3281 = vsel %vm3274, %v3277, %v3280
    %v3282 = vsel %vm3271, nan, %v3281
    %v3283 = vand.u32 2147483647, %v353
    %vm3284 = vcmp.le.f32.partialorder %v3283, 0.7853982
    %vm3285 = vcmp.lt.s32.totalorder %v353, 0
    %v3286 = vand.u32 %v353, 2139095040
    %v3287 = vshrl.u32 %v3286, 23
    %v3288 = vsub.s32 %v3287, 127
    %v3289 = vand.u32 2147483647, %v353
    %v3290 = vand.u32 %v3289, 8388607
    %v3291 = vor.u32 %v3290, 8388608
    %v3292 = vsub.s32 0, %v3291
    %v3293 = vadd.s32 %v3288, 1
    %vm3294 = vcmp.gt.s32.totalorder %v3293, 0
    %v3295 = vsel %vm3294, %v3293, 0
    %v3296 = vshrl.u32 %v3295, 5
    %v3297 = vand.u32 %v3295, 31
    %v3298 = vsub.s32 32, %v3297
    %v3299 = vshrl.u32 683565275, %v3298
    %v3300 = vshll.u32 683565275, %v3297
    %v3301 = vshrl.u32 2475754826, %v3298
    %v3302 = vor.u32 %v3300, %v3301
    %v3303 = vshll.u32 2475754826, %v3297
    %v3304 = vshrl.u32 2131351028, %v3298
    %v3305 = vor.u32 %v3303, %v3304
    %v3306 = vshll.u32 2131351028, %v3297
    %v3307 = vshrl.u32 2102212464, %v3298
    %v3308 = vor.u32 %v3306, %v3307
    %v3309 = vshll.u32 2102212464, %v3297
    %v3310 = vshrl.u32 920167782, %v3298
    %v3311 = vor.u32 %v3309, %v3310
    %v3312 = vshll.u32 920167782, %v3297
    %v3313 = vshrl.u32 1326507024, %v3298
    %v3314 = vor.u32 %v3312, %v3313
    %vm3315 = vcmp.lt.s32.totalorder %v3296, 1
    %vm3316 = vcmp.lt.s32.totalorder %v3296, 2
    %vm3317 = vcmp.lt.s32.totalorder %v3296, 3
    %vm3318 = vcmp.lt.s32.totalorder %v3296, 4
    %v3319 = vsel %vm3315, %v3299, %v3302
    %v3320 = vsel %vm3318, %v3308, 2102212464
    %v3321 = vsel %vm3317, %v3305, %v3320
    %v3322 = vsel %vm3316, %v3319, %v3321
    %v3323 = vsel %vm3315, %v3302, %v3305
    %v3324 = vsel %vm3318, %v3311, 920167782
    %v3325 = vsel %vm3317, %v3308, %v3324
    %v3326 = vsel %vm3316, %v3323, %v3325
    %v3327 = vsel %vm3315, %v3305, %v3308
    %v3328 = vsel %vm3318, %v3314, 1326507024
    %v3329 = vsel %vm3317, %v3311, %v3328
    %v3330 = vsel %vm3316, %v3327, %v3329
    %v3331 = vshll.u32 %v3291, 8
    %v3332 = vmul.u32.u64.compose %v3331, %v3330
    %v3333 = vextract.low.u32 %v3332
    %v3334 = vextract.high.u32 %v3332
    %v3335 = vmul.u32.u64.compose %v3331, %v3326
    %v3336 = vextract.low.u32 %v3335
    %v3337 = vextract.high.u32 %v3335
    %v3338 = vmul.u32 %v3331, %v3322
    %v3339 = vadd.s32 %v3334, %v3336
    %vm3340 = vc.u32 %v3334, %v3336
    %v3341 = vadd.s32 %v3337, 1
    %v3342 = vsel %vm3340, %v3341, %v3337
    %v3343 = vadd.s32 %v3338, %v3342
    %v3344 = vadd.s32 %v3343, 536870912
    %v3345 = vshrl.u32 %v3344, 30
    %v3346 = vshll.u32 %v3345, 30
    %v3347 = vsub.s32 %v3343, %v3346
    %vm3348 = vcmp.lt.s32.totalorder %v3347, 0
    %v3349 = vsub.s32 0, %v3347
    %v3350 = vsel %vm3348, %v3349, %v3347
    %v3351 = vclz %v3350
    %v3352 = vsub.s32 %v3351, 2
    %vm3353 = vcmp.gt.s32.totalorder 0, %v3352
    %v3354 = vsel %vm3353, 0, %v3352
    %v3355 = vsub.s32 32, %v3354
    %v3356 = vshll.u32 %v3347, %v3354
    %v3357 = vshrl.u32 %v3339, %v3355
    %v3358 = vor.u32 %v3356, %v3357
    %v3359 = vsub.s32 4294967266, %v3354
    %v3360 = vadd.s32 %v3359, 127
    %v3361 = vshll.u32 %v3360, 23
    %v3362 = vor.u32 4788187, %v3361
    %v3363 = vand.u32 2147483647, %v3362
    %v3365 = vcvt.s32.f32 %v3358
    %v3366 = vmul.f32 %v3365, %v3363
    %v3367 = vxor.u32 %v3366, 2147483648
    %v3368 = vsel %vm3285, %v3367, %v3366
    %v3369 = vsub.s32 4, %v3345
    %v3370 = vsel %vm3285, %v3369, %v3345
    %v3371 = vsel %vm3284, %v353, %v3368
    %v3372 = vsel %vm3284, 0, %v3370
    %v3373 = vcosq.f32.pop %v3371
    %v3374 = vsinq.f32.pop %v3371
    %vm3375 = vweird.f32 %v353
    %v3376 = vadd.s32 %v3372, 3
    %v3377 = vand.u32 %v3376, 3
    %vm3378 = vcmp.lt.s32.totalorder %v3377, 2
    %vm3379 = vcmp.eq.s32.totalorder %v3377, 0
    %v3380 = vxor.u32 %v3374, 2147483648
    %v3381 = vsel %vm3379, %v3373, %v3380
    %vm3382 = vcmp.eq.s32.totalorder %v3377, 2
    %v3383 = vxor.u32 %v3373, 2147483648
    %v3384 = vsel %vm3382, %v3383, %v3374
    %v3385 = vsel %vm3378, %v3381, %v3384
    %v3386 = vsel %vm3375, nan, %v3385
    %v3387 = vand.u32 2147483647, %v358
    %vm3388 = vcmp.le.f32.partialorder %v3387, 0.7853982
    %vm3389 = vcmp.lt.s32.totalorder %v358, 0
    %v3390 = vand.u32 %v358, 2139095040
    %v3391 = vshrl.u32 %v3390, 23
    %v3392 = vsub.s32 %v3391, 127
    %v3393 = vand.u32 2147483647, %v358
    %v3394 = vand.u32 %v3393, 8388607
    %v3395 = vor.u32 %v3394, 8388608
    %v3396 = vsub.s32 0, %v3395
    %v3397 = vadd.s32 %v3392, 1
    %vm3398 = vcmp.gt.s32.totalorder %v3397, 0
    %v3399 = vsel %vm3398, %v3397, 0
    %v3400 = vshrl.u32 %v3399, 5
    %v3401 = vand.u32 %v3399, 31
    %v3402 = vsub.s32 32, %v3401
    %v3403 = vshrl.u32 683565275, %v3402
    %v3404 = vshll.u32 683565275, %v3401
    %v3405 = vshrl.u32 2475754826, %v3402
    %v3406 = vor.u32 %v3404, %v3405
    %v3407 = vshll.u32 2475754826, %v3401
    %v3408 = vshrl.u32 2131351028, %v3402
    %v3409 = vor.u32 %v3407, %v3408
    %v3410 = vshll.u32 2131351028, %v3401
    %v3411 = vshrl.u32 2102212464, %v3402
    %v3412 = vor.u32 %v3410, %v3411
    %v3413 = vshll.u32 2102212464, %v3401
    %v3414 = vshrl.u32 920167782, %v3402
    %v3415 = vor.u32 %v3413, %v3414
    %v3416 = vshll.u32 920167782, %v3401
    %v3417 = vshrl.u32 1326507024, %v3402
    %v3418 = vor.u32 %v3416, %v3417
    %vm3419 = vcmp.lt.s32.totalorder %v3400, 1
    %vm3420 = vcmp.lt.s32.totalorder %v3400, 2
    %vm3421 = vcmp.lt.s32.totalorder %v3400, 3
    %vm3422 = vcmp.lt.s32.totalorder %v3400, 4
    %v3423 = vsel %vm3419, %v3403, %v3406
    %v3424 = vsel %vm3422, %v3412, 2102212464
    %v3425 = vsel %vm3421, %v3409, %v3424
    %v3426 = vsel %vm3420, %v3423, %v3425
    %v3427 = vsel %vm3419, %v3406, %v3409
    %v3428 = vsel %vm3422, %v3415, 920167782
    %v3429 = vsel %vm3421, %v3412, %v3428
    %v3430 = vsel %vm3420, %v3427, %v3429
    %v3431 = vsel %vm3419, %v3409, %v3412
    %v3432 = vsel %vm3422, %v3418, 1326507024
    %v3433 = vsel %vm3421, %v3415, %v3432
    %v3434 = vsel %vm3420, %v3431, %v3433
    %v3435 = vshll.u32 %v3395, 8
    %v3436 = vmul.u32.u64.compose %v3435, %v3434
    %v3437 = vextract.low.u32 %v3436
    %v3438 = vextract.high.u32 %v3436
    %v3439 = vmul.u32.u64.compose %v3435, %v3430
    %v3440 = vextract.low.u32 %v3439
    %v3441 = vextract.high.u32 %v3439
    %v3442 = vmul.u32 %v3435, %v3426
    %v3443 = vadd.s32 %v3438, %v3440
    %vm3444 = vc.u32 %v3438, %v3440
    %v3445 = vadd.s32 %v3441, 1
    %v3446 = vsel %vm3444, %v3445, %v3441
    %v3447 = vadd.s32 %v3442, %v3446
    %v3448 = vadd.s32 %v3447, 536870912
    %v3449 = vshrl.u32 %v3448, 30
    %v3450 = vshll.u32 %v3449, 30
    %v3451 = vsub.s32 %v3447, %v3450
    %vm3452 = vcmp.lt.s32.totalorder %v3451, 0
    %v3453 = vsub.s32 0, %v3451
    %v3454 = vsel %vm3452, %v3453, %v3451
    %v3455 = vclz %v3454
    %v3456 = vsub.s32 %v3455, 2
    %vm3457 = vcmp.gt.s32.totalorder 0, %v3456
    %v3458 = vsel %vm3457, 0, %v3456
    %v3459 = vsub.s32 32, %v3458
    %v3460 = vshll.u32 %v3451, %v3458
    %v3461 = vshrl.u32 %v3443, %v3459
    %v3462 = vor.u32 %v3460, %v3461
    %v3463 = vsub.s32 4294967266, %v3458
    %v3464 = vadd.s32 %v3463, 127
    %v3465 = vshll.u32 %v3464, 23
    %v3466 = vor.u32 4788187, %v3465
    %v3467 = vand.u32 2147483647, %v3466
    %v3469 = vcvt.s32.f32 %v3462
    %v3470 = vmul.f32 %v3469, %v3467
    %v3471 = vxor.u32 %v3470, 2147483648
    %v3472 = vsel %vm3389, %v3471, %v3470
    %v3473 = vsub.s32 4, %v3449
    %v3474 = vsel %vm3389, %v3473, %v3449
    %v3475 = vsel %vm3388, %v358, %v3472
    %v3476 = vsel %vm3388, 0, %v3474
    %v3477 = vcosq.f32.pop %v3475
    %v3478 = vsinq.f32.pop %v3475
    %vm3479 = vweird.f32 %v358
    %v3480 = vadd.s32 %v3476, 3
    %v3481 = vand.u32 %v3480, 3
    %vm3482 = vcmp.lt.s32.totalorder %v3481, 2
    %vm3483 = vcmp.eq.s32.totalorder %v3481, 0
    %v3484 = vxor.u32 %v3478, 2147483648
    %v3485 = vsel %vm3483, %v3477, %v3484
    %vm3486 = vcmp.eq.s32.totalorder %v3481, 2
    %v3487 = vxor.u32 %v3477, 2147483648
    %v3488 = vsel %vm3486, %v3487, %v3478
    %v3489 = vsel %vm3482, %v3485, %v3488
    %v3490 = vsel %vm3479, nan, %v3489
    %v3491 = vand.u32 2147483647, %v363
    %vm3492 = vcmp.le.f32.partialorder %v3491, 0.7853982
    %vm3493 = vcmp.lt.s32.totalorder %v363, 0
    %v3494 = vand.u32 %v363, 2139095040
    %v3495 = vshrl.u32 %v3494, 23
    %v3496 = vsub.s32 %v3495, 127
    %v3497 = vand.u32 2147483647, %v363
    %v3498 = vand.u32 %v3497, 8388607
    %v3499 = vor.u32 %v3498, 8388608
    %v3500 = vsub.s32 0, %v3499
    %v3501 = vadd.s32 %v3496, 1
    %vm3502 = vcmp.gt.s32.totalorder %v3501, 0
    %v3503 = vsel %vm3502, %v3501, 0
    %v3504 = vshrl.u32 %v3503, 5
    %v3505 = vand.u32 %v3503, 31
    %v3506 = vsub.s32 32, %v3505
    %v3507 = vshrl.u32 683565275, %v3506
    %v3508 = vshll.u32 683565275, %v3505
    %v3509 = vshrl.u32 2475754826, %v3506
    %v3510 = vor.u32 %v3508, %v3509
    %v3511 = vshll.u32 2475754826, %v3505
    %v3512 = vshrl.u32 2131351028, %v3506
    %v3513 = vor.u32 %v3511, %v3512
    %v3514 = vshll.u32 2131351028, %v3505
    %v3515 = vshrl.u32 2102212464, %v3506
    %v3516 = vor.u32 %v3514, %v3515
    %v3517 = vshll.u32 2102212464, %v3505
    %v3518 = vshrl.u32 920167782, %v3506
    %v3519 = vor.u32 %v3517, %v3518
    %v3520 = vshll.u32 920167782, %v3505
    %v3521 = vshrl.u32 1326507024, %v3506
    %v3522 = vor.u32 %v3520, %v3521
    %vm3523 = vcmp.lt.s32.totalorder %v3504, 1
    %vm3524 = vcmp.lt.s32.totalorder %v3504, 2
    %vm3525 = vcmp.lt.s32.totalorder %v3504, 3
    %vm3526 = vcmp.lt.s32.totalorder %v3504, 4
    %v3527 = vsel %vm3523, %v3507, %v3510
    %v3528 = vsel %vm3526, %v3516, 2102212464
    %v3529 = vsel %vm3525, %v3513, %v3528
    %v3530 = vsel %vm3524, %v3527, %v3529
    %v3531 = vsel %vm3523, %v3510, %v3513
    %v3532 = vsel %vm3526, %v3519, 920167782
    %v3533 = vsel %vm3525, %v3516, %v3532
    %v3534 = vsel %vm3524, %v3531, %v3533
    %v3535 = vsel %vm3523, %v3513, %v3516
    %v3536 = vsel %vm3526, %v3522, 1326507024
    %v3537 = vsel %vm3525, %v3519, %v3536
    %v3538 = vsel %vm3524, %v3535, %v3537
    %v3539 = vshll.u32 %v3499, 8
    %v3540 = vmul.u32.u64.compose %v3539, %v3538
    %v3541 = vextract.low.u32 %v3540
    %v3542 = vextract.high.u32 %v3540
    %v3543 = vmul.u32.u64.compose %v3539, %v3534
    %v3544 = vextract.low.u32 %v3543
    %v3545 = vextract.high.u32 %v3543
    %v3546 = vmul.u32 %v3539, %v3530
    %v3547 = vadd.s32 %v3542, %v3544
    %vm3548 = vc.u32 %v3542, %v3544
    %v3549 = vadd.s32 %v3545, 1
    %v3550 = vsel %vm3548, %v3549, %v3545
    %v3551 = vadd.s32 %v3546, %v3550
    %v3552 = vadd.s32 %v3551, 536870912
    %v3553 = vshrl.u32 %v3552, 30
    %v3554 = vshll.u32 %v3553, 30
    %v3555 = vsub.s32 %v3551, %v3554
    %vm3556 = vcmp.lt.s32.totalorder %v3555, 0
    %v3557 = vsub.s32 0, %v3555
    %v3558 = vsel %vm3556, %v3557, %v3555
    %v3559 = vclz %v3558
    %v3560 = vsub.s32 %v3559, 2
    %vm3561 = vcmp.gt.s32.totalorder 0, %v3560
    %v3562 = vsel %vm3561, 0, %v3560
    %v3563 = vsub.s32 32, %v3562
    %v3564 = vshll.u32 %v3555, %v3562
    %v3565 = vshrl.u32 %v3547, %v3563
    %v3566 = vor.u32 %v3564, %v3565
    %v3567 = vsub.s32 4294967266, %v3562
    %v3568 = vadd.s32 %v3567, 127
    %v3569 = vshll.u32 %v3568, 23
    %v3570 = vor.u32 4788187, %v3569
    %v3571 = vand.u32 2147483647, %v3570
    %v3573 = vcvt.s32.f32 %v3566
    %v3574 = vmul.f32 %v3573, %v3571
    %v3575 = vxor.u32 %v3574, 2147483648
    %v3576 = vsel %vm3493, %v3575, %v3574
    %v3577 = vsub.s32 4, %v3553
    %v3578 = vsel %vm3493, %v3577, %v3553
    %v3579 = vsel %vm3492, %v363, %v3576
    %v3580 = vsel %vm3492, 0, %v3578
    %v3581 = vcosq.f32.pop %v3579
    %v3582 = vsinq.f32.pop %v3579
    %vm3583 = vweird.f32 %v363
    %v3584 = vadd.s32 %v3580, 3
    %v3585 = vand.u32 %v3584, 3
    %vm3586 = vcmp.lt.s32.totalorder %v3585, 2
    %vm3587 = vcmp.eq.s32.totalorder %v3585, 0
    %v3588 = vxor.u32 %v3582, 2147483648
    %v3589 = vsel %vm3587, %v3581, %v3588
    %vm3590 = vcmp.eq.s32.totalorder %v3585, 2
    %v3591 = vxor.u32 %v3581, 2147483648
    %v3592 = vsel %vm3590, %v3591, %v3582
    %v3593 = vsel %vm3586, %v3589, %v3592
    %v3594 = vsel %vm3583, nan, %v3593
    %v3595 = vand.u32 2147483647, %v368
    %vm3596 = vcmp.le.f32.partialorder %v3595, 0.7853982
    %vm3597 = vcmp.lt.s32.totalorder %v368, 0
    %v3598 = vand.u32 %v368, 2139095040
    %v3599 = vshrl.u32 %v3598, 23
    %v3600 = vsub.s32 %v3599, 127
    %v3601 = vand.u32 2147483647, %v368
    %v3602 = vand.u32 %v3601, 8388607
    %v3603 = vor.u32 %v3602, 8388608
    %v3604 = vsub.s32 0, %v3603
    %v3605 = vadd.s32 %v3600, 1
    %vm3606 = vcmp.gt.s32.totalorder %v3605, 0
    %v3607 = vsel %vm3606, %v3605, 0
    %v3608 = vshrl.u32 %v3607, 5
    %v3609 = vand.u32 %v3607, 31
    %v3610 = vsub.s32 32, %v3609
    %v3611 = vshrl.u32 683565275, %v3610
    %v3612 = vshll.u32 683565275, %v3609
    %v3613 = vshrl.u32 2475754826, %v3610
    %v3614 = vor.u32 %v3612, %v3613
    %v3615 = vshll.u32 2475754826, %v3609
    %v3616 = vshrl.u32 2131351028, %v3610
    %v3617 = vor.u32 %v3615, %v3616
    %v3618 = vshll.u32 2131351028, %v3609
    %v3619 = vshrl.u32 2102212464, %v3610
    %v3620 = vor.u32 %v3618, %v3619
    %v3621 = vshll.u32 2102212464, %v3609
    %v3622 = vshrl.u32 920167782, %v3610
    %v3623 = vor.u32 %v3621, %v3622
    %v3624 = vshll.u32 920167782, %v3609
    %v3625 = vshrl.u32 1326507024, %v3610
    %v3626 = vor.u32 %v3624, %v3625
    %vm3627 = vcmp.lt.s32.totalorder %v3608, 1
    %vm3628 = vcmp.lt.s32.totalorder %v3608, 2
    %vm3629 = vcmp.lt.s32.totalorder %v3608, 3
    %vm3630 = vcmp.lt.s32.totalorder %v3608, 4
    %v3631 = vsel %vm3627, %v3611, %v3614
    %v3632 = vsel %vm3630, %v3620, 2102212464
    %v3633 = vsel %vm3629, %v3617, %v3632
    %v3634 = vsel %vm3628, %v3631, %v3633
    %v3635 = vsel %vm3627, %v3614, %v3617
    %v3636 = vsel %vm3630, %v3623, 920167782
    %v3637 = vsel %vm3629, %v3620, %v3636
    %v3638 = vsel %vm3628, %v3635, %v3637
    %v3639 = vsel %vm3627, %v3617, %v3620
    %v3640 = vsel %vm3630, %v3626, 1326507024
    %v3641 = vsel %vm3629, %v3623, %v3640
    %v3642 = vsel %vm3628, %v3639, %v3641
    %v3643 = vshll.u32 %v3603, 8
    %v3644 = vmul.u32.u64.compose %v3643, %v3642
    %v3645 = vextract.low.u32 %v3644
    %v3646 = vextract.high.u32 %v3644
    %v3647 = vmul.u32.u64.compose %v3643, %v3638
    %v3648 = vextract.low.u32 %v3647
    %v3649 = vextract.high.u32 %v3647
    %v3650 = vmul.u32 %v3643, %v3634
    %v3651 = vadd.s32 %v3646, %v3648
    %vm3652 = vc.u32 %v3646, %v3648
    %v3653 = vadd.s32 %v3649, 1
    %v3654 = vsel %vm3652, %v3653, %v3649
    %v3655 = vadd.s32 %v3650, %v3654
    %v3656 = vadd.s32 %v3655, 536870912
    %v3657 = vshrl.u32 %v3656, 30
    %v3658 = vshll.u32 %v3657, 30
    %v3659 = vsub.s32 %v3655, %v3658
    %vm3660 = vcmp.lt.s32.totalorder %v3659, 0
    %v3661 = vsub.s32 0, %v3659
    %v3662 = vsel %vm3660, %v3661, %v3659
    %v3663 = vclz %v3662
    %v3664 = vsub.s32 %v3663, 2
    %vm3665 = vcmp.gt.s32.totalorder 0, %v3664
    %v3666 = vsel %vm3665, 0, %v3664
    %v3667 = vsub.s32 32, %v3666
    %v3668 = vshll.u32 %v3659, %v3666
    %v3669 = vshrl.u32 %v3651, %v3667
    %v3670 = vor.u32 %v3668, %v3669
    %v3671 = vsub.s32 4294967266, %v3666
    %v3672 = vadd.s32 %v3671, 127
    %v3673 = vshll.u32 %v3672, 23
    %v3674 = vor.u32 4788187, %v3673
    %v3675 = vand.u32 2147483647, %v3674
    %v3677 = vcvt.s32.f32 %v3670
    %v3678 = vmul.f32 %v3677, %v3675
    %v3679 = vxor.u32 %v3678, 2147483648
    %v3680 = vsel %vm3597, %v3679, %v3678
    %v3681 = vsub.s32 4, %v3657
    %v3682 = vsel %vm3597, %v3681, %v3657
    %v3683 = vsel %vm3596, %v368, %v3680
    %v3684 = vsel %vm3596, 0, %v3682
    %v3685 = vcosq.f32.pop %v3683
    %v3686 = vsinq.f32.pop %v3683
    %vm3687 = vweird.f32 %v368
    %v3688 = vadd.s32 %v3684, 3
    %v3689 = vand.u32 %v3688, 3
    %vm3690 = vcmp.lt.s32.totalorder %v3689, 2
    %vm3691 = vcmp.eq.s32.totalorder %v3689, 0
    %v3692 = vxor.u32 %v3686, 2147483648
    %v3693 = vsel %vm3691, %v3685, %v3692
    %vm3694 = vcmp.eq.s32.totalorder %v3689, 2
    %v3695 = vxor.u32 %v3685, 2147483648
    %v3696 = vsel %vm3694, %v3695, %v3686
    %v3697 = vsel %vm3690, %v3693, %v3696
    %v3698 = vsel %vm3687, nan, %v3697
    %3699 = vst [vmem:[#allocation2] sm:$0xff] %v474
    %3700 = vst [vmem:[#allocation2 + $0x10] sm:$0xff] %v578
    %3701 = vst [vmem:[#allocation2 + $0x20] sm:$0xff] %v682
    %3702 = vst [vmem:[#allocation2 + $0x30] sm:$0xff] %v786
    %3703 = vst [vmem:[#allocation2 + $0x40] sm:$0xff] %v890
    %3704 = vst [vmem:[#allocation2 + $0x50] sm:$0xff] %v994
    %3705 = vst [vmem:[#allocation2 + $0x60] sm:$0xff] %v1098
    %3706 = vst [vmem:[#allocation2 + $0x70] sm:$0xff] %v1202
    %3707 = vst [vmem:[#allocation2 + $0x80] sm:$0xff] %v1306
    %3708 = vst [vmem:[#allocation2 + $0x90] sm:$0xff] %v1410
    %3709 = vst [vmem:[#allocation2 + $0xa0] sm:$0xff] %v1514
    %3710 = vst [vmem:[#allocation2 + $0xb0] sm:$0xff] %v1618
    %3711 = vst [vmem:[#allocation2 + $0xc0] sm:$0xff] %v1722
    %3712 = vst [vmem:[#allocation2 + $0xd0] sm:$0xff] %v1826
    %3713 = vst [vmem:[#allocation2 + $0xe0] sm:$0xff] %v1930
    %3714 = vst [vmem:[#allocation2 + $0xf0] sm:$0xff] %v2034
    %3715 = vst [vmem:[#allocation2 + $0x100] sm:$0xff] %v2138
    %3716 = vst [vmem:[#allocation2 + $0x110] sm:$0xff] %v2242
    %3717 = vst [vmem:[#allocation2 + $0x120] sm:$0xff] %v2346
    %3718 = vst [vmem:[#allocation2 + $0x130] sm:$0xff] %v2450
    %3719 = vst [vmem:[#allocation2 + $0x140] sm:$0xff] %v2554
    %3720 = vst [vmem:[#allocation2 + $0x150] sm:$0xff] %v2658
    %3721 = vst [vmem:[#allocation2 + $0x160] sm:$0xff] %v2762
    %3722 = vst [vmem:[#allocation2 + $0x170] sm:$0xff] %v2866
    %3723 = vst [vmem:[#allocation2 + $0x180] sm:$0xff] %v2970
    %3724 = vst [vmem:[#allocation2 + $0x190] sm:$0xff] %v3074
    %3725 = vst [vmem:[#allocation2 + $0x1a0] sm:$0xff] %v3178
    %3726 = vst [vmem:[#allocation2 + $0x1b0] sm:$0xff] %v3282
    %3727 = vst [vmem:[#allocation2 + $0x1c0] sm:$0xff] %v3386
    %3728 = vst [vmem:[#allocation2 + $0x1d0] sm:$0xff] %v3490
    %3729 = vst [vmem:[#allocation2 + $0x1e0] sm:$0xff] %v3594
    %3730 = vst [vmem:[#allocation2 + $0x1f0] sm:$0xff] %v3698
    %v3731 = vand.u32 2147483647, %v213
    %vm3732 = vcmp.le.f32.partialorder %v3731, 0.7853982
    %vm3733 = vcmp.lt.s32.totalorder %v213, 0
    %v3734 = vand.u32 %v213, 2139095040
    %v3735 = vshrl.u32 %v3734, 23
    %v3736 = vsub.s32 %v3735, 127
    %v3737 = vand.u32 2147483647, %v213
    %v3738 = vand.u32 %v3737, 8388607
    %v3739 = vor.u32 %v3738, 8388608
    %v3740 = vsub.s32 0, %v3739
    %v3741 = vadd.s32 %v3736, 1
    %vm3742 = vcmp.gt.s32.totalorder %v3741, 0
    %v3743 = vsel %vm3742, %v3741, 0
    %v3744 = vshrl.u32 %v3743, 5
    %v3745 = vand.u32 %v3743, 31
    %v3746 = vsub.s32 32, %v3745
    %v3747 = vshrl.u32 683565275, %v3746
    %v3748 = vshll.u32 683565275, %v3745
    %v3749 = vshrl.u32 2475754826, %v3746
    %v3750 = vor.u32 %v3748, %v3749
    %v3751 = vshll.u32 2475754826, %v3745
    %v3752 = vshrl.u32 2131351028, %v3746
    %v3753 = vor.u32 %v3751, %v3752
    %v3754 = vshll.u32 2131351028, %v3745
    %v3755 = vshrl.u32 2102212464, %v3746
    %v3756 = vor.u32 %v3754, %v3755
    %v3757 = vshll.u32 2102212464, %v3745
    %v3758 = vshrl.u32 920167782, %v3746
    %v3759 = vor.u32 %v3757, %v3758
    %v3760 = vshll.u32 920167782, %v3745
    %v3761 = vshrl.u32 1326507024, %v3746
    %v3762 = vor.u32 %v3760, %v3761
    %vm3763 = vcmp.lt.s32.totalorder %v3744, 1
    %vm3764 = vcmp.lt.s32.totalorder %v3744, 2
    %vm3765 = vcmp.lt.s32.totalorder %v3744, 3
    %vm3766 = vcmp.lt.s32.totalorder %v3744, 4
    %v3767 = vsel %vm3763, %v3747, %v3750
    %v3768 = vsel %vm3766, %v3756, 2102212464
    %v3769 = vsel %vm3765, %v3753, %v3768
    %v3770 = vsel %vm3764, %v3767, %v3769
    %v3771 = vsel %vm3763, %v3750, %v3753
    %v3772 = vsel %vm3766, %v3759, 920167782
    %v3773 = vsel %vm3765, %v3756, %v3772
    %v3774 = vsel %vm3764, %v3771, %v3773
    %v3775 = vsel %vm3763, %v3753, %v3756
    %v3776 = vsel %vm3766, %v3762, 1326507024
    %v3777 = vsel %vm3765, %v3759, %v3776
    %v3778 = vsel %vm3764, %v3775, %v3777
    %v3779 = vshll.u32 %v3739, 8
    %v3780 = vmul.u32.u64.compose %v3779, %v3778
    %v3781 = vextract.low.u32 %v3780
    %v3782 = vextract.high.u32 %v3780
    %v3783 = vmul.u32.u64.compose %v3779, %v3774
    %v3784 = vextract.low.u32 %v3783
    %v3785 = vextract.high.u32 %v3783
    %v3786 = vmul.u32 %v3779, %v3770
    %v3787 = vadd.s32 %v3782, %v3784
    %vm3788 = vc.u32 %v3782, %v3784
    %v3789 = vadd.s32 %v3785, 1
    %v3790 = vsel %vm3788, %v3789, %v3785
    %v3791 = vadd.s32 %v3786, %v3790
    %v3792 = vadd.s32 %v3791, 536870912
    %v3793 = vshrl.u32 %v3792, 30
    %v3794 = vshll.u32 %v3793, 30
    %v3795 = vsub.s32 %v3791, %v3794
    %vm3796 = vcmp.lt.s32.totalorder %v3795, 0
    %v3797 = vsub.s32 0, %v3795
    %v3798 = vsel %vm3796, %v3797, %v3795
    %v3799 = vclz %v3798
    %v3800 = vsub.s32 %v3799, 2
    %vm3801 = vcmp.gt.s32.totalorder 0, %v3800
    %v3802 = vsel %vm3801, 0, %v3800
    %v3803 = vsub.s32 32, %v3802
    %v3804 = vshll.u32 %v3795, %v3802
    %v3805 = vshrl.u32 %v3787, %v3803
    %v3806 = vor.u32 %v3804, %v3805
    %v3807 = vsub.s32 4294967266, %v3802
    %v3808 = vadd.s32 %v3807, 127
    %v3809 = vshll.u32 %v3808, 23
    %v3810 = vor.u32 4788187, %v3809
    %v3811 = vand.u32 2147483647, %v3810
    %v3813 = vcvt.s32.f32 %v3806
    %v3814 = vmul.f32 %v3813, %v3811
    %v3815 = vxor.u32 %v3814, 2147483648
    %v3816 = vsel %vm3733, %v3815, %v3814
    %v3817 = vsub.s32 4, %v3793
    %v3818 = vsel %vm3733, %v3817, %v3793
    %v3819 = vsel %vm3732, %v213, %v3816
    %v3820 = vsel %vm3732, 0, %v3818
    %v3821 = vcosq.f32.pop %v3819
    %v3822 = vsinq.f32.pop %v3819
    %vm3823 = vweird.f32 %v213
    %v3824 = vand.u32 %v3820, 3
    %vm3825 = vcmp.lt.s32.totalorder %v3824, 2
    %vm3826 = vcmp.eq.s32.totalorder %v3824, 0
    %v3827 = vxor.u32 %v3822, 2147483648
    %v3828 = vsel %vm3826, %v3821, %v3827
    %vm3829 = vcmp.eq.s32.totalorder %v3824, 2
    %v3830 = vxor.u32 %v3821, 2147483648
    %v3831 = vsel %vm3829, %v3830, %v3822
    %v3832 = vsel %vm3825, %v3828, %v3831
    %v3833 = vsel %vm3823, nan, %v3832
    %v3834 = vand.u32 2147483647, %v218
    %vm3835 = vcmp.le.f32.partialorder %v3834, 0.7853982
    %vm3836 = vcmp.lt.s32.totalorder %v218, 0
    %v3837 = vand.u32 %v218, 2139095040
    %v3838 = vshrl.u32 %v3837, 23
    %v3839 = vsub.s32 %v3838, 127
    %v3840 = vand.u32 2147483647, %v218
    %v3841 = vand.u32 %v3840, 8388607
    %v3842 = vor.u32 %v3841, 8388608
    %v3843 = vsub.s32 0, %v3842
    %v3844 = vadd.s32 %v3839, 1
    %vm3845 = vcmp.gt.s32.totalorder %v3844, 0
    %v3846 = vsel %vm3845, %v3844, 0
    %v3847 = vshrl.u32 %v3846, 5
    %v3848 = vand.u32 %v3846, 31
    %v3849 = vsub.s32 32, %v3848
    %v3850 = vshrl.u32 683565275, %v3849
    %v3851 = vshll.u32 683565275, %v3848
    %v3852 = vshrl.u32 2475754826, %v3849
    %v3853 = vor.u32 %v3851, %v3852
    %v3854 = vshll.u32 2475754826, %v3848
    %v3855 = vshrl.u32 2131351028, %v3849
    %v3856 = vor.u32 %v3854, %v3855
    %v3857 = vshll.u32 2131351028, %v3848
    %v3858 = vshrl.u32 2102212464, %v3849
    %v3859 = vor.u32 %v3857, %v3858
    %v3860 = vshll.u32 2102212464, %v3848
    %v3861 = vshrl.u32 920167782, %v3849
    %v3862 = vor.u32 %v3860, %v3861
    %v3863 = vshll.u32 920167782, %v3848
    %v3864 = vshrl.u32 1326507024, %v3849
    %v3865 = vor.u32 %v3863, %v3864
    %vm3866 = vcmp.lt.s32.totalorder %v3847, 1
    %vm3867 = vcmp.lt.s32.totalorder %v3847, 2
    %vm3868 = vcmp.lt.s32.totalorder %v3847, 3
    %vm3869 = vcmp.lt.s32.totalorder %v3847, 4
    %v3870 = vsel %vm3866, %v3850, %v3853
    %v3871 = vsel %vm3869, %v3859, 2102212464
    %v3872 = vsel %vm3868, %v3856, %v3871
    %v3873 = vsel %vm3867, %v3870, %v3872
    %v3874 = vsel %vm3866, %v3853, %v3856
    %v3875 = vsel %vm3869, %v3862, 920167782
    %v3876 = vsel %vm3868, %v3859, %v3875
    %v3877 = vsel %vm3867, %v3874, %v3876
    %v3878 = vsel %vm3866, %v3856, %v3859
    %v3879 = vsel %vm3869, %v3865, 1326507024
    %v3880 = vsel %vm3868, %v3862, %v3879
    %v3881 = vsel %vm3867, %v3878, %v3880
    %v3882 = vshll.u32 %v3842, 8
    %v3883 = vmul.u32.u64.compose %v3882, %v3881
    %v3884 = vextract.low.u32 %v3883
    %v3885 = vextract.high.u32 %v3883
    %v3886 = vmul.u32.u64.compose %v3882, %v3877
    %v3887 = vextract.low.u32 %v3886
    %v3888 = vextract.high.u32 %v3886
    %v3889 = vmul.u32 %v3882, %v3873
    %v3890 = vadd.s32 %v3885, %v3887
    %vm3891 = vc.u32 %v3885, %v3887
    %v3892 = vadd.s32 %v3888, 1
    %v3893 = vsel %vm3891, %v3892, %v3888
    %v3894 = vadd.s32 %v3889, %v3893
    %v3895 = vadd.s32 %v3894, 536870912
    %v3896 = vshrl.u32 %v3895, 30
    %v3897 = vshll.u32 %v3896, 30
    %v3898 = vsub.s32 %v3894, %v3897
    %vm3899 = vcmp.lt.s32.totalorder %v3898, 0
    %v3900 = vsub.s32 0, %v3898
    %v3901 = vsel %vm3899, %v3900, %v3898
    %v3902 = vclz %v3901
    %v3903 = vsub.s32 %v3902, 2
    %vm3904 = vcmp.gt.s32.totalorder 0, %v3903
    %v3905 = vsel %vm3904, 0, %v3903
    %v3906 = vsub.s32 32, %v3905
    %v3907 = vshll.u32 %v3898, %v3905
    %v3908 = vshrl.u32 %v3890, %v3906
    %v3909 = vor.u32 %v3907, %v3908
    %v3910 = vsub.s32 4294967266, %v3905
    %v3911 = vadd.s32 %v3910, 127
    %v3912 = vshll.u32 %v3911, 23
    %v3913 = vor.u32 4788187, %v3912
    %v3914 = vand.u32 2147483647, %v3913
    %v3916 = vcvt.s32.f32 %v3909
    %v3917 = vmul.f32 %v3916, %v3914
    %v3918 = vxor.u32 %v3917, 2147483648
    %v3919 = vsel %vm3836, %v3918, %v3917
    %v3920 = vsub.s32 4, %v3896
    %v3921 = vsel %vm3836, %v3920, %v3896
    %v3922 = vsel %vm3835, %v218, %v3919
    %v3923 = vsel %vm3835, 0, %v3921
    %v3924 = vcosq.f32.pop %v3922
    %v3925 = vsinq.f32.pop %v3922
    %vm3926 = vweird.f32 %v218
    %v3927 = vand.u32 %v3923, 3
    %vm3928 = vcmp.lt.s32.totalorder %v3927, 2
    %vm3929 = vcmp.eq.s32.totalorder %v3927, 0
    %v3930 = vxor.u32 %v3925, 2147483648
    %v3931 = vsel %vm3929, %v3924, %v3930
    %vm3932 = vcmp.eq.s32.totalorder %v3927, 2
    %v3933 = vxor.u32 %v3924, 2147483648
    %v3934 = vsel %vm3932, %v3933, %v3925
    %v3935 = vsel %vm3928, %v3931, %v3934
    %v3936 = vsel %vm3926, nan, %v3935
    %v3937 = vand.u32 2147483647, %v223
    %vm3938 = vcmp.le.f32.partialorder %v3937, 0.7853982
    %vm3939 = vcmp.lt.s32.totalorder %v223, 0
    %v3940 = vand.u32 %v223, 2139095040
    %v3941 = vshrl.u32 %v3940, 23
    %v3942 = vsub.s32 %v3941, 127
    %v3943 = vand.u32 2147483647, %v223
    %v3944 = vand.u32 %v3943, 8388607
    %v3945 = vor.u32 %v3944, 8388608
    %v3946 = vsub.s32 0, %v3945
    %v3947 = vadd.s32 %v3942, 1
    %vm3948 = vcmp.gt.s32.totalorder %v3947, 0
    %v3949 = vsel %vm3948, %v3947, 0
    %v3950 = vshrl.u32 %v3949, 5
    %v3951 = vand.u32 %v3949, 31
    %v3952 = vsub.s32 32, %v3951
    %v3953 = vshrl.u32 683565275, %v3952
    %v3954 = vshll.u32 683565275, %v3951
    %v3955 = vshrl.u32 2475754826, %v3952
    %v3956 = vor.u32 %v3954, %v3955
    %v3957 = vshll.u32 2475754826, %v3951
    %v3958 = vshrl.u32 2131351028, %v3952
    %v3959 = vor.u32 %v3957, %v3958
    %v3960 = vshll.u32 2131351028, %v3951
    %v3961 = vshrl.u32 2102212464, %v3952
    %v3962 = vor.u32 %v3960, %v3961
    %v3963 = vshll.u32 2102212464, %v3951
    %v3964 = vshrl.u32 920167782, %v3952
    %v3965 = vor.u32 %v3963, %v3964
    %v3966 = vshll.u32 920167782, %v3951
    %v3967 = vshrl.u32 1326507024, %v3952
    %v3968 = vor.u32 %v3966, %v3967
    %vm3969 = vcmp.lt.s32.totalorder %v3950, 1
    %vm3970 = vcmp.lt.s32.totalorder %v3950, 2
    %vm3971 = vcmp.lt.s32.totalorder %v3950, 3
    %vm3972 = vcmp.lt.s32.totalorder %v3950, 4
    %v3973 = vsel %vm3969, %v3953, %v3956
    %v3974 = vsel %vm3972, %v3962, 2102212464
    %v3975 = vsel %vm3971, %v3959, %v3974
    %v3976 = vsel %vm3970, %v3973, %v3975
    %v3977 = vsel %vm3969, %v3956, %v3959
    %v3978 = vsel %vm3972, %v3965, 920167782
    %v3979 = vsel %vm3971, %v3962, %v3978
    %v3980 = vsel %vm3970, %v3977, %v3979
    %v3981 = vsel %vm3969, %v3959, %v3962
    %v3982 = vsel %vm3972, %v3968, 1326507024
    %v3983 = vsel %vm3971, %v3965, %v3982
    %v3984 = vsel %vm3970, %v3981, %v3983
    %v3985 = vshll.u32 %v3945, 8
    %v3986 = vmul.u32.u64.compose %v3985, %v3984
    %v3987 = vextract.low.u32 %v3986
    %v3988 = vextract.high.u32 %v3986
    %v3989 = vmul.u32.u64.compose %v3985, %v3980
    %v3990 = vextract.low.u32 %v3989
    %v3991 = vextract.high.u32 %v3989
    %v3992 = vmul.u32 %v3985, %v3976
    %v3993 = vadd.s32 %v3988, %v3990
    %vm3994 = vc.u32 %v3988, %v3990
    %v3995 = vadd.s32 %v3991, 1
    %v3996 = vsel %vm3994, %v3995, %v3991
    %v3997 = vadd.s32 %v3992, %v3996
    %v3998 = vadd.s32 %v3997, 536870912
    %v3999 = vshrl.u32 %v3998, 30
    %v4000 = vshll.u32 %v3999, 30
    %v4001 = vsub.s32 %v3997, %v4000
    %vm4002 = vcmp.lt.s32.totalorder %v4001, 0
    %v4003 = vsub.s32 0, %v4001
    %v4004 = vsel %vm4002, %v4003, %v4001
    %v4005 = vclz %v4004
    %v4006 = vsub.s32 %v4005, 2
    %vm4007 = vcmp.gt.s32.totalorder 0, %v4006
    %v4008 = vsel %vm4007, 0, %v4006
    %v4009 = vsub.s32 32, %v4008
    %v4010 = vshll.u32 %v4001, %v4008
    %v4011 = vshrl.u32 %v3993, %v4009
    %v4012 = vor.u32 %v4010, %v4011
    %v4013 = vsub.s32 4294967266, %v4008
    %v4014 = vadd.s32 %v4013, 127
    %v4015 = vshll.u32 %v4014, 23
    %v4016 = vor.u32 4788187, %v4015
    %v4017 = vand.u32 2147483647, %v4016
    %v4019 = vcvt.s32.f32 %v4012
    %v4020 = vmul.f32 %v4019, %v4017
    %v4021 = vxor.u32 %v4020, 2147483648
    %v4022 = vsel %vm3939, %v4021, %v4020
    %v4023 = vsub.s32 4, %v3999
    %v4024 = vsel %vm3939, %v4023, %v3999
    %v4025 = vsel %vm3938, %v223, %v4022
    %v4026 = vsel %vm3938, 0, %v4024
    %v4027 = vcosq.f32.pop %v4025
    %v4028 = vsinq.f32.pop %v4025
    %vm4029 = vweird.f32 %v223
    %v4030 = vand.u32 %v4026, 3
    %vm4031 = vcmp.lt.s32.totalorder %v4030, 2
    %vm4032 = vcmp.eq.s32.totalorder %v4030, 0
    %v4033 = vxor.u32 %v4028, 2147483648
    %v4034 = vsel %vm4032, %v4027, %v4033
    %vm4035 = vcmp.eq.s32.totalorder %v4030, 2
    %v4036 = vxor.u32 %v4027, 2147483648
    %v4037 = vsel %vm4035, %v4036, %v4028
    %v4038 = vsel %vm4031, %v4034, %v4037
    %v4039 = vsel %vm4029, nan, %v4038
    %v4040 = vand.u32 2147483647, %v228
    %vm4041 = vcmp.le.f32.partialorder %v4040, 0.7853982
    %vm4042 = vcmp.lt.s32.totalorder %v228, 0
    %v4043 = vand.u32 %v228, 2139095040
    %v4044 = vshrl.u32 %v4043, 23
    %v4045 = vsub.s32 %v4044, 127
    %v4046 = vand.u32 2147483647, %v228
    %v4047 = vand.u32 %v4046, 8388607
    %v4048 = vor.u32 %v4047, 8388608
    %v4049 = vsub.s32 0, %v4048
    %v4050 = vadd.s32 %v4045, 1
    %vm4051 = vcmp.gt.s32.totalorder %v4050, 0
    %v4052 = vsel %vm4051, %v4050, 0
    %v4053 = vshrl.u32 %v4052, 5
    %v4054 = vand.u32 %v4052, 31
    %v4055 = vsub.s32 32, %v4054
    %v4056 = vshrl.u32 683565275, %v4055
    %v4057 = vshll.u32 683565275, %v4054
    %v4058 = vshrl.u32 2475754826, %v4055
    %v4059 = vor.u32 %v4057, %v4058
    %v4060 = vshll.u32 2475754826, %v4054
    %v4061 = vshrl.u32 2131351028, %v4055
    %v4062 = vor.u32 %v4060, %v4061
    %v4063 = vshll.u32 2131351028, %v4054
    %v4064 = vshrl.u32 2102212464, %v4055
    %v4065 = vor.u32 %v4063, %v4064
    %v4066 = vshll.u32 2102212464, %v4054
    %v4067 = vshrl.u32 920167782, %v4055
    %v4068 = vor.u32 %v4066, %v4067
    %v4069 = vshll.u32 920167782, %v4054
    %v4070 = vshrl.u32 1326507024, %v4055
    %v4071 = vor.u32 %v4069, %v4070
    %vm4072 = vcmp.lt.s32.totalorder %v4053, 1
    %vm4073 = vcmp.lt.s32.totalorder %v4053, 2
    %vm4074 = vcmp.lt.s32.totalorder %v4053, 3
    %vm4075 = vcmp.lt.s32.totalorder %v4053, 4
    %v4076 = vsel %vm4072, %v4056, %v4059
    %v4077 = vsel %vm4075, %v4065, 2102212464
    %v4078 = vsel %vm4074, %v4062, %v4077
    %v4079 = vsel %vm4073, %v4076, %v4078
    %v4080 = vsel %vm4072, %v4059, %v4062
    %v4081 = vsel %vm4075, %v4068, 920167782
    %v4082 = vsel %vm4074, %v4065, %v4081
    %v4083 = vsel %vm4073, %v4080, %v4082
    %v4084 = vsel %vm4072, %v4062, %v4065
    %v4085 = vsel %vm4075, %v4071, 1326507024
    %v4086 = vsel %vm4074, %v4068, %v4085
    %v4087 = vsel %vm4073, %v4084, %v4086
    %v4088 = vshll.u32 %v4048, 8
    %v4089 = vmul.u32.u64.compose %v4088, %v4087
    %v4090 = vextract.low.u32 %v4089
    %v4091 = vextract.high.u32 %v4089
    %v4092 = vmul.u32.u64.compose %v4088, %v4083
    %v4093 = vextract.low.u32 %v4092
    %v4094 = vextract.high.u32 %v4092
    %v4095 = vmul.u32 %v4088, %v4079
    %v4096 = vadd.s32 %v4091, %v4093
    %vm4097 = vc.u32 %v4091, %v4093
    %v4098 = vadd.s32 %v4094, 1
    %v4099 = vsel %vm4097, %v4098, %v4094
    %v4100 = vadd.s32 %v4095, %v4099
    %v4101 = vadd.s32 %v4100, 536870912
    %v4102 = vshrl.u32 %v4101, 30
    %v4103 = vshll.u32 %v4102, 30
    %v4104 = vsub.s32 %v4100, %v4103
    %vm4105 = vcmp.lt.s32.totalorder %v4104, 0
    %v4106 = vsub.s32 0, %v4104
    %v4107 = vsel %vm4105, %v4106, %v4104
    %v4108 = vclz %v4107
    %v4109 = vsub.s32 %v4108, 2
    %vm4110 = vcmp.gt.s32.totalorder 0, %v4109
    %v4111 = vsel %vm4110, 0, %v4109
    %v4112 = vsub.s32 32, %v4111
    %v4113 = vshll.u32 %v4104, %v4111
    %v4114 = vshrl.u32 %v4096, %v4112
    %v4115 = vor.u32 %v4113, %v4114
    %v4116 = vsub.s32 4294967266, %v4111
    %v4117 = vadd.s32 %v4116, 127
    %v4118 = vshll.u32 %v4117, 23
    %v4119 = vor.u32 4788187, %v4118
    %v4120 = vand.u32 2147483647, %v4119
    %v4122 = vcvt.s32.f32 %v4115
    %v4123 = vmul.f32 %v4122, %v4120
    %v4124 = vxor.u32 %v4123, 2147483648
    %v4125 = vsel %vm4042, %v4124, %v4123
    %v4126 = vsub.s32 4, %v4102
    %v4127 = vsel %vm4042, %v4126, %v4102
    %v4128 = vsel %vm4041, %v228, %v4125
    %v4129 = vsel %vm4041, 0, %v4127
    %v4130 = vcosq.f32.pop %v4128
    %v4131 = vsinq.f32.pop %v4128
    %vm4132 = vweird.f32 %v228
    %v4133 = vand.u32 %v4129, 3
    %vm4134 = vcmp.lt.s32.totalorder %v4133, 2
    %vm4135 = vcmp.eq.s32.totalorder %v4133, 0
    %v4136 = vxor.u32 %v4131, 2147483648
    %v4137 = vsel %vm4135, %v4130, %v4136
    %vm4138 = vcmp.eq.s32.totalorder %v4133, 2
    %v4139 = vxor.u32 %v4130, 2147483648
    %v4140 = vsel %vm4138, %v4139, %v4131
    %v4141 = vsel %vm4134, %v4137, %v4140
    %v4142 = vsel %vm4132, nan, %v4141
    %v4143 = vand.u32 2147483647, %v233
    %vm4144 = vcmp.le.f32.partialorder %v4143, 0.7853982
    %vm4145 = vcmp.lt.s32.totalorder %v233, 0
    %v4146 = vand.u32 %v233, 2139095040
    %v4147 = vshrl.u32 %v4146, 23
    %v4148 = vsub.s32 %v4147, 127
    %v4149 = vand.u32 2147483647, %v233
    %v4150 = vand.u32 %v4149, 8388607
    %v4151 = vor.u32 %v4150, 8388608
    %v4152 = vsub.s32 0, %v4151
    %v4153 = vadd.s32 %v4148, 1
    %vm4154 = vcmp.gt.s32.totalorder %v4153, 0
    %v4155 = vsel %vm4154, %v4153, 0
    %v4156 = vshrl.u32 %v4155, 5
    %v4157 = vand.u32 %v4155, 31
    %v4158 = vsub.s32 32, %v4157
    %v4159 = vshrl.u32 683565275, %v4158
    %v4160 = vshll.u32 683565275, %v4157
    %v4161 = vshrl.u32 2475754826, %v4158
    %v4162 = vor.u32 %v4160, %v4161
    %v4163 = vshll.u32 2475754826, %v4157
    %v4164 = vshrl.u32 2131351028, %v4158
    %v4165 = vor.u32 %v4163, %v4164
    %v4166 = vshll.u32 2131351028, %v4157
    %v4167 = vshrl.u32 2102212464, %v4158
    %v4168 = vor.u32 %v4166, %v4167
    %v4169 = vshll.u32 2102212464, %v4157
    %v4170 = vshrl.u32 920167782, %v4158
    %v4171 = vor.u32 %v4169, %v4170
    %v4172 = vshll.u32 920167782, %v4157
    %v4173 = vshrl.u32 1326507024, %v4158
    %v4174 = vor.u32 %v4172, %v4173
    %vm4175 = vcmp.lt.s32.totalorder %v4156, 1
    %vm4176 = vcmp.lt.s32.totalorder %v4156, 2
    %vm4177 = vcmp.lt.s32.totalorder %v4156, 3
    %vm4178 = vcmp.lt.s32.totalorder %v4156, 4
    %v4179 = vsel %vm4175, %v4159, %v4162
    %v4180 = vsel %vm4178, %v4168, 2102212464
    %v4181 = vsel %vm4177, %v4165, %v4180
    %v4182 = vsel %vm4176, %v4179, %v4181
    %v4183 = vsel %vm4175, %v4162, %v4165
    %v4184 = vsel %vm4178, %v4171, 920167782
    %v4185 = vsel %vm4177, %v4168, %v4184
    %v4186 = vsel %vm4176, %v4183, %v4185
    %v4187 = vsel %vm4175, %v4165, %v4168
    %v4188 = vsel %vm4178, %v4174, 1326507024
    %v4189 = vsel %vm4177, %v4171, %v4188
    %v4190 = vsel %vm4176, %v4187, %v4189
    %v4191 = vshll.u32 %v4151, 8
    %v4192 = vmul.u32.u64.compose %v4191, %v4190
    %v4193 = vextract.low.u32 %v4192
    %v4194 = vextract.high.u32 %v4192
    %v4195 = vmul.u32.u64.compose %v4191, %v4186
    %v4196 = vextract.low.u32 %v4195
    %v4197 = vextract.high.u32 %v4195
    %v4198 = vmul.u32 %v4191, %v4182
    %v4199 = vadd.s32 %v4194, %v4196
    %vm4200 = vc.u32 %v4194, %v4196
    %v4201 = vadd.s32 %v4197, 1
    %v4202 = vsel %vm4200, %v4201, %v4197
    %v4203 = vadd.s32 %v4198, %v4202
    %v4204 = vadd.s32 %v4203, 536870912
    %v4205 = vshrl.u32 %v4204, 30
    %v4206 = vshll.u32 %v4205, 30
    %v4207 = vsub.s32 %v4203, %v4206
    %vm4208 = vcmp.lt.s32.totalorder %v4207, 0
    %v4209 = vsub.s32 0, %v4207
    %v4210 = vsel %vm4208, %v4209, %v4207
    %v4211 = vclz %v4210
    %v4212 = vsub.s32 %v4211, 2
    %vm4213 = vcmp.gt.s32.totalorder 0, %v4212
    %v4214 = vsel %vm4213, 0, %v4212
    %v4215 = vsub.s32 32, %v4214
    %v4216 = vshll.u32 %v4207, %v4214
    %v4217 = vshrl.u32 %v4199, %v4215
    %v4218 = vor.u32 %v4216, %v4217
    %v4219 = vsub.s32 4294967266, %v4214
    %v4220 = vadd.s32 %v4219, 127
    %v4221 = vshll.u32 %v4220, 23
    %v4222 = vor.u32 4788187, %v4221
    %v4223 = vand.u32 2147483647, %v4222
    %v4225 = vcvt.s32.f32 %v4218
    %v4226 = vmul.f32 %v4225, %v4223
    %v4227 = vxor.u32 %v4226, 2147483648
    %v4228 = vsel %vm4145, %v4227, %v4226
    %v4229 = vsub.s32 4, %v4205
    %v4230 = vsel %vm4145, %v4229, %v4205
    %v4231 = vsel %vm4144, %v233, %v4228
    %v4232 = vsel %vm4144, 0, %v4230
    %v4233 = vcosq.f32.pop %v4231
    %v4234 = vsinq.f32.pop %v4231
    %vm4235 = vweird.f32 %v233
    %v4236 = vand.u32 %v4232, 3
    %vm4237 = vcmp.lt.s32.totalorder %v4236, 2
    %vm4238 = vcmp.eq.s32.totalorder %v4236, 0
    %v4239 = vxor.u32 %v4234, 2147483648
    %v4240 = vsel %vm4238, %v4233, %v4239
    %vm4241 = vcmp.eq.s32.totalorder %v4236, 2
    %v4242 = vxor.u32 %v4233, 2147483648
    %v4243 = vsel %vm4241, %v4242, %v4234
    %v4244 = vsel %vm4237, %v4240, %v4243
    %v4245 = vsel %vm4235, nan, %v4244
    %v4246 = vand.u32 2147483647, %v238
    %vm4247 = vcmp.le.f32.partialorder %v4246, 0.7853982
    %vm4248 = vcmp.lt.s32.totalorder %v238, 0
    %v4249 = vand.u32 %v238, 2139095040
    %v4250 = vshrl.u32 %v4249, 23
    %v4251 = vsub.s32 %v4250, 127
    %v4252 = vand.u32 2147483647, %v238
    %v4253 = vand.u32 %v4252, 8388607
    %v4254 = vor.u32 %v4253, 8388608
    %v4255 = vsub.s32 0, %v4254
    %v4256 = vadd.s32 %v4251, 1
    %vm4257 = vcmp.gt.s32.totalorder %v4256, 0
    %v4258 = vsel %vm4257, %v4256, 0
    %v4259 = vshrl.u32 %v4258, 5
    %v4260 = vand.u32 %v4258, 31
    %v4261 = vsub.s32 32, %v4260
    %v4262 = vshrl.u32 683565275, %v4261
    %v4263 = vshll.u32 683565275, %v4260
    %v4264 = vshrl.u32 2475754826, %v4261
    %v4265 = vor.u32 %v4263, %v4264
    %v4266 = vshll.u32 2475754826, %v4260
    %v4267 = vshrl.u32 2131351028, %v4261
    %v4268 = vor.u32 %v4266, %v4267
    %v4269 = vshll.u32 2131351028, %v4260
    %v4270 = vshrl.u32 2102212464, %v4261
    %v4271 = vor.u32 %v4269, %v4270
    %v4272 = vshll.u32 2102212464, %v4260
    %v4273 = vshrl.u32 920167782, %v4261
    %v4274 = vor.u32 %v4272, %v4273
    %v4275 = vshll.u32 920167782, %v4260
    %v4276 = vshrl.u32 1326507024, %v4261
    %v4277 = vor.u32 %v4275, %v4276
    %vm4278 = vcmp.lt.s32.totalorder %v4259, 1
    %vm4279 = vcmp.lt.s32.totalorder %v4259, 2
    %vm4280 = vcmp.lt.s32.totalorder %v4259, 3
    %vm4281 = vcmp.lt.s32.totalorder %v4259, 4
    %v4282 = vsel %vm4278, %v4262, %v4265
    %v4283 = vsel %vm4281, %v4271, 2102212464
    %v4284 = vsel %vm4280, %v4268, %v4283
    %v4285 = vsel %vm4279, %v4282, %v4284
    %v4286 = vsel %vm4278, %v4265, %v4268
    %v4287 = vsel %vm4281, %v4274, 920167782
    %v4288 = vsel %vm4280, %v4271, %v4287
    %v4289 = vsel %vm4279, %v4286, %v4288
    %v4290 = vsel %vm4278, %v4268, %v4271
    %v4291 = vsel %vm4281, %v4277, 1326507024
    %v4292 = vsel %vm4280, %v4274, %v4291
    %v4293 = vsel %vm4279, %v4290, %v4292
    %v4294 = vshll.u32 %v4254, 8
    %v4295 = vmul.u32.u64.compose %v4294, %v4293
    %v4296 = vextract.low.u32 %v4295
    %v4297 = vextract.high.u32 %v4295
    %v4298 = vmul.u32.u64.compose %v4294, %v4289
    %v4299 = vextract.low.u32 %v4298
    %v4300 = vextract.high.u32 %v4298
    %v4301 = vmul.u32 %v4294, %v4285
    %v4302 = vadd.s32 %v4297, %v4299
    %vm4303 = vc.u32 %v4297, %v4299
    %v4304 = vadd.s32 %v4300, 1
    %v4305 = vsel %vm4303, %v4304, %v4300
    %v4306 = vadd.s32 %v4301, %v4305
    %v4307 = vadd.s32 %v4306, 536870912
    %v4308 = vshrl.u32 %v4307, 30
    %v4309 = vshll.u32 %v4308, 30
    %v4310 = vsub.s32 %v4306, %v4309
    %vm4311 = vcmp.lt.s32.totalorder %v4310, 0
    %v4312 = vsub.s32 0, %v4310
    %v4313 = vsel %vm4311, %v4312, %v4310
    %v4314 = vclz %v4313
    %v4315 = vsub.s32 %v4314, 2
    %vm4316 = vcmp.gt.s32.totalorder 0, %v4315
    %v4317 = vsel %vm4316, 0, %v4315
    %v4318 = vsub.s32 32, %v4317
    %v4319 = vshll.u32 %v4310, %v4317
    %v4320 = vshrl.u32 %v4302, %v4318
    %v4321 = vor.u32 %v4319, %v4320
    %v4322 = vsub.s32 4294967266, %v4317
    %v4323 = vadd.s32 %v4322, 127
    %v4324 = vshll.u32 %v4323, 23
    %v4325 = vor.u32 4788187, %v4324
    %v4326 = vand.u32 2147483647, %v4325
    %v4328 = vcvt.s32.f32 %v4321
    %v4329 = vmul.f32 %v4328, %v4326
    %v4330 = vxor.u32 %v4329, 2147483648
    %v4331 = vsel %vm4248, %v4330, %v4329
    %v4332 = vsub.s32 4, %v4308
    %v4333 = vsel %vm4248, %v4332, %v4308
    %v4334 = vsel %vm4247, %v238, %v4331
    %v4335 = vsel %vm4247, 0, %v4333
    %v4336 = vcosq.f32.pop %v4334
    %v4337 = vsinq.f32.pop %v4334
    %vm4338 = vweird.f32 %v238
    %v4339 = vand.u32 %v4335, 3
    %vm4340 = vcmp.lt.s32.totalorder %v4339, 2
    %vm4341 = vcmp.eq.s32.totalorder %v4339, 0
    %v4342 = vxor.u32 %v4337, 2147483648
    %v4343 = vsel %vm4341, %v4336, %v4342
    %vm4344 = vcmp.eq.s32.totalorder %v4339, 2
    %v4345 = vxor.u32 %v4336, 2147483648
    %v4346 = vsel %vm4344, %v4345, %v4337
    %v4347 = vsel %vm4340, %v4343, %v4346
    %v4348 = vsel %vm4338, nan, %v4347
    %v4349 = vand.u32 2147483647, %v243
    %vm4350 = vcmp.le.f32.partialorder %v4349, 0.7853982
    %vm4351 = vcmp.lt.s32.totalorder %v243, 0
    %v4352 = vand.u32 %v243, 2139095040
    %v4353 = vshrl.u32 %v4352, 23
    %v4354 = vsub.s32 %v4353, 127
    %v4355 = vand.u32 2147483647, %v243
    %v4356 = vand.u32 %v4355, 8388607
    %v4357 = vor.u32 %v4356, 8388608
    %v4358 = vsub.s32 0, %v4357
    %v4359 = vadd.s32 %v4354, 1
    %vm4360 = vcmp.gt.s32.totalorder %v4359, 0
    %v4361 = vsel %vm4360, %v4359, 0
    %v4362 = vshrl.u32 %v4361, 5
    %v4363 = vand.u32 %v4361, 31
    %v4364 = vsub.s32 32, %v4363
    %v4365 = vshrl.u32 683565275, %v4364
    %v4366 = vshll.u32 683565275, %v4363
    %v4367 = vshrl.u32 2475754826, %v4364
    %v4368 = vor.u32 %v4366, %v4367
    %v4369 = vshll.u32 2475754826, %v4363
    %v4370 = vshrl.u32 2131351028, %v4364
    %v4371 = vor.u32 %v4369, %v4370
    %v4372 = vshll.u32 2131351028, %v4363
    %v4373 = vshrl.u32 2102212464, %v4364
    %v4374 = vor.u32 %v4372, %v4373
    %v4375 = vshll.u32 2102212464, %v4363
    %v4376 = vshrl.u32 920167782, %v4364
    %v4377 = vor.u32 %v4375, %v4376
    %v4378 = vshll.u32 920167782, %v4363
    %v4379 = vshrl.u32 1326507024, %v4364
    %v4380 = vor.u32 %v4378, %v4379
    %vm4381 = vcmp.lt.s32.totalorder %v4362, 1
    %vm4382 = vcmp.lt.s32.totalorder %v4362, 2
    %vm4383 = vcmp.lt.s32.totalorder %v4362, 3
    %vm4384 = vcmp.lt.s32.totalorder %v4362, 4
    %v4385 = vsel %vm4381, %v4365, %v4368
    %v4386 = vsel %vm4384, %v4374, 2102212464
    %v4387 = vsel %vm4383, %v4371, %v4386
    %v4388 = vsel %vm4382, %v4385, %v4387
    %v4389 = vsel %vm4381, %v4368, %v4371
    %v4390 = vsel %vm4384, %v4377, 920167782
    %v4391 = vsel %vm4383, %v4374, %v4390
    %v4392 = vsel %vm4382, %v4389, %v4391
    %v4393 = vsel %vm4381, %v4371, %v4374
    %v4394 = vsel %vm4384, %v4380, 1326507024
    %v4395 = vsel %vm4383, %v4377, %v4394
    %v4396 = vsel %vm4382, %v4393, %v4395
    %v4397 = vshll.u32 %v4357, 8
    %v4398 = vmul.u32.u64.compose %v4397, %v4396
    %v4399 = vextract.low.u32 %v4398
    %v4400 = vextract.high.u32 %v4398
    %v4401 = vmul.u32.u64.compose %v4397, %v4392
    %v4402 = vextract.low.u32 %v4401
    %v4403 = vextract.high.u32 %v4401
    %v4404 = vmul.u32 %v4397, %v4388
    %v4405 = vadd.s32 %v4400, %v4402
    %vm4406 = vc.u32 %v4400, %v4402
    %v4407 = vadd.s32 %v4403, 1
    %v4408 = vsel %vm4406, %v4407, %v4403
    %v4409 = vadd.s32 %v4404, %v4408
    %v4410 = vadd.s32 %v4409, 536870912
    %v4411 = vshrl.u32 %v4410, 30
    %v4412 = vshll.u32 %v4411, 30
    %v4413 = vsub.s32 %v4409, %v4412
    %vm4414 = vcmp.lt.s32.totalorder %v4413, 0
    %v4415 = vsub.s32 0, %v4413
    %v4416 = vsel %vm4414, %v4415, %v4413
    %v4417 = vclz %v4416
    %v4418 = vsub.s32 %v4417, 2
    %vm4419 = vcmp.gt.s32.totalorder 0, %v4418
    %v4420 = vsel %vm4419, 0, %v4418
    %v4421 = vsub.s32 32, %v4420
    %v4422 = vshll.u32 %v4413, %v4420
    %v4423 = vshrl.u32 %v4405, %v4421
    %v4424 = vor.u32 %v4422, %v4423
    %v4425 = vsub.s32 4294967266, %v4420
    %v4426 = vadd.s32 %v4425, 127
    %v4427 = vshll.u32 %v4426, 23
    %v4428 = vor.u32 4788187, %v4427
    %v4429 = vand.u32 2147483647, %v4428
    %v4431 = vcvt.s32.f32 %v4424
    %v4432 = vmul.f32 %v4431, %v4429
    %v4433 = vxor.u32 %v4432, 2147483648
    %v4434 = vsel %vm4351, %v4433, %v4432
    %v4435 = vsub.s32 4, %v4411
    %v4436 = vsel %vm4351, %v4435, %v4411
    %v4437 = vsel %vm4350, %v243, %v4434
    %v4438 = vsel %vm4350, 0, %v4436
    %v4439 = vcosq.f32.pop %v4437
    %v4440 = vsinq.f32.pop %v4437
    %vm4441 = vweird.f32 %v243
    %v4442 = vand.u32 %v4438, 3
    %vm4443 = vcmp.lt.s32.totalorder %v4442, 2
    %vm4444 = vcmp.eq.s32.totalorder %v4442, 0
    %v4445 = vxor.u32 %v4440, 2147483648
    %v4446 = vsel %vm4444, %v4439, %v4445
    %vm4447 = vcmp.eq.s32.totalorder %v4442, 2
    %v4448 = vxor.u32 %v4439, 2147483648
    %v4449 = vsel %vm4447, %v4448, %v4440
    %v4450 = vsel %vm4443, %v4446, %v4449
    %v4451 = vsel %vm4441, nan, %v4450
    %v4452 = vand.u32 2147483647, %v248
    %vm4453 = vcmp.le.f32.partialorder %v4452, 0.7853982
    %vm4454 = vcmp.lt.s32.totalorder %v248, 0
    %v4455 = vand.u32 %v248, 2139095040
    %v4456 = vshrl.u32 %v4455, 23
    %v4457 = vsub.s32 %v4456, 127
    %v4458 = vand.u32 2147483647, %v248
    %v4459 = vand.u32 %v4458, 8388607
    %v4460 = vor.u32 %v4459, 8388608
    %v4461 = vsub.s32 0, %v4460
    %v4462 = vadd.s32 %v4457, 1
    %vm4463 = vcmp.gt.s32.totalorder %v4462, 0
    %v4464 = vsel %vm4463, %v4462, 0
    %v4465 = vshrl.u32 %v4464, 5
    %v4466 = vand.u32 %v4464, 31
    %v4467 = vsub.s32 32, %v4466
    %v4468 = vshrl.u32 683565275, %v4467
    %v4469 = vshll.u32 683565275, %v4466
    %v4470 = vshrl.u32 2475754826, %v4467
    %v4471 = vor.u32 %v4469, %v4470
    %v4472 = vshll.u32 2475754826, %v4466
    %v4473 = vshrl.u32 2131351028, %v4467
    %v4474 = vor.u32 %v4472, %v4473
    %v4475 = vshll.u32 2131351028, %v4466
    %v4476 = vshrl.u32 2102212464, %v4467
    %v4477 = vor.u32 %v4475, %v4476
    %v4478 = vshll.u32 2102212464, %v4466
    %v4479 = vshrl.u32 920167782, %v4467
    %v4480 = vor.u32 %v4478, %v4479
    %v4481 = vshll.u32 920167782, %v4466
    %v4482 = vshrl.u32 1326507024, %v4467
    %v4483 = vor.u32 %v4481, %v4482
    %vm4484 = vcmp.lt.s32.totalorder %v4465, 1
    %vm4485 = vcmp.lt.s32.totalorder %v4465, 2
    %vm4486 = vcmp.lt.s32.totalorder %v4465, 3
    %vm4487 = vcmp.lt.s32.totalorder %v4465, 4
    %v4488 = vsel %vm4484, %v4468, %v4471
    %v4489 = vsel %vm4487, %v4477, 2102212464
    %v4490 = vsel %vm4486, %v4474, %v4489
    %v4491 = vsel %vm4485, %v4488, %v4490
    %v4492 = vsel %vm4484, %v4471, %v4474
    %v4493 = vsel %vm4487, %v4480, 920167782
    %v4494 = vsel %vm4486, %v4477, %v4493
    %v4495 = vsel %vm4485, %v4492, %v4494
    %v4496 = vsel %vm4484, %v4474, %v4477
    %v4497 = vsel %vm4487, %v4483, 1326507024
    %v4498 = vsel %vm4486, %v4480, %v4497
    %v4499 = vsel %vm4485, %v4496, %v4498
    %v4500 = vshll.u32 %v4460, 8
    %v4501 = vmul.u32.u64.compose %v4500, %v4499
    %v4502 = vextract.low.u32 %v4501
    %v4503 = vextract.high.u32 %v4501
    %v4504 = vmul.u32.u64.compose %v4500, %v4495
    %v4505 = vextract.low.u32 %v4504
    %v4506 = vextract.high.u32 %v4504
    %v4507 = vmul.u32 %v4500, %v4491
    %v4508 = vadd.s32 %v4503, %v4505
    %vm4509 = vc.u32 %v4503, %v4505
    %v4510 = vadd.s32 %v4506, 1
    %v4511 = vsel %vm4509, %v4510, %v4506
    %v4512 = vadd.s32 %v4507, %v4511
    %v4513 = vadd.s32 %v4512, 536870912
    %v4514 = vshrl.u32 %v4513, 30
    %v4515 = vshll.u32 %v4514, 30
    %v4516 = vsub.s32 %v4512, %v4515
    %vm4517 = vcmp.lt.s32.totalorder %v4516, 0
    %v4518 = vsub.s32 0, %v4516
    %v4519 = vsel %vm4517, %v4518, %v4516
    %v4520 = vclz %v4519
    %v4521 = vsub.s32 %v4520, 2
    %vm4522 = vcmp.gt.s32.totalorder 0, %v4521
    %v4523 = vsel %vm4522, 0, %v4521
    %v4524 = vsub.s32 32, %v4523
    %v4525 = vshll.u32 %v4516, %v4523
    %v4526 = vshrl.u32 %v4508, %v4524
    %v4527 = vor.u32 %v4525, %v4526
    %v4528 = vsub.s32 4294967266, %v4523
    %v4529 = vadd.s32 %v4528, 127
    %v4530 = vshll.u32 %v4529, 23
    %v4531 = vor.u32 4788187, %v4530
    %v4532 = vand.u32 2147483647, %v4531
    %v4534 = vcvt.s32.f32 %v4527
    %v4535 = vmul.f32 %v4534, %v4532
    %v4536 = vxor.u32 %v4535, 2147483648
    %v4537 = vsel %vm4454, %v4536, %v4535
    %v4538 = vsub.s32 4, %v4514
    %v4539 = vsel %vm4454, %v4538, %v4514
    %v4540 = vsel %vm4453, %v248, %v4537
    %v4541 = vsel %vm4453, 0, %v4539
    %v4542 = vcosq.f32.pop %v4540
    %v4543 = vsinq.f32.pop %v4540
    %vm4544 = vweird.f32 %v248
    %v4545 = vand.u32 %v4541, 3
    %vm4546 = vcmp.lt.s32.totalorder %v4545, 2
    %vm4547 = vcmp.eq.s32.totalorder %v4545, 0
    %v4548 = vxor.u32 %v4543, 2147483648
    %v4549 = vsel %vm4547, %v4542, %v4548
    %vm4550 = vcmp.eq.s32.totalorder %v4545, 2
    %v4551 = vxor.u32 %v4542, 2147483648
    %v4552 = vsel %vm4550, %v4551, %v4543
    %v4553 = vsel %vm4546, %v4549, %v4552
    %v4554 = vsel %vm4544, nan, %v4553
    %v4555 = vand.u32 2147483647, %v253
    %vm4556 = vcmp.le.f32.partialorder %v4555, 0.7853982
    %vm4557 = vcmp.lt.s32.totalorder %v253, 0
    %v4558 = vand.u32 %v253, 2139095040
    %v4559 = vshrl.u32 %v4558, 23
    %v4560 = vsub.s32 %v4559, 127
    %v4561 = vand.u32 2147483647, %v253
    %v4562 = vand.u32 %v4561, 8388607
    %v4563 = vor.u32 %v4562, 8388608
    %v4564 = vsub.s32 0, %v4563
    %v4565 = vadd.s32 %v4560, 1
    %vm4566 = vcmp.gt.s32.totalorder %v4565, 0
    %v4567 = vsel %vm4566, %v4565, 0
    %v4568 = vshrl.u32 %v4567, 5
    %v4569 = vand.u32 %v4567, 31
    %v4570 = vsub.s32 32, %v4569
    %v4571 = vshrl.u32 683565275, %v4570
    %v4572 = vshll.u32 683565275, %v4569
    %v4573 = vshrl.u32 2475754826, %v4570
    %v4574 = vor.u32 %v4572, %v4573
    %v4575 = vshll.u32 2475754826, %v4569
    %v4576 = vshrl.u32 2131351028, %v4570
    %v4577 = vor.u32 %v4575, %v4576
    %v4578 = vshll.u32 2131351028, %v4569
    %v4579 = vshrl.u32 2102212464, %v4570
    %v4580 = vor.u32 %v4578, %v4579
    %v4581 = vshll.u32 2102212464, %v4569
    %v4582 = vshrl.u32 920167782, %v4570
    %v4583 = vor.u32 %v4581, %v4582
    %v4584 = vshll.u32 920167782, %v4569
    %v4585 = vshrl.u32 1326507024, %v4570
    %v4586 = vor.u32 %v4584, %v4585
    %vm4587 = vcmp.lt.s32.totalorder %v4568, 1
    %vm4588 = vcmp.lt.s32.totalorder %v4568, 2
    %vm4589 = vcmp.lt.s32.totalorder %v4568, 3
    %vm4590 = vcmp.lt.s32.totalorder %v4568, 4
    %v4591 = vsel %vm4587, %v4571, %v4574
    %v4592 = vsel %vm4590, %v4580, 2102212464
    %v4593 = vsel %vm4589, %v4577, %v4592
    %v4594 = vsel %vm4588, %v4591, %v4593
    %v4595 = vsel %vm4587, %v4574, %v4577
    %v4596 = vsel %vm4590, %v4583, 920167782
    %v4597 = vsel %vm4589, %v4580, %v4596
    %v4598 = vsel %vm4588, %v4595, %v4597
    %v4599 = vsel %vm4587, %v4577, %v4580
    %v4600 = vsel %vm4590, %v4586, 1326507024
    %v4601 = vsel %vm4589, %v4583, %v4600
    %v4602 = vsel %vm4588, %v4599, %v4601
    %v4603 = vshll.u32 %v4563, 8
    %v4604 = vmul.u32.u64.compose %v4603, %v4602
    %v4605 = vextract.low.u32 %v4604
    %v4606 = vextract.high.u32 %v4604
    %v4607 = vmul.u32.u64.compose %v4603, %v4598
    %v4608 = vextract.low.u32 %v4607
    %v4609 = vextract.high.u32 %v4607
    %v4610 = vmul.u32 %v4603, %v4594
    %v4611 = vadd.s32 %v4606, %v4608
    %vm4612 = vc.u32 %v4606, %v4608
    %v4613 = vadd.s32 %v4609, 1
    %v4614 = vsel %vm4612, %v4613, %v4609
    %v4615 = vadd.s32 %v4610, %v4614
    %v4616 = vadd.s32 %v4615, 536870912
    %v4617 = vshrl.u32 %v4616, 30
    %v4618 = vshll.u32 %v4617, 30
    %v4619 = vsub.s32 %v4615, %v4618
    %vm4620 = vcmp.lt.s32.totalorder %v4619, 0
    %v4621 = vsub.s32 0, %v4619
    %v4622 = vsel %vm4620, %v4621, %v4619
    %v4623 = vclz %v4622
    %v4624 = vsub.s32 %v4623, 2
    %vm4625 = vcmp.gt.s32.totalorder 0, %v4624
    %v4626 = vsel %vm4625, 0, %v4624
    %v4627 = vsub.s32 32, %v4626
    %v4628 = vshll.u32 %v4619, %v4626
    %v4629 = vshrl.u32 %v4611, %v4627
    %v4630 = vor.u32 %v4628, %v4629
    %v4631 = vsub.s32 4294967266, %v4626
    %v4632 = vadd.s32 %v4631, 127
    %v4633 = vshll.u32 %v4632, 23
    %v4634 = vor.u32 4788187, %v4633
    %v4635 = vand.u32 2147483647, %v4634
    %v4637 = vcvt.s32.f32 %v4630
    %v4638 = vmul.f32 %v4637, %v4635
    %v4639 = vxor.u32 %v4638, 2147483648
    %v4640 = vsel %vm4557, %v4639, %v4638
    %v4641 = vsub.s32 4, %v4617
    %v4642 = vsel %vm4557, %v4641, %v4617
    %v4643 = vsel %vm4556, %v253, %v4640
    %v4644 = vsel %vm4556, 0, %v4642
    %v4645 = vcosq.f32.pop %v4643
    %v4646 = vsinq.f32.pop %v4643
    %vm4647 = vweird.f32 %v253
    %v4648 = vand.u32 %v4644, 3
    %vm4649 = vcmp.lt.s32.totalorder %v4648, 2
    %vm4650 = vcmp.eq.s32.totalorder %v4648, 0
    %v4651 = vxor.u32 %v4646, 2147483648
    %v4652 = vsel %vm4650, %v4645, %v4651
    %vm4653 = vcmp.eq.s32.totalorder %v4648, 2
    %v4654 = vxor.u32 %v4645, 2147483648
    %v4655 = vsel %vm4653, %v4654, %v4646
    %v4656 = vsel %vm4649, %v4652, %v4655
    %v4657 = vsel %vm4647, nan, %v4656
    %v4658 = vand.u32 2147483647, %v258
    %vm4659 = vcmp.le.f32.partialorder %v4658, 0.7853982
    %vm4660 = vcmp.lt.s32.totalorder %v258, 0
    %v4661 = vand.u32 %v258, 2139095040
    %v4662 = vshrl.u32 %v4661, 23
    %v4663 = vsub.s32 %v4662, 127
    %v4664 = vand.u32 2147483647, %v258
    %v4665 = vand.u32 %v4664, 8388607
    %v4666 = vor.u32 %v4665, 8388608
    %v4667 = vsub.s32 0, %v4666
    %v4668 = vadd.s32 %v4663, 1
    %vm4669 = vcmp.gt.s32.totalorder %v4668, 0
    %v4670 = vsel %vm4669, %v4668, 0
    %v4671 = vshrl.u32 %v4670, 5
    %v4672 = vand.u32 %v4670, 31
    %v4673 = vsub.s32 32, %v4672
    %v4674 = vshrl.u32 683565275, %v4673
    %v4675 = vshll.u32 683565275, %v4672
    %v4676 = vshrl.u32 2475754826, %v4673
    %v4677 = vor.u32 %v4675, %v4676
    %v4678 = vshll.u32 2475754826, %v4672
    %v4679 = vshrl.u32 2131351028, %v4673
    %v4680 = vor.u32 %v4678, %v4679
    %v4681 = vshll.u32 2131351028, %v4672
    %v4682 = vshrl.u32 2102212464, %v4673
    %v4683 = vor.u32 %v4681, %v4682
    %v4684 = vshll.u32 2102212464, %v4672
    %v4685 = vshrl.u32 920167782, %v4673
    %v4686 = vor.u32 %v4684, %v4685
    %v4687 = vshll.u32 920167782, %v4672
    %v4688 = vshrl.u32 1326507024, %v4673
    %v4689 = vor.u32 %v4687, %v4688
    %vm4690 = vcmp.lt.s32.totalorder %v4671, 1
    %vm4691 = vcmp.lt.s32.totalorder %v4671, 2
    %vm4692 = vcmp.lt.s32.totalorder %v4671, 3
    %vm4693 = vcmp.lt.s32.totalorder %v4671, 4
    %v4694 = vsel %vm4690, %v4674, %v4677
    %v4695 = vsel %vm4693, %v4683, 2102212464
    %v4696 = vsel %vm4692, %v4680, %v4695
    %v4697 = vsel %vm4691, %v4694, %v4696
    %v4698 = vsel %vm4690, %v4677, %v4680
    %v4699 = vsel %vm4693, %v4686, 920167782
    %v4700 = vsel %vm4692, %v4683, %v4699
    %v4701 = vsel %vm4691, %v4698, %v4700
    %v4702 = vsel %vm4690, %v4680, %v4683
    %v4703 = vsel %vm4693, %v4689, 1326507024
    %v4704 = vsel %vm4692, %v4686, %v4703
    %v4705 = vsel %vm4691, %v4702, %v4704
    %v4706 = vshll.u32 %v4666, 8
    %v4707 = vmul.u32.u64.compose %v4706, %v4705
    %v4708 = vextract.low.u32 %v4707
    %v4709 = vextract.high.u32 %v4707
    %v4710 = vmul.u32.u64.compose %v4706, %v4701
    %v4711 = vextract.low.u32 %v4710
    %v4712 = vextract.high.u32 %v4710
    %v4713 = vmul.u32 %v4706, %v4697
    %v4714 = vadd.s32 %v4709, %v4711
    %vm4715 = vc.u32 %v4709, %v4711
    %v4716 = vadd.s32 %v4712, 1
    %v4717 = vsel %vm4715, %v4716, %v4712
    %v4718 = vadd.s32 %v4713, %v4717
    %v4719 = vadd.s32 %v4718, 536870912
    %v4720 = vshrl.u32 %v4719, 30
    %v4721 = vshll.u32 %v4720, 30
    %v4722 = vsub.s32 %v4718, %v4721
    %vm4723 = vcmp.lt.s32.totalorder %v4722, 0
    %v4724 = vsub.s32 0, %v4722
    %v4725 = vsel %vm4723, %v4724, %v4722
    %v4726 = vclz %v4725
    %v4727 = vsub.s32 %v4726, 2
    %vm4728 = vcmp.gt.s32.totalorder 0, %v4727
    %v4729 = vsel %vm4728, 0, %v4727
    %v4730 = vsub.s32 32, %v4729
    %v4731 = vshll.u32 %v4722, %v4729
    %v4732 = vshrl.u32 %v4714, %v4730
    %v4733 = vor.u32 %v4731, %v4732
    %v4734 = vsub.s32 4294967266, %v4729
    %v4735 = vadd.s32 %v4734, 127
    %v4736 = vshll.u32 %v4735, 23
    %v4737 = vor.u32 4788187, %v4736
    %v4738 = vand.u32 2147483647, %v4737
    %v4740 = vcvt.s32.f32 %v4733
    %v4741 = vmul.f32 %v4740, %v4738
    %v4742 = vxor.u32 %v4741, 2147483648
    %v4743 = vsel %vm4660, %v4742, %v4741
    %v4744 = vsub.s32 4, %v4720
    %v4745 = vsel %vm4660, %v4744, %v4720
    %v4746 = vsel %vm4659, %v258, %v4743
    %v4747 = vsel %vm4659, 0, %v4745
    %v4748 = vcosq.f32.pop %v4746
    %v4749 = vsinq.f32.pop %v4746
    %vm4750 = vweird.f32 %v258
    %v4751 = vand.u32 %v4747, 3
    %vm4752 = vcmp.lt.s32.totalorder %v4751, 2
    %vm4753 = vcmp.eq.s32.totalorder %v4751, 0
    %v4754 = vxor.u32 %v4749, 2147483648
    %v4755 = vsel %vm4753, %v4748, %v4754
    %vm4756 = vcmp.eq.s32.totalorder %v4751, 2
    %v4757 = vxor.u32 %v4748, 2147483648
    %v4758 = vsel %vm4756, %v4757, %v4749
    %v4759 = vsel %vm4752, %v4755, %v4758
    %v4760 = vsel %vm4750, nan, %v4759
    %v4761 = vand.u32 2147483647, %v263
    %vm4762 = vcmp.le.f32.partialorder %v4761, 0.7853982
    %vm4763 = vcmp.lt.s32.totalorder %v263, 0
    %v4764 = vand.u32 %v263, 2139095040
    %v4765 = vshrl.u32 %v4764, 23
    %v4766 = vsub.s32 %v4765, 127
    %v4767 = vand.u32 2147483647, %v263
    %v4768 = vand.u32 %v4767, 8388607
    %v4769 = vor.u32 %v4768, 8388608
    %v4770 = vsub.s32 0, %v4769
    %v4771 = vadd.s32 %v4766, 1
    %vm4772 = vcmp.gt.s32.totalorder %v4771, 0
    %v4773 = vsel %vm4772, %v4771, 0
    %v4774 = vshrl.u32 %v4773, 5
    %v4775 = vand.u32 %v4773, 31
    %v4776 = vsub.s32 32, %v4775
    %v4777 = vshrl.u32 683565275, %v4776
    %v4778 = vshll.u32 683565275, %v4775
    %v4779 = vshrl.u32 2475754826, %v4776
    %v4780 = vor.u32 %v4778, %v4779
    %v4781 = vshll.u32 2475754826, %v4775
    %v4782 = vshrl.u32 2131351028, %v4776
    %v4783 = vor.u32 %v4781, %v4782
    %v4784 = vshll.u32 2131351028, %v4775
    %v4785 = vshrl.u32 2102212464, %v4776
    %v4786 = vor.u32 %v4784, %v4785
    %v4787 = vshll.u32 2102212464, %v4775
    %v4788 = vshrl.u32 920167782, %v4776
    %v4789 = vor.u32 %v4787, %v4788
    %v4790 = vshll.u32 920167782, %v4775
    %v4791 = vshrl.u32 1326507024, %v4776
    %v4792 = vor.u32 %v4790, %v4791
    %vm4793 = vcmp.lt.s32.totalorder %v4774, 1
    %vm4794 = vcmp.lt.s32.totalorder %v4774, 2
    %vm4795 = vcmp.lt.s32.totalorder %v4774, 3
    %vm4796 = vcmp.lt.s32.totalorder %v4774, 4
    %v4797 = vsel %vm4793, %v4777, %v4780
    %v4798 = vsel %vm4796, %v4786, 2102212464
    %v4799 = vsel %vm4795, %v4783, %v4798
    %v4800 = vsel %vm4794, %v4797, %v4799
    %v4801 = vsel %vm4793, %v4780, %v4783
    %v4802 = vsel %vm4796, %v4789, 920167782
    %v4803 = vsel %vm4795, %v4786, %v4802
    %v4804 = vsel %vm4794, %v4801, %v4803
    %v4805 = vsel %vm4793, %v4783, %v4786
    %v4806 = vsel %vm4796, %v4792, 1326507024
    %v4807 = vsel %vm4795, %v4789, %v4806
    %v4808 = vsel %vm4794, %v4805, %v4807
    %v4809 = vshll.u32 %v4769, 8
    %v4810 = vmul.u32.u64.compose %v4809, %v4808
    %v4811 = vextract.low.u32 %v4810
    %v4812 = vextract.high.u32 %v4810
    %v4813 = vmul.u32.u64.compose %v4809, %v4804
    %v4814 = vextract.low.u32 %v4813
    %v4815 = vextract.high.u32 %v4813
    %v4816 = vmul.u32 %v4809, %v4800
    %v4817 = vadd.s32 %v4812, %v4814
    %vm4818 = vc.u32 %v4812, %v4814
    %v4819 = vadd.s32 %v4815, 1
    %v4820 = vsel %vm4818, %v4819, %v4815
    %v4821 = vadd.s32 %v4816, %v4820
    %v4822 = vadd.s32 %v4821, 536870912
    %v4823 = vshrl.u32 %v4822, 30
    %v4824 = vshll.u32 %v4823, 30
    %v4825 = vsub.s32 %v4821, %v4824
    %vm4826 = vcmp.lt.s32.totalorder %v4825, 0
    %v4827 = vsub.s32 0, %v4825
    %v4828 = vsel %vm4826, %v4827, %v4825
    %v4829 = vclz %v4828
    %v4830 = vsub.s32 %v4829, 2
    %vm4831 = vcmp.gt.s32.totalorder 0, %v4830
    %v4832 = vsel %vm4831, 0, %v4830
    %v4833 = vsub.s32 32, %v4832
    %v4834 = vshll.u32 %v4825, %v4832
    %v4835 = vshrl.u32 %v4817, %v4833
    %v4836 = vor.u32 %v4834, %v4835
    %v4837 = vsub.s32 4294967266, %v4832
    %v4838 = vadd.s32 %v4837, 127
    %v4839 = vshll.u32 %v4838, 23
    %v4840 = vor.u32 4788187, %v4839
    %v4841 = vand.u32 2147483647, %v4840
    %v4843 = vcvt.s32.f32 %v4836
    %v4844 = vmul.f32 %v4843, %v4841
    %v4845 = vxor.u32 %v4844, 2147483648
    %v4846 = vsel %vm4763, %v4845, %v4844
    %v4847 = vsub.s32 4, %v4823
    %v4848 = vsel %vm4763, %v4847, %v4823
    %v4849 = vsel %vm4762, %v263, %v4846
    %v4850 = vsel %vm4762, 0, %v4848
    %v4851 = vcosq.f32.pop %v4849
    %v4852 = vsinq.f32.pop %v4849
    %vm4853 = vweird.f32 %v263
    %v4854 = vand.u32 %v4850, 3
    %vm4855 = vcmp.lt.s32.totalorder %v4854, 2
    %vm4856 = vcmp.eq.s32.totalorder %v4854, 0
    %v4857 = vxor.u32 %v4852, 2147483648
    %v4858 = vsel %vm4856, %v4851, %v4857
    %vm4859 = vcmp.eq.s32.totalorder %v4854, 2
    %v4860 = vxor.u32 %v4851, 2147483648
    %v4861 = vsel %vm4859, %v4860, %v4852
    %v4862 = vsel %vm4855, %v4858, %v4861
    %v4863 = vsel %vm4853, nan, %v4862
    %v4864 = vand.u32 2147483647, %v268
    %vm4865 = vcmp.le.f32.partialorder %v4864, 0.7853982
    %vm4866 = vcmp.lt.s32.totalorder %v268, 0
    %v4867 = vand.u32 %v268, 2139095040
    %v4868 = vshrl.u32 %v4867, 23
    %v4869 = vsub.s32 %v4868, 127
    %v4870 = vand.u32 2147483647, %v268
    %v4871 = vand.u32 %v4870, 8388607
    %v4872 = vor.u32 %v4871, 8388608
    %v4873 = vsub.s32 0, %v4872
    %v4874 = vadd.s32 %v4869, 1
    %vm4875 = vcmp.gt.s32.totalorder %v4874, 0
    %v4876 = vsel %vm4875, %v4874, 0
    %v4877 = vshrl.u32 %v4876, 5
    %v4878 = vand.u32 %v4876, 31
    %v4879 = vsub.s32 32, %v4878
    %v4880 = vshrl.u32 683565275, %v4879
    %v4881 = vshll.u32 683565275, %v4878
    %v4882 = vshrl.u32 2475754826, %v4879
    %v4883 = vor.u32 %v4881, %v4882
    %v4884 = vshll.u32 2475754826, %v4878
    %v4885 = vshrl.u32 2131351028, %v4879
    %v4886 = vor.u32 %v4884, %v4885
    %v4887 = vshll.u32 2131351028, %v4878
    %v4888 = vshrl.u32 2102212464, %v4879
    %v4889 = vor.u32 %v4887, %v4888
    %v4890 = vshll.u32 2102212464, %v4878
    %v4891 = vshrl.u32 920167782, %v4879
    %v4892 = vor.u32 %v4890, %v4891
    %v4893 = vshll.u32 920167782, %v4878
    %v4894 = vshrl.u32 1326507024, %v4879
    %v4895 = vor.u32 %v4893, %v4894
    %vm4896 = vcmp.lt.s32.totalorder %v4877, 1
    %vm4897 = vcmp.lt.s32.totalorder %v4877, 2
    %vm4898 = vcmp.lt.s32.totalorder %v4877, 3
    %vm4899 = vcmp.lt.s32.totalorder %v4877, 4
    %v4900 = vsel %vm4896, %v4880, %v4883
    %v4901 = vsel %vm4899, %v4889, 2102212464
    %v4902 = vsel %vm4898, %v4886, %v4901
    %v4903 = vsel %vm4897, %v4900, %v4902
    %v4904 = vsel %vm4896, %v4883, %v4886
    %v4905 = vsel %vm4899, %v4892, 920167782
    %v4906 = vsel %vm4898, %v4889, %v4905
    %v4907 = vsel %vm4897, %v4904, %v4906
    %v4908 = vsel %vm4896, %v4886, %v4889
    %v4909 = vsel %vm4899, %v4895, 1326507024
    %v4910 = vsel %vm4898, %v4892, %v4909
    %v4911 = vsel %vm4897, %v4908, %v4910
    %v4912 = vshll.u32 %v4872, 8
    %v4913 = vmul.u32.u64.compose %v4912, %v4911
    %v4914 = vextract.low.u32 %v4913
    %v4915 = vextract.high.u32 %v4913
    %v4916 = vmul.u32.u64.compose %v4912, %v4907
    %v4917 = vextract.low.u32 %v4916
    %v4918 = vextract.high.u32 %v4916
    %v4919 = vmul.u32 %v4912, %v4903
    %v4920 = vadd.s32 %v4915, %v4917
    %vm4921 = vc.u32 %v4915, %v4917
    %v4922 = vadd.s32 %v4918, 1
    %v4923 = vsel %vm4921, %v4922, %v4918
    %v4924 = vadd.s32 %v4919, %v4923
    %v4925 = vadd.s32 %v4924, 536870912
    %v4926 = vshrl.u32 %v4925, 30
    %v4927 = vshll.u32 %v4926, 30
    %v4928 = vsub.s32 %v4924, %v4927
    %vm4929 = vcmp.lt.s32.totalorder %v4928, 0
    %v4930 = vsub.s32 0, %v4928
    %v4931 = vsel %vm4929, %v4930, %v4928
    %v4932 = vclz %v4931
    %v4933 = vsub.s32 %v4932, 2
    %vm4934 = vcmp.gt.s32.totalorder 0, %v4933
    %v4935 = vsel %vm4934, 0, %v4933
    %v4936 = vsub.s32 32, %v4935
    %v4937 = vshll.u32 %v4928, %v4935
    %v4938 = vshrl.u32 %v4920, %v4936
    %v4939 = vor.u32 %v4937, %v4938
    %v4940 = vsub.s32 4294967266, %v4935
    %v4941 = vadd.s32 %v4940, 127
    %v4942 = vshll.u32 %v4941, 23
    %v4943 = vor.u32 4788187, %v4942
    %v4944 = vand.u32 2147483647, %v4943
    %v4946 = vcvt.s32.f32 %v4939
    %v4947 = vmul.f32 %v4946, %v4944
    %v4948 = vxor.u32 %v4947, 2147483648
    %v4949 = vsel %vm4866, %v4948, %v4947
    %v4950 = vsub.s32 4, %v4926
    %v4951 = vsel %vm4866, %v4950, %v4926
    %v4952 = vsel %vm4865, %v268, %v4949
    %v4953 = vsel %vm4865, 0, %v4951
    %v4954 = vcosq.f32.pop %v4952
    %v4955 = vsinq.f32.pop %v4952
    %vm4956 = vweird.f32 %v268
    %v4957 = vand.u32 %v4953, 3
    %vm4958 = vcmp.lt.s32.totalorder %v4957, 2
    %vm4959 = vcmp.eq.s32.totalorder %v4957, 0
    %v4960 = vxor.u32 %v4955, 2147483648
    %v4961 = vsel %vm4959, %v4954, %v4960
    %vm4962 = vcmp.eq.s32.totalorder %v4957, 2
    %v4963 = vxor.u32 %v4954, 2147483648
    %v4964 = vsel %vm4962, %v4963, %v4955
    %v4965 = vsel %vm4958, %v4961, %v4964
    %v4966 = vsel %vm4956, nan, %v4965
    %v4967 = vand.u32 2147483647, %v273
    %vm4968 = vcmp.le.f32.partialorder %v4967, 0.7853982
    %vm4969 = vcmp.lt.s32.totalorder %v273, 0
    %v4970 = vand.u32 %v273, 2139095040
    %v4971 = vshrl.u32 %v4970, 23
    %v4972 = vsub.s32 %v4971, 127
    %v4973 = vand.u32 2147483647, %v273
    %v4974 = vand.u32 %v4973, 8388607
    %v4975 = vor.u32 %v4974, 8388608
    %v4976 = vsub.s32 0, %v4975
    %v4977 = vadd.s32 %v4972, 1
    %vm4978 = vcmp.gt.s32.totalorder %v4977, 0
    %v4979 = vsel %vm4978, %v4977, 0
    %v4980 = vshrl.u32 %v4979, 5
    %v4981 = vand.u32 %v4979, 31
    %v4982 = vsub.s32 32, %v4981
    %v4983 = vshrl.u32 683565275, %v4982
    %v4984 = vshll.u32 683565275, %v4981
    %v4985 = vshrl.u32 2475754826, %v4982
    %v4986 = vor.u32 %v4984, %v4985
    %v4987 = vshll.u32 2475754826, %v4981
    %v4988 = vshrl.u32 2131351028, %v4982
    %v4989 = vor.u32 %v4987, %v4988
    %v4990 = vshll.u32 2131351028, %v4981
    %v4991 = vshrl.u32 2102212464, %v4982
    %v4992 = vor.u32 %v4990, %v4991
    %v4993 = vshll.u32 2102212464, %v4981
    %v4994 = vshrl.u32 920167782, %v4982
    %v4995 = vor.u32 %v4993, %v4994
    %v4996 = vshll.u32 920167782, %v4981
    %v4997 = vshrl.u32 1326507024, %v4982
    %v4998 = vor.u32 %v4996, %v4997
    %vm4999 = vcmp.lt.s32.totalorder %v4980, 1
    %vm5000 = vcmp.lt.s32.totalorder %v4980, 2
    %vm5001 = vcmp.lt.s32.totalorder %v4980, 3
    %vm5002 = vcmp.lt.s32.totalorder %v4980, 4
    %v5003 = vsel %vm4999, %v4983, %v4986
    %v5004 = vsel %vm5002, %v4992, 2102212464
    %v5005 = vsel %vm5001, %v4989, %v5004
    %v5006 = vsel %vm5000, %v5003, %v5005
    %v5007 = vsel %vm4999, %v4986, %v4989
    %v5008 = vsel %vm5002, %v4995, 920167782
    %v5009 = vsel %vm5001, %v4992, %v5008
    %v5010 = vsel %vm5000, %v5007, %v5009
    %v5011 = vsel %vm4999, %v4989, %v4992
    %v5012 = vsel %vm5002, %v4998, 1326507024
    %v5013 = vsel %vm5001, %v4995, %v5012
    %v5014 = vsel %vm5000, %v5011, %v5013
    %v5015 = vshll.u32 %v4975, 8
    %v5016 = vmul.u32.u64.compose %v5015, %v5014
    %v5017 = vextract.low.u32 %v5016
    %v5018 = vextract.high.u32 %v5016
    %v5019 = vmul.u32.u64.compose %v5015, %v5010
    %v5020 = vextract.low.u32 %v5019
    %v5021 = vextract.high.u32 %v5019
    %v5022 = vmul.u32 %v5015, %v5006
    %v5023 = vadd.s32 %v5018, %v5020
    %vm5024 = vc.u32 %v5018, %v5020
    %v5025 = vadd.s32 %v5021, 1
    %v5026 = vsel %vm5024, %v5025, %v5021
    %v5027 = vadd.s32 %v5022, %v5026
    %v5028 = vadd.s32 %v5027, 536870912
    %v5029 = vshrl.u32 %v5028, 30
    %v5030 = vshll.u32 %v5029, 30
    %v5031 = vsub.s32 %v5027, %v5030
    %vm5032 = vcmp.lt.s32.totalorder %v5031, 0
    %v5033 = vsub.s32 0, %v5031
    %v5034 = vsel %vm5032, %v5033, %v5031
    %v5035 = vclz %v5034
    %v5036 = vsub.s32 %v5035, 2
    %vm5037 = vcmp.gt.s32.totalorder 0, %v5036
    %v5038 = vsel %vm5037, 0, %v5036
    %v5039 = vsub.s32 32, %v5038
    %v5040 = vshll.u32 %v5031, %v5038
    %v5041 = vshrl.u32 %v5023, %v5039
    %v5042 = vor.u32 %v5040, %v5041
    %v5043 = vsub.s32 4294967266, %v5038
    %v5044 = vadd.s32 %v5043, 127
    %v5045 = vshll.u32 %v5044, 23
    %v5046 = vor.u32 4788187, %v5045
    %v5047 = vand.u32 2147483647, %v5046
    %v5049 = vcvt.s32.f32 %v5042
    %v5050 = vmul.f32 %v5049, %v5047
    %v5051 = vxor.u32 %v5050, 2147483648
    %v5052 = vsel %vm4969, %v5051, %v5050
    %v5053 = vsub.s32 4, %v5029
    %v5054 = vsel %vm4969, %v5053, %v5029
    %v5055 = vsel %vm4968, %v273, %v5052
    %v5056 = vsel %vm4968, 0, %v5054
    %v5057 = vcosq.f32.pop %v5055
    %v5058 = vsinq.f32.pop %v5055
    %vm5059 = vweird.f32 %v273
    %v5060 = vand.u32 %v5056, 3
    %vm5061 = vcmp.lt.s32.totalorder %v5060, 2
    %vm5062 = vcmp.eq.s32.totalorder %v5060, 0
    %v5063 = vxor.u32 %v5058, 2147483648
    %v5064 = vsel %vm5062, %v5057, %v5063
    %vm5065 = vcmp.eq.s32.totalorder %v5060, 2
    %v5066 = vxor.u32 %v5057, 2147483648
    %v5067 = vsel %vm5065, %v5066, %v5058
    %v5068 = vsel %vm5061, %v5064, %v5067
    %v5069 = vsel %vm5059, nan, %v5068
    %v5070 = vand.u32 2147483647, %v278
    %vm5071 = vcmp.le.f32.partialorder %v5070, 0.7853982
    %vm5072 = vcmp.lt.s32.totalorder %v278, 0
    %v5073 = vand.u32 %v278, 2139095040
    %v5074 = vshrl.u32 %v5073, 23
    %v5075 = vsub.s32 %v5074, 127
    %v5076 = vand.u32 2147483647, %v278
    %v5077 = vand.u32 %v5076, 8388607
    %v5078 = vor.u32 %v5077, 8388608
    %v5079 = vsub.s32 0, %v5078
    %v5080 = vadd.s32 %v5075, 1
    %vm5081 = vcmp.gt.s32.totalorder %v5080, 0
    %v5082 = vsel %vm5081, %v5080, 0
    %v5083 = vshrl.u32 %v5082, 5
    %v5084 = vand.u32 %v5082, 31
    %v5085 = vsub.s32 32, %v5084
    %v5086 = vshrl.u32 683565275, %v5085
    %v5087 = vshll.u32 683565275, %v5084
    %v5088 = vshrl.u32 2475754826, %v5085
    %v5089 = vor.u32 %v5087, %v5088
    %v5090 = vshll.u32 2475754826, %v5084
    %v5091 = vshrl.u32 2131351028, %v5085
    %v5092 = vor.u32 %v5090, %v5091
    %v5093 = vshll.u32 2131351028, %v5084
    %v5094 = vshrl.u32 2102212464, %v5085
    %v5095 = vor.u32 %v5093, %v5094
    %v5096 = vshll.u32 2102212464, %v5084
    %v5097 = vshrl.u32 920167782, %v5085
    %v5098 = vor.u32 %v5096, %v5097
    %v5099 = vshll.u32 920167782, %v5084
    %v5100 = vshrl.u32 1326507024, %v5085
    %v5101 = vor.u32 %v5099, %v5100
    %vm5102 = vcmp.lt.s32.totalorder %v5083, 1
    %vm5103 = vcmp.lt.s32.totalorder %v5083, 2
    %vm5104 = vcmp.lt.s32.totalorder %v5083, 3
    %vm5105 = vcmp.lt.s32.totalorder %v5083, 4
    %v5106 = vsel %vm5102, %v5086, %v5089
    %v5107 = vsel %vm5105, %v5095, 2102212464
    %v5108 = vsel %vm5104, %v5092, %v5107
    %v5109 = vsel %vm5103, %v5106, %v5108
    %v5110 = vsel %vm5102, %v5089, %v5092
    %v5111 = vsel %vm5105, %v5098, 920167782
    %v5112 = vsel %vm5104, %v5095, %v5111
    %v5113 = vsel %vm5103, %v5110, %v5112
    %v5114 = vsel %vm5102, %v5092, %v5095
    %v5115 = vsel %vm5105, %v5101, 1326507024
    %v5116 = vsel %vm5104, %v5098, %v5115
    %v5117 = vsel %vm5103, %v5114, %v5116
    %v5118 = vshll.u32 %v5078, 8
    %v5119 = vmul.u32.u64.compose %v5118, %v5117
    %v5120 = vextract.low.u32 %v5119
    %v5121 = vextract.high.u32 %v5119
    %v5122 = vmul.u32.u64.compose %v5118, %v5113
    %v5123 = vextract.low.u32 %v5122
    %v5124 = vextract.high.u32 %v5122
    %v5125 = vmul.u32 %v5118, %v5109
    %v5126 = vadd.s32 %v5121, %v5123
    %vm5127 = vc.u32 %v5121, %v5123
    %v5128 = vadd.s32 %v5124, 1
    %v5129 = vsel %vm5127, %v5128, %v5124
    %v5130 = vadd.s32 %v5125, %v5129
    %v5131 = vadd.s32 %v5130, 536870912
    %v5132 = vshrl.u32 %v5131, 30
    %v5133 = vshll.u32 %v5132, 30
    %v5134 = vsub.s32 %v5130, %v5133
    %vm5135 = vcmp.lt.s32.totalorder %v5134, 0
    %v5136 = vsub.s32 0, %v5134
    %v5137 = vsel %vm5135, %v5136, %v5134
    %v5138 = vclz %v5137
    %v5139 = vsub.s32 %v5138, 2
    %vm5140 = vcmp.gt.s32.totalorder 0, %v5139
    %v5141 = vsel %vm5140, 0, %v5139
    %v5142 = vsub.s32 32, %v5141
    %v5143 = vshll.u32 %v5134, %v5141
    %v5144 = vshrl.u32 %v5126, %v5142
    %v5145 = vor.u32 %v5143, %v5144
    %v5146 = vsub.s32 4294967266, %v5141
    %v5147 = vadd.s32 %v5146, 127
    %v5148 = vshll.u32 %v5147, 23
    %v5149 = vor.u32 4788187, %v5148
    %v5150 = vand.u32 2147483647, %v5149
    %v5152 = vcvt.s32.f32 %v5145
    %v5153 = vmul.f32 %v5152, %v5150
    %v5154 = vxor.u32 %v5153, 2147483648
    %v5155 = vsel %vm5072, %v5154, %v5153
    %v5156 = vsub.s32 4, %v5132
    %v5157 = vsel %vm5072, %v5156, %v5132
    %v5158 = vsel %vm5071, %v278, %v5155
    %v5159 = vsel %vm5071, 0, %v5157
    %v5160 = vcosq.f32.pop %v5158
    %v5161 = vsinq.f32.pop %v5158
    %vm5162 = vweird.f32 %v278
    %v5163 = vand.u32 %v5159, 3
    %vm5164 = vcmp.lt.s32.totalorder %v5163, 2
    %vm5165 = vcmp.eq.s32.totalorder %v5163, 0
    %v5166 = vxor.u32 %v5161, 2147483648
    %v5167 = vsel %vm5165, %v5160, %v5166
    %vm5168 = vcmp.eq.s32.totalorder %v5163, 2
    %v5169 = vxor.u32 %v5160, 2147483648
    %v5170 = vsel %vm5168, %v5169, %v5161
    %v5171 = vsel %vm5164, %v5167, %v5170
    %v5172 = vsel %vm5162, nan, %v5171
    %v5173 = vand.u32 2147483647, %v283
    %vm5174 = vcmp.le.f32.partialorder %v5173, 0.7853982
    %vm5175 = vcmp.lt.s32.totalorder %v283, 0
    %v5176 = vand.u32 %v283, 2139095040
    %v5177 = vshrl.u32 %v5176, 23
    %v5178 = vsub.s32 %v5177, 127
    %v5179 = vand.u32 2147483647, %v283
    %v5180 = vand.u32 %v5179, 8388607
    %v5181 = vor.u32 %v5180, 8388608
    %v5182 = vsub.s32 0, %v5181
    %v5183 = vadd.s32 %v5178, 1
    %vm5184 = vcmp.gt.s32.totalorder %v5183, 0
    %v5185 = vsel %vm5184, %v5183, 0
    %v5186 = vshrl.u32 %v5185, 5
    %v5187 = vand.u32 %v5185, 31
    %v5188 = vsub.s32 32, %v5187
    %v5189 = vshrl.u32 683565275, %v5188
    %v5190 = vshll.u32 683565275, %v5187
    %v5191 = vshrl.u32 2475754826, %v5188
    %v5192 = vor.u32 %v5190, %v5191
    %v5193 = vshll.u32 2475754826, %v5187
    %v5194 = vshrl.u32 2131351028, %v5188
    %v5195 = vor.u32 %v5193, %v5194
    %v5196 = vshll.u32 2131351028, %v5187
    %v5197 = vshrl.u32 2102212464, %v5188
    %v5198 = vor.u32 %v5196, %v5197
    %v5199 = vshll.u32 2102212464, %v5187
    %v5200 = vshrl.u32 920167782, %v5188
    %v5201 = vor.u32 %v5199, %v5200
    %v5202 = vshll.u32 920167782, %v5187
    %v5203 = vshrl.u32 1326507024, %v5188
    %v5204 = vor.u32 %v5202, %v5203
    %vm5205 = vcmp.lt.s32.totalorder %v5186, 1
    %vm5206 = vcmp.lt.s32.totalorder %v5186, 2
    %vm5207 = vcmp.lt.s32.totalorder %v5186, 3
    %vm5208 = vcmp.lt.s32.totalorder %v5186, 4
    %v5209 = vsel %vm5205, %v5189, %v5192
    %v5210 = vsel %vm5208, %v5198, 2102212464
    %v5211 = vsel %vm5207, %v5195, %v5210
    %v5212 = vsel %vm5206, %v5209, %v5211
    %v5213 = vsel %vm5205, %v5192, %v5195
    %v5214 = vsel %vm5208, %v5201, 920167782
    %v5215 = vsel %vm5207, %v5198, %v5214
    %v5216 = vsel %vm5206, %v5213, %v5215
    %v5217 = vsel %vm5205, %v5195, %v5198
    %v5218 = vsel %vm5208, %v5204, 1326507024
    %v5219 = vsel %vm5207, %v5201, %v5218
    %v5220 = vsel %vm5206, %v5217, %v5219
    %v5221 = vshll.u32 %v5181, 8
    %v5222 = vmul.u32.u64.compose %v5221, %v5220
    %v5223 = vextract.low.u32 %v5222
    %v5224 = vextract.high.u32 %v5222
    %v5225 = vmul.u32.u64.compose %v5221, %v5216
    %v5226 = vextract.low.u32 %v5225
    %v5227 = vextract.high.u32 %v5225
    %v5228 = vmul.u32 %v5221, %v5212
    %v5229 = vadd.s32 %v5224, %v5226
    %vm5230 = vc.u32 %v5224, %v5226
    %v5231 = vadd.s32 %v5227, 1
    %v5232 = vsel %vm5230, %v5231, %v5227
    %v5233 = vadd.s32 %v5228, %v5232
    %v5234 = vadd.s32 %v5233, 536870912
    %v5235 = vshrl.u32 %v5234, 30
    %v5236 = vshll.u32 %v5235, 30
    %v5237 = vsub.s32 %v5233, %v5236
    %vm5238 = vcmp.lt.s32.totalorder %v5237, 0
    %v5239 = vsub.s32 0, %v5237
    %v5240 = vsel %vm5238, %v5239, %v5237
    %v5241 = vclz %v5240
    %v5242 = vsub.s32 %v5241, 2
    %vm5243 = vcmp.gt.s32.totalorder 0, %v5242
    %v5244 = vsel %vm5243, 0, %v5242
    %v5245 = vsub.s32 32, %v5244
    %v5246 = vshll.u32 %v5237, %v5244
    %v5247 = vshrl.u32 %v5229, %v5245
    %v5248 = vor.u32 %v5246, %v5247
    %v5249 = vsub.s32 4294967266, %v5244
    %v5250 = vadd.s32 %v5249, 127
    %v5251 = vshll.u32 %v5250, 23
    %v5252 = vor.u32 4788187, %v5251
    %v5253 = vand.u32 2147483647, %v5252
    %v5255 = vcvt.s32.f32 %v5248
    %v5256 = vmul.f32 %v5255, %v5253
    %v5257 = vxor.u32 %v5256, 2147483648
    %v5258 = vsel %vm5175, %v5257, %v5256
    %v5259 = vsub.s32 4, %v5235
    %v5260 = vsel %vm5175, %v5259, %v5235
    %v5261 = vsel %vm5174, %v283, %v5258
    %v5262 = vsel %vm5174, 0, %v5260
    %v5263 = vcosq.f32.pop %v5261
    %v5264 = vsinq.f32.pop %v5261
    %vm5265 = vweird.f32 %v283
    %v5266 = vand.u32 %v5262, 3
    %vm5267 = vcmp.lt.s32.totalorder %v5266, 2
    %vm5268 = vcmp.eq.s32.totalorder %v5266, 0
    %v5269 = vxor.u32 %v5264, 2147483648
    %v5270 = vsel %vm5268, %v5263, %v5269
    %vm5271 = vcmp.eq.s32.totalorder %v5266, 2
    %v5272 = vxor.u32 %v5263, 2147483648
    %v5273 = vsel %vm5271, %v5272, %v5264
    %v5274 = vsel %vm5267, %v5270, %v5273
    %v5275 = vsel %vm5265, nan, %v5274
    %v5276 = vand.u32 2147483647, %v288
    %vm5277 = vcmp.le.f32.partialorder %v5276, 0.7853982
    %vm5278 = vcmp.lt.s32.totalorder %v288, 0
    %v5279 = vand.u32 %v288, 2139095040
    %v5280 = vshrl.u32 %v5279, 23
    %v5281 = vsub.s32 %v5280, 127
    %v5282 = vand.u32 2147483647, %v288
    %v5283 = vand.u32 %v5282, 8388607
    %v5284 = vor.u32 %v5283, 8388608
    %v5285 = vsub.s32 0, %v5284
    %v5286 = vadd.s32 %v5281, 1
    %vm5287 = vcmp.gt.s32.totalorder %v5286, 0
    %v5288 = vsel %vm5287, %v5286, 0
    %v5289 = vshrl.u32 %v5288, 5
    %v5290 = vand.u32 %v5288, 31
    %v5291 = vsub.s32 32, %v5290
    %v5292 = vshrl.u32 683565275, %v5291
    %v5293 = vshll.u32 683565275, %v5290
    %v5294 = vshrl.u32 2475754826, %v5291
    %v5295 = vor.u32 %v5293, %v5294
    %v5296 = vshll.u32 2475754826, %v5290
    %v5297 = vshrl.u32 2131351028, %v5291
    %v5298 = vor.u32 %v5296, %v5297
    %v5299 = vshll.u32 2131351028, %v5290
    %v5300 = vshrl.u32 2102212464, %v5291
    %v5301 = vor.u32 %v5299, %v5300
    %v5302 = vshll.u32 2102212464, %v5290
    %v5303 = vshrl.u32 920167782, %v5291
    %v5304 = vor.u32 %v5302, %v5303
    %v5305 = vshll.u32 920167782, %v5290
    %v5306 = vshrl.u32 1326507024, %v5291
    %v5307 = vor.u32 %v5305, %v5306
    %vm5308 = vcmp.lt.s32.totalorder %v5289, 1
    %vm5309 = vcmp.lt.s32.totalorder %v5289, 2
    %vm5310 = vcmp.lt.s32.totalorder %v5289, 3
    %vm5311 = vcmp.lt.s32.totalorder %v5289, 4
    %v5312 = vsel %vm5308, %v5292, %v5295
    %v5313 = vsel %vm5311, %v5301, 2102212464
    %v5314 = vsel %vm5310, %v5298, %v5313
    %v5315 = vsel %vm5309, %v5312, %v5314
    %v5316 = vsel %vm5308, %v5295, %v5298
    %v5317 = vsel %vm5311, %v5304, 920167782
    %v5318 = vsel %vm5310, %v5301, %v5317
    %v5319 = vsel %vm5309, %v5316, %v5318
    %v5320 = vsel %vm5308, %v5298, %v5301
    %v5321 = vsel %vm5311, %v5307, 1326507024
    %v5322 = vsel %vm5310, %v5304, %v5321
    %v5323 = vsel %vm5309, %v5320, %v5322
    %v5324 = vshll.u32 %v5284, 8
    %v5325 = vmul.u32.u64.compose %v5324, %v5323
    %v5326 = vextract.low.u32 %v5325
    %v5327 = vextract.high.u32 %v5325
    %v5328 = vmul.u32.u64.compose %v5324, %v5319
    %v5329 = vextract.low.u32 %v5328
    %v5330 = vextract.high.u32 %v5328
    %v5331 = vmul.u32 %v5324, %v5315
    %v5332 = vadd.s32 %v5327, %v5329
    %vm5333 = vc.u32 %v5327, %v5329
    %v5334 = vadd.s32 %v5330, 1
    %v5335 = vsel %vm5333, %v5334, %v5330
    %v5336 = vadd.s32 %v5331, %v5335
    %v5337 = vadd.s32 %v5336, 536870912
    %v5338 = vshrl.u32 %v5337, 30
    %v5339 = vshll.u32 %v5338, 30
    %v5340 = vsub.s32 %v5336, %v5339
    %vm5341 = vcmp.lt.s32.totalorder %v5340, 0
    %v5342 = vsub.s32 0, %v5340
    %v5343 = vsel %vm5341, %v5342, %v5340
    %v5344 = vclz %v5343
    %v5345 = vsub.s32 %v5344, 2
    %vm5346 = vcmp.gt.s32.totalorder 0, %v5345
    %v5347 = vsel %vm5346, 0, %v5345
    %v5348 = vsub.s32 32, %v5347
    %v5349 = vshll.u32 %v5340, %v5347
    %v5350 = vshrl.u32 %v5332, %v5348
    %v5351 = vor.u32 %v5349, %v5350
    %v5352 = vsub.s32 4294967266, %v5347
    %v5353 = vadd.s32 %v5352, 127
    %v5354 = vshll.u32 %v5353, 23
    %v5355 = vor.u32 4788187, %v5354
    %v5356 = vand.u32 2147483647, %v5355
    %v5358 = vcvt.s32.f32 %v5351
    %v5359 = vmul.f32 %v5358, %v5356
    %v5360 = vxor.u32 %v5359, 2147483648
    %v5361 = vsel %vm5278, %v5360, %v5359
    %v5362 = vsub.s32 4, %v5338
    %v5363 = vsel %vm5278, %v5362, %v5338
    %v5364 = vsel %vm5277, %v288, %v5361
    %v5365 = vsel %vm5277, 0, %v5363
    %v5366 = vcosq.f32.pop %v5364
    %v5367 = vsinq.f32.pop %v5364
    %vm5368 = vweird.f32 %v288
    %v5369 = vand.u32 %v5365, 3
    %vm5370 = vcmp.lt.s32.totalorder %v5369, 2
    %vm5371 = vcmp.eq.s32.totalorder %v5369, 0
    %v5372 = vxor.u32 %v5367, 2147483648
    %v5373 = vsel %vm5371, %v5366, %v5372
    %vm5374 = vcmp.eq.s32.totalorder %v5369, 2
    %v5375 = vxor.u32 %v5366, 2147483648
    %v5376 = vsel %vm5374, %v5375, %v5367
    %v5377 = vsel %vm5370, %v5373, %v5376
    %v5378 = vsel %vm5368, nan, %v5377
    %v5379 = vand.u32 2147483647, %v293
    %vm5380 = vcmp.le.f32.partialorder %v5379, 0.7853982
    %vm5381 = vcmp.lt.s32.totalorder %v293, 0
    %v5382 = vand.u32 %v293, 2139095040
    %v5383 = vshrl.u32 %v5382, 23
    %v5384 = vsub.s32 %v5383, 127
    %v5385 = vand.u32 2147483647, %v293
    %v5386 = vand.u32 %v5385, 8388607
    %v5387 = vor.u32 %v5386, 8388608
    %v5388 = vsub.s32 0, %v5387
    %v5389 = vadd.s32 %v5384, 1
    %vm5390 = vcmp.gt.s32.totalorder %v5389, 0
    %v5391 = vsel %vm5390, %v5389, 0
    %v5392 = vshrl.u32 %v5391, 5
    %v5393 = vand.u32 %v5391, 31
    %v5394 = vsub.s32 32, %v5393
    %v5395 = vshrl.u32 683565275, %v5394
    %v5396 = vshll.u32 683565275, %v5393
    %v5397 = vshrl.u32 2475754826, %v5394
    %v5398 = vor.u32 %v5396, %v5397
    %v5399 = vshll.u32 2475754826, %v5393
    %v5400 = vshrl.u32 2131351028, %v5394
    %v5401 = vor.u32 %v5399, %v5400
    %v5402 = vshll.u32 2131351028, %v5393
    %v5403 = vshrl.u32 2102212464, %v5394
    %v5404 = vor.u32 %v5402, %v5403
    %v5405 = vshll.u32 2102212464, %v5393
    %v5406 = vshrl.u32 920167782, %v5394
    %v5407 = vor.u32 %v5405, %v5406
    %v5408 = vshll.u32 920167782, %v5393
    %v5409 = vshrl.u32 1326507024, %v5394
    %v5410 = vor.u32 %v5408, %v5409
    %vm5411 = vcmp.lt.s32.totalorder %v5392, 1
    %vm5412 = vcmp.lt.s32.totalorder %v5392, 2
    %vm5413 = vcmp.lt.s32.totalorder %v5392, 3
    %vm5414 = vcmp.lt.s32.totalorder %v5392, 4
    %v5415 = vsel %vm5411, %v5395, %v5398
    %v5416 = vsel %vm5414, %v5404, 2102212464
    %v5417 = vsel %vm5413, %v5401, %v5416
    %v5418 = vsel %vm5412, %v5415, %v5417
    %v5419 = vsel %vm5411, %v5398, %v5401
    %v5420 = vsel %vm5414, %v5407, 920167782
    %v5421 = vsel %vm5413, %v5404, %v5420
    %v5422 = vsel %vm5412, %v5419, %v5421
    %v5423 = vsel %vm5411, %v5401, %v5404
    %v5424 = vsel %vm5414, %v5410, 1326507024
    %v5425 = vsel %vm5413, %v5407, %v5424
    %v5426 = vsel %vm5412, %v5423, %v5425
    %v5427 = vshll.u32 %v5387, 8
    %v5428 = vmul.u32.u64.compose %v5427, %v5426
    %v5429 = vextract.low.u32 %v5428
    %v5430 = vextract.high.u32 %v5428
    %v5431 = vmul.u32.u64.compose %v5427, %v5422
    %v5432 = vextract.low.u32 %v5431
    %v5433 = vextract.high.u32 %v5431
    %v5434 = vmul.u32 %v5427, %v5418
    %v5435 = vadd.s32 %v5430, %v5432
    %vm5436 = vc.u32 %v5430, %v5432
    %v5437 = vadd.s32 %v5433, 1
    %v5438 = vsel %vm5436, %v5437, %v5433
    %v5439 = vadd.s32 %v5434, %v5438
    %v5440 = vadd.s32 %v5439, 536870912
    %v5441 = vshrl.u32 %v5440, 30
    %v5442 = vshll.u32 %v5441, 30
    %v5443 = vsub.s32 %v5439, %v5442
    %vm5444 = vcmp.lt.s32.totalorder %v5443, 0
    %v5445 = vsub.s32 0, %v5443
    %v5446 = vsel %vm5444, %v5445, %v5443
    %v5447 = vclz %v5446
    %v5448 = vsub.s32 %v5447, 2
    %vm5449 = vcmp.gt.s32.totalorder 0, %v5448
    %v5450 = vsel %vm5449, 0, %v5448
    %v5451 = vsub.s32 32, %v5450
    %v5452 = vshll.u32 %v5443, %v5450
    %v5453 = vshrl.u32 %v5435, %v5451
    %v5454 = vor.u32 %v5452, %v5453
    %v5455 = vsub.s32 4294967266, %v5450
    %v5456 = vadd.s32 %v5455, 127
    %v5457 = vshll.u32 %v5456, 23
    %v5458 = vor.u32 4788187, %v5457
    %v5459 = vand.u32 2147483647, %v5458
    %v5461 = vcvt.s32.f32 %v5454
    %v5462 = vmul.f32 %v5461, %v5459
    %v5463 = vxor.u32 %v5462, 2147483648
    %v5464 = vsel %vm5381, %v5463, %v5462
    %v5465 = vsub.s32 4, %v5441
    %v5466 = vsel %vm5381, %v5465, %v5441
    %v5467 = vsel %vm5380, %v293, %v5464
    %v5468 = vsel %vm5380, 0, %v5466
    %v5469 = vcosq.f32.pop %v5467
    %v5470 = vsinq.f32.pop %v5467
    %vm5471 = vweird.f32 %v293
    %v5472 = vand.u32 %v5468, 3
    %vm5473 = vcmp.lt.s32.totalorder %v5472, 2
    %vm5474 = vcmp.eq.s32.totalorder %v5472, 0
    %v5475 = vxor.u32 %v5470, 2147483648
    %v5476 = vsel %vm5474, %v5469, %v5475
    %vm5477 = vcmp.eq.s32.totalorder %v5472, 2
    %v5478 = vxor.u32 %v5469, 2147483648
    %v5479 = vsel %vm5477, %v5478, %v5470
    %v5480 = vsel %vm5473, %v5476, %v5479
    %v5481 = vsel %vm5471, nan, %v5480
    %v5482 = vand.u32 2147483647, %v298
    %vm5483 = vcmp.le.f32.partialorder %v5482, 0.7853982
    %vm5484 = vcmp.lt.s32.totalorder %v298, 0
    %v5485 = vand.u32 %v298, 2139095040
    %v5486 = vshrl.u32 %v5485, 23
    %v5487 = vsub.s32 %v5486, 127
    %v5488 = vand.u32 2147483647, %v298
    %v5489 = vand.u32 %v5488, 8388607
    %v5490 = vor.u32 %v5489, 8388608
    %v5491 = vsub.s32 0, %v5490
    %v5492 = vadd.s32 %v5487, 1
    %vm5493 = vcmp.gt.s32.totalorder %v5492, 0
    %v5494 = vsel %vm5493, %v5492, 0
    %v5495 = vshrl.u32 %v5494, 5
    %v5496 = vand.u32 %v5494, 31
    %v5497 = vsub.s32 32, %v5496
    %v5498 = vshrl.u32 683565275, %v5497
    %v5499 = vshll.u32 683565275, %v5496
    %v5500 = vshrl.u32 2475754826, %v5497
    %v5501 = vor.u32 %v5499, %v5500
    %v5502 = vshll.u32 2475754826, %v5496
    %v5503 = vshrl.u32 2131351028, %v5497
    %v5504 = vor.u32 %v5502, %v5503
    %v5505 = vshll.u32 2131351028, %v5496
    %v5506 = vshrl.u32 2102212464, %v5497
    %v5507 = vor.u32 %v5505, %v5506
    %v5508 = vshll.u32 2102212464, %v5496
    %v5509 = vshrl.u32 920167782, %v5497
    %v5510 = vor.u32 %v5508, %v5509
    %v5511 = vshll.u32 920167782, %v5496
    %v5512 = vshrl.u32 1326507024, %v5497
    %v5513 = vor.u32 %v5511, %v5512
    %vm5514 = vcmp.lt.s32.totalorder %v5495, 1
    %vm5515 = vcmp.lt.s32.totalorder %v5495, 2
    %vm5516 = vcmp.lt.s32.totalorder %v5495, 3
    %vm5517 = vcmp.lt.s32.totalorder %v5495, 4
    %v5518 = vsel %vm5514, %v5498, %v5501
    %v5519 = vsel %vm5517, %v5507, 2102212464
    %v5520 = vsel %vm5516, %v5504, %v5519
    %v5521 = vsel %vm5515, %v5518, %v5520
    %v5522 = vsel %vm5514, %v5501, %v5504
    %v5523 = vsel %vm5517, %v5510, 920167782
    %v5524 = vsel %vm5516, %v5507, %v5523
    %v5525 = vsel %vm5515, %v5522, %v5524
    %v5526 = vsel %vm5514, %v5504, %v5507
    %v5527 = vsel %vm5517, %v5513, 1326507024
    %v5528 = vsel %vm5516, %v5510, %v5527
    %v5529 = vsel %vm5515, %v5526, %v5528
    %v5530 = vshll.u32 %v5490, 8
    %v5531 = vmul.u32.u64.compose %v5530, %v5529
    %v5532 = vextract.low.u32 %v5531
    %v5533 = vextract.high.u32 %v5531
    %v5534 = vmul.u32.u64.compose %v5530, %v5525
    %v5535 = vextract.low.u32 %v5534
    %v5536 = vextract.high.u32 %v5534
    %v5537 = vmul.u32 %v5530, %v5521
    %v5538 = vadd.s32 %v5533, %v5535
    %vm5539 = vc.u32 %v5533, %v5535
    %v5540 = vadd.s32 %v5536, 1
    %v5541 = vsel %vm5539, %v5540, %v5536
    %v5542 = vadd.s32 %v5537, %v5541
    %v5543 = vadd.s32 %v5542, 536870912
    %v5544 = vshrl.u32 %v5543, 30
    %v5545 = vshll.u32 %v5544, 30
    %v5546 = vsub.s32 %v5542, %v5545
    %vm5547 = vcmp.lt.s32.totalorder %v5546, 0
    %v5548 = vsub.s32 0, %v5546
    %v5549 = vsel %vm5547, %v5548, %v5546
    %v5550 = vclz %v5549
    %v5551 = vsub.s32 %v5550, 2
    %vm5552 = vcmp.gt.s32.totalorder 0, %v5551
    %v5553 = vsel %vm5552, 0, %v5551
    %v5554 = vsub.s32 32, %v5553
    %v5555 = vshll.u32 %v5546, %v5553
    %v5556 = vshrl.u32 %v5538, %v5554
    %v5557 = vor.u32 %v5555, %v5556
    %v5558 = vsub.s32 4294967266, %v5553
    %v5559 = vadd.s32 %v5558, 127
    %v5560 = vshll.u32 %v5559, 23
    %v5561 = vor.u32 4788187, %v5560
    %v5562 = vand.u32 2147483647, %v5561
    %v5564 = vcvt.s32.f32 %v5557
    %v5565 = vmul.f32 %v5564, %v5562
    %v5566 = vxor.u32 %v5565, 2147483648
    %v5567 = vsel %vm5484, %v5566, %v5565
    %v5568 = vsub.s32 4, %v5544
    %v5569 = vsel %vm5484, %v5568, %v5544
    %v5570 = vsel %vm5483, %v298, %v5567
    %v5571 = vsel %vm5483, 0, %v5569
    %v5572 = vcosq.f32.pop %v5570
    %v5573 = vsinq.f32.pop %v5570
    %vm5574 = vweird.f32 %v298
    %v5575 = vand.u32 %v5571, 3
    %vm5576 = vcmp.lt.s32.totalorder %v5575, 2
    %vm5577 = vcmp.eq.s32.totalorder %v5575, 0
    %v5578 = vxor.u32 %v5573, 2147483648
    %v5579 = vsel %vm5577, %v5572, %v5578
    %vm5580 = vcmp.eq.s32.totalorder %v5575, 2
    %v5581 = vxor.u32 %v5572, 2147483648
    %v5582 = vsel %vm5580, %v5581, %v5573
    %v5583 = vsel %vm5576, %v5579, %v5582
    %v5584 = vsel %vm5574, nan, %v5583
    %v5585 = vand.u32 2147483647, %v303
    %vm5586 = vcmp.le.f32.partialorder %v5585, 0.7853982
    %vm5587 = vcmp.lt.s32.totalorder %v303, 0
    %v5588 = vand.u32 %v303, 2139095040
    %v5589 = vshrl.u32 %v5588, 23
    %v5590 = vsub.s32 %v5589, 127
    %v5591 = vand.u32 2147483647, %v303
    %v5592 = vand.u32 %v5591, 8388607
    %v5593 = vor.u32 %v5592, 8388608
    %v5594 = vsub.s32 0, %v5593
    %v5595 = vadd.s32 %v5590, 1
    %vm5596 = vcmp.gt.s32.totalorder %v5595, 0
    %v5597 = vsel %vm5596, %v5595, 0
    %v5598 = vshrl.u32 %v5597, 5
    %v5599 = vand.u32 %v5597, 31
    %v5600 = vsub.s32 32, %v5599
    %v5601 = vshrl.u32 683565275, %v5600
    %v5602 = vshll.u32 683565275, %v5599
    %v5603 = vshrl.u32 2475754826, %v5600
    %v5604 = vor.u32 %v5602, %v5603
    %v5605 = vshll.u32 2475754826, %v5599
    %v5606 = vshrl.u32 2131351028, %v5600
    %v5607 = vor.u32 %v5605, %v5606
    %v5608 = vshll.u32 2131351028, %v5599
    %v5609 = vshrl.u32 2102212464, %v5600
    %v5610 = vor.u32 %v5608, %v5609
    %v5611 = vshll.u32 2102212464, %v5599
    %v5612 = vshrl.u32 920167782, %v5600
    %v5613 = vor.u32 %v5611, %v5612
    %v5614 = vshll.u32 920167782, %v5599
    %v5615 = vshrl.u32 1326507024, %v5600
    %v5616 = vor.u32 %v5614, %v5615
    %vm5617 = vcmp.lt.s32.totalorder %v5598, 1
    %vm5618 = vcmp.lt.s32.totalorder %v5598, 2
    %vm5619 = vcmp.lt.s32.totalorder %v5598, 3
    %vm5620 = vcmp.lt.s32.totalorder %v5598, 4
    %v5621 = vsel %vm5617, %v5601, %v5604
    %v5622 = vsel %vm5620, %v5610, 2102212464
    %v5623 = vsel %vm5619, %v5607, %v5622
    %v5624 = vsel %vm5618, %v5621, %v5623
    %v5625 = vsel %vm5617, %v5604, %v5607
    %v5626 = vsel %vm5620, %v5613, 920167782
    %v5627 = vsel %vm5619, %v5610, %v5626
    %v5628 = vsel %vm5618, %v5625, %v5627
    %v5629 = vsel %vm5617, %v5607, %v5610
    %v5630 = vsel %vm5620, %v5616, 1326507024
    %v5631 = vsel %vm5619, %v5613, %v5630
    %v5632 = vsel %vm5618, %v5629, %v5631
    %v5633 = vshll.u32 %v5593, 8
    %v5634 = vmul.u32.u64.compose %v5633, %v5632
    %v5635 = vextract.low.u32 %v5634
    %v5636 = vextract.high.u32 %v5634
    %v5637 = vmul.u32.u64.compose %v5633, %v5628
    %v5638 = vextract.low.u32 %v5637
    %v5639 = vextract.high.u32 %v5637
    %v5640 = vmul.u32 %v5633, %v5624
    %v5641 = vadd.s32 %v5636, %v5638
    %vm5642 = vc.u32 %v5636, %v5638
    %v5643 = vadd.s32 %v5639, 1
    %v5644 = vsel %vm5642, %v5643, %v5639
    %v5645 = vadd.s32 %v5640, %v5644
    %v5646 = vadd.s32 %v5645, 536870912
    %v5647 = vshrl.u32 %v5646, 30
    %v5648 = vshll.u32 %v5647, 30
    %v5649 = vsub.s32 %v5645, %v5648
    %vm5650 = vcmp.lt.s32.totalorder %v5649, 0
    %v5651 = vsub.s32 0, %v5649
    %v5652 = vsel %vm5650, %v5651, %v5649
    %v5653 = vclz %v5652
    %v5654 = vsub.s32 %v5653, 2
    %vm5655 = vcmp.gt.s32.totalorder 0, %v5654
    %v5656 = vsel %vm5655, 0, %v5654
    %v5657 = vsub.s32 32, %v5656
    %v5658 = vshll.u32 %v5649, %v5656
    %v5659 = vshrl.u32 %v5641, %v5657
    %v5660 = vor.u32 %v5658, %v5659
    %v5661 = vsub.s32 4294967266, %v5656
    %v5662 = vadd.s32 %v5661, 127
    %v5663 = vshll.u32 %v5662, 23
    %v5664 = vor.u32 4788187, %v5663
    %v5665 = vand.u32 2147483647, %v5664
    %v5667 = vcvt.s32.f32 %v5660
    %v5668 = vmul.f32 %v5667, %v5665
    %v5669 = vxor.u32 %v5668, 2147483648
    %v5670 = vsel %vm5587, %v5669, %v5668
    %v5671 = vsub.s32 4, %v5647
    %v5672 = vsel %vm5587, %v5671, %v5647
    %v5673 = vsel %vm5586, %v303, %v5670
    %v5674 = vsel %vm5586, 0, %v5672
    %v5675 = vcosq.f32.pop %v5673
    %v5676 = vsinq.f32.pop %v5673
    %vm5677 = vweird.f32 %v303
    %v5678 = vand.u32 %v5674, 3
    %vm5679 = vcmp.lt.s32.totalorder %v5678, 2
    %vm5680 = vcmp.eq.s32.totalorder %v5678, 0
    %v5681 = vxor.u32 %v5676, 2147483648
    %v5682 = vsel %vm5680, %v5675, %v5681
    %vm5683 = vcmp.eq.s32.totalorder %v5678, 2
    %v5684 = vxor.u32 %v5675, 2147483648
    %v5685 = vsel %vm5683, %v5684, %v5676
    %v5686 = vsel %vm5679, %v5682, %v5685
    %v5687 = vsel %vm5677, nan, %v5686
    %v5688 = vand.u32 2147483647, %v308
    %vm5689 = vcmp.le.f32.partialorder %v5688, 0.7853982
    %vm5690 = vcmp.lt.s32.totalorder %v308, 0
    %v5691 = vand.u32 %v308, 2139095040
    %v5692 = vshrl.u32 %v5691, 23
    %v5693 = vsub.s32 %v5692, 127
    %v5694 = vand.u32 2147483647, %v308
    %v5695 = vand.u32 %v5694, 8388607
    %v5696 = vor.u32 %v5695, 8388608
    %v5697 = vsub.s32 0, %v5696
    %v5698 = vadd.s32 %v5693, 1
    %vm5699 = vcmp.gt.s32.totalorder %v5698, 0
    %v5700 = vsel %vm5699, %v5698, 0
    %v5701 = vshrl.u32 %v5700, 5
    %v5702 = vand.u32 %v5700, 31
    %v5703 = vsub.s32 32, %v5702
    %v5704 = vshrl.u32 683565275, %v5703
    %v5705 = vshll.u32 683565275, %v5702
    %v5706 = vshrl.u32 2475754826, %v5703
    %v5707 = vor.u32 %v5705, %v5706
    %v5708 = vshll.u32 2475754826, %v5702
    %v5709 = vshrl.u32 2131351028, %v5703
    %v5710 = vor.u32 %v5708, %v5709
    %v5711 = vshll.u32 2131351028, %v5702
    %v5712 = vshrl.u32 2102212464, %v5703
    %v5713 = vor.u32 %v5711, %v5712
    %v5714 = vshll.u32 2102212464, %v5702
    %v5715 = vshrl.u32 920167782, %v5703
    %v5716 = vor.u32 %v5714, %v5715
    %v5717 = vshll.u32 920167782, %v5702
    %v5718 = vshrl.u32 1326507024, %v5703
    %v5719 = vor.u32 %v5717, %v5718
    %vm5720 = vcmp.lt.s32.totalorder %v5701, 1
    %vm5721 = vcmp.lt.s32.totalorder %v5701, 2
    %vm5722 = vcmp.lt.s32.totalorder %v5701, 3
    %vm5723 = vcmp.lt.s32.totalorder %v5701, 4
    %v5724 = vsel %vm5720, %v5704, %v5707
    %v5725 = vsel %vm5723, %v5713, 2102212464
    %v5726 = vsel %vm5722, %v5710, %v5725
    %v5727 = vsel %vm5721, %v5724, %v5726
    %v5728 = vsel %vm5720, %v5707, %v5710
    %v5729 = vsel %vm5723, %v5716, 920167782
    %v5730 = vsel %vm5722, %v5713, %v5729
    %v5731 = vsel %vm5721, %v5728, %v5730
    %v5732 = vsel %vm5720, %v5710, %v5713
    %v5733 = vsel %vm5723, %v5719, 1326507024
    %v5734 = vsel %vm5722, %v5716, %v5733
    %v5735 = vsel %vm5721, %v5732, %v5734
    %v5736 = vshll.u32 %v5696, 8
    %v5737 = vmul.u32.u64.compose %v5736, %v5735
    %v5738 = vextract.low.u32 %v5737
    %v5739 = vextract.high.u32 %v5737
    %v5740 = vmul.u32.u64.compose %v5736, %v5731
    %v5741 = vextract.low.u32 %v5740
    %v5742 = vextract.high.u32 %v5740
    %v5743 = vmul.u32 %v5736, %v5727
    %v5744 = vadd.s32 %v5739, %v5741
    %vm5745 = vc.u32 %v5739, %v5741
    %v5746 = vadd.s32 %v5742, 1
    %v5747 = vsel %vm5745, %v5746, %v5742
    %v5748 = vadd.s32 %v5743, %v5747
    %v5749 = vadd.s32 %v5748, 536870912
    %v5750 = vshrl.u32 %v5749, 30
    %v5751 = vshll.u32 %v5750, 30
    %v5752 = vsub.s32 %v5748, %v5751
    %vm5753 = vcmp.lt.s32.totalorder %v5752, 0
    %v5754 = vsub.s32 0, %v5752
    %v5755 = vsel %vm5753, %v5754, %v5752
    %v5756 = vclz %v5755
    %v5757 = vsub.s32 %v5756, 2
    %vm5758 = vcmp.gt.s32.totalorder 0, %v5757
    %v5759 = vsel %vm5758, 0, %v5757
    %v5760 = vsub.s32 32, %v5759
    %v5761 = vshll.u32 %v5752, %v5759
    %v5762 = vshrl.u32 %v5744, %v5760
    %v5763 = vor.u32 %v5761, %v5762
    %v5764 = vsub.s32 4294967266, %v5759
    %v5765 = vadd.s32 %v5764, 127
    %v5766 = vshll.u32 %v5765, 23
    %v5767 = vor.u32 4788187, %v5766
    %v5768 = vand.u32 2147483647, %v5767
    %v5770 = vcvt.s32.f32 %v5763
    %v5771 = vmul.f32 %v5770, %v5768
    %v5772 = vxor.u32 %v5771, 2147483648
    %v5773 = vsel %vm5690, %v5772, %v5771
    %v5774 = vsub.s32 4, %v5750
    %v5775 = vsel %vm5690, %v5774, %v5750
    %v5776 = vsel %vm5689, %v308, %v5773
    %v5777 = vsel %vm5689, 0, %v5775
    %v5778 = vcosq.f32.pop %v5776
    %v5779 = vsinq.f32.pop %v5776
    %vm5780 = vweird.f32 %v308
    %v5781 = vand.u32 %v5777, 3
    %vm5782 = vcmp.lt.s32.totalorder %v5781, 2
    %vm5783 = vcmp.eq.s32.totalorder %v5781, 0
    %v5784 = vxor.u32 %v5779, 2147483648
    %v5785 = vsel %vm5783, %v5778, %v5784
    %vm5786 = vcmp.eq.s32.totalorder %v5781, 2
    %v5787 = vxor.u32 %v5778, 2147483648
    %v5788 = vsel %vm5786, %v5787, %v5779
    %v5789 = vsel %vm5782, %v5785, %v5788
    %v5790 = vsel %vm5780, nan, %v5789
    %v5791 = vand.u32 2147483647, %v313
    %vm5792 = vcmp.le.f32.partialorder %v5791, 0.7853982
    %vm5793 = vcmp.lt.s32.totalorder %v313, 0
    %v5794 = vand.u32 %v313, 2139095040
    %v5795 = vshrl.u32 %v5794, 23
    %v5796 = vsub.s32 %v5795, 127
    %v5797 = vand.u32 2147483647, %v313
    %v5798 = vand.u32 %v5797, 8388607
    %v5799 = vor.u32 %v5798, 8388608
    %v5800 = vsub.s32 0, %v5799
    %v5801 = vadd.s32 %v5796, 1
    %vm5802 = vcmp.gt.s32.totalorder %v5801, 0
    %v5803 = vsel %vm5802, %v5801, 0
    %v5804 = vshrl.u32 %v5803, 5
    %v5805 = vand.u32 %v5803, 31
    %v5806 = vsub.s32 32, %v5805
    %v5807 = vshrl.u32 683565275, %v5806
    %v5808 = vshll.u32 683565275, %v5805
    %v5809 = vshrl.u32 2475754826, %v5806
    %v5810 = vor.u32 %v5808, %v5809
    %v5811 = vshll.u32 2475754826, %v5805
    %v5812 = vshrl.u32 2131351028, %v5806
    %v5813 = vor.u32 %v5811, %v5812
    %v5814 = vshll.u32 2131351028, %v5805
    %v5815 = vshrl.u32 2102212464, %v5806
    %v5816 = vor.u32 %v5814, %v5815
    %v5817 = vshll.u32 2102212464, %v5805
    %v5818 = vshrl.u32 920167782, %v5806
    %v5819 = vor.u32 %v5817, %v5818
    %v5820 = vshll.u32 920167782, %v5805
    %v5821 = vshrl.u32 1326507024, %v5806
    %v5822 = vor.u32 %v5820, %v5821
    %vm5823 = vcmp.lt.s32.totalorder %v5804, 1
    %vm5824 = vcmp.lt.s32.totalorder %v5804, 2
    %vm5825 = vcmp.lt.s32.totalorder %v5804, 3
    %vm5826 = vcmp.lt.s32.totalorder %v5804, 4
    %v5827 = vsel %vm5823, %v5807, %v5810
    %v5828 = vsel %vm5826, %v5816, 2102212464
    %v5829 = vsel %vm5825, %v5813, %v5828
    %v5830 = vsel %vm5824, %v5827, %v5829
    %v5831 = vsel %vm5823, %v5810, %v5813
    %v5832 = vsel %vm5826, %v5819, 920167782
    %v5833 = vsel %vm5825, %v5816, %v5832
    %v5834 = vsel %vm5824, %v5831, %v5833
    %v5835 = vsel %vm5823, %v5813, %v5816
    %v5836 = vsel %vm5826, %v5822, 1326507024
    %v5837 = vsel %vm5825, %v5819, %v5836
    %v5838 = vsel %vm5824, %v5835, %v5837
    %v5839 = vshll.u32 %v5799, 8
    %v5840 = vmul.u32.u64.compose %v5839, %v5838
    %v5841 = vextract.low.u32 %v5840
    %v5842 = vextract.high.u32 %v5840
    %v5843 = vmul.u32.u64.compose %v5839, %v5834
    %v5844 = vextract.low.u32 %v5843
    %v5845 = vextract.high.u32 %v5843
    %v5846 = vmul.u32 %v5839, %v5830
    %v5847 = vadd.s32 %v5842, %v5844
    %vm5848 = vc.u32 %v5842, %v5844
    %v5849 = vadd.s32 %v5845, 1
    %v5850 = vsel %vm5848, %v5849, %v5845
    %v5851 = vadd.s32 %v5846, %v5850
    %v5852 = vadd.s32 %v5851, 536870912
    %v5853 = vshrl.u32 %v5852, 30
    %v5854 = vshll.u32 %v5853, 30
    %v5855 = vsub.s32 %v5851, %v5854
    %vm5856 = vcmp.lt.s32.totalorder %v5855, 0
    %v5857 = vsub.s32 0, %v5855
    %v5858 = vsel %vm5856, %v5857, %v5855
    %v5859 = vclz %v5858
    %v5860 = vsub.s32 %v5859, 2
    %vm5861 = vcmp.gt.s32.totalorder 0, %v5860
    %v5862 = vsel %vm5861, 0, %v5860
    %v5863 = vsub.s32 32, %v5862
    %v5864 = vshll.u32 %v5855, %v5862
    %v5865 = vshrl.u32 %v5847, %v5863
    %v5866 = vor.u32 %v5864, %v5865
    %v5867 = vsub.s32 4294967266, %v5862
    %v5868 = vadd.s32 %v5867, 127
    %v5869 = vshll.u32 %v5868, 23
    %v5870 = vor.u32 4788187, %v5869
    %v5871 = vand.u32 2147483647, %v5870
    %v5873 = vcvt.s32.f32 %v5866
    %v5874 = vmul.f32 %v5873, %v5871
    %v5875 = vxor.u32 %v5874, 2147483648
    %v5876 = vsel %vm5793, %v5875, %v5874
    %v5877 = vsub.s32 4, %v5853
    %v5878 = vsel %vm5793, %v5877, %v5853
    %v5879 = vsel %vm5792, %v313, %v5876
    %v5880 = vsel %vm5792, 0, %v5878
    %v5881 = vcosq.f32.pop %v5879
    %v5882 = vsinq.f32.pop %v5879
    %vm5883 = vweird.f32 %v313
    %v5884 = vand.u32 %v5880, 3
    %vm5885 = vcmp.lt.s32.totalorder %v5884, 2
    %vm5886 = vcmp.eq.s32.totalorder %v5884, 0
    %v5887 = vxor.u32 %v5882, 2147483648
    %v5888 = vsel %vm5886, %v5881, %v5887
    %vm5889 = vcmp.eq.s32.totalorder %v5884, 2
    %v5890 = vxor.u32 %v5881, 2147483648
    %v5891 = vsel %vm5889, %v5890, %v5882
    %v5892 = vsel %vm5885, %v5888, %v5891
    %v5893 = vsel %vm5883, nan, %v5892
    %v5894 = vand.u32 2147483647, %v318
    %vm5895 = vcmp.le.f32.partialorder %v5894, 0.7853982
    %vm5896 = vcmp.lt.s32.totalorder %v318, 0
    %v5897 = vand.u32 %v318, 2139095040
    %v5898 = vshrl.u32 %v5897, 23
    %v5899 = vsub.s32 %v5898, 127
    %v5900 = vand.u32 2147483647, %v318
    %v5901 = vand.u32 %v5900, 8388607
    %v5902 = vor.u32 %v5901, 8388608
    %v5903 = vsub.s32 0, %v5902
    %v5904 = vadd.s32 %v5899, 1
    %vm5905 = vcmp.gt.s32.totalorder %v5904, 0
    %v5906 = vsel %vm5905, %v5904, 0
    %v5907 = vshrl.u32 %v5906, 5
    %v5908 = vand.u32 %v5906, 31
    %v5909 = vsub.s32 32, %v5908
    %v5910 = vshrl.u32 683565275, %v5909
    %v5911 = vshll.u32 683565275, %v5908
    %v5912 = vshrl.u32 2475754826, %v5909
    %v5913 = vor.u32 %v5911, %v5912
    %v5914 = vshll.u32 2475754826, %v5908
    %v5915 = vshrl.u32 2131351028, %v5909
    %v5916 = vor.u32 %v5914, %v5915
    %v5917 = vshll.u32 2131351028, %v5908
    %v5918 = vshrl.u32 2102212464, %v5909
    %v5919 = vor.u32 %v5917, %v5918
    %v5920 = vshll.u32 2102212464, %v5908
    %v5921 = vshrl.u32 920167782, %v5909
    %v5922 = vor.u32 %v5920, %v5921
    %v5923 = vshll.u32 920167782, %v5908
    %v5924 = vshrl.u32 1326507024, %v5909
    %v5925 = vor.u32 %v5923, %v5924
    %vm5926 = vcmp.lt.s32.totalorder %v5907, 1
    %vm5927 = vcmp.lt.s32.totalorder %v5907, 2
    %vm5928 = vcmp.lt.s32.totalorder %v5907, 3
    %vm5929 = vcmp.lt.s32.totalorder %v5907, 4
    %v5930 = vsel %vm5926, %v5910, %v5913
    %v5931 = vsel %vm5929, %v5919, 2102212464
    %v5932 = vsel %vm5928, %v5916, %v5931
    %v5933 = vsel %vm5927, %v5930, %v5932
    %v5934 = vsel %vm5926, %v5913, %v5916
    %v5935 = vsel %vm5929, %v5922, 920167782
    %v5936 = vsel %vm5928, %v5919, %v5935
    %v5937 = vsel %vm5927, %v5934, %v5936
    %v5938 = vsel %vm5926, %v5916, %v5919
    %v5939 = vsel %vm5929, %v5925, 1326507024
    %v5940 = vsel %vm5928, %v5922, %v5939
    %v5941 = vsel %vm5927, %v5938, %v5940
    %v5942 = vshll.u32 %v5902, 8
    %v5943 = vmul.u32.u64.compose %v5942, %v5941
    %v5944 = vextract.low.u32 %v5943
    %v5945 = vextract.high.u32 %v5943
    %v5946 = vmul.u32.u64.compose %v5942, %v5937
    %v5947 = vextract.low.u32 %v5946
    %v5948 = vextract.high.u32 %v5946
    %v5949 = vmul.u32 %v5942, %v5933
    %v5950 = vadd.s32 %v5945, %v5947
    %vm5951 = vc.u32 %v5945, %v5947
    %v5952 = vadd.s32 %v5948, 1
    %v5953 = vsel %vm5951, %v5952, %v5948
    %v5954 = vadd.s32 %v5949, %v5953
    %v5955 = vadd.s32 %v5954, 536870912
    %v5956 = vshrl.u32 %v5955, 30
    %v5957 = vshll.u32 %v5956, 30
    %v5958 = vsub.s32 %v5954, %v5957
    %vm5959 = vcmp.lt.s32.totalorder %v5958, 0
    %v5960 = vsub.s32 0, %v5958
    %v5961 = vsel %vm5959, %v5960, %v5958
    %v5962 = vclz %v5961
    %v5963 = vsub.s32 %v5962, 2
    %vm5964 = vcmp.gt.s32.totalorder 0, %v5963
    %v5965 = vsel %vm5964, 0, %v5963
    %v5966 = vsub.s32 32, %v5965
    %v5967 = vshll.u32 %v5958, %v5965
    %v5968 = vshrl.u32 %v5950, %v5966
    %v5969 = vor.u32 %v5967, %v5968
    %v5970 = vsub.s32 4294967266, %v5965
    %v5971 = vadd.s32 %v5970, 127
    %v5972 = vshll.u32 %v5971, 23
    %v5973 = vor.u32 4788187, %v5972
    %v5974 = vand.u32 2147483647, %v5973
    %v5976 = vcvt.s32.f32 %v5969
    %v5977 = vmul.f32 %v5976, %v5974
    %v5978 = vxor.u32 %v5977, 2147483648
    %v5979 = vsel %vm5896, %v5978, %v5977
    %v5980 = vsub.s32 4, %v5956
    %v5981 = vsel %vm5896, %v5980, %v5956
    %v5982 = vsel %vm5895, %v318, %v5979
    %v5983 = vsel %vm5895, 0, %v5981
    %v5984 = vcosq.f32.pop %v5982
    %v5985 = vsinq.f32.pop %v5982
    %vm5986 = vweird.f32 %v318
    %v5987 = vand.u32 %v5983, 3
    %vm5988 = vcmp.lt.s32.totalorder %v5987, 2
    %vm5989 = vcmp.eq.s32.totalorder %v5987, 0
    %v5990 = vxor.u32 %v5985, 2147483648
    %v5991 = vsel %vm5989, %v5984, %v5990
    %vm5992 = vcmp.eq.s32.totalorder %v5987, 2
    %v5993 = vxor.u32 %v5984, 2147483648
    %v5994 = vsel %vm5992, %v5993, %v5985
    %v5995 = vsel %vm5988, %v5991, %v5994
    %v5996 = vsel %vm5986, nan, %v5995
    %v5997 = vand.u32 2147483647, %v323
    %vm5998 = vcmp.le.f32.partialorder %v5997, 0.7853982
    %vm5999 = vcmp.lt.s32.totalorder %v323, 0
    %v6000 = vand.u32 %v323, 2139095040
    %v6001 = vshrl.u32 %v6000, 23
    %v6002 = vsub.s32 %v6001, 127
    %v6003 = vand.u32 2147483647, %v323
    %v6004 = vand.u32 %v6003, 8388607
    %v6005 = vor.u32 %v6004, 8388608
    %v6006 = vsub.s32 0, %v6005
    %v6007 = vadd.s32 %v6002, 1
    %vm6008 = vcmp.gt.s32.totalorder %v6007, 0
    %v6009 = vsel %vm6008, %v6007, 0
    %v6010 = vshrl.u32 %v6009, 5
    %v6011 = vand.u32 %v6009, 31
    %v6012 = vsub.s32 32, %v6011
    %v6013 = vshrl.u32 683565275, %v6012
    %v6014 = vshll.u32 683565275, %v6011
    %v6015 = vshrl.u32 2475754826, %v6012
    %v6016 = vor.u32 %v6014, %v6015
    %v6017 = vshll.u32 2475754826, %v6011
    %v6018 = vshrl.u32 2131351028, %v6012
    %v6019 = vor.u32 %v6017, %v6018
    %v6020 = vshll.u32 2131351028, %v6011
    %v6021 = vshrl.u32 2102212464, %v6012
    %v6022 = vor.u32 %v6020, %v6021
    %v6023 = vshll.u32 2102212464, %v6011
    %v6024 = vshrl.u32 920167782, %v6012
    %v6025 = vor.u32 %v6023, %v6024
    %v6026 = vshll.u32 920167782, %v6011
    %v6027 = vshrl.u32 1326507024, %v6012
    %v6028 = vor.u32 %v6026, %v6027
    %vm6029 = vcmp.lt.s32.totalorder %v6010, 1
    %vm6030 = vcmp.lt.s32.totalorder %v6010, 2
    %vm6031 = vcmp.lt.s32.totalorder %v6010, 3
    %vm6032 = vcmp.lt.s32.totalorder %v6010, 4
    %v6033 = vsel %vm6029, %v6013, %v6016
    %v6034 = vsel %vm6032, %v6022, 2102212464
    %v6035 = vsel %vm6031, %v6019, %v6034
    %v6036 = vsel %vm6030, %v6033, %v6035
    %v6037 = vsel %vm6029, %v6016, %v6019
    %v6038 = vsel %vm6032, %v6025, 920167782
    %v6039 = vsel %vm6031, %v6022, %v6038
    %v6040 = vsel %vm6030, %v6037, %v6039
    %v6041 = vsel %vm6029, %v6019, %v6022
    %v6042 = vsel %vm6032, %v6028, 1326507024
    %v6043 = vsel %vm6031, %v6025, %v6042
    %v6044 = vsel %vm6030, %v6041, %v6043
    %v6045 = vshll.u32 %v6005, 8
    %v6046 = vmul.u32.u64.compose %v6045, %v6044
    %v6047 = vextract.low.u32 %v6046
    %v6048 = vextract.high.u32 %v6046
    %v6049 = vmul.u32.u64.compose %v6045, %v6040
    %v6050 = vextract.low.u32 %v6049
    %v6051 = vextract.high.u32 %v6049
    %v6052 = vmul.u32 %v6045, %v6036
    %v6053 = vadd.s32 %v6048, %v6050
    %vm6054 = vc.u32 %v6048, %v6050
    %v6055 = vadd.s32 %v6051, 1
    %v6056 = vsel %vm6054, %v6055, %v6051
    %v6057 = vadd.s32 %v6052, %v6056
    %v6058 = vadd.s32 %v6057, 536870912
    %v6059 = vshrl.u32 %v6058, 30
    %v6060 = vshll.u32 %v6059, 30
    %v6061 = vsub.s32 %v6057, %v6060
    %vm6062 = vcmp.lt.s32.totalorder %v6061, 0
    %v6063 = vsub.s32 0, %v6061
    %v6064 = vsel %vm6062, %v6063, %v6061
    %v6065 = vclz %v6064
    %v6066 = vsub.s32 %v6065, 2
    %vm6067 = vcmp.gt.s32.totalorder 0, %v6066
    %v6068 = vsel %vm6067, 0, %v6066
    %v6069 = vsub.s32 32, %v6068
    %v6070 = vshll.u32 %v6061, %v6068
    %v6071 = vshrl.u32 %v6053, %v6069
    %v6072 = vor.u32 %v6070, %v6071
    %v6073 = vsub.s32 4294967266, %v6068
    %v6074 = vadd.s32 %v6073, 127
    %v6075 = vshll.u32 %v6074, 23
    %v6076 = vor.u32 4788187, %v6075
    %v6077 = vand.u32 2147483647, %v6076
    %v6079 = vcvt.s32.f32 %v6072
    %v6080 = vmul.f32 %v6079, %v6077
    %v6081 = vxor.u32 %v6080, 2147483648
    %v6082 = vsel %vm5999, %v6081, %v6080
    %v6083 = vsub.s32 4, %v6059
    %v6084 = vsel %vm5999, %v6083, %v6059
    %v6085 = vsel %vm5998, %v323, %v6082
    %v6086 = vsel %vm5998, 0, %v6084
    %v6087 = vcosq.f32.pop %v6085
    %v6088 = vsinq.f32.pop %v6085
    %vm6089 = vweird.f32 %v323
    %v6090 = vand.u32 %v6086, 3
    %vm6091 = vcmp.lt.s32.totalorder %v6090, 2
    %vm6092 = vcmp.eq.s32.totalorder %v6090, 0
    %v6093 = vxor.u32 %v6088, 2147483648
    %v6094 = vsel %vm6092, %v6087, %v6093
    %vm6095 = vcmp.eq.s32.totalorder %v6090, 2
    %v6096 = vxor.u32 %v6087, 2147483648
    %v6097 = vsel %vm6095, %v6096, %v6088
    %v6098 = vsel %vm6091, %v6094, %v6097
    %v6099 = vsel %vm6089, nan, %v6098
    %v6100 = vand.u32 2147483647, %v328
    %vm6101 = vcmp.le.f32.partialorder %v6100, 0.7853982
    %vm6102 = vcmp.lt.s32.totalorder %v328, 0
    %v6103 = vand.u32 %v328, 2139095040
    %v6104 = vshrl.u32 %v6103, 23
    %v6105 = vsub.s32 %v6104, 127
    %v6106 = vand.u32 2147483647, %v328
    %v6107 = vand.u32 %v6106, 8388607
    %v6108 = vor.u32 %v6107, 8388608
    %v6109 = vsub.s32 0, %v6108
    %v6110 = vadd.s32 %v6105, 1
    %vm6111 = vcmp.gt.s32.totalorder %v6110, 0
    %v6112 = vsel %vm6111, %v6110, 0
    %v6113 = vshrl.u32 %v6112, 5
    %v6114 = vand.u32 %v6112, 31
    %v6115 = vsub.s32 32, %v6114
    %v6116 = vshrl.u32 683565275, %v6115
    %v6117 = vshll.u32 683565275, %v6114
    %v6118 = vshrl.u32 2475754826, %v6115
    %v6119 = vor.u32 %v6117, %v6118
    %v6120 = vshll.u32 2475754826, %v6114
    %v6121 = vshrl.u32 2131351028, %v6115
    %v6122 = vor.u32 %v6120, %v6121
    %v6123 = vshll.u32 2131351028, %v6114
    %v6124 = vshrl.u32 2102212464, %v6115
    %v6125 = vor.u32 %v6123, %v6124
    %v6126 = vshll.u32 2102212464, %v6114
    %v6127 = vshrl.u32 920167782, %v6115
    %v6128 = vor.u32 %v6126, %v6127
    %v6129 = vshll.u32 920167782, %v6114
    %v6130 = vshrl.u32 1326507024, %v6115
    %v6131 = vor.u32 %v6129, %v6130
    %vm6132 = vcmp.lt.s32.totalorder %v6113, 1
    %vm6133 = vcmp.lt.s32.totalorder %v6113, 2
    %vm6134 = vcmp.lt.s32.totalorder %v6113, 3
    %vm6135 = vcmp.lt.s32.totalorder %v6113, 4
    %v6136 = vsel %vm6132, %v6116, %v6119
    %v6137 = vsel %vm6135, %v6125, 2102212464
    %v6138 = vsel %vm6134, %v6122, %v6137
    %v6139 = vsel %vm6133, %v6136, %v6138
    %v6140 = vsel %vm6132, %v6119, %v6122
    %v6141 = vsel %vm6135, %v6128, 920167782
    %v6142 = vsel %vm6134, %v6125, %v6141
    %v6143 = vsel %vm6133, %v6140, %v6142
    %v6144 = vsel %vm6132, %v6122, %v6125
    %v6145 = vsel %vm6135, %v6131, 1326507024
    %v6146 = vsel %vm6134, %v6128, %v6145
    %v6147 = vsel %vm6133, %v6144, %v6146
    %v6148 = vshll.u32 %v6108, 8
    %v6149 = vmul.u32.u64.compose %v6148, %v6147
    %v6150 = vextract.low.u32 %v6149
    %v6151 = vextract.high.u32 %v6149
    %v6152 = vmul.u32.u64.compose %v6148, %v6143
    %v6153 = vextract.low.u32 %v6152
    %v6154 = vextract.high.u32 %v6152
    %v6155 = vmul.u32 %v6148, %v6139
    %v6156 = vadd.s32 %v6151, %v6153
    %vm6157 = vc.u32 %v6151, %v6153
    %v6158 = vadd.s32 %v6154, 1
    %v6159 = vsel %vm6157, %v6158, %v6154
    %v6160 = vadd.s32 %v6155, %v6159
    %v6161 = vadd.s32 %v6160, 536870912
    %v6162 = vshrl.u32 %v6161, 30
    %v6163 = vshll.u32 %v6162, 30
    %v6164 = vsub.s32 %v6160, %v6163
    %vm6165 = vcmp.lt.s32.totalorder %v6164, 0
    %v6166 = vsub.s32 0, %v6164
    %v6167 = vsel %vm6165, %v6166, %v6164
    %v6168 = vclz %v6167
    %v6169 = vsub.s32 %v6168, 2
    %vm6170 = vcmp.gt.s32.totalorder 0, %v6169
    %v6171 = vsel %vm6170, 0, %v6169
    %v6172 = vsub.s32 32, %v6171
    %v6173 = vshll.u32 %v6164, %v6171
    %v6174 = vshrl.u32 %v6156, %v6172
    %v6175 = vor.u32 %v6173, %v6174
    %v6176 = vsub.s32 4294967266, %v6171
    %v6177 = vadd.s32 %v6176, 127
    %v6178 = vshll.u32 %v6177, 23
    %v6179 = vor.u32 4788187, %v6178
    %v6180 = vand.u32 2147483647, %v6179
    %v6182 = vcvt.s32.f32 %v6175
    %v6183 = vmul.f32 %v6182, %v6180
    %v6184 = vxor.u32 %v6183, 2147483648
    %v6185 = vsel %vm6102, %v6184, %v6183
    %v6186 = vsub.s32 4, %v6162
    %v6187 = vsel %vm6102, %v6186, %v6162
    %v6188 = vsel %vm6101, %v328, %v6185
    %v6189 = vsel %vm6101, 0, %v6187
    %v6190 = vcosq.f32.pop %v6188
    %v6191 = vsinq.f32.pop %v6188
    %vm6192 = vweird.f32 %v328
    %v6193 = vand.u32 %v6189, 3
    %vm6194 = vcmp.lt.s32.totalorder %v6193, 2
    %vm6195 = vcmp.eq.s32.totalorder %v6193, 0
    %v6196 = vxor.u32 %v6191, 2147483648
    %v6197 = vsel %vm6195, %v6190, %v6196
    %vm6198 = vcmp.eq.s32.totalorder %v6193, 2
    %v6199 = vxor.u32 %v6190, 2147483648
    %v6200 = vsel %vm6198, %v6199, %v6191
    %v6201 = vsel %vm6194, %v6197, %v6200
    %v6202 = vsel %vm6192, nan, %v6201
    %v6203 = vand.u32 2147483647, %v333
    %vm6204 = vcmp.le.f32.partialorder %v6203, 0.7853982
    %vm6205 = vcmp.lt.s32.totalorder %v333, 0
    %v6206 = vand.u32 %v333, 2139095040
    %v6207 = vshrl.u32 %v6206, 23
    %v6208 = vsub.s32 %v6207, 127
    %v6209 = vand.u32 2147483647, %v333
    %v6210 = vand.u32 %v6209, 8388607
    %v6211 = vor.u32 %v6210, 8388608
    %v6212 = vsub.s32 0, %v6211
    %v6213 = vadd.s32 %v6208, 1
    %vm6214 = vcmp.gt.s32.totalorder %v6213, 0
    %v6215 = vsel %vm6214, %v6213, 0
    %v6216 = vshrl.u32 %v6215, 5
    %v6217 = vand.u32 %v6215, 31
    %v6218 = vsub.s32 32, %v6217
    %v6219 = vshrl.u32 683565275, %v6218
    %v6220 = vshll.u32 683565275, %v6217
    %v6221 = vshrl.u32 2475754826, %v6218
    %v6222 = vor.u32 %v6220, %v6221
    %v6223 = vshll.u32 2475754826, %v6217
    %v6224 = vshrl.u32 2131351028, %v6218
    %v6225 = vor.u32 %v6223, %v6224
    %v6226 = vshll.u32 2131351028, %v6217
    %v6227 = vshrl.u32 2102212464, %v6218
    %v6228 = vor.u32 %v6226, %v6227
    %v6229 = vshll.u32 2102212464, %v6217
    %v6230 = vshrl.u32 920167782, %v6218
    %v6231 = vor.u32 %v6229, %v6230
    %v6232 = vshll.u32 920167782, %v6217
    %v6233 = vshrl.u32 1326507024, %v6218
    %v6234 = vor.u32 %v6232, %v6233
    %vm6235 = vcmp.lt.s32.totalorder %v6216, 1
    %vm6236 = vcmp.lt.s32.totalorder %v6216, 2
    %vm6237 = vcmp.lt.s32.totalorder %v6216, 3
    %vm6238 = vcmp.lt.s32.totalorder %v6216, 4
    %v6239 = vsel %vm6235, %v6219, %v6222
    %v6240 = vsel %vm6238, %v6228, 2102212464
    %v6241 = vsel %vm6237, %v6225, %v6240
    %v6242 = vsel %vm6236, %v6239, %v6241
    %v6243 = vsel %vm6235, %v6222, %v6225
    %v6244 = vsel %vm6238, %v6231, 920167782
    %v6245 = vsel %vm6237, %v6228, %v6244
    %v6246 = vsel %vm6236, %v6243, %v6245
    %v6247 = vsel %vm6235, %v6225, %v6228
    %v6248 = vsel %vm6238, %v6234, 1326507024
    %v6249 = vsel %vm6237, %v6231, %v6248
    %v6250 = vsel %vm6236, %v6247, %v6249
    %v6251 = vshll.u32 %v6211, 8
    %v6252 = vmul.u32.u64.compose %v6251, %v6250
    %v6253 = vextract.low.u32 %v6252
    %v6254 = vextract.high.u32 %v6252
    %v6255 = vmul.u32.u64.compose %v6251, %v6246
    %v6256 = vextract.low.u32 %v6255
    %v6257 = vextract.high.u32 %v6255
    %v6258 = vmul.u32 %v6251, %v6242
    %v6259 = vadd.s32 %v6254, %v6256
    %vm6260 = vc.u32 %v6254, %v6256
    %v6261 = vadd.s32 %v6257, 1
    %v6262 = vsel %vm6260, %v6261, %v6257
    %v6263 = vadd.s32 %v6258, %v6262
    %v6264 = vadd.s32 %v6263, 536870912
    %v6265 = vshrl.u32 %v6264, 30
    %v6266 = vshll.u32 %v6265, 30
    %v6267 = vsub.s32 %v6263, %v6266
    %vm6268 = vcmp.lt.s32.totalorder %v6267, 0
    %v6269 = vsub.s32 0, %v6267
    %v6270 = vsel %vm6268, %v6269, %v6267
    %v6271 = vclz %v6270
    %v6272 = vsub.s32 %v6271, 2
    %vm6273 = vcmp.gt.s32.totalorder 0, %v6272
    %v6274 = vsel %vm6273, 0, %v6272
    %v6275 = vsub.s32 32, %v6274
    %v6276 = vshll.u32 %v6267, %v6274
    %v6277 = vshrl.u32 %v6259, %v6275
    %v6278 = vor.u32 %v6276, %v6277
    %v6279 = vsub.s32 4294967266, %v6274
    %v6280 = vadd.s32 %v6279, 127
    %v6281 = vshll.u32 %v6280, 23
    %v6282 = vor.u32 4788187, %v6281
    %v6283 = vand.u32 2147483647, %v6282
    %v6285 = vcvt.s32.f32 %v6278
    %v6286 = vmul.f32 %v6285, %v6283
    %v6287 = vxor.u32 %v6286, 2147483648
    %v6288 = vsel %vm6205, %v6287, %v6286
    %v6289 = vsub.s32 4, %v6265
    %v6290 = vsel %vm6205, %v6289, %v6265
    %v6291 = vsel %vm6204, %v333, %v6288
    %v6292 = vsel %vm6204, 0, %v6290
    %v6293 = vcosq.f32.pop %v6291
    %v6294 = vsinq.f32.pop %v6291
    %vm6295 = vweird.f32 %v333
    %v6296 = vand.u32 %v6292, 3
    %vm6297 = vcmp.lt.s32.totalorder %v6296, 2
    %vm6298 = vcmp.eq.s32.totalorder %v6296, 0
    %v6299 = vxor.u32 %v6294, 2147483648
    %v6300 = vsel %vm6298, %v6293, %v6299
    %vm6301 = vcmp.eq.s32.totalorder %v6296, 2
    %v6302 = vxor.u32 %v6293, 2147483648
    %v6303 = vsel %vm6301, %v6302, %v6294
    %v6304 = vsel %vm6297, %v6300, %v6303
    %v6305 = vsel %vm6295, nan, %v6304
    %v6306 = vand.u32 2147483647, %v338
    %vm6307 = vcmp.le.f32.partialorder %v6306, 0.7853982
    %vm6308 = vcmp.lt.s32.totalorder %v338, 0
    %v6309 = vand.u32 %v338, 2139095040
    %v6310 = vshrl.u32 %v6309, 23
    %v6311 = vsub.s32 %v6310, 127
    %v6312 = vand.u32 2147483647, %v338
    %v6313 = vand.u32 %v6312, 8388607
    %v6314 = vor.u32 %v6313, 8388608
    %v6315 = vsub.s32 0, %v6314
    %v6316 = vadd.s32 %v6311, 1
    %vm6317 = vcmp.gt.s32.totalorder %v6316, 0
    %v6318 = vsel %vm6317, %v6316, 0
    %v6319 = vshrl.u32 %v6318, 5
    %v6320 = vand.u32 %v6318, 31
    %v6321 = vsub.s32 32, %v6320
    %v6322 = vshrl.u32 683565275, %v6321
    %v6323 = vshll.u32 683565275, %v6320
    %v6324 = vshrl.u32 2475754826, %v6321
    %v6325 = vor.u32 %v6323, %v6324
    %v6326 = vshll.u32 2475754826, %v6320
    %v6327 = vshrl.u32 2131351028, %v6321
    %v6328 = vor.u32 %v6326, %v6327
    %v6329 = vshll.u32 2131351028, %v6320
    %v6330 = vshrl.u32 2102212464, %v6321
    %v6331 = vor.u32 %v6329, %v6330
    %v6332 = vshll.u32 2102212464, %v6320
    %v6333 = vshrl.u32 920167782, %v6321
    %v6334 = vor.u32 %v6332, %v6333
    %v6335 = vshll.u32 920167782, %v6320
    %v6336 = vshrl.u32 1326507024, %v6321
    %v6337 = vor.u32 %v6335, %v6336
    %vm6338 = vcmp.lt.s32.totalorder %v6319, 1
    %vm6339 = vcmp.lt.s32.totalorder %v6319, 2
    %vm6340 = vcmp.lt.s32.totalorder %v6319, 3
    %vm6341 = vcmp.lt.s32.totalorder %v6319, 4
    %v6342 = vsel %vm6338, %v6322, %v6325
    %v6343 = vsel %vm6341, %v6331, 2102212464
    %v6344 = vsel %vm6340, %v6328, %v6343
    %v6345 = vsel %vm6339, %v6342, %v6344
    %v6346 = vsel %vm6338, %v6325, %v6328
    %v6347 = vsel %vm6341, %v6334, 920167782
    %v6348 = vsel %vm6340, %v6331, %v6347
    %v6349 = vsel %vm6339, %v6346, %v6348
    %v6350 = vsel %vm6338, %v6328, %v6331
    %v6351 = vsel %vm6341, %v6337, 1326507024
    %v6352 = vsel %vm6340, %v6334, %v6351
    %v6353 = vsel %vm6339, %v6350, %v6352
    %v6354 = vshll.u32 %v6314, 8
    %v6355 = vmul.u32.u64.compose %v6354, %v6353
    %v6356 = vextract.low.u32 %v6355
    %v6357 = vextract.high.u32 %v6355
    %v6358 = vmul.u32.u64.compose %v6354, %v6349
    %v6359 = vextract.low.u32 %v6358
    %v6360 = vextract.high.u32 %v6358
    %v6361 = vmul.u32 %v6354, %v6345
    %v6362 = vadd.s32 %v6357, %v6359
    %vm6363 = vc.u32 %v6357, %v6359
    %v6364 = vadd.s32 %v6360, 1
    %v6365 = vsel %vm6363, %v6364, %v6360
    %v6366 = vadd.s32 %v6361, %v6365
    %v6367 = vadd.s32 %v6366, 536870912
    %v6368 = vshrl.u32 %v6367, 30
    %v6369 = vshll.u32 %v6368, 30
    %v6370 = vsub.s32 %v6366, %v6369
    %vm6371 = vcmp.lt.s32.totalorder %v6370, 0
    %v6372 = vsub.s32 0, %v6370
    %v6373 = vsel %vm6371, %v6372, %v6370
    %v6374 = vclz %v6373
    %v6375 = vsub.s32 %v6374, 2
    %vm6376 = vcmp.gt.s32.totalorder 0, %v6375
    %v6377 = vsel %vm6376, 0, %v6375
    %v6378 = vsub.s32 32, %v6377
    %v6379 = vshll.u32 %v6370, %v6377
    %v6380 = vshrl.u32 %v6362, %v6378
    %v6381 = vor.u32 %v6379, %v6380
    %v6382 = vsub.s32 4294967266, %v6377
    %v6383 = vadd.s32 %v6382, 127
    %v6384 = vshll.u32 %v6383, 23
    %v6385 = vor.u32 4788187, %v6384
    %v6386 = vand.u32 2147483647, %v6385
    %v6388 = vcvt.s32.f32 %v6381
    %v6389 = vmul.f32 %v6388, %v6386
    %v6390 = vxor.u32 %v6389, 2147483648
    %v6391 = vsel %vm6308, %v6390, %v6389
    %v6392 = vsub.s32 4, %v6368
    %v6393 = vsel %vm6308, %v6392, %v6368
    %v6394 = vsel %vm6307, %v338, %v6391
    %v6395 = vsel %vm6307, 0, %v6393
    %v6396 = vcosq.f32.pop %v6394
    %v6397 = vsinq.f32.pop %v6394
    %vm6398 = vweird.f32 %v338
    %v6399 = vand.u32 %v6395, 3
    %vm6400 = vcmp.lt.s32.totalorder %v6399, 2
    %vm6401 = vcmp.eq.s32.totalorder %v6399, 0
    %v6402 = vxor.u32 %v6397, 2147483648
    %v6403 = vsel %vm6401, %v6396, %v6402
    %vm6404 = vcmp.eq.s32.totalorder %v6399, 2
    %v6405 = vxor.u32 %v6396, 2147483648
    %v6406 = vsel %vm6404, %v6405, %v6397
    %v6407 = vsel %vm6400, %v6403, %v6406
    %v6408 = vsel %vm6398, nan, %v6407
    %v6409 = vand.u32 2147483647, %v343
    %vm6410 = vcmp.le.f32.partialorder %v6409, 0.7853982
    %vm6411 = vcmp.lt.s32.totalorder %v343, 0
    %v6412 = vand.u32 %v343, 2139095040
    %v6413 = vshrl.u32 %v6412, 23
    %v6414 = vsub.s32 %v6413, 127
    %v6415 = vand.u32 2147483647, %v343
    %v6416 = vand.u32 %v6415, 8388607
    %v6417 = vor.u32 %v6416, 8388608
    %v6418 = vsub.s32 0, %v6417
    %v6419 = vadd.s32 %v6414, 1
    %vm6420 = vcmp.gt.s32.totalorder %v6419, 0
    %v6421 = vsel %vm6420, %v6419, 0
    %v6422 = vshrl.u32 %v6421, 5
    %v6423 = vand.u32 %v6421, 31
    %v6424 = vsub.s32 32, %v6423
    %v6425 = vshrl.u32 683565275, %v6424
    %v6426 = vshll.u32 683565275, %v6423
    %v6427 = vshrl.u32 2475754826, %v6424
    %v6428 = vor.u32 %v6426, %v6427
    %v6429 = vshll.u32 2475754826, %v6423
    %v6430 = vshrl.u32 2131351028, %v6424
    %v6431 = vor.u32 %v6429, %v6430
    %v6432 = vshll.u32 2131351028, %v6423
    %v6433 = vshrl.u32 2102212464, %v6424
    %v6434 = vor.u32 %v6432, %v6433
    %v6435 = vshll.u32 2102212464, %v6423
    %v6436 = vshrl.u32 920167782, %v6424
    %v6437 = vor.u32 %v6435, %v6436
    %v6438 = vshll.u32 920167782, %v6423
    %v6439 = vshrl.u32 1326507024, %v6424
    %v6440 = vor.u32 %v6438, %v6439
    %vm6441 = vcmp.lt.s32.totalorder %v6422, 1
    %vm6442 = vcmp.lt.s32.totalorder %v6422, 2
    %vm6443 = vcmp.lt.s32.totalorder %v6422, 3
    %vm6444 = vcmp.lt.s32.totalorder %v6422, 4
    %v6445 = vsel %vm6441, %v6425, %v6428
    %v6446 = vsel %vm6444, %v6434, 2102212464
    %v6447 = vsel %vm6443, %v6431, %v6446
    %v6448 = vsel %vm6442, %v6445, %v6447
    %v6449 = vsel %vm6441, %v6428, %v6431
    %v6450 = vsel %vm6444, %v6437, 920167782
    %v6451 = vsel %vm6443, %v6434, %v6450
    %v6452 = vsel %vm6442, %v6449, %v6451
    %v6453 = vsel %vm6441, %v6431, %v6434
    %v6454 = vsel %vm6444, %v6440, 1326507024
    %v6455 = vsel %vm6443, %v6437, %v6454
    %v6456 = vsel %vm6442, %v6453, %v6455
    %v6457 = vshll.u32 %v6417, 8
    %v6458 = vmul.u32.u64.compose %v6457, %v6456
    %v6459 = vextract.low.u32 %v6458
    %v6460 = vextract.high.u32 %v6458
    %v6461 = vmul.u32.u64.compose %v6457, %v6452
    %v6462 = vextract.low.u32 %v6461
    %v6463 = vextract.high.u32 %v6461
    %v6464 = vmul.u32 %v6457, %v6448
    %v6465 = vadd.s32 %v6460, %v6462
    %vm6466 = vc.u32 %v6460, %v6462
    %v6467 = vadd.s32 %v6463, 1
    %v6468 = vsel %vm6466, %v6467, %v6463
    %v6469 = vadd.s32 %v6464, %v6468
    %v6470 = vadd.s32 %v6469, 536870912
    %v6471 = vshrl.u32 %v6470, 30
    %v6472 = vshll.u32 %v6471, 30
    %v6473 = vsub.s32 %v6469, %v6472
    %vm6474 = vcmp.lt.s32.totalorder %v6473, 0
    %v6475 = vsub.s32 0, %v6473
    %v6476 = vsel %vm6474, %v6475, %v6473
    %v6477 = vclz %v6476
    %v6478 = vsub.s32 %v6477, 2
    %vm6479 = vcmp.gt.s32.totalorder 0, %v6478
    %v6480 = vsel %vm6479, 0, %v6478
    %v6481 = vsub.s32 32, %v6480
    %v6482 = vshll.u32 %v6473, %v6480
    %v6483 = vshrl.u32 %v6465, %v6481
    %v6484 = vor.u32 %v6482, %v6483
    %v6485 = vsub.s32 4294967266, %v6480
    %v6486 = vadd.s32 %v6485, 127
    %v6487 = vshll.u32 %v6486, 23
    %v6488 = vor.u32 4788187, %v6487
    %v6489 = vand.u32 2147483647, %v6488
    %v6491 = vcvt.s32.f32 %v6484
    %v6492 = vmul.f32 %v6491, %v6489
    %v6493 = vxor.u32 %v6492, 2147483648
    %v6494 = vsel %vm6411, %v6493, %v6492
    %v6495 = vsub.s32 4, %v6471
    %v6496 = vsel %vm6411, %v6495, %v6471
    %v6497 = vsel %vm6410, %v343, %v6494
    %v6498 = vsel %vm6410, 0, %v6496
    %v6499 = vcosq.f32.pop %v6497
    %v6500 = vsinq.f32.pop %v6497
    %vm6501 = vweird.f32 %v343
    %v6502 = vand.u32 %v6498, 3
    %vm6503 = vcmp.lt.s32.totalorder %v6502, 2
    %vm6504 = vcmp.eq.s32.totalorder %v6502, 0
    %v6505 = vxor.u32 %v6500, 2147483648
    %v6506 = vsel %vm6504, %v6499, %v6505
    %vm6507 = vcmp.eq.s32.totalorder %v6502, 2
    %v6508 = vxor.u32 %v6499, 2147483648
    %v6509 = vsel %vm6507, %v6508, %v6500
    %v6510 = vsel %vm6503, %v6506, %v6509
    %v6511 = vsel %vm6501, nan, %v6510
    %v6512 = vand.u32 2147483647, %v348
    %vm6513 = vcmp.le.f32.partialorder %v6512, 0.7853982
    %vm6514 = vcmp.lt.s32.totalorder %v348, 0
    %v6515 = vand.u32 %v348, 2139095040
    %v6516 = vshrl.u32 %v6515, 23
    %v6517 = vsub.s32 %v6516, 127
    %v6518 = vand.u32 2147483647, %v348
    %v6519 = vand.u32 %v6518, 8388607
    %v6520 = vor.u32 %v6519, 8388608
    %v6521 = vsub.s32 0, %v6520
    %v6522 = vadd.s32 %v6517, 1
    %vm6523 = vcmp.gt.s32.totalorder %v6522, 0
    %v6524 = vsel %vm6523, %v6522, 0
    %v6525 = vshrl.u32 %v6524, 5
    %v6526 = vand.u32 %v6524, 31
    %v6527 = vsub.s32 32, %v6526
    %v6528 = vshrl.u32 683565275, %v6527
    %v6529 = vshll.u32 683565275, %v6526
    %v6530 = vshrl.u32 2475754826, %v6527
    %v6531 = vor.u32 %v6529, %v6530
    %v6532 = vshll.u32 2475754826, %v6526
    %v6533 = vshrl.u32 2131351028, %v6527
    %v6534 = vor.u32 %v6532, %v6533
    %v6535 = vshll.u32 2131351028, %v6526
    %v6536 = vshrl.u32 2102212464, %v6527
    %v6537 = vor.u32 %v6535, %v6536
    %v6538 = vshll.u32 2102212464, %v6526
    %v6539 = vshrl.u32 920167782, %v6527
    %v6540 = vor.u32 %v6538, %v6539
    %v6541 = vshll.u32 920167782, %v6526
    %v6542 = vshrl.u32 1326507024, %v6527
    %v6543 = vor.u32 %v6541, %v6542
    %vm6544 = vcmp.lt.s32.totalorder %v6525, 1
    %vm6545 = vcmp.lt.s32.totalorder %v6525, 2
    %vm6546 = vcmp.lt.s32.totalorder %v6525, 3
    %vm6547 = vcmp.lt.s32.totalorder %v6525, 4
    %v6548 = vsel %vm6544, %v6528, %v6531
    %v6549 = vsel %vm6547, %v6537, 2102212464
    %v6550 = vsel %vm6546, %v6534, %v6549
    %v6551 = vsel %vm6545, %v6548, %v6550
    %v6552 = vsel %vm6544, %v6531, %v6534
    %v6553 = vsel %vm6547, %v6540, 920167782
    %v6554 = vsel %vm6546, %v6537, %v6553
    %v6555 = vsel %vm6545, %v6552, %v6554
    %v6556 = vsel %vm6544, %v6534, %v6537
    %v6557 = vsel %vm6547, %v6543, 1326507024
    %v6558 = vsel %vm6546, %v6540, %v6557
    %v6559 = vsel %vm6545, %v6556, %v6558
    %v6560 = vshll.u32 %v6520, 8
    %v6561 = vmul.u32.u64.compose %v6560, %v6559
    %v6562 = vextract.low.u32 %v6561
    %v6563 = vextract.high.u32 %v6561
    %v6564 = vmul.u32.u64.compose %v6560, %v6555
    %v6565 = vextract.low.u32 %v6564
    %v6566 = vextract.high.u32 %v6564
    %v6567 = vmul.u32 %v6560, %v6551
    %v6568 = vadd.s32 %v6563, %v6565
    %vm6569 = vc.u32 %v6563, %v6565
    %v6570 = vadd.s32 %v6566, 1
    %v6571 = vsel %vm6569, %v6570, %v6566
    %v6572 = vadd.s32 %v6567, %v6571
    %v6573 = vadd.s32 %v6572, 536870912
    %v6574 = vshrl.u32 %v6573, 30
    %v6575 = vshll.u32 %v6574, 30
    %v6576 = vsub.s32 %v6572, %v6575
    %vm6577 = vcmp.lt.s32.totalorder %v6576, 0
    %v6578 = vsub.s32 0, %v6576
    %v6579 = vsel %vm6577, %v6578, %v6576
    %v6580 = vclz %v6579
    %v6581 = vsub.s32 %v6580, 2
    %vm6582 = vcmp.gt.s32.totalorder 0, %v6581
    %v6583 = vsel %vm6582, 0, %v6581
    %v6584 = vsub.s32 32, %v6583
    %v6585 = vshll.u32 %v6576, %v6583
    %v6586 = vshrl.u32 %v6568, %v6584
    %v6587 = vor.u32 %v6585, %v6586
    %v6588 = vsub.s32 4294967266, %v6583
    %v6589 = vadd.s32 %v6588, 127
    %v6590 = vshll.u32 %v6589, 23
    %v6591 = vor.u32 4788187, %v6590
    %v6592 = vand.u32 2147483647, %v6591
    %v6594 = vcvt.s32.f32 %v6587
    %v6595 = vmul.f32 %v6594, %v6592
    %v6596 = vxor.u32 %v6595, 2147483648
    %v6597 = vsel %vm6514, %v6596, %v6595
    %v6598 = vsub.s32 4, %v6574
    %v6599 = vsel %vm6514, %v6598, %v6574
    %v6600 = vsel %vm6513, %v348, %v6597
    %v6601 = vsel %vm6513, 0, %v6599
    %v6602 = vcosq.f32.pop %v6600
    %v6603 = vsinq.f32.pop %v6600
    %vm6604 = vweird.f32 %v348
    %v6605 = vand.u32 %v6601, 3
    %vm6606 = vcmp.lt.s32.totalorder %v6605, 2
    %vm6607 = vcmp.eq.s32.totalorder %v6605, 0
    %v6608 = vxor.u32 %v6603, 2147483648
    %v6609 = vsel %vm6607, %v6602, %v6608
    %vm6610 = vcmp.eq.s32.totalorder %v6605, 2
    %v6611 = vxor.u32 %v6602, 2147483648
    %v6612 = vsel %vm6610, %v6611, %v6603
    %v6613 = vsel %vm6606, %v6609, %v6612
    %v6614 = vsel %vm6604, nan, %v6613
    %v6615 = vand.u32 2147483647, %v353
    %vm6616 = vcmp.le.f32.partialorder %v6615, 0.7853982
    %vm6617 = vcmp.lt.s32.totalorder %v353, 0
    %v6618 = vand.u32 %v353, 2139095040
    %v6619 = vshrl.u32 %v6618, 23
    %v6620 = vsub.s32 %v6619, 127
    %v6621 = vand.u32 2147483647, %v353
    %v6622 = vand.u32 %v6621, 8388607
    %v6623 = vor.u32 %v6622, 8388608
    %v6624 = vsub.s32 0, %v6623
    %v6625 = vadd.s32 %v6620, 1
    %vm6626 = vcmp.gt.s32.totalorder %v6625, 0
    %v6627 = vsel %vm6626, %v6625, 0
    %v6628 = vshrl.u32 %v6627, 5
    %v6629 = vand.u32 %v6627, 31
    %v6630 = vsub.s32 32, %v6629
    %v6631 = vshrl.u32 683565275, %v6630
    %v6632 = vshll.u32 683565275, %v6629
    %v6633 = vshrl.u32 2475754826, %v6630
    %v6634 = vor.u32 %v6632, %v6633
    %v6635 = vshll.u32 2475754826, %v6629
    %v6636 = vshrl.u32 2131351028, %v6630
    %v6637 = vor.u32 %v6635, %v6636
    %v6638 = vshll.u32 2131351028, %v6629
    %v6639 = vshrl.u32 2102212464, %v6630
    %v6640 = vor.u32 %v6638, %v6639
    %v6641 = vshll.u32 2102212464, %v6629
    %v6642 = vshrl.u32 920167782, %v6630
    %v6643 = vor.u32 %v6641, %v6642
    %v6644 = vshll.u32 920167782, %v6629
    %v6645 = vshrl.u32 1326507024, %v6630
    %v6646 = vor.u32 %v6644, %v6645
    %vm6647 = vcmp.lt.s32.totalorder %v6628, 1
    %vm6648 = vcmp.lt.s32.totalorder %v6628, 2
    %vm6649 = vcmp.lt.s32.totalorder %v6628, 3
    %vm6650 = vcmp.lt.s32.totalorder %v6628, 4
    %v6651 = vsel %vm6647, %v6631, %v6634
    %v6652 = vsel %vm6650, %v6640, 2102212464
    %v6653 = vsel %vm6649, %v6637, %v6652
    %v6654 = vsel %vm6648, %v6651, %v6653
    %v6655 = vsel %vm6647, %v6634, %v6637
    %v6656 = vsel %vm6650, %v6643, 920167782
    %v6657 = vsel %vm6649, %v6640, %v6656
    %v6658 = vsel %vm6648, %v6655, %v6657
    %v6659 = vsel %vm6647, %v6637, %v6640
    %v6660 = vsel %vm6650, %v6646, 1326507024
    %v6661 = vsel %vm6649, %v6643, %v6660
    %v6662 = vsel %vm6648, %v6659, %v6661
    %v6663 = vshll.u32 %v6623, 8
    %v6664 = vmul.u32.u64.compose %v6663, %v6662
    %v6665 = vextract.low.u32 %v6664
    %v6666 = vextract.high.u32 %v6664
    %v6667 = vmul.u32.u64.compose %v6663, %v6658
    %v6668 = vextract.low.u32 %v6667
    %v6669 = vextract.high.u32 %v6667
    %v6670 = vmul.u32 %v6663, %v6654
    %v6671 = vadd.s32 %v6666, %v6668
    %vm6672 = vc.u32 %v6666, %v6668
    %v6673 = vadd.s32 %v6669, 1
    %v6674 = vsel %vm6672, %v6673, %v6669
    %v6675 = vadd.s32 %v6670, %v6674
    %v6676 = vadd.s32 %v6675, 536870912
    %v6677 = vshrl.u32 %v6676, 30
    %v6678 = vshll.u32 %v6677, 30
    %v6679 = vsub.s32 %v6675, %v6678
    %vm6680 = vcmp.lt.s32.totalorder %v6679, 0
    %v6681 = vsub.s32 0, %v6679
    %v6682 = vsel %vm6680, %v6681, %v6679
    %v6683 = vclz %v6682
    %v6684 = vsub.s32 %v6683, 2
    %vm6685 = vcmp.gt.s32.totalorder 0, %v6684
    %v6686 = vsel %vm6685, 0, %v6684
    %v6687 = vsub.s32 32, %v6686
    %v6688 = vshll.u32 %v6679, %v6686
    %v6689 = vshrl.u32 %v6671, %v6687
    %v6690 = vor.u32 %v6688, %v6689
    %v6691 = vsub.s32 4294967266, %v6686
    %v6692 = vadd.s32 %v6691, 127
    %v6693 = vshll.u32 %v6692, 23
    %v6694 = vor.u32 4788187, %v6693
    %v6695 = vand.u32 2147483647, %v6694
    %v6697 = vcvt.s32.f32 %v6690
    %v6698 = vmul.f32 %v6697, %v6695
    %v6699 = vxor.u32 %v6698, 2147483648
    %v6700 = vsel %vm6617, %v6699, %v6698
    %v6701 = vsub.s32 4, %v6677
    %v6702 = vsel %vm6617, %v6701, %v6677
    %v6703 = vsel %vm6616, %v353, %v6700
    %v6704 = vsel %vm6616, 0, %v6702
    %v6705 = vcosq.f32.pop %v6703
    %v6706 = vsinq.f32.pop %v6703
    %vm6707 = vweird.f32 %v353
    %v6708 = vand.u32 %v6704, 3
    %vm6709 = vcmp.lt.s32.totalorder %v6708, 2
    %vm6710 = vcmp.eq.s32.totalorder %v6708, 0
    %v6711 = vxor.u32 %v6706, 2147483648
    %v6712 = vsel %vm6710, %v6705, %v6711
    %vm6713 = vcmp.eq.s32.totalorder %v6708, 2
    %v6714 = vxor.u32 %v6705, 2147483648
    %v6715 = vsel %vm6713, %v6714, %v6706
    %v6716 = vsel %vm6709, %v6712, %v6715
    %v6717 = vsel %vm6707, nan, %v6716
    %v6718 = vand.u32 2147483647, %v358
    %vm6719 = vcmp.le.f32.partialorder %v6718, 0.7853982
    %vm6720 = vcmp.lt.s32.totalorder %v358, 0
    %v6721 = vand.u32 %v358, 2139095040
    %v6722 = vshrl.u32 %v6721, 23
    %v6723 = vsub.s32 %v6722, 127
    %v6724 = vand.u32 2147483647, %v358
    %v6725 = vand.u32 %v6724, 8388607
    %v6726 = vor.u32 %v6725, 8388608
    %v6727 = vsub.s32 0, %v6726
    %v6728 = vadd.s32 %v6723, 1
    %vm6729 = vcmp.gt.s32.totalorder %v6728, 0
    %v6730 = vsel %vm6729, %v6728, 0
    %v6731 = vshrl.u32 %v6730, 5
    %v6732 = vand.u32 %v6730, 31
    %v6733 = vsub.s32 32, %v6732
    %v6734 = vshrl.u32 683565275, %v6733
    %v6735 = vshll.u32 683565275, %v6732
    %v6736 = vshrl.u32 2475754826, %v6733
    %v6737 = vor.u32 %v6735, %v6736
    %v6738 = vshll.u32 2475754826, %v6732
    %v6739 = vshrl.u32 2131351028, %v6733
    %v6740 = vor.u32 %v6738, %v6739
    %v6741 = vshll.u32 2131351028, %v6732
    %v6742 = vshrl.u32 2102212464, %v6733
    %v6743 = vor.u32 %v6741, %v6742
    %v6744 = vshll.u32 2102212464, %v6732
    %v6745 = vshrl.u32 920167782, %v6733
    %v6746 = vor.u32 %v6744, %v6745
    %v6747 = vshll.u32 920167782, %v6732
    %v6748 = vshrl.u32 1326507024, %v6733
    %v6749 = vor.u32 %v6747, %v6748
    %vm6750 = vcmp.lt.s32.totalorder %v6731, 1
    %vm6751 = vcmp.lt.s32.totalorder %v6731, 2
    %vm6752 = vcmp.lt.s32.totalorder %v6731, 3
    %vm6753 = vcmp.lt.s32.totalorder %v6731, 4
    %v6754 = vsel %vm6750, %v6734, %v6737
    %v6755 = vsel %vm6753, %v6743, 2102212464
    %v6756 = vsel %vm6752, %v6740, %v6755
    %v6757 = vsel %vm6751, %v6754, %v6756
    %v6758 = vsel %vm6750, %v6737, %v6740
    %v6759 = vsel %vm6753, %v6746, 920167782
    %v6760 = vsel %vm6752, %v6743, %v6759
    %v6761 = vsel %vm6751, %v6758, %v6760
    %v6762 = vsel %vm6750, %v6740, %v6743
    %v6763 = vsel %vm6753, %v6749, 1326507024
    %v6764 = vsel %vm6752, %v6746, %v6763
    %v6765 = vsel %vm6751, %v6762, %v6764
    %v6766 = vshll.u32 %v6726, 8
    %v6767 = vmul.u32.u64.compose %v6766, %v6765
    %v6768 = vextract.low.u32 %v6767
    %v6769 = vextract.high.u32 %v6767
    %v6770 = vmul.u32.u64.compose %v6766, %v6761
    %v6771 = vextract.low.u32 %v6770
    %v6772 = vextract.high.u32 %v6770
    %v6773 = vmul.u32 %v6766, %v6757
    %v6774 = vadd.s32 %v6769, %v6771
    %vm6775 = vc.u32 %v6769, %v6771
    %v6776 = vadd.s32 %v6772, 1
    %v6777 = vsel %vm6775, %v6776, %v6772
    %v6778 = vadd.s32 %v6773, %v6777
    %v6779 = vadd.s32 %v6778, 536870912
    %v6780 = vshrl.u32 %v6779, 30
    %v6781 = vshll.u32 %v6780, 30
    %v6782 = vsub.s32 %v6778, %v6781
    %vm6783 = vcmp.lt.s32.totalorder %v6782, 0
    %v6784 = vsub.s32 0, %v6782
    %v6785 = vsel %vm6783, %v6784, %v6782
    %v6786 = vclz %v6785
    %v6787 = vsub.s32 %v6786, 2
    %vm6788 = vcmp.gt.s32.totalorder 0, %v6787
    %v6789 = vsel %vm6788, 0, %v6787
    %v6790 = vsub.s32 32, %v6789
    %v6791 = vshll.u32 %v6782, %v6789
    %v6792 = vshrl.u32 %v6774, %v6790
    %v6793 = vor.u32 %v6791, %v6792
    %v6794 = vsub.s32 4294967266, %v6789
    %v6795 = vadd.s32 %v6794, 127
    %v6796 = vshll.u32 %v6795, 23
    %v6797 = vor.u32 4788187, %v6796
    %v6798 = vand.u32 2147483647, %v6797
    %v6800 = vcvt.s32.f32 %v6793
    %v6801 = vmul.f32 %v6800, %v6798
    %v6802 = vxor.u32 %v6801, 2147483648
    %v6803 = vsel %vm6720, %v6802, %v6801
    %v6804 = vsub.s32 4, %v6780
    %v6805 = vsel %vm6720, %v6804, %v6780
    %v6806 = vsel %vm6719, %v358, %v6803
    %v6807 = vsel %vm6719, 0, %v6805
    %v6808 = vcosq.f32.pop %v6806
    %v6809 = vsinq.f32.pop %v6806
    %vm6810 = vweird.f32 %v358
    %v6811 = vand.u32 %v6807, 3
    %vm6812 = vcmp.lt.s32.totalorder %v6811, 2
    %vm6813 = vcmp.eq.s32.totalorder %v6811, 0
    %v6814 = vxor.u32 %v6809, 2147483648
    %v6815 = vsel %vm6813, %v6808, %v6814
    %vm6816 = vcmp.eq.s32.totalorder %v6811, 2
    %v6817 = vxor.u32 %v6808, 2147483648
    %v6818 = vsel %vm6816, %v6817, %v6809
    %v6819 = vsel %vm6812, %v6815, %v6818
    %v6820 = vsel %vm6810, nan, %v6819
    %v6821 = vand.u32 2147483647, %v363
    %vm6822 = vcmp.le.f32.partialorder %v6821, 0.7853982
    %vm6823 = vcmp.lt.s32.totalorder %v363, 0
    %v6824 = vand.u32 %v363, 2139095040
    %v6825 = vshrl.u32 %v6824, 23
    %v6826 = vsub.s32 %v6825, 127
    %v6827 = vand.u32 2147483647, %v363
    %v6828 = vand.u32 %v6827, 8388607
    %v6829 = vor.u32 %v6828, 8388608
    %v6830 = vsub.s32 0, %v6829
    %v6831 = vadd.s32 %v6826, 1
    %vm6832 = vcmp.gt.s32.totalorder %v6831, 0
    %v6833 = vsel %vm6832, %v6831, 0
    %v6834 = vshrl.u32 %v6833, 5
    %v6835 = vand.u32 %v6833, 31
    %v6836 = vsub.s32 32, %v6835
    %v6837 = vshrl.u32 683565275, %v6836
    %v6838 = vshll.u32 683565275, %v6835
    %v6839 = vshrl.u32 2475754826, %v6836
    %v6840 = vor.u32 %v6838, %v6839
    %v6841 = vshll.u32 2475754826, %v6835
    %v6842 = vshrl.u32 2131351028, %v6836
    %v6843 = vor.u32 %v6841, %v6842
    %v6844 = vshll.u32 2131351028, %v6835
    %v6845 = vshrl.u32 2102212464, %v6836
    %v6846 = vor.u32 %v6844, %v6845
    %v6847 = vshll.u32 2102212464, %v6835
    %v6848 = vshrl.u32 920167782, %v6836
    %v6849 = vor.u32 %v6847, %v6848
    %v6850 = vshll.u32 920167782, %v6835
    %v6851 = vshrl.u32 1326507024, %v6836
    %v6852 = vor.u32 %v6850, %v6851
    %vm6853 = vcmp.lt.s32.totalorder %v6834, 1
    %vm6854 = vcmp.lt.s32.totalorder %v6834, 2
    %vm6855 = vcmp.lt.s32.totalorder %v6834, 3
    %vm6856 = vcmp.lt.s32.totalorder %v6834, 4
    %v6857 = vsel %vm6853, %v6837, %v6840
    %v6858 = vsel %vm6856, %v6846, 2102212464
    %v6859 = vsel %vm6855, %v6843, %v6858
    %v6860 = vsel %vm6854, %v6857, %v6859
    %v6861 = vsel %vm6853, %v6840, %v6843
    %v6862 = vsel %vm6856, %v6849, 920167782
    %v6863 = vsel %vm6855, %v6846, %v6862
    %v6864 = vsel %vm6854, %v6861, %v6863
    %v6865 = vsel %vm6853, %v6843, %v6846
    %v6866 = vsel %vm6856, %v6852, 1326507024
    %v6867 = vsel %vm6855, %v6849, %v6866
    %v6868 = vsel %vm6854, %v6865, %v6867
    %v6869 = vshll.u32 %v6829, 8
    %v6870 = vmul.u32.u64.compose %v6869, %v6868
    %v6871 = vextract.low.u32 %v6870
    %v6872 = vextract.high.u32 %v6870
    %v6873 = vmul.u32.u64.compose %v6869, %v6864
    %v6874 = vextract.low.u32 %v6873
    %v6875 = vextract.high.u32 %v6873
    %v6876 = vmul.u32 %v6869, %v6860
    %v6877 = vadd.s32 %v6872, %v6874
    %vm6878 = vc.u32 %v6872, %v6874
    %v6879 = vadd.s32 %v6875, 1
    %v6880 = vsel %vm6878, %v6879, %v6875
    %v6881 = vadd.s32 %v6876, %v6880
    %v6882 = vadd.s32 %v6881, 536870912
    %v6883 = vshrl.u32 %v6882, 30
    %v6884 = vshll.u32 %v6883, 30
    %v6885 = vsub.s32 %v6881, %v6884
    %vm6886 = vcmp.lt.s32.totalorder %v6885, 0
    %v6887 = vsub.s32 0, %v6885
    %v6888 = vsel %vm6886, %v6887, %v6885
    %v6889 = vclz %v6888
    %v6890 = vsub.s32 %v6889, 2
    %vm6891 = vcmp.gt.s32.totalorder 0, %v6890
    %v6892 = vsel %vm6891, 0, %v6890
    %v6893 = vsub.s32 32, %v6892
    %v6894 = vshll.u32 %v6885, %v6892
    %v6895 = vshrl.u32 %v6877, %v6893
    %v6896 = vor.u32 %v6894, %v6895
    %v6897 = vsub.s32 4294967266, %v6892
    %v6898 = vadd.s32 %v6897, 127
    %v6899 = vshll.u32 %v6898, 23
    %v6900 = vor.u32 4788187, %v6899
    %v6901 = vand.u32 2147483647, %v6900
    %v6903 = vcvt.s32.f32 %v6896
    %v6904 = vmul.f32 %v6903, %v6901
    %v6905 = vxor.u32 %v6904, 2147483648
    %v6906 = vsel %vm6823, %v6905, %v6904
    %v6907 = vsub.s32 4, %v6883
    %v6908 = vsel %vm6823, %v6907, %v6883
    %v6909 = vsel %vm6822, %v363, %v6906
    %v6910 = vsel %vm6822, 0, %v6908
    %v6911 = vcosq.f32.pop %v6909
    %v6912 = vsinq.f32.pop %v6909
    %vm6913 = vweird.f32 %v363
    %v6914 = vand.u32 %v6910, 3
    %vm6915 = vcmp.lt.s32.totalorder %v6914, 2
    %vm6916 = vcmp.eq.s32.totalorder %v6914, 0
    %v6917 = vxor.u32 %v6912, 2147483648
    %v6918 = vsel %vm6916, %v6911, %v6917
    %vm6919 = vcmp.eq.s32.totalorder %v6914, 2
    %v6920 = vxor.u32 %v6911, 2147483648
    %v6921 = vsel %vm6919, %v6920, %v6912
    %v6922 = vsel %vm6915, %v6918, %v6921
    %v6923 = vsel %vm6913, nan, %v6922
    %v6924 = vand.u32 2147483647, %v368
    %vm6925 = vcmp.le.f32.partialorder %v6924, 0.7853982
    %vm6926 = vcmp.lt.s32.totalorder %v368, 0
    %v6927 = vand.u32 %v368, 2139095040
    %v6928 = vshrl.u32 %v6927, 23
    %v6929 = vsub.s32 %v6928, 127
    %v6930 = vand.u32 2147483647, %v368
    %v6931 = vand.u32 %v6930, 8388607
    %v6932 = vor.u32 %v6931, 8388608
    %v6933 = vsub.s32 0, %v6932
    %v6934 = vadd.s32 %v6929, 1
    %vm6935 = vcmp.gt.s32.totalorder %v6934, 0
    %v6936 = vsel %vm6935, %v6934, 0
    %v6937 = vshrl.u32 %v6936, 5
    %v6938 = vand.u32 %v6936, 31
    %v6939 = vsub.s32 32, %v6938
    %v6940 = vshrl.u32 683565275, %v6939
    %v6941 = vshll.u32 683565275, %v6938
    %v6942 = vshrl.u32 2475754826, %v6939
    %v6943 = vor.u32 %v6941, %v6942
    %v6944 = vshll.u32 2475754826, %v6938
    %v6945 = vshrl.u32 2131351028, %v6939
    %v6946 = vor.u32 %v6944, %v6945
    %v6947 = vshll.u32 2131351028, %v6938
    %v6948 = vshrl.u32 2102212464, %v6939
    %v6949 = vor.u32 %v6947, %v6948
    %v6950 = vshll.u32 2102212464, %v6938
    %v6951 = vshrl.u32 920167782, %v6939
    %v6952 = vor.u32 %v6950, %v6951
    %v6953 = vshll.u32 920167782, %v6938
    %v6954 = vshrl.u32 1326507024, %v6939
    %v6955 = vor.u32 %v6953, %v6954
    %vm6956 = vcmp.lt.s32.totalorder %v6937, 1
    %vm6957 = vcmp.lt.s32.totalorder %v6937, 2
    %vm6958 = vcmp.lt.s32.totalorder %v6937, 3
    %vm6959 = vcmp.lt.s32.totalorder %v6937, 4
    %v6960 = vsel %vm6956, %v6940, %v6943
    %v6961 = vsel %vm6959, %v6949, 2102212464
    %v6962 = vsel %vm6958, %v6946, %v6961
    %v6963 = vsel %vm6957, %v6960, %v6962
    %v6964 = vsel %vm6956, %v6943, %v6946
    %v6965 = vsel %vm6959, %v6952, 920167782
    %v6966 = vsel %vm6958, %v6949, %v6965
    %v6967 = vsel %vm6957, %v6964, %v6966
    %v6968 = vsel %vm6956, %v6946, %v6949
    %v6969 = vsel %vm6959, %v6955, 1326507024
    %v6970 = vsel %vm6958, %v6952, %v6969
    %v6971 = vsel %vm6957, %v6968, %v6970
    %v6972 = vshll.u32 %v6932, 8
    %v6973 = vmul.u32.u64.compose %v6972, %v6971
    %v6974 = vextract.low.u32 %v6973
    %v6975 = vextract.high.u32 %v6973
    %v6976 = vmul.u32.u64.compose %v6972, %v6967
    %v6977 = vextract.low.u32 %v6976
    %v6978 = vextract.high.u32 %v6976
    %v6979 = vmul.u32 %v6972, %v6963
    %v6980 = vadd.s32 %v6975, %v6977
    %vm6981 = vc.u32 %v6975, %v6977
    %v6982 = vadd.s32 %v6978, 1
    %v6983 = vsel %vm6981, %v6982, %v6978
    %v6984 = vadd.s32 %v6979, %v6983
    %v6985 = vadd.s32 %v6984, 536870912
    %v6986 = vshrl.u32 %v6985, 30
    %v6987 = vshll.u32 %v6986, 30
    %v6988 = vsub.s32 %v6984, %v6987
    %vm6989 = vcmp.lt.s32.totalorder %v6988, 0
    %v6990 = vsub.s32 0, %v6988
    %v6991 = vsel %vm6989, %v6990, %v6988
    %v6992 = vclz %v6991
    %v6993 = vsub.s32 %v6992, 2
    %vm6994 = vcmp.gt.s32.totalorder 0, %v6993
    %v6995 = vsel %vm6994, 0, %v6993
    %v6996 = vsub.s32 32, %v6995
    %v6997 = vshll.u32 %v6988, %v6995
    %v6998 = vshrl.u32 %v6980, %v6996
    %v6999 = vor.u32 %v6997, %v6998
    %v7000 = vsub.s32 4294967266, %v6995
    %v7001 = vadd.s32 %v7000, 127
    %v7002 = vshll.u32 %v7001, 23
    %v7003 = vor.u32 4788187, %v7002
    %v7004 = vand.u32 2147483647, %v7003
    %v7006 = vcvt.s32.f32 %v6999
    %v7007 = vmul.f32 %v7006, %v7004
    %v7008 = vxor.u32 %v7007, 2147483648
    %v7009 = vsel %vm6926, %v7008, %v7007
    %v7010 = vsub.s32 4, %v6986
    %v7011 = vsel %vm6926, %v7010, %v6986
    %v7012 = vsel %vm6925, %v368, %v7009
    %v7013 = vsel %vm6925, 0, %v7011
    %v7014 = vcosq.f32.pop %v7012
    %v7015 = vsinq.f32.pop %v7012
    %vm7016 = vweird.f32 %v368
    %v7017 = vand.u32 %v7013, 3
    %vm7018 = vcmp.lt.s32.totalorder %v7017, 2
    %vm7019 = vcmp.eq.s32.totalorder %v7017, 0
    %v7020 = vxor.u32 %v7015, 2147483648
    %v7021 = vsel %vm7019, %v7014, %v7020
    %vm7022 = vcmp.eq.s32.totalorder %v7017, 2
    %v7023 = vxor.u32 %v7014, 2147483648
    %v7024 = vsel %vm7022, %v7023, %v7015
    %v7025 = vsel %vm7018, %v7021, %v7024
    %v7026 = vsel %vm7016, nan, %v7025
    %7027 = vst [vmem:[#allocation2 + $0x8] sm:$0xff] %v3833
    %7028 = vst [vmem:[#allocation2 + $0x18] sm:$0xff] %v3936
    %7029 = vst [vmem:[#allocation2 + $0x28] sm:$0xff] %v4039
    %7030 = vst [vmem:[#allocation2 + $0x38] sm:$0xff] %v4142
    %7031 = vst [vmem:[#allocation2 + $0x48] sm:$0xff] %v4245
    %7032 = vst [vmem:[#allocation2 + $0x58] sm:$0xff] %v4348
    %7033 = vst [vmem:[#allocation2 + $0x68] sm:$0xff] %v4451
    %7034 = vst [vmem:[#allocation2 + $0x78] sm:$0xff] %v4554
    %7035 = vst [vmem:[#allocation2 + $0x88] sm:$0xff] %v4657
    %7036 = vst [vmem:[#allocation2 + $0x98] sm:$0xff] %v4760
    %7037 = vst [vmem:[#allocation2 + $0xa8] sm:$0xff] %v4863
    %7038 = vst [vmem:[#allocation2 + $0xb8] sm:$0xff] %v4966
    %7039 = vst [vmem:[#allocation2 + $0xc8] sm:$0xff] %v5069
    %7040 = vst [vmem:[#allocation2 + $0xd8] sm:$0xff] %v5172
    %7041 = vst [vmem:[#allocation2 + $0xe8] sm:$0xff] %v5275
    %7042 = vst [vmem:[#allocation2 + $0xf8] sm:$0xff] %v5378
    %7043 = vst [vmem:[#allocation2 + $0x108] sm:$0xff] %v5481
    %7044 = vst [vmem:[#allocation2 + $0x118] sm:$0xff] %v5584
    %7045 = vst [vmem:[#allocation2 + $0x128] sm:$0xff] %v5687
    %7046 = vst [vmem:[#allocation2 + $0x138] sm:$0xff] %v5790
    %7047 = vst [vmem:[#allocation2 + $0x148] sm:$0xff] %v5893
    %7048 = vst [vmem:[#allocation2 + $0x158] sm:$0xff] %v5996
    %7049 = vst [vmem:[#allocation2 + $0x168] sm:$0xff] %v6099
    %7050 = vst [vmem:[#allocation2 + $0x178] sm:$0xff] %v6202
    %7051 = vst [vmem:[#allocation2 + $0x188] sm:$0xff] %v6305
    %7052 = vst [vmem:[#allocation2 + $0x198] sm:$0xff] %v6408
    %7053 = vst [vmem:[#allocation2 + $0x1a8] sm:$0xff] %v6511
    %7054 = vst [vmem:[#allocation2 + $0x1b8] sm:$0xff] %v6614
    %7055 = vst [vmem:[#allocation2 + $0x1c8] sm:$0xff] %v6717
    %7056 = vst [vmem:[#allocation2 + $0x1d8] sm:$0xff] %v6820
    %7057 = vst [vmem:[#allocation2 + $0x1e8] sm:$0xff] %v6923
    %7058 = vst [vmem:[#allocation2 + $0x1f8] sm:$0xff] %v7026
    // Predicated region
    $region10: #{tpu_custom_call.1} parent=1 // pred_check
      _
    $region11: #{tpu_custom_call.1} parent=1 // pred_check_branch
      %7060 = sbr.rel (0) target = $region13
    $region12: #{tpu_custom_call.1} parent=1 // pred_region
      %s7062 = ssub.s32 8192, 8192
      %7063 = vsyncadd [#allocation3], %s7062
      %s7064 = sshll.u32 [#allocation2], 4
      %s7065 = int_to_ptr.vmem [resolvable:$true] %s7064
      %7070 = dma.vmem_to_hbm [thread:$0]  %s7065, 8192, %s2, [#allocation3], 256, 256, 16
    $region13: #{tpu_custom_call.1} parent=1 // pred_fallthru
      _
    // Predicated region
    $region14: #{tpu_custom_call.1} parent=1 // pred_check
      _
    $region15: #{tpu_custom_call.1} parent=1 // pred_check_branch
      %7072 = sbr.rel (0) target = $region17
    $region16: #{tpu_custom_call.1} parent=1 // pred_region
      %7073 = dma.done [#allocation3], 8192
    $region17: #{tpu_custom_call.1} parent=1 // pred_fallthru
      _
    %7074 = vsyncpa [#allocation3], 1

</llo_original>
